<compile_context>
chip_gen: v5e
topology: v5e:2x2
jax: 0.10.0
libtpu: 0.0.40
codegen_flags: <defaults>
</compile_context>

<pallas_src>
import jax
import jax.numpy as jnp
from jax.experimental import pallas as pl
from jax.experimental.pallas import tpu as pltpu

DEPTHS = [2, 3, 4]
EXPAND_RATIOS = [3, 4, 6]
KERNEL_SIZES = [3, 5, 7]
N_UNITS = 5
MAX_DEPTH = max(DEPTHS)                      # inner loop trip count = 4
HIDDEN = 64
CONSTRAINT_LIST = [10.0, 12.5, 15.0, 17.5, 20.0]
N_SUPERCLASS = 20

GATE_COLS = 4 * HIDDEN                       # 256 gate columns (i | f | g | o)
HEAD_COLS = 6                                # 2 logits per head x 3 heads
FUSED_COLS = GATE_COLS + 128                 # lane-pad fused width to 384

# Packed input-table row layout.
X0_ROW = 0                                   # row 0      : x0 @ W_ih^T + b
DPROJ_ROW = 1                                # rows 1..3  : depth-emb projections
RPROJ_ROW = 4                                # rows 4..6  : ratio-emb projections
KPROJ_ROW = 7                                # rows 7..9  : ks-emb projections
BIAS_ROW = 10                                # row 10     : [0(256) | head_b(6) | 0]
N_TABLE_ROWS = 11

# Packed output row layout (single (45, 3) buffer).
DEPTH_BASE = 0                               # rows 0..4
RATIO_BASE = N_UNITS                         # rows 5..24
KS_BASE = N_UNITS + N_UNITS * MAX_DEPTH      # rows 25..44
N_OUT_ROWS = N_UNITS + 2 * N_UNITS * MAX_DEPTH   # 45


def _controller_kernel(table_ref, w_ref, out_ref):
    H = HIDDEN

    # Column 0 of every cum-indicator row is the leading cumprod "1": write it
    # (and the rest of the buffer) once; per step only cols 1:3 are updated.
    out_ref[...] = jnp.ones_like(out_ref)

    # Loop-invariant operands: hoist once before the unrolled 45-step chain.
    w = w_ref[...]                                        # (64, 384)
    bias = table_ref[BIAS_ROW:BIAS_ROW + 1, :]            # (1, 384)

    def lstm_step(xproj, prev, h, c):
        # xproj = embed @ W_ih^T + (b_ih + b_hh); prev[:, :256] = h_prev @ W_hh.
        # The g-gate columns of both are pre-scaled by 2 in the wrapper, so a
        # single sigmoid over the whole gate row covers i/f/o AND g (via
        # tanh(x) = 2*sigmoid(2x) - 1): one EUP push per step instead of three.
        gates = xproj + prev[:, 0:GATE_COLS]              # (1, 256)
        s = jax.nn.sigmoid(gates)
        i = s[:, 0:H]
        f = s[:, H:2 * H]
        g = 2.0 * s[:, 2 * H:3 * H] - 1.0                 # == tanh(original g)
        o = s[:, 3 * H:4 * H]
        c_new = f * c + i * g
        h_new = o * jnp.tanh(c_new)
        # Fused recurrent + head matmul: cols 0:256 feed the NEXT step's gates,
        # cols 256:262 are the six head logits for THIS step (head bias folded
        # in via the bias row).  One MXU round trip per step instead of two.
        prev_new = jnp.dot(h_new, w, preferred_element_type=jnp.float32) + bias
        return prev_new, h_new, c_new

    def decide(prev, col0, trow):
        # Two head logits for this decision type (eval-mode bernoulli test:
        # sigmoid(l) > 0.5  <=>  l > 0, mathematically exact).
        l2 = prev[:, GATE_COLS + col0:GATE_COLS + col0 + 2]       # (1, 2)
        ge = (l2 > 0.0).astype(jnp.float32)                       # [r0, r1]
        cum12 = ge * ge[:, 0:1]                                   # [r0, r0*r1]
        r0 = l2[:, 0:1] > 0.0
        r1 = l2[:, 1:2] > 0.0
        # Next-step input projection: pure VPU lane-select on the precomputed
        # (3, 256) table rows -- no iota / one-hot / cross-sublane reduction.
        t0 = table_ref[trow + 0:trow + 1, 0:GATE_COLS]
        t1 = table_ref[trow + 1:trow + 2, 0:GATE_COLS]
        t2 = table_ref[trow + 2:trow + 3, 0:GATE_COLS]
        xproj_next = jnp.where(r0, jnp.where(r1, t2, t1), t0)     # (1, 256)
        return cum12, xproj_next

    h = jnp.zeros((1, H), jnp.float32)
    c = jnp.zeros((1, H), jnp.float32)
    xproj = table_ref[X0_ROW:X0_ROW + 1, 0:GATE_COLS]             # (1, 256)
    prev = bias                           # h0 == 0 -> recurrent term is zero

    for u in range(N_UNITS):
        # depth decision (head logit cols 256:258)
        prev, h, c = lstm_step(xproj, prev, h, c)
        cum12, xproj = decide(prev, 0, DPROJ_ROW)
        out_ref[DEPTH_BASE + u:DEPTH_BASE + u + 1, 1:3] = cum12

        for blk in range(MAX_DEPTH):
            r = u * MAX_DEPTH + blk
            # expand-ratio decision (head logit cols 258:260)
            prev, h, c = lstm_step(xproj, prev, h, c)
            cum12, xproj = decide(prev, 2, RPROJ_ROW)
            out_ref[RATIO_BASE + r:RATIO_BASE + r + 1, 1:3] = cum12

            # kernel-size decision (head logit cols 260:262)
            prev, h, c = lstm_step(xproj, prev, h, c)
            cum12, xproj = decide(prev, 4, KPROJ_ROW)
            out_ref[KS_BASE + r:KS_BASE + r + 1, 1:3] = cum12


def init_params(key, init_range=0.1):
    H = HIDDEN
    ks = jax.random.split(key, 15)
    u = lambda k, shape: jax.random.uniform(k, shape, jnp.float32,
                                            -init_range, init_range)
    return dict(
        superclass_emb=u(ks[0], (N_SUPERCLASS, H // 2)),
        condition_emb=u(ks[1], (len(CONSTRAINT_LIST), H // 2)),
        depth_emb=u(ks[2], (len(DEPTHS), H)),
        ratio_emb=u(ks[3], (len(EXPAND_RATIOS), H)),
        ks_emb=u(ks[4], (len(KERNEL_SIZES), H)),
        w_ih=u(ks[5], (4 * H, H)),
        w_hh=u(ks[6], (4 * H, H)),
        b_ih=u(ks[7], (4 * H,)),
        b_hh=u(ks[8], (4 * H,)),
        depth_w=u(ks[9], (len(DEPTHS) - 1, H)),
        depth_b=u(ks[10], (len(DEPTHS) - 1,)),
        width_w=u(ks[11], (len(EXPAND_RATIOS) - 1, H)),
        width_b=u(ks[12], (len(EXPAND_RATIOS) - 1,)),
        ks_w=u(ks[13], (len(KERNEL_SIZES) - 1, H)),
        ks_b=u(ks[14], (len(KERNEL_SIZES) - 1,)),
    )


def prepare_controller(params):
    """Constraint-independent precompute; call ONCE per params and cache."""
    H = HIDDEN
    pad = FUSED_COLS - GATE_COLS

    # Pre-scale the g-gate columns by 2 so the kernel needs a single sigmoid
    # over the whole gate row (tanh(x) = 2*sigmoid(2x) - 1).
    scale = jnp.ones((GATE_COLS,), jnp.float32).at[2 * H:3 * H].set(2.0)
    wih_t = params["w_ih"].T * scale[None, :]                    # (64, 256)
    whh_t = params["w_hh"].T * scale[None, :]                    # (64, 256)
    b = ((params["b_ih"] + params["b_hh"]) * scale)[None, :]     # (1, 256)

    def proj(emb):  # embed @ W_ih^T + b, lane-padded to FUSED_COLS
        p = emb @ wih_t + b
        return jnp.pad(p, ((0, 0), (0, pad)))

    dproj = proj(params["depth_emb"])                            # (3, 384)
    rproj = proj(params["ratio_emb"])                            # (3, 384)
    kproj = proj(params["ks_emb"])                               # (3, 384)

    # Fused weight: [W_hh (g-scaled) | depth_w^T | width_w^T | ks_w^T | 0-pad].
    w_fused = jnp.zeros((H, FUSED_COLS), jnp.float32)
    w_fused = w_fused.at[:, 0:GATE_COLS].set(whh_t)
    w_fused = w_fused.at[:, GATE_COLS + 0:GATE_COLS + 2].set(params["depth_w"].T)
    w_fused = w_fused.at[:, GATE_COLS + 2:GATE_COLS + 4].set(params["width_w"].T)
    w_fused = w_fused.at[:, GATE_COLS + 4:GATE_COLS + 6].set(params["ks_w"].T)

    bias_row = jnp.zeros((1, FUSED_COLS), jnp.float32)
    bias_row = bias_row.at[:, GATE_COLS + 0:GATE_COLS + 2].set(params["depth_b"][None, :])
    bias_row = bias_row.at[:, GATE_COLS + 2:GATE_COLS + 4].set(params["width_b"][None, :])
    bias_row = bias_row.at[:, GATE_COLS + 4:GATE_COLS + 6].set(params["ks_b"][None, :])

    static_rows = jnp.concatenate([dproj, rproj, kproj, bias_row], axis=0)  # (10, 384)

    return dict(
        w_fused=w_fused,
        static_rows=static_rows,
        wih_t_s=wih_t,
        b_s=b,
        condition_emb=params["condition_emb"],
        superclass_emb=params["superclass_emb"],
    )


def linear_interpolation(condition_emb, constraints):
    clist = jnp.asarray(CONSTRAINT_LIST, jnp.float32)
    i = jnp.clip(jnp.searchsorted(clist, constraints, side="left") - 1,
                 0, len(CONSTRAINT_LIST) - 2)
    left, right = clist[i], clist[i + 1]
    w = ((right - constraints) / (right - left))[:, None]
    return w * condition_emb[i] + (1.0 - w) * condition_emb[i + 1]


@jax.jit
def controller_forward(prepared, constraints, superclass_id):
    # The torch module is batch_size=1 (it calls .item() per decision).
    if constraints.shape != (1,):
        raise ValueError("controller_forward supports batch size 1 only, "
                         f"got constraints shape {constraints.shape}")
    H = HIDDEN

    # (1, 64) LSTM input = [interp(constraint) || superclass embedding].
    cond = linear_interpolation(prepared["condition_emb"], constraints)   # (1, 32)
    sc = prepared["superclass_emb"][superclass_id][None, :]
    sc = jnp.broadcast_to(sc, (1, H // 2))
    x0 = jnp.concatenate([cond, sc], axis=1).astype(jnp.float32)          # (1, 64)

    # Fold x0 @ W_ih^T + b off the kernel's critical path; pack everything
    # dynamic into ONE (11, 384) table (single input DMA besides the weight).
    x0_proj = x0 @ prepared["wih_t_s"] + prepared["b_s"]                  # (1, 256)
    x0_row = jnp.pad(x0_proj, ((0, 0), (0, FUSED_COLS - GATE_COLS)))      # (1, 384)
    table = jnp.concatenate([x0_row, prepared["static_rows"]], axis=0)    # (11, 384)

    vmem = pl.BlockSpec(memory_space=pltpu.MemorySpace.VMEM)
    cum = pl.pallas_call(
        _controller_kernel,
        out_shape=jax.ShapeDtypeStruct((N_OUT_ROWS, 3), jnp.float32),
        in_specs=[vmem, vmem],
        out_specs=vmem,
    )(table, prepared["w_fused"])

    depth_cum = cum[DEPTH_BASE:DEPTH_BASE + N_UNITS]                      # (5, 3)
    ratio_cum = cum[RATIO_BASE:RATIO_BASE + N_UNITS * MAX_DEPTH]          # (20, 3)
    ks_cum = cum[KS_BASE:KS_BASE + N_UNITS * MAX_DEPTH]                   # (20, 3)

    depth_idx = (jnp.sum(depth_cum, axis=1) - 1.0).astype(jnp.int32)
    ratio_idx = (jnp.sum(ratio_cum, axis=1) - 1.0).astype(jnp.int32)
    ks_idx = (jnp.sum(ks_cum, axis=1) - 1.0).astype(jnp.int32)

    depths = jnp.take(jnp.asarray(DEPTHS, jnp.int32), depth_idx)
    ratios = jnp.take(jnp.asarray(EXPAND_RATIOS, jnp.int32), ratio_idx)
    kernel_sizes = jnp.take(jnp.asarray(KERNEL_SIZES, jnp.int32), ks_idx)

    return (depths, ratios, kernel_sizes,
            depth_cum,                                                    # (5, 3)
            ratio_cum.reshape(N_UNITS, MAX_DEPTH, len(EXPAND_RATIOS)),    # (5, 4, 3)
            ks_cum.reshape(N_UNITS, MAX_DEPTH, len(KERNEL_SIZES)))        # (5, 4, 3)


if __name__ == "__main__":
    key = jax.random.PRNGKey(0)
    params = init_params(key)
    prepared = prepare_controller(params)        # cache per params

    # batch = 1 constraint (the torch module uses .item(), i.e. batch_size=1)
    constraints = jnp.array([12.0], dtype=jnp.float32)
    superclass_id = jnp.int32(3)

    out = controller_forward(prepared, constraints, superclass_id)
    out = jax.block_until_ready(out)

    depths, ratios, kernel_sizes = out[0], out[1], out[2]
    depth_cum, ratio_cum, ks_cum = out[3], out[4], out[5]
    assert depths.shape == (N_UNITS,)
    assert ratios.shape == (N_UNITS * MAX_DEPTH,)
    assert kernel_sizes.shape == (N_UNITS * MAX_DEPTH,)
    assert depth_cum.shape == (N_UNITS, len(DEPTHS))
    assert ratio_cum.shape == (N_UNITS, MAX_DEPTH, len(EXPAND_RATIOS))
    assert ks_cum.shape == (N_UNITS, MAX_DEPTH, len(KERNEL_SIZES))
    # all cum rows start with the leading 1 and are non-increasing {0,1} flags
    assert bool(jnp.all(depth_cum[:, 0] == 1.0))
    print("KERNEL_OK")
</pallas_src>

<mosaic_0001>
module attributes {stable_mosaic.version = 11 : i64} {
  func.func @_controller_kernel(%arg0: memref<11x384xf32, #tpu.memory_space<vmem>>, %arg1: memref<64x384xf32, #tpu.memory_space<vmem>>, %arg2: memref<45x3xf32, #tpu.memory_space<vmem>>) attributes {dimension_semantics = [], scalar_prefetch = 0 : i64, scratch_operands = 0 : i64, tpu.core_type = #tpu.core_type<tc>} {
    %cst = arith.constant 1.000000e+00 : f32
    %0 = vector.broadcast %cst : f32 to vector<45x3xf32>
    %c0 = arith.constant 0 : index
    %c0_0 = arith.constant 0 : index
    %1 = vector.load %arg2[%c0, %c0_0] : memref<45x3xf32, #tpu.memory_space<vmem>>, vector<45x3xf32>
    tpu.vector_store %arg2[%c0, %c0_0], %0 {strides = array<i32>} : memref<45x3xf32, #tpu.memory_space<vmem>>, vector<45x3xf32>,
    %c0_1 = arith.constant 0 : index
    %c0_2 = arith.constant 0 : index
    %2 = vector.load %arg1[%c0_1, %c0_2] : memref<64x384xf32, #tpu.memory_space<vmem>>, vector<64x384xf32>
    %c10 = arith.constant 10 : index
    %c0_3 = arith.constant 0 : index
    %3 = vector.load %arg0[%c10, %c0_3] : memref<11x384xf32, #tpu.memory_space<vmem>>, vector<1x384xf32>
    %cst_4 = arith.constant 0.000000e+00 : f32
    %4 = vector.broadcast %cst_4 : f32 to vector<1x64xf32>
    %c0_5 = arith.constant 0 : index
    %c0_6 = arith.constant 0 : index
    %5 = vector.load %arg0[%c0_5, %c0_6] : memref<11x384xf32, #tpu.memory_space<vmem>>, vector<1x256xf32>
    %6 = vector.extract_strided_slice %3 {offsets = [0, 0], sizes = [1, 256], strides = [1, 1]} : vector<1x384xf32> to vector<1x256xf32>
    %7 = arith.addf %5, %6 : vector<1x256xf32>
    %8 = arith.negf %7 : vector<1x256xf32>
    %9 = math.exp %8 : vector<1x256xf32>
    %cst_7 = arith.constant 1.000000e+00 : f32
    %10 = vector.broadcast %cst_7 : f32 to vector<1x256xf32>
    %11 = arith.addf %10, %9 : vector<1x256xf32>
    %12 = arith.divf %10, %11 : vector<1x256xf32>
    %13 = vector.extract_strided_slice %12 {offsets = [0, 0], sizes = [1, 64], strides = [1, 1]} : vector<1x256xf32> to vector<1x64xf32>
    %14 = vector.extract_strided_slice %12 {offsets = [0, 64], sizes = [1, 64], strides = [1, 1]} : vector<1x256xf32> to vector<1x64xf32>
    %15 = vector.extract_strided_slice %12 {offsets = [0, 128], sizes = [1, 64], strides = [1, 1]} : vector<1x256xf32> to vector<1x64xf32>
    %cst_8 = arith.constant 2.000000e+00 : f32
    %16 = vector.broadcast %cst_8 : f32 to vector<1x64xf32>
    %17 = arith.mulf %16, %15 : vector<1x64xf32>
    %cst_9 = arith.constant 1.000000e+00 : f32
    %18 = vector.broadcast %cst_9 : f32 to vector<1x64xf32>
    %19 = arith.subf %17, %18 : vector<1x64xf32>
    %20 = vector.extract_strided_slice %12 {offsets = [0, 192], sizes = [1, 64], strides = [1, 1]} : vector<1x256xf32> to vector<1x64xf32>
    %21 = arith.mulf %14, %4 : vector<1x64xf32>
    %22 = arith.mulf %13, %19 : vector<1x64xf32>
    %23 = arith.addf %21, %22 : vector<1x64xf32>
    %24 = math.tanh %23 : vector<1x64xf32>
    %25 = arith.mulf %20, %24 : vector<1x64xf32>
    %cst_10 = arith.constant dense<0.000000e+00> : vector<1x384xf32>
    %26 = tpu.matmul %25, %2, %cst_10 {dimension_numbers = #tpu.dot_dimension_numbers<[1], [0], [0], [1], [0, 0, 1, 1], [], []>} : vector<1x64xf32>, vector<64x384xf32>, vector<1x384xf32> -> vector<1x384xf32>
    %27 = arith.addf %26, %3 : vector<1x384xf32>
    %28 = vector.extract_strided_slice %27 {offsets = [0, 256], sizes = [1, 2], strides = [1, 1]} : vector<1x384xf32> to vector<1x2xf32>
    %cst_11 = arith.constant 0.000000e+00 : f32
    %29 = vector.broadcast %cst_11 : f32 to vector<1x2xf32>
    %30 = arith.cmpf ogt, %28, %29 : vector<1x2xf32>
    %31 = arith.extui %30 : vector<1x2xi1> to vector<1x2xi32>
    %32 = arith.sitofp %31 : vector<1x2xi32> to vector<1x2xf32>
    %33 = vector.extract_strided_slice %32 {offsets = [0, 0], sizes = [1, 1], strides = [1, 1]} : vector<1x2xf32> to vector<1x1xf32>
    %34 = vector.broadcast %33 : vector<1x1xf32> to vector<1x2xf32>
    %35 = arith.mulf %32, %34 : vector<1x2xf32>
    %36 = vector.extract_strided_slice %28 {offsets = [0, 0], sizes = [1, 1], strides = [1, 1]} : vector<1x2xf32> to vector<1x1xf32>
    %cst_12 = arith.constant 0.000000e+00 : f32
    %37 = vector.broadcast %cst_12 : f32 to vector<1x1xf32>
    %38 = arith.cmpf ogt, %36, %37 : vector<1x1xf32>
    %39 = vector.extract_strided_slice %28 {offsets = [0, 1], sizes = [1, 1], strides = [1, 1]} : vector<1x2xf32> to vector<1x1xf32>
    %cst_13 = arith.constant 0.000000e+00 : f32
    %40 = vector.broadcast %cst_13 : f32 to vector<1x1xf32>
    %41 = arith.cmpf ogt, %39, %40 : vector<1x1xf32>
    %c1 = arith.constant 1 : index
    %c0_14 = arith.constant 0 : index
    %42 = vector.load %arg0[%c1, %c0_14] : memref<11x384xf32, #tpu.memory_space<vmem>>, vector<1x256xf32>
    %c2 = arith.constant 2 : index
    %c0_15 = arith.constant 0 : index
    %43 = vector.load %arg0[%c2, %c0_15] : memref<11x384xf32, #tpu.memory_space<vmem>>, vector<1x256xf32>
    %c3 = arith.constant 3 : index
    %c0_16 = arith.constant 0 : index
    %44 = vector.load %arg0[%c3, %c0_16] : memref<11x384xf32, #tpu.memory_space<vmem>>, vector<1x256xf32>
    %45 = vector.shape_cast %41 : vector<1x1xi1> to vector<1x1xi1>
    %46 = vector.broadcast %45 : vector<1x1xi1> to vector<1x256xi1>
    %47 = arith.select %46, %44, %43 : vector<1x256xi1>, vector<1x256xf32>
    %48 = vector.shape_cast %38 : vector<1x1xi1> to vector<1x1xi1>
    %49 = vector.broadcast %48 : vector<1x1xi1> to vector<1x256xi1>
    %50 = arith.select %49, %47, %42 : vector<1x256xi1>, vector<1x256xf32>
    %c0_17 = arith.constant 0 : index
    %c1_18 = arith.constant 1 : index
    %51 = vector.load %arg2[%c0_17, %c1_18] : memref<45x3xf32, #tpu.memory_space<vmem>>, vector<1x2xf32>
    tpu.vector_store %arg2[%c0_17, %c1_18], %35 {strides = array<i32>} : memref<45x3xf32, #tpu.memory_space<vmem>>, vector<1x2xf32>,
    %52 = vector.extract_strided_slice %27 {offsets = [0, 0], sizes = [1, 256], strides = [1, 1]} : vector<1x384xf32> to vector<1x256xf32>
    %53 = arith.addf %50, %52 : vector<1x256xf32>
    %54 = arith.negf %53 : vector<1x256xf32>
    %55 = math.exp %54 : vector<1x256xf32>
    %cst_19 = arith.constant 1.000000e+00 : f32
    %56 = vector.broadcast %cst_19 : f32 to vector<1x256xf32>
    %57 = arith.addf %56, %55 : vector<1x256xf32>
    %58 = arith.divf %56, %57 : vector<1x256xf32>
    %59 = vector.extract_strided_slice %58 {offsets = [0, 0], sizes = [1, 64], strides = [1, 1]} : vector<1x256xf32> to vector<1x64xf32>
    %60 = vector.extract_strided_slice %58 {offsets = [0, 64], sizes = [1, 64], strides = [1, 1]} : vector<1x256xf32> to vector<1x64xf32>
    %61 = vector.extract_strided_slice %58 {offsets = [0, 128], sizes = [1, 64], strides = [1, 1]} : vector<1x256xf32> to vector<1x64xf32>
    %cst_20 = arith.constant 2.000000e+00 : f32
    %62 = vector.broadcast %cst_20 : f32 to vector<1x64xf32>
    %63 = arith.mulf %62, %61 : vector<1x64xf32>
    %cst_21 = arith.constant 1.000000e+00 : f32
    %64 = vector.broadcast %cst_21 : f32 to vector<1x64xf32>
    %65 = arith.subf %63, %64 : vector<1x64xf32>
    %66 = vector.extract_strided_slice %58 {offsets = [0, 192], sizes = [1, 64], strides = [1, 1]} : vector<1x256xf32> to vector<1x64xf32>
    %67 = arith.mulf %60, %23 : vector<1x64xf32>
    %68 = arith.mulf %59, %65 : vector<1x64xf32>
    %69 = arith.addf %67, %68 : vector<1x64xf32>
    %70 = math.tanh %69 : vector<1x64xf32>
    %71 = arith.mulf %66, %70 : vector<1x64xf32>
    %cst_22 = arith.constant dense<0.000000e+00> : vector<1x384xf32>
    %72 = tpu.matmul %71, %2, %cst_22 {dimension_numbers = #tpu.dot_dimension_numbers<[1], [0], [0], [1], [0, 0, 1, 1], [], []>} : vector<1x64xf32>, vector<64x384xf32>, vector<1x384xf32> -> vector<1x384xf32>
    %73 = arith.addf %72, %3 : vector<1x384xf32>
    %74 = vector.extract_strided_slice %73 {offsets = [0, 258], sizes = [1, 2], strides = [1, 1]} : vector<1x384xf32> to vector<1x2xf32>
    %cst_23 = arith.constant 0.000000e+00 : f32
    %75 = vector.broadcast %cst_23 : f32 to vector<1x2xf32>
    %76 = arith.cmpf ogt, %74, %75 : vector<1x2xf32>
    %77 = arith.extui %76 : vector<1x2xi1> to vector<1x2xi32>
    %78 = arith.sitofp %77 : vector<1x2xi32> to vector<1x2xf32>
    %79 = vector.extract_strided_slice %78 {offsets = [0, 0], sizes = [1, 1], strides = [1, 1]} : vector<1x2xf32> to vector<1x1xf32>
    %80 = vector.broadcast %79 : vector<1x1xf32> to vector<1x2xf32>
    %81 = arith.mulf %78, %80 : vector<1x2xf32>
    %82 = vector.extract_strided_slice %74 {offsets = [0, 0], sizes = [1, 1], strides = [1, 1]} : vector<1x2xf32> to vector<1x1xf32>
    %cst_24 = arith.constant 0.000000e+00 : f32
    %83 = vector.broadcast %cst_24 : f32 to vector<1x1xf32>
    %84 = arith.cmpf ogt, %82, %83 : vector<1x1xf32>
    %85 = vector.extract_strided_slice %74 {offsets = [0, 1], sizes = [1, 1], strides = [1, 1]} : vector<1x2xf32> to vector<1x1xf32>
    %cst_25 = arith.constant 0.000000e+00 : f32
    %86 = vector.broadcast %cst_25 : f32 to vector<1x1xf32>
    %87 = arith.cmpf ogt, %85, %86 : vector<1x1xf32>
    %c4 = arith.constant 4 : index
    %c0_26 = arith.constant 0 : index
    %88 = vector.load %arg0[%c4, %c0_26] : memref<11x384xf32, #tpu.memory_space<vmem>>, vector<1x256xf32>
    %c5 = arith.constant 5 : index
    %c0_27 = arith.constant 0 : index
    %89 = vector.load %arg0[%c5, %c0_27] : memref<11x384xf32, #tpu.memory_space<vmem>>, vector<1x256xf32>
    %c6 = arith.constant 6 : index
    %c0_28 = arith.constant 0 : index
    %90 = vector.load %arg0[%c6, %c0_28] : memref<11x384xf32, #tpu.memory_space<vmem>>, vector<1x256xf32>
    %91 = vector.shape_cast %87 : vector<1x1xi1> to vector<1x1xi1>
    %92 = vector.broadcast %91 : vector<1x1xi1> to vector<1x256xi1>
    %93 = arith.select %92, %90, %89 : vector<1x256xi1>, vector<1x256xf32>
    %94 = vector.shape_cast %84 : vector<1x1xi1> to vector<1x1xi1>
    %95 = vector.broadcast %94 : vector<1x1xi1> to vector<1x256xi1>
    %96 = arith.select %95, %93, %88 : vector<1x256xi1>, vector<1x256xf32>
    %c5_29 = arith.constant 5 : index
    %c1_30 = arith.constant 1 : index
    %97 = vector.load %arg2[%c5_29, %c1_30] : memref<45x3xf32, #tpu.memory_space<vmem>>, vector<1x2xf32>
    tpu.vector_store %arg2[%c5_29, %c1_30], %81 {strides = array<i32>} : memref<45x3xf32, #tpu.memory_space<vmem>>, vector<1x2xf32>,
    %98 = vector.extract_strided_slice %73 {offsets = [0, 0], sizes = [1, 256], strides = [1, 1]} : vector<1x384xf32> to vector<1x256xf32>
    %99 = arith.addf %96, %98 : vector<1x256xf32>
    %100 = arith.negf %99 : vector<1x256xf32>
    %101 = math.exp %100 : vector<1x256xf32>
    %cst_31 = arith.constant 1.000000e+00 : f32
    %102 = vector.broadcast %cst_31 : f32 to vector<1x256xf32>
    %103 = arith.addf %102, %101 : vector<1x256xf32>
    %104 = arith.divf %102, %103 : vector<1x256xf32>
    %105 = vector.extract_strided_slice %104 {offsets = [0, 0], sizes = [1, 64], strides = [1, 1]} : vector<1x256xf32> to vector<1x64xf32>
    %106 = vector.extract_strided_slice %104 {offsets = [0, 64], sizes = [1, 64], strides = [1, 1]} : vector<1x256xf32> to vector<1x64xf32>
    %107 = vector.extract_strided_slice %104 {offsets = [0, 128], sizes = [1, 64], strides = [1, 1]} : vector<1x256xf32> to vector<1x64xf32>
    %cst_32 = arith.constant 2.000000e+00 : f32
    %108 = vector.broadcast %cst_32 : f32 to vector<1x64xf32>
    %109 = arith.mulf %108, %107 : vector<1x64xf32>
    %cst_33 = arith.constant 1.000000e+00 : f32
    %110 = vector.broadcast %cst_33 : f32 to vector<1x64xf32>
    %111 = arith.subf %109, %110 : vector<1x64xf32>
    %112 = vector.extract_strided_slice %104 {offsets = [0, 192], sizes = [1, 64], strides = [1, 1]} : vector<1x256xf32> to vector<1x64xf32>
    %113 = arith.mulf %106, %69 : vector<1x64xf32>
    %114 = arith.mulf %105, %111 : vector<1x64xf32>
    %115 = arith.addf %113, %114 : vector<1x64xf32>
    %116 = math.tanh %115 : vector<1x64xf32>
    %117 = arith.mulf %112, %116 : vector<1x64xf32>
    %cst_34 = arith.constant dense<0.000000e+00> : vector<1x384xf32>
    %118 = tpu.matmul %117, %2, %cst_34 {dimension_numbers = #tpu.dot_dimension_numbers<[1], [0], [0], [1], [0, 0, 1, 1], [], []>} : vector<1x64xf32>, vector<64x384xf32>, vector<1x384xf32> -> vector<1x384xf32>
    %119 = arith.addf %118, %3 : vector<1x384xf32>
    %120 = vector.extract_strided_slice %119 {offsets = [0, 260], sizes = [1, 2], strides = [1, 1]} : vector<1x384xf32> to vector<1x2xf32>
    %cst_35 = arith.constant 0.000000e+00 : f32
    %121 = vector.broadcast %cst_35 : f32 to vector<1x2xf32>
    %122 = arith.cmpf ogt, %120, %121 : vector<1x2xf32>
    %123 = arith.extui %122 : vector<1x2xi1> to vector<1x2xi32>
    %124 = arith.sitofp %123 : vector<1x2xi32> to vector<1x2xf32>
    %125 = vector.extract_strided_slice %124 {offsets = [0, 0], sizes = [1, 1], strides = [1, 1]} : vector<1x2xf32> to vector<1x1xf32>
    %126 = vector.broadcast %125 : vector<1x1xf32> to vector<1x2xf32>
    %127 = arith.mulf %124, %126 : vector<1x2xf32>
    %128 = vector.extract_strided_slice %120 {offsets = [0, 0], sizes = [1, 1], strides = [1, 1]} : vector<1x2xf32> to vector<1x1xf32>
    %cst_36 = arith.constant 0.000000e+00 : f32
    %129 = vector.broadcast %cst_36 : f32 to vector<1x1xf32>
    %130 = arith.cmpf ogt, %128, %129 : vector<1x1xf32>
    %131 = vector.extract_strided_slice %120 {offsets = [0, 1], sizes = [1, 1], strides = [1, 1]} : vector<1x2xf32> to vector<1x1xf32>
    %cst_37 = arith.constant 0.000000e+00 : f32
    %132 = vector.broadcast %cst_37 : f32 to vector<1x1xf32>
    %133 = arith.cmpf ogt, %131, %132 : vector<1x1xf32>
    %c7 = arith.constant 7 : index
    %c0_38 = arith.constant 0 : index
    %134 = vector.load %arg0[%c7, %c0_38] : memref<11x384xf32, #tpu.memory_space<vmem>>, vector<1x256xf32>
    %c8 = arith.constant 8 : index
    %c0_39 = arith.constant 0 : index
    %135 = vector.load %arg0[%c8, %c0_39] : memref<11x384xf32, #tpu.memory_space<vmem>>, vector<1x256xf32>
    %c9 = arith.constant 9 : index
    %c0_40 = arith.constant 0 : index
    %136 = vector.load %arg0[%c9, %c0_40] : memref<11x384xf32, #tpu.memory_space<vmem>>, vector<1x256xf32>
    %137 = vector.shape_cast %133 : vector<1x1xi1> to vector<1x1xi1>
    %138 = vector.broadcast %137 : vector<1x1xi1> to vector<1x256xi1>
    %139 = arith.select %138, %136, %135 : vector<1x256xi1>, vector<1x256xf32>
    %140 = vector.shape_cast %130 : vector<1x1xi1> to vector<1x1xi1>
    %141 = vector.broadcast %140 : vector<1x1xi1> to vector<1x256xi1>
    %142 = arith.select %141, %139, %134 : vector<1x256xi1>, vector<1x256xf32>
    %c25 = arith.constant 25 : index
    %c1_41 = arith.constant 1 : index
    %143 = vector.load %arg2[%c25, %c1_41] : memref<45x3xf32, #tpu.memory_space<vmem>>, vector<1x2xf32>
    tpu.vector_store %arg2[%c25, %c1_41], %127 {strides = array<i32>} : memref<45x3xf32, #tpu.memory_space<vmem>>, vector<1x2xf32>,
    %144 = vector.extract_strided_slice %119 {offsets = [0, 0], sizes = [1, 256], strides = [1, 1]} : vector<1x384xf32> to vector<1x256xf32>
    %145 = arith.addf %142, %144 : vector<1x256xf32>
    %146 = arith.negf %145 : vector<1x256xf32>
    %147 = math.exp %146 : vector<1x256xf32>
    %cst_42 = arith.constant 1.000000e+00 : f32
    %148 = vector.broadcast %cst_42 : f32 to vector<1x256xf32>
    %149 = arith.addf %148, %147 : vector<1x256xf32>
    %150 = arith.divf %148, %149 : vector<1x256xf32>
    %151 = vector.extract_strided_slice %150 {offsets = [0, 0], sizes = [1, 64], strides = [1, 1]} : vector<1x256xf32> to vector<1x64xf32>
    %152 = vector.extract_strided_slice %150 {offsets = [0, 64], sizes = [1, 64], strides = [1, 1]} : vector<1x256xf32> to vector<1x64xf32>
    %153 = vector.extract_strided_slice %150 {offsets = [0, 128], sizes = [1, 64], strides = [1, 1]} : vector<1x256xf32> to vector<1x64xf32>
    %cst_43 = arith.constant 2.000000e+00 : f32
    %154 = vector.broadcast %cst_43 : f32 to vector<1x64xf32>
    %155 = arith.mulf %154, %153 : vector<1x64xf32>
    %cst_44 = arith.constant 1.000000e+00 : f32
    %156 = vector.broadcast %cst_44 : f32 to vector<1x64xf32>
    %157 = arith.subf %155, %156 : vector<1x64xf32>
    %158 = vector.extract_strided_slice %150 {offsets = [0, 192], sizes = [1, 64], strides = [1, 1]} : vector<1x256xf32> to vector<1x64xf32>
    %159 = arith.mulf %152, %115 : vector<1x64xf32>
    %160 = arith.mulf %151, %157 : vector<1x64xf32>
    %161 = arith.addf %159, %160 : vector<1x64xf32>
    %162 = math.tanh %161 : vector<1x64xf32>
    %163 = arith.mulf %158, %162 : vector<1x64xf32>
    %cst_45 = arith.constant dense<0.000000e+00> : vector<1x384xf32>
    %164 = tpu.matmul %163, %2, %cst_45 {dimension_numbers = #tpu.dot_dimension_numbers<[1], [0], [0], [1], [0, 0, 1, 1], [], []>} : vector<1x64xf32>, vector<64x384xf32>, vector<1x384xf32> -> vector<1x384xf32>
    %165 = arith.addf %164, %3 : vector<1x384xf32>
    %166 = vector.extract_strided_slice %165 {offsets = [0, 258], sizes = [1, 2], strides = [1, 1]} : vector<1x384xf32> to vector<1x2xf32>
    %cst_46 = arith.constant 0.000000e+00 : f32
    %167 = vector.broadcast %cst_46 : f32 to vector<1x2xf32>
    %168 = arith.cmpf ogt, %166, %167 : vector<1x2xf32>
    %169 = arith.extui %168 : vector<1x2xi1> to vector<1x2xi32>
    %170 = arith.sitofp %169 : vector<1x2xi32> to vector<1x2xf32>
    %171 = vector.extract_strided_slice %170 {offsets = [0, 0], sizes = [1, 1], strides = [1, 1]} : vector<1x2xf32> to vector<1x1xf32>
    %172 = vector.broadcast %171 : vector<1x1xf32> to vector<1x2xf32>
    %173 = arith.mulf %170, %172 : vector<1x2xf32>
    %174 = vector.extract_strided_slice %166 {offsets = [0, 0], sizes = [1, 1], strides = [1, 1]} : vector<1x2xf32> to vector<1x1xf32>
    %cst_47 = arith.constant 0.000000e+00 : f32
    %175 = vector.broadcast %cst_47 : f32 to vector<1x1xf32>
    %176 = arith.cmpf ogt, %174, %175 : vector<1x1xf32>
    %177 = vector.extract_strided_slice %166 {offsets = [0, 1], sizes = [1, 1], strides = [1, 1]} : vector<1x2xf32> to vector<1x1xf32>
    %cst_48 = arith.constant 0.000000e+00 : f32
    %178 = vector.broadcast %cst_48 : f32 to vector<1x1xf32>
    %179 = arith.cmpf ogt, %177, %178 : vector<1x1xf32>
    %c4_49 = arith.constant 4 : index
    %c0_50 = arith.constant 0 : index
    %180 = vector.load %arg0[%c4_49, %c0_50] : memref<11x384xf32, #tpu.memory_space<vmem>>, vector<1x256xf32>
    %c5_51 = arith.constant 5 : index
    %c0_52 = arith.constant 0 : index
    %181 = vector.load %arg0[%c5_51, %c0_52] : memref<11x384xf32, #tpu.memory_space<vmem>>, vector<1x256xf32>
    %c6_53 = arith.constant 6 : index
    %c0_54 = arith.constant 0 : index
    %182 = vector.load %arg0[%c6_53, %c0_54] : memref<11x384xf32, #tpu.memory_space<vmem>>, vector<1x256xf32>
    %183 = vector.shape_cast %179 : vector<1x1xi1> to vector<1x1xi1>
    %184 = vector.broadcast %183 : vector<1x1xi1> to vector<1x256xi1>
    %185 = arith.select %184, %182, %181 : vector<1x256xi1>, vector<1x256xf32>
    %186 = vector.shape_cast %176 : vector<1x1xi1> to vector<1x1xi1>
    %187 = vector.broadcast %186 : vector<1x1xi1> to vector<1x256xi1>
    %188 = arith.select %187, %185, %180 : vector<1x256xi1>, vector<1x256xf32>
    %c6_55 = arith.constant 6 : index
    %c1_56 = arith.constant 1 : index
    %189 = vector.load %arg2[%c6_55, %c1_56] : memref<45x3xf32, #tpu.memory_space<vmem>>, vector<1x2xf32>
    tpu.vector_store %arg2[%c6_55, %c1_56], %173 {strides = array<i32>} : memref<45x3xf32, #tpu.memory_space<vmem>>, vector<1x2xf32>,
    %190 = vector.extract_strided_slice %165 {offsets = [0, 0], sizes = [1, 256], strides = [1, 1]} : vector<1x384xf32> to vector<1x256xf32>
    %191 = arith.addf %188, %190 : vector<1x256xf32>
    %192 = arith.negf %191 : vector<1x256xf32>
    %193 = math.exp %192 : vector<1x256xf32>
    %cst_57 = arith.constant 1.000000e+00 : f32
    %194 = vector.broadcast %cst_57 : f32 to vector<1x256xf32>
    %195 = arith.addf %194, %193 : vector<1x256xf32>
    %196 = arith.divf %194, %195 : vector<1x256xf32>
    %197 = vector.extract_strided_slice %196 {offsets = [0, 0], sizes = [1, 64], strides = [1, 1]} : vector<1x256xf32> to vector<1x64xf32>
    %198 = vector.extract_strided_slice %196 {offsets = [0, 64], sizes = [1, 64], strides = [1, 1]} : vector<1x256xf32> to vector<1x64xf32>
    %199 = vector.extract_strided_slice %196 {offsets = [0, 128], sizes = [1, 64], strides = [1, 1]} : vector<1x256xf32> to vector<1x64xf32>
    %cst_58 = arith.constant 2.000000e+00 : f32
    %200 = vector.broadcast %cst_58 : f32 to vector<1x64xf32>
    %201 = arith.mulf %200, %199 : vector<1x64xf32>
    %cst_59 = arith.constant 1.000000e+00 : f32
    %202 = vector.broadcast %cst_59 : f32 to vector<1x64xf32>
    %203 = arith.subf %201, %202 : vector<1x64xf32>
    %204 = vector.extract_strided_slice %196 {offsets = [0, 192], sizes = [1, 64], strides = [1, 1]} : vector<1x256xf32> to vector<1x64xf32>
    %205 = arith.mulf %198, %161 : vector<1x64xf32>
    %206 = arith.mulf %197, %203 : vector<1x64xf32>
    %207 = arith.addf %205, %206 : vector<1x64xf32>
    %208 = math.tanh %207 : vector<1x64xf32>
    %209 = arith.mulf %204, %208 : vector<1x64xf32>
    %cst_60 = arith.constant dense<0.000000e+00> : vector<1x384xf32>
    %210 = tpu.matmul %209, %2, %cst_60 {dimension_numbers = #tpu.dot_dimension_numbers<[1], [0], [0], [1], [0, 0, 1, 1], [], []>} : vector<1x64xf32>, vector<64x384xf32>, vector<1x384xf32> -> vector<1x384xf32>
    %211 = arith.addf %210, %3 : vector<1x384xf32>
    %212 = vector.extract_strided_slice %211 {offsets = [0, 260], sizes = [1, 2], strides = [1, 1]} : vector<1x384xf32> to vector<1x2xf32>
    %cst_61 = arith.constant 0.000000e+00 : f32
    %213 = vector.broadcast %cst_61 : f32 to vector<1x2xf32>
    %214 = arith.cmpf ogt, %212, %213 : vector<1x2xf32>
    %215 = arith.extui %214 : vector<1x2xi1> to vector<1x2xi32>
    %216 = arith.sitofp %215 : vector<1x2xi32> to vector<1x2xf32>
    %217 = vector.extract_strided_slice %216 {offsets = [0, 0], sizes = [1, 1], strides = [1, 1]} : vector<1x2xf32> to vector<1x1xf32>
    %218 = vector.broadcast %217 : vector<1x1xf32> to vector<1x2xf32>
    %219 = arith.mulf %216, %218 : vector<1x2xf32>
    %220 = vector.extract_strided_slice %212 {offsets = [0, 0], sizes = [1, 1], strides = [1, 1]} : vector<1x2xf32> to vector<1x1xf32>
    %cst_62 = arith.constant 0.000000e+00 : f32
    %221 = vector.broadcast %cst_62 : f32 to vector<1x1xf32>
    %222 = arith.cmpf ogt, %220, %221 : vector<1x1xf32>
    %223 = vector.extract_strided_slice %212 {offsets = [0, 1], sizes = [1, 1], strides = [1, 1]} : vector<1x2xf32> to vector<1x1xf32>
    %cst_63 = arith.constant 0.000000e+00 : f32
    %224 = vector.broadcast %cst_63 : f32 to vector<1x1xf32>
    %225 = arith.cmpf ogt, %223, %224 : vector<1x1xf32>
    %c7_64 = arith.constant 7 : index
    %c0_65 = arith.constant 0 : index
    %226 = vector.load %arg0[%c7_64, %c0_65] : memref<11x384xf32, #tpu.memory_space<vmem>>, vector<1x256xf32>
    %c8_66 = arith.constant 8 : index
    %c0_67 = arith.constant 0 : index
    %227 = vector.load %arg0[%c8_66, %c0_67] : memref<11x384xf32, #tpu.memory_space<vmem>>, vector<1x256xf32>
    %c9_68 = arith.constant 9 : index
    %c0_69 = arith.constant 0 : index
    %228 = vector.load %arg0[%c9_68, %c0_69] : memref<11x384xf32, #tpu.memory_space<vmem>>, vector<1x256xf32>
    %229 = vector.shape_cast %225 : vector<1x1xi1> to vector<1x1xi1>
    %230 = vector.broadcast %229 : vector<1x1xi1> to vector<1x256xi1>
    %231 = arith.select %230, %228, %227 : vector<1x256xi1>, vector<1x256xf32>
    %232 = vector.shape_cast %222 : vector<1x1xi1> to vector<1x1xi1>
    %233 = vector.broadcast %232 : vector<1x1xi1> to vector<1x256xi1>
    %234 = arith.select %233, %231, %226 : vector<1x256xi1>, vector<1x256xf32>
    %c26 = arith.constant 26 : index
    %c1_70 = arith.constant 1 : index
    %235 = vector.load %arg2[%c26, %c1_70] : memref<45x3xf32, #tpu.memory_space<vmem>>, vector<1x2xf32>
    tpu.vector_store %arg2[%c26, %c1_70], %219 {strides = array<i32>} : memref<45x3xf32, #tpu.memory_space<vmem>>, vector<1x2xf32>,
    %236 = vector.extract_strided_slice %211 {offsets = [0, 0], sizes = [1, 256], strides = [1, 1]} : vector<1x384xf32> to vector<1x256xf32>
    %237 = arith.addf %234, %236 : vector<1x256xf32>
    %238 = arith.negf %237 : vector<1x256xf32>
    %239 = math.exp %238 : vector<1x256xf32>
    %cst_71 = arith.constant 1.000000e+00 : f32
    %240 = vector.broadcast %cst_71 : f32 to vector<1x256xf32>
    %241 = arith.addf %240, %239 : vector<1x256xf32>
    %242 = arith.divf %240, %241 : vector<1x256xf32>
    %243 = vector.extract_strided_slice %242 {offsets = [0, 0], sizes = [1, 64], strides = [1, 1]} : vector<1x256xf32> to vector<1x64xf32>
    %244 = vector.extract_strided_slice %242 {offsets = [0, 64], sizes = [1, 64], strides = [1, 1]} : vector<1x256xf32> to vector<1x64xf32>
    %245 = vector.extract_strided_slice %242 {offsets = [0, 128], sizes = [1, 64], strides = [1, 1]} : vector<1x256xf32> to vector<1x64xf32>
    %cst_72 = arith.constant 2.000000e+00 : f32
    %246 = vector.broadcast %cst_72 : f32 to vector<1x64xf32>
    %247 = arith.mulf %246, %245 : vector<1x64xf32>
    %cst_73 = arith.constant 1.000000e+00 : f32
    %248 = vector.broadcast %cst_73 : f32 to vector<1x64xf32>
    %249 = arith.subf %247, %248 : vector<1x64xf32>
    %250 = vector.extract_strided_slice %242 {offsets = [0, 192], sizes = [1, 64], strides = [1, 1]} : vector<1x256xf32> to vector<1x64xf32>
    %251 = arith.mulf %244, %207 : vector<1x64xf32>
    %252 = arith.mulf %243, %249 : vector<1x64xf32>
    %253 = arith.addf %251, %252 : vector<1x64xf32>
    %254 = math.tanh %253 : vector<1x64xf32>
    %255 = arith.mulf %250, %254 : vector<1x64xf32>
    %cst_74 = arith.constant dense<0.000000e+00> : vector<1x384xf32>
    %256 = tpu.matmul %255, %2, %cst_74 {dimension_numbers = #tpu.dot_dimension_numbers<[1], [0], [0], [1], [0, 0, 1, 1], [], []>} : vector<1x64xf32>, vector<64x384xf32>, vector<1x384xf32> -> vector<1x384xf32>
    %257 = arith.addf %256, %3 : vector<1x384xf32>
    %258 = vector.extract_strided_slice %257 {offsets = [0, 258], sizes = [1, 2], strides = [1, 1]} : vector<1x384xf32> to vector<1x2xf32>
    %cst_75 = arith.constant 0.000000e+00 : f32
    %259 = vector.broadcast %cst_75 : f32 to vector<1x2xf32>
    %260 = arith.cmpf ogt, %258, %259 : vector<1x2xf32>
    %261 = arith.extui %260 : vector<1x2xi1> to vector<1x2xi32>
    %262 = arith.sitofp %261 : vector<1x2xi32> to vector<1x2xf32>
    %263 = vector.extract_strided_slice %262 {offsets = [0, 0], sizes = [1, 1], strides = [1, 1]} : vector<1x2xf32> to vector<1x1xf32>
    %264 = vector.broadcast %263 : vector<1x1xf32> to vector<1x2xf32>
    %265 = arith.mulf %262, %264 : vector<1x2xf32>
    %266 = vector.extract_strided_slice %258 {offsets = [0, 0], sizes = [1, 1], strides = [1, 1]} : vector<1x2xf32> to vector<1x1xf32>
    %cst_76 = arith.constant 0.000000e+00 : f32
    %267 = vector.broadcast %cst_76 : f32 to vector<1x1xf32>
    %268 = arith.cmpf ogt, %266, %267 : vector<1x1xf32>
    %269 = vector.extract_strided_slice %258 {offsets = [0, 1], sizes = [1, 1], strides = [1, 1]} : vector<1x2xf32> to vector<1x1xf32>
    %cst_77 = arith.constant 0.000000e+00 : f32
    %270 = vector.broadcast %cst_77 : f32 to vector<1x1xf32>
    %271 = arith.cmpf ogt, %269, %270 : vector<1x1xf32>
    %c4_78 = arith.constant 4 : index
    %c0_79 = arith.constant 0 : index
    %272 = vector.load %arg0[%c4_78, %c0_79] : memref<11x384xf32, #tpu.memory_space<vmem>>, vector<1x256xf32>
    %c5_80 = arith.constant 5 : index
    %c0_81 = arith.constant 0 : index
    %273 = vector.load %arg0[%c5_80, %c0_81] : memref<11x384xf32, #tpu.memory_space<vmem>>, vector<1x256xf32>
    %c6_82 = arith.constant 6 : index
    %c0_83 = arith.constant 0 : index
    %274 = vector.load %arg0[%c6_82, %c0_83] : memref<11x384xf32, #tpu.memory_space<vmem>>, vector<1x256xf32>
    %275 = vector.shape_cast %271 : vector<1x1xi1> to vector<1x1xi1>
    %276 = vector.broadcast %275 : vector<1x1xi1> to vector<1x256xi1>
    %277 = arith.select %276, %274, %273 : vector<1x256xi1>, vector<1x256xf32>
    %278 = vector.shape_cast %268 : vector<1x1xi1> to vector<1x1xi1>
    %279 = vector.broadcast %278 : vector<1x1xi1> to vector<1x256xi1>
    %280 = arith.select %279, %277, %272 : vector<1x256xi1>, vector<1x256xf32>
    %c7_84 = arith.constant 7 : index
    %c1_85 = arith.constant 1 : index
    %281 = vector.load %arg2[%c7_84, %c1_85] : memref<45x3xf32, #tpu.memory_space<vmem>>, vector<1x2xf32>
    tpu.vector_store %arg2[%c7_84, %c1_85], %265 {strides = array<i32>} : memref<45x3xf32, #tpu.memory_space<vmem>>, vector<1x2xf32>,
    %282 = vector.extract_strided_slice %257 {offsets = [0, 0], sizes = [1, 256], strides = [1, 1]} : vector<1x384xf32> to vector<1x256xf32>
    %283 = arith.addf %280, %282 : vector<1x256xf32>
    %284 = arith.negf %283 : vector<1x256xf32>
    %285 = math.exp %284 : vector<1x256xf32>
    %cst_86 = arith.constant 1.000000e+00 : f32
    %286 = vector.broadcast %cst_86 : f32 to vector<1x256xf32>
    %287 = arith.addf %286, %285 : vector<1x256xf32>
    %288 = arith.divf %286, %287 : vector<1x256xf32>
    %289 = vector.extract_strided_slice %288 {offsets = [0, 0], sizes = [1, 64], strides = [1, 1]} : vector<1x256xf32> to vector<1x64xf32>
    %290 = vector.extract_strided_slice %288 {offsets = [0, 64], sizes = [1, 64], strides = [1, 1]} : vector<1x256xf32> to vector<1x64xf32>
    %291 = vector.extract_strided_slice %288 {offsets = [0, 128], sizes = [1, 64], strides = [1, 1]} : vector<1x256xf32> to vector<1x64xf32>
    %cst_87 = arith.constant 2.000000e+00 : f32
    %292 = vector.broadcast %cst_87 : f32 to vector<1x64xf32>
    %293 = arith.mulf %292, %291 : vector<1x64xf32>
    %cst_88 = arith.constant 1.000000e+00 : f32
    %294 = vector.broadcast %cst_88 : f32 to vector<1x64xf32>
    %295 = arith.subf %293, %294 : vector<1x64xf32>
    %296 = vector.extract_strided_slice %288 {offsets = [0, 192], sizes = [1, 64], strides = [1, 1]} : vector<1x256xf32> to vector<1x64xf32>
    %297 = arith.mulf %290, %253 : vector<1x64xf32>
    %298 = arith.mulf %289, %295 : vector<1x64xf32>
    %299 = arith.addf %297, %298 : vector<1x64xf32>
    %300 = math.tanh %299 : vector<1x64xf32>
    %301 = arith.mulf %296, %300 : vector<1x64xf32>
    %cst_89 = arith.constant dense<0.000000e+00> : vector<1x384xf32>
    %302 = tpu.matmul %301, %2, %cst_89 {dimension_numbers = #tpu.dot_dimension_numbers<[1], [0], [0], [1], [0, 0, 1, 1], [], []>} : vector<1x64xf32>, vector<64x384xf32>, vector<1x384xf32> -> vector<1x384xf32>
    %303 = arith.addf %302, %3 : vector<1x384xf32>
    %304 = vector.extract_strided_slice %303 {offsets = [0, 260], sizes = [1, 2], strides = [1, 1]} : vector<1x384xf32> to vector<1x2xf32>
    %cst_90 = arith.constant 0.000000e+00 : f32
    %305 = vector.broadcast %cst_90 : f32 to vector<1x2xf32>
    %306 = arith.cmpf ogt, %304, %305 : vector<1x2xf32>
    %307 = arith.extui %306 : vector<1x2xi1> to vector<1x2xi32>
    %308 = arith.sitofp %307 : vector<1x2xi32> to vector<1x2xf32>
    %309 = vector.extract_strided_slice %308 {offsets = [0, 0], sizes = [1, 1], strides = [1, 1]} : vector<1x2xf32> to vector<1x1xf32>
    %310 = vector.broadcast %309 : vector<1x1xf32> to vector<1x2xf32>
    %311 = arith.mulf %308, %310 : vector<1x2xf32>
    %312 = vector.extract_strided_slice %304 {offsets = [0, 0], sizes = [1, 1], strides = [1, 1]} : vector<1x2xf32> to vector<1x1xf32>
    %cst_91 = arith.constant 0.000000e+00 : f32
    %313 = vector.broadcast %cst_91 : f32 to vector<1x1xf32>
    %314 = arith.cmpf ogt, %312, %313 : vector<1x1xf32>
    %315 = vector.extract_strided_slice %304 {offsets = [0, 1], sizes = [1, 1], strides = [1, 1]} : vector<1x2xf32> to vector<1x1xf32>
    %cst_92 = arith.constant 0.000000e+00 : f32
    %316 = vector.broadcast %cst_92 : f32 to vector<1x1xf32>
    %317 = arith.cmpf ogt, %315, %316 : vector<1x1xf32>
    %c7_93 = arith.constant 7 : index
    %c0_94 = arith.constant 0 : index
    %318 = vector.load %arg0[%c7_93, %c0_94] : memref<11x384xf32, #tpu.memory_space<vmem>>, vector<1x256xf32>
    %c8_95 = arith.constant 8 : index
    %c0_96 = arith.constant 0 : index
    %319 = vector.load %arg0[%c8_95, %c0_96] : memref<11x384xf32, #tpu.memory_space<vmem>>, vector<1x256xf32>
    %c9_97 = arith.constant 9 : index
    %c0_98 = arith.constant 0 : index
    %320 = vector.load %arg0[%c9_97, %c0_98] : memref<11x384xf32, #tpu.memory_space<vmem>>, vector<1x256xf32>
    %321 = vector.shape_cast %317 : vector<1x1xi1> to vector<1x1xi1>
    %322 = vector.broadcast %321 : vector<1x1xi1> to vector<1x256xi1>
    %323 = arith.select %322, %320, %319 : vector<1x256xi1>, vector<1x256xf32>
    %324 = vector.shape_cast %314 : vector<1x1xi1> to vector<1x1xi1>
    %325 = vector.broadcast %324 : vector<1x1xi1> to vector<1x256xi1>
    %326 = arith.select %325, %323, %318 : vector<1x256xi1>, vector<1x256xf32>
    %c27 = arith.constant 27 : index
    %c1_99 = arith.constant 1 : index
    %327 = vector.load %arg2[%c27, %c1_99] : memref<45x3xf32, #tpu.memory_space<vmem>>, vector<1x2xf32>
    tpu.vector_store %arg2[%c27, %c1_99], %311 {strides = array<i32>} : memref<45x3xf32, #tpu.memory_space<vmem>>, vector<1x2xf32>,
    %328 = vector.extract_strided_slice %303 {offsets = [0, 0], sizes = [1, 256], strides = [1, 1]} : vector<1x384xf32> to vector<1x256xf32>
    %329 = arith.addf %326, %328 : vector<1x256xf32>
    %330 = arith.negf %329 : vector<1x256xf32>
    %331 = math.exp %330 : vector<1x256xf32>
    %cst_100 = arith.constant 1.000000e+00 : f32
    %332 = vector.broadcast %cst_100 : f32 to vector<1x256xf32>
    %333 = arith.addf %332, %331 : vector<1x256xf32>
    %334 = arith.divf %332, %333 : vector<1x256xf32>
    %335 = vector.extract_strided_slice %334 {offsets = [0, 0], sizes = [1, 64], strides = [1, 1]} : vector<1x256xf32> to vector<1x64xf32>
    %336 = vector.extract_strided_slice %334 {offsets = [0, 64], sizes = [1, 64], strides = [1, 1]} : vector<1x256xf32> to vector<1x64xf32>
    %337 = vector.extract_strided_slice %334 {offsets = [0, 128], sizes = [1, 64], strides = [1, 1]} : vector<1x256xf32> to vector<1x64xf32>
    %cst_101 = arith.constant 2.000000e+00 : f32
    %338 = vector.broadcast %cst_101 : f32 to vector<1x64xf32>
    %339 = arith.mulf %338, %337 : vector<1x64xf32>
    %cst_102 = arith.constant 1.000000e+00 : f32
    %340 = vector.broadcast %cst_102 : f32 to vector<1x64xf32>
    %341 = arith.subf %339, %340 : vector<1x64xf32>
    %342 = vector.extract_strided_slice %334 {offsets = [0, 192], sizes = [1, 64], strides = [1, 1]} : vector<1x256xf32> to vector<1x64xf32>
    %343 = arith.mulf %336, %299 : vector<1x64xf32>
    %344 = arith.mulf %335, %341 : vector<1x64xf32>
    %345 = arith.addf %343, %344 : vector<1x64xf32>
    %346 = math.tanh %345 : vector<1x64xf32>
    %347 = arith.mulf %342, %346 : vector<1x64xf32>
    %cst_103 = arith.constant dense<0.000000e+00> : vector<1x384xf32>
    %348 = tpu.matmul %347, %2, %cst_103 {dimension_numbers = #tpu.dot_dimension_numbers<[1], [0], [0], [1], [0, 0, 1, 1], [], []>} : vector<1x64xf32>, vector<64x384xf32>, vector<1x384xf32> -> vector<1x384xf32>
    %349 = arith.addf %348, %3 : vector<1x384xf32>
    %350 = vector.extract_strided_slice %349 {offsets = [0, 258], sizes = [1, 2], strides = [1, 1]} : vector<1x384xf32> to vector<1x2xf32>
    %cst_104 = arith.constant 0.000000e+00 : f32
    %351 = vector.broadcast %cst_104 : f32 to vector<1x2xf32>
    %352 = arith.cmpf ogt, %350, %351 : vector<1x2xf32>
    %353 = arith.extui %352 : vector<1x2xi1> to vector<1x2xi32>
    %354 = arith.sitofp %353 : vector<1x2xi32> to vector<1x2xf32>
    %355 = vector.extract_strided_slice %354 {offsets = [0, 0], sizes = [1, 1], strides = [1, 1]} : vector<1x2xf32> to vector<1x1xf32>
    %356 = vector.broadcast %355 : vector<1x1xf32> to vector<1x2xf32>
    %357 = arith.mulf %354, %356 : vector<1x2xf32>
    %358 = vector.extract_strided_slice %350 {offsets = [0, 0], sizes = [1, 1], strides = [1, 1]} : vector<1x2xf32> to vector<1x1xf32>
    %cst_105 = arith.constant 0.000000e+00 : f32
    %359 = vector.broadcast %cst_105 : f32 to vector<1x1xf32>
    %360 = arith.cmpf ogt, %358, %359 : vector<1x1xf32>
    %361 = vector.extract_strided_slice %350 {offsets = [0, 1], sizes = [1, 1], strides = [1, 1]} : vector<1x2xf32> to vector<1x1xf32>
    %cst_106 = arith.constant 0.000000e+00 : f32
    %362 = vector.broadcast %cst_106 : f32 to vector<1x1xf32>
    %363 = arith.cmpf ogt, %361, %362 : vector<1x1xf32>
    %c4_107 = arith.constant 4 : index
    %c0_108 = arith.constant 0 : index
    %364 = vector.load %arg0[%c4_107, %c0_108] : memref<11x384xf32, #tpu.memory_space<vmem>>, vector<1x256xf32>
    %c5_109 = arith.constant 5 : index
    %c0_110 = arith.constant 0 : index
    %365 = vector.load %arg0[%c5_109, %c0_110] : memref<11x384xf32, #tpu.memory_space<vmem>>, vector<1x256xf32>
    %c6_111 = arith.constant 6 : index
    %c0_112 = arith.constant 0 : index
    %366 = vector.load %arg0[%c6_111, %c0_112] : memref<11x384xf32, #tpu.memory_space<vmem>>, vector<1x256xf32>
    %367 = vector.shape_cast %363 : vector<1x1xi1> to vector<1x1xi1>
    %368 = vector.broadcast %367 : vector<1x1xi1> to vector<1x256xi1>
    %369 = arith.select %368, %366, %365 : vector<1x256xi1>, vector<1x256xf32>
    %370 = vector.shape_cast %360 : vector<1x1xi1> to vector<1x1xi1>
    %371 = vector.broadcast %370 : vector<1x1xi1> to vector<1x256xi1>
    %372 = arith.select %371, %369, %364 : vector<1x256xi1>, vector<1x256xf32>
    %c8_113 = arith.constant 8 : index
    %c1_114 = arith.constant 1 : index
    %373 = vector.load %arg2[%c8_113, %c1_114] : memref<45x3xf32, #tpu.memory_space<vmem>>, vector<1x2xf32>
    tpu.vector_store %arg2[%c8_113, %c1_114], %357 {strides = array<i32>} : memref<45x3xf32, #tpu.memory_space<vmem>>, vector<1x2xf32>,
    %374 = vector.extract_strided_slice %349 {offsets = [0, 0], sizes = [1, 256], strides = [1, 1]} : vector<1x384xf32> to vector<1x256xf32>
    %375 = arith.addf %372, %374 : vector<1x256xf32>
    %376 = arith.negf %375 : vector<1x256xf32>
    %377 = math.exp %376 : vector<1x256xf32>
    %cst_115 = arith.constant 1.000000e+00 : f32
    %378 = vector.broadcast %cst_115 : f32 to vector<1x256xf32>
    %379 = arith.addf %378, %377 : vector<1x256xf32>
    %380 = arith.divf %378, %379 : vector<1x256xf32>
    %381 = vector.extract_strided_slice %380 {offsets = [0, 0], sizes = [1, 64], strides = [1, 1]} : vector<1x256xf32> to vector<1x64xf32>
    %382 = vector.extract_strided_slice %380 {offsets = [0, 64], sizes = [1, 64], strides = [1, 1]} : vector<1x256xf32> to vector<1x64xf32>
    %383 = vector.extract_strided_slice %380 {offsets = [0, 128], sizes = [1, 64], strides = [1, 1]} : vector<1x256xf32> to vector<1x64xf32>
    %cst_116 = arith.constant 2.000000e+00 : f32
    %384 = vector.broadcast %cst_116 : f32 to vector<1x64xf32>
    %385 = arith.mulf %384, %383 : vector<1x64xf32>
    %cst_117 = arith.constant 1.000000e+00 : f32
    %386 = vector.broadcast %cst_117 : f32 to vector<1x64xf32>
    %387 = arith.subf %385, %386 : vector<1x64xf32>
    %388 = vector.extract_strided_slice %380 {offsets = [0, 192], sizes = [1, 64], strides = [1, 1]} : vector<1x256xf32> to vector<1x64xf32>
    %389 = arith.mulf %382, %345 : vector<1x64xf32>
    %390 = arith.mulf %381, %387 : vector<1x64xf32>
    %391 = arith.addf %389, %390 : vector<1x64xf32>
    %392 = math.tanh %391 : vector<1x64xf32>
    %393 = arith.mulf %388, %392 : vector<1x64xf32>
    %cst_118 = arith.constant dense<0.000000e+00> : vector<1x384xf32>
    %394 = tpu.matmul %393, %2, %cst_118 {dimension_numbers = #tpu.dot_dimension_numbers<[1], [0], [0], [1], [0, 0, 1, 1], [], []>} : vector<1x64xf32>, vector<64x384xf32>, vector<1x384xf32> -> vector<1x384xf32>
    %395 = arith.addf %394, %3 : vector<1x384xf32>
    %396 = vector.extract_strided_slice %395 {offsets = [0, 260], sizes = [1, 2], strides = [1, 1]} : vector<1x384xf32> to vector<1x2xf32>
    %cst_119 = arith.constant 0.000000e+00 : f32
    %397 = vector.broadcast %cst_119 : f32 to vector<1x2xf32>
    %398 = arith.cmpf ogt, %396, %397 : vector<1x2xf32>
    %399 = arith.extui %398 : vector<1x2xi1> to vector<1x2xi32>
    %400 = arith.sitofp %399 : vector<1x2xi32> to vector<1x2xf32>
    %401 = vector.extract_strided_slice %400 {offsets = [0, 0], sizes = [1, 1], strides = [1, 1]} : vector<1x2xf32> to vector<1x1xf32>
    %402 = vector.broadcast %401 : vector<1x1xf32> to vector<1x2xf32>
    %403 = arith.mulf %400, %402 : vector<1x2xf32>
    %404 = vector.extract_strided_slice %396 {offsets = [0, 0], sizes = [1, 1], strides = [1, 1]} : vector<1x2xf32> to vector<1x1xf32>
    %cst_120 = arith.constant 0.000000e+00 : f32
    %405 = vector.broadcast %cst_120 : f32 to vector<1x1xf32>
    %406 = arith.cmpf ogt, %404, %405 : vector<1x1xf32>
    %407 = vector.extract_strided_slice %396 {offsets = [0, 1], sizes = [1, 1], strides = [1, 1]} : vector<1x2xf32> to vector<1x1xf32>
    %cst_121 = arith.constant 0.000000e+00 : f32
    %408 = vector.broadcast %cst_121 : f32 to vector<1x1xf32>
    %409 = arith.cmpf ogt, %407, %408 : vector<1x1xf32>
    %c7_122 = arith.constant 7 : index
    %c0_123 = arith.constant 0 : index
    %410 = vector.load %arg0[%c7_122, %c0_123] : memref<11x384xf32, #tpu.memory_space<vmem>>, vector<1x256xf32>
    %c8_124 = arith.constant 8 : index
    %c0_125 = arith.constant 0 : index
    %411 = vector.load %arg0[%c8_124, %c0_125] : memref<11x384xf32, #tpu.memory_space<vmem>>, vector<1x256xf32>
    %c9_126 = arith.constant 9 : index
    %c0_127 = arith.constant 0 : index
    %412 = vector.load %arg0[%c9_126, %c0_127] : memref<11x384xf32, #tpu.memory_space<vmem>>, vector<1x256xf32>
    %413 = vector.shape_cast %409 : vector<1x1xi1> to vector<1x1xi1>
    %414 = vector.broadcast %413 : vector<1x1xi1> to vector<1x256xi1>
    %415 = arith.select %414, %412, %411 : vector<1x256xi1>, vector<1x256xf32>
    %416 = vector.shape_cast %406 : vector<1x1xi1> to vector<1x1xi1>
    %417 = vector.broadcast %416 : vector<1x1xi1> to vector<1x256xi1>
    %418 = arith.select %417, %415, %410 : vector<1x256xi1>, vector<1x256xf32>
    %c28 = arith.constant 28 : index
    %c1_128 = arith.constant 1 : index
    %419 = vector.load %arg2[%c28, %c1_128] : memref<45x3xf32, #tpu.memory_space<vmem>>, vector<1x2xf32>
    tpu.vector_store %arg2[%c28, %c1_128], %403 {strides = array<i32>} : memref<45x3xf32, #tpu.memory_space<vmem>>, vector<1x2xf32>,
    %420 = vector.extract_strided_slice %395 {offsets = [0, 0], sizes = [1, 256], strides = [1, 1]} : vector<1x384xf32> to vector<1x256xf32>
    %421 = arith.addf %418, %420 : vector<1x256xf32>
    %422 = arith.negf %421 : vector<1x256xf32>
    %423 = math.exp %422 : vector<1x256xf32>
    %cst_129 = arith.constant 1.000000e+00 : f32
    %424 = vector.broadcast %cst_129 : f32 to vector<1x256xf32>
    %425 = arith.addf %424, %423 : vector<1x256xf32>
    %426 = arith.divf %424, %425 : vector<1x256xf32>
    %427 = vector.extract_strided_slice %426 {offsets = [0, 0], sizes = [1, 64], strides = [1, 1]} : vector<1x256xf32> to vector<1x64xf32>
    %428 = vector.extract_strided_slice %426 {offsets = [0, 64], sizes = [1, 64], strides = [1, 1]} : vector<1x256xf32> to vector<1x64xf32>
    %429 = vector.extract_strided_slice %426 {offsets = [0, 128], sizes = [1, 64], strides = [1, 1]} : vector<1x256xf32> to vector<1x64xf32>
    %cst_130 = arith.constant 2.000000e+00 : f32
    %430 = vector.broadcast %cst_130 : f32 to vector<1x64xf32>
    %431 = arith.mulf %430, %429 : vector<1x64xf32>
    %cst_131 = arith.constant 1.000000e+00 : f32
    %432 = vector.broadcast %cst_131 : f32 to vector<1x64xf32>
    %433 = arith.subf %431, %432 : vector<1x64xf32>
    %434 = vector.extract_strided_slice %426 {offsets = [0, 192], sizes = [1, 64], strides = [1, 1]} : vector<1x256xf32> to vector<1x64xf32>
    %435 = arith.mulf %428, %391 : vector<1x64xf32>
    %436 = arith.mulf %427, %433 : vector<1x64xf32>
    %437 = arith.addf %435, %436 : vector<1x64xf32>
    %438 = math.tanh %437 : vector<1x64xf32>
    %439 = arith.mulf %434, %438 : vector<1x64xf32>
    %cst_132 = arith.constant dense<0.000000e+00> : vector<1x384xf32>
    %440 = tpu.matmul %439, %2, %cst_132 {dimension_numbers = #tpu.dot_dimension_numbers<[1], [0], [0], [1], [0, 0, 1, 1], [], []>} : vector<1x64xf32>, vector<64x384xf32>, vector<1x384xf32> -> vector<1x384xf32>
    %441 = arith.addf %440, %3 : vector<1x384xf32>
    %442 = vector.extract_strided_slice %441 {offsets = [0, 256], sizes = [1, 2], strides = [1, 1]} : vector<1x384xf32> to vector<1x2xf32>
    %cst_133 = arith.constant 0.000000e+00 : f32
    %443 = vector.broadcast %cst_133 : f32 to vector<1x2xf32>
    %444 = arith.cmpf ogt, %442, %443 : vector<1x2xf32>
    %445 = arith.extui %444 : vector<1x2xi1> to vector<1x2xi32>
    %446 = arith.sitofp %445 : vector<1x2xi32> to vector<1x2xf32>
    %447 = vector.extract_strided_slice %446 {offsets = [0, 0], sizes = [1, 1], strides = [1, 1]} : vector<1x2xf32> to vector<1x1xf32>
    %448 = vector.broadcast %447 : vector<1x1xf32> to vector<1x2xf32>
    %449 = arith.mulf %446, %448 : vector<1x2xf32>
    %450 = vector.extract_strided_slice %442 {offsets = [0, 0], sizes = [1, 1], strides = [1, 1]} : vector<1x2xf32> to vector<1x1xf32>
    %cst_134 = arith.constant 0.000000e+00 : f32
    %451 = vector.broadcast %cst_134 : f32 to vector<1x1xf32>
    %452 = arith.cmpf ogt, %450, %451 : vector<1x1xf32>
    %453 = vector.extract_strided_slice %442 {offsets = [0, 1], sizes = [1, 1], strides = [1, 1]} : vector<1x2xf32> to vector<1x1xf32>
    %cst_135 = arith.constant 0.000000e+00 : f32
    %454 = vector.broadcast %cst_135 : f32 to vector<1x1xf32>
    %455 = arith.cmpf ogt, %453, %454 : vector<1x1xf32>
    %c1_136 = arith.constant 1 : index
    %c0_137 = arith.constant 0 : index
    %456 = vector.load %arg0[%c1_136, %c0_137] : memref<11x384xf32, #tpu.memory_space<vmem>>, vector<1x256xf32>
    %c2_138 = arith.constant 2 : index
    %c0_139 = arith.constant 0 : index
    %457 = vector.load %arg0[%c2_138, %c0_139] : memref<11x384xf32, #tpu.memory_space<vmem>>, vector<1x256xf32>
    %c3_140 = arith.constant 3 : index
    %c0_141 = arith.constant 0 : index
    %458 = vector.load %arg0[%c3_140, %c0_141] : memref<11x384xf32, #tpu.memory_space<vmem>>, vector<1x256xf32>
    %459 = vector.shape_cast %455 : vector<1x1xi1> to vector<1x1xi1>
    %460 = vector.broadcast %459 : vector<1x1xi1> to vector<1x256xi1>
    %461 = arith.select %460, %458, %457 : vector<1x256xi1>, vector<1x256xf32>
    %462 = vector.shape_cast %452 : vector<1x1xi1> to vector<1x1xi1>
    %463 = vector.broadcast %462 : vector<1x1xi1> to vector<1x256xi1>
    %464 = arith.select %463, %461, %456 : vector<1x256xi1>, vector<1x256xf32>
    %c1_142 = arith.constant 1 : index
    %c1_143 = arith.constant 1 : index
    %465 = vector.load %arg2[%c1_142, %c1_143] : memref<45x3xf32, #tpu.memory_space<vmem>>, vector<1x2xf32>
    tpu.vector_store %arg2[%c1_142, %c1_143], %449 {strides = array<i32>} : memref<45x3xf32, #tpu.memory_space<vmem>>, vector<1x2xf32>,
    %466 = vector.extract_strided_slice %441 {offsets = [0, 0], sizes = [1, 256], strides = [1, 1]} : vector<1x384xf32> to vector<1x256xf32>
    %467 = arith.addf %464, %466 : vector<1x256xf32>
    %468 = arith.negf %467 : vector<1x256xf32>
    %469 = math.exp %468 : vector<1x256xf32>
    %cst_144 = arith.constant 1.000000e+00 : f32
    %470 = vector.broadcast %cst_144 : f32 to vector<1x256xf32>
    %471 = arith.addf %470, %469 : vector<1x256xf32>
    %472 = arith.divf %470, %471 : vector<1x256xf32>
    %473 = vector.extract_strided_slice %472 {offsets = [0, 0], sizes = [1, 64], strides = [1, 1]} : vector<1x256xf32> to vector<1x64xf32>
    %474 = vector.extract_strided_slice %472 {offsets = [0, 64], sizes = [1, 64], strides = [1, 1]} : vector<1x256xf32> to vector<1x64xf32>
    %475 = vector.extract_strided_slice %472 {offsets = [0, 128], sizes = [1, 64], strides = [1, 1]} : vector<1x256xf32> to vector<1x64xf32>
    %cst_145 = arith.constant 2.000000e+00 : f32
    %476 = vector.broadcast %cst_145 : f32 to vector<1x64xf32>
    %477 = arith.mulf %476, %475 : vector<1x64xf32>
    %cst_146 = arith.constant 1.000000e+00 : f32
    %478 = vector.broadcast %cst_146 : f32 to vector<1x64xf32>
    %479 = arith.subf %477, %478 : vector<1x64xf32>
    %480 = vector.extract_strided_slice %472 {offsets = [0, 192], sizes = [1, 64], strides = [1, 1]} : vector<1x256xf32> to vector<1x64xf32>
    %481 = arith.mulf %474, %437 : vector<1x64xf32>
    %482 = arith.mulf %473, %479 : vector<1x64xf32>
    %483 = arith.addf %481, %482 : vector<1x64xf32>
    %484 = math.tanh %483 : vector<1x64xf32>
    %485 = arith.mulf %480, %484 : vector<1x64xf32>
    %cst_147 = arith.constant dense<0.000000e+00> : vector<1x384xf32>
    %486 = tpu.matmul %485, %2, %cst_147 {dimension_numbers = #tpu.dot_dimension_numbers<[1], [0], [0], [1], [0, 0, 1, 1], [], []>} : vector<1x64xf32>, vector<64x384xf32>, vector<1x384xf32> -> vector<1x384xf32>
    %487 = arith.addf %486, %3 : vector<1x384xf32>
    %488 = vector.extract_strided_slice %487 {offsets = [0, 258], sizes = [1, 2], strides = [1, 1]} : vector<1x384xf32> to vector<1x2xf32>
    %cst_148 = arith.constant 0.000000e+00 : f32
    %489 = vector.broadcast %cst_148 : f32 to vector<1x2xf32>
    %490 = arith.cmpf ogt, %488, %489 : vector<1x2xf32>
    %491 = arith.extui %490 : vector<1x2xi1> to vector<1x2xi32>
    %492 = arith.sitofp %491 : vector<1x2xi32> to vector<1x2xf32>
    %493 = vector.extract_strided_slice %492 {offsets = [0, 0], sizes = [1, 1], strides = [1, 1]} : vector<1x2xf32> to vector<1x1xf32>
    %494 = vector.broadcast %493 : vector<1x1xf32> to vector<1x2xf32>
    %495 = arith.mulf %492, %494 : vector<1x2xf32>
    %496 = vector.extract_strided_slice %488 {offsets = [0, 0], sizes = [1, 1], strides = [1, 1]} : vector<1x2xf32> to vector<1x1xf32>
    %cst_149 = arith.constant 0.000000e+00 : f32
    %497 = vector.broadcast %cst_149 : f32 to vector<1x1xf32>
    %498 = arith.cmpf ogt, %496, %497 : vector<1x1xf32>
    %499 = vector.extract_strided_slice %488 {offsets = [0, 1], sizes = [1, 1], strides = [1, 1]} : vector<1x2xf32> to vector<1x1xf32>
    %cst_150 = arith.constant 0.000000e+00 : f32
    %500 = vector.broadcast %cst_150 : f32 to vector<1x1xf32>
    %501 = arith.cmpf ogt, %499, %500 : vector<1x1xf32>
    %c4_151 = arith.constant 4 : index
    %c0_152 = arith.constant 0 : index
    %502 = vector.load %arg0[%c4_151, %c0_152] : memref<11x384xf32, #tpu.memory_space<vmem>>, vector<1x256xf32>
    %c5_153 = arith.constant 5 : index
    %c0_154 = arith.constant 0 : index
    %503 = vector.load %arg0[%c5_153, %c0_154] : memref<11x384xf32, #tpu.memory_space<vmem>>, vector<1x256xf32>
    %c6_155 = arith.constant 6 : index
    %c0_156 = arith.constant 0 : index
    %504 = vector.load %arg0[%c6_155, %c0_156] : memref<11x384xf32, #tpu.memory_space<vmem>>, vector<1x256xf32>
    %505 = vector.shape_cast %501 : vector<1x1xi1> to vector<1x1xi1>
    %506 = vector.broadcast %505 : vector<1x1xi1> to vector<1x256xi1>
    %507 = arith.select %506, %504, %503 : vector<1x256xi1>, vector<1x256xf32>
    %508 = vector.shape_cast %498 : vector<1x1xi1> to vector<1x1xi1>
    %509 = vector.broadcast %508 : vector<1x1xi1> to vector<1x256xi1>
    %510 = arith.select %509, %507, %502 : vector<1x256xi1>, vector<1x256xf32>
    %c9_157 = arith.constant 9 : index
    %c1_158 = arith.constant 1 : index
    %511 = vector.load %arg2[%c9_157, %c1_158] : memref<45x3xf32, #tpu.memory_space<vmem>>, vector<1x2xf32>
    tpu.vector_store %arg2[%c9_157, %c1_158], %495 {strides = array<i32>} : memref<45x3xf32, #tpu.memory_space<vmem>>, vector<1x2xf32>,
    %512 = vector.extract_strided_slice %487 {offsets = [0, 0], sizes = [1, 256], strides = [1, 1]} : vector<1x384xf32> to vector<1x256xf32>
    %513 = arith.addf %510, %512 : vector<1x256xf32>
    %514 = arith.negf %513 : vector<1x256xf32>
    %515 = math.exp %514 : vector<1x256xf32>
    %cst_159 = arith.constant 1.000000e+00 : f32
    %516 = vector.broadcast %cst_159 : f32 to vector<1x256xf32>
    %517 = arith.addf %516, %515 : vector<1x256xf32>
    %518 = arith.divf %516, %517 : vector<1x256xf32>
    %519 = vector.extract_strided_slice %518 {offsets = [0, 0], sizes = [1, 64], strides = [1, 1]} : vector<1x256xf32> to vector<1x64xf32>
    %520 = vector.extract_strided_slice %518 {offsets = [0, 64], sizes = [1, 64], strides = [1, 1]} : vector<1x256xf32> to vector<1x64xf32>
    %521 = vector.extract_strided_slice %518 {offsets = [0, 128], sizes = [1, 64], strides = [1, 1]} : vector<1x256xf32> to vector<1x64xf32>
    %cst_160 = arith.constant 2.000000e+00 : f32
    %522 = vector.broadcast %cst_160 : f32 to vector<1x64xf32>
    %523 = arith.mulf %522, %521 : vector<1x64xf32>
    %cst_161 = arith.constant 1.000000e+00 : f32
    %524 = vector.broadcast %cst_161 : f32 to vector<1x64xf32>
    %525 = arith.subf %523, %524 : vector<1x64xf32>
    %526 = vector.extract_strided_slice %518 {offsets = [0, 192], sizes = [1, 64], strides = [1, 1]} : vector<1x256xf32> to vector<1x64xf32>
    %527 = arith.mulf %520, %483 : vector<1x64xf32>
    %528 = arith.mulf %519, %525 : vector<1x64xf32>
    %529 = arith.addf %527, %528 : vector<1x64xf32>
    %530 = math.tanh %529 : vector<1x64xf32>
    %531 = arith.mulf %526, %530 : vector<1x64xf32>
    %cst_162 = arith.constant dense<0.000000e+00> : vector<1x384xf32>
    %532 = tpu.matmul %531, %2, %cst_162 {dimension_numbers = #tpu.dot_dimension_numbers<[1], [0], [0], [1], [0, 0, 1, 1], [], []>} : vector<1x64xf32>, vector<64x384xf32>, vector<1x384xf32> -> vector<1x384xf32>
    %533 = arith.addf %532, %3 : vector<1x384xf32>
    %534 = vector.extract_strided_slice %533 {offsets = [0, 260], sizes = [1, 2], strides = [1, 1]} : vector<1x384xf32> to vector<1x2xf32>
    %cst_163 = arith.constant 0.000000e+00 : f32
    %535 = vector.broadcast %cst_163 : f32 to vector<1x2xf32>
    %536 = arith.cmpf ogt, %534, %535 : vector<1x2xf32>
    %537 = arith.extui %536 : vector<1x2xi1> to vector<1x2xi32>
    %538 = arith.sitofp %537 : vector<1x2xi32> to vector<1x2xf32>
    %539 = vector.extract_strided_slice %538 {offsets = [0, 0], sizes = [1, 1], strides = [1, 1]} : vector<1x2xf32> to vector<1x1xf32>
    %540 = vector.broadcast %539 : vector<1x1xf32> to vector<1x2xf32>
    %541 = arith.mulf %538, %540 : vector<1x2xf32>
    %542 = vector.extract_strided_slice %534 {offsets = [0, 0], sizes = [1, 1], strides = [1, 1]} : vector<1x2xf32> to vector<1x1xf32>
    %cst_164 = arith.constant 0.000000e+00 : f32
    %543 = vector.broadcast %cst_164 : f32 to vector<1x1xf32>
    %544 = arith.cmpf ogt, %542, %543 : vector<1x1xf32>
    %545 = vector.extract_strided_slice %534 {offsets = [0, 1], sizes = [1, 1], strides = [1, 1]} : vector<1x2xf32> to vector<1x1xf32>
    %cst_165 = arith.constant 0.000000e+00 : f32
    %546 = vector.broadcast %cst_165 : f32 to vector<1x1xf32>
    %547 = arith.cmpf ogt, %545, %546 : vector<1x1xf32>
    %c7_166 = arith.constant 7 : index
    %c0_167 = arith.constant 0 : index
    %548 = vector.load %arg0[%c7_166, %c0_167] : memref<11x384xf32, #tpu.memory_space<vmem>>, vector<1x256xf32>
    %c8_168 = arith.constant 8 : index
    %c0_169 = arith.constant 0 : index
    %549 = vector.load %arg0[%c8_168, %c0_169] : memref<11x384xf32, #tpu.memory_space<vmem>>, vector<1x256xf32>
    %c9_170 = arith.constant 9 : index
    %c0_171 = arith.constant 0 : index
    %550 = vector.load %arg0[%c9_170, %c0_171] : memref<11x384xf32, #tpu.memory_space<vmem>>, vector<1x256xf32>
    %551 = vector.shape_cast %547 : vector<1x1xi1> to vector<1x1xi1>
    %552 = vector.broadcast %551 : vector<1x1xi1> to vector<1x256xi1>
    %553 = arith.select %552, %550, %549 : vector<1x256xi1>, vector<1x256xf32>
    %554 = vector.shape_cast %544 : vector<1x1xi1> to vector<1x1xi1>
    %555 = vector.broadcast %554 : vector<1x1xi1> to vector<1x256xi1>
    %556 = arith.select %555, %553, %548 : vector<1x256xi1>, vector<1x256xf32>
    %c29 = arith.constant 29 : index
    %c1_172 = arith.constant 1 : index
    %557 = vector.load %arg2[%c29, %c1_172] : memref<45x3xf32, #tpu.memory_space<vmem>>, vector<1x2xf32>
    tpu.vector_store %arg2[%c29, %c1_172], %541 {strides = array<i32>} : memref<45x3xf32, #tpu.memory_space<vmem>>, vector<1x2xf32>,
    %558 = vector.extract_strided_slice %533 {offsets = [0, 0], sizes = [1, 256], strides = [1, 1]} : vector<1x384xf32> to vector<1x256xf32>
    %559 = arith.addf %556, %558 : vector<1x256xf32>
    %560 = arith.negf %559 : vector<1x256xf32>
    %561 = math.exp %560 : vector<1x256xf32>
    %cst_173 = arith.constant 1.000000e+00 : f32
    %562 = vector.broadcast %cst_173 : f32 to vector<1x256xf32>
    %563 = arith.addf %562, %561 : vector<1x256xf32>
    %564 = arith.divf %562, %563 : vector<1x256xf32>
    %565 = vector.extract_strided_slice %564 {offsets = [0, 0], sizes = [1, 64], strides = [1, 1]} : vector<1x256xf32> to vector<1x64xf32>
    %566 = vector.extract_strided_slice %564 {offsets = [0, 64], sizes = [1, 64], strides = [1, 1]} : vector<1x256xf32> to vector<1x64xf32>
    %567 = vector.extract_strided_slice %564 {offsets = [0, 128], sizes = [1, 64], strides = [1, 1]} : vector<1x256xf32> to vector<1x64xf32>
    %cst_174 = arith.constant 2.000000e+00 : f32
    %568 = vector.broadcast %cst_174 : f32 to vector<1x64xf32>
    %569 = arith.mulf %568, %567 : vector<1x64xf32>
    %cst_175 = arith.constant 1.000000e+00 : f32
    %570 = vector.broadcast %cst_175 : f32 to vector<1x64xf32>
    %571 = arith.subf %569, %570 : vector<1x64xf32>
    %572 = vector.extract_strided_slice %564 {offsets = [0, 192], sizes = [1, 64], strides = [1, 1]} : vector<1x256xf32> to vector<1x64xf32>
    %573 = arith.mulf %566, %529 : vector<1x64xf32>
    %574 = arith.mulf %565, %571 : vector<1x64xf32>
    %575 = arith.addf %573, %574 : vector<1x64xf32>
    %576 = math.tanh %575 : vector<1x64xf32>
    %577 = arith.mulf %572, %576 : vector<1x64xf32>
    %cst_176 = arith.constant dense<0.000000e+00> : vector<1x384xf32>
    %578 = tpu.matmul %577, %2, %cst_176 {dimension_numbers = #tpu.dot_dimension_numbers<[1], [0], [0], [1], [0, 0, 1, 1], [], []>} : vector<1x64xf32>, vector<64x384xf32>, vector<1x384xf32> -> vector<1x384xf32>
    %579 = arith.addf %578, %3 : vector<1x384xf32>
    %580 = vector.extract_strided_slice %579 {offsets = [0, 258], sizes = [1, 2], strides = [1, 1]} : vector<1x384xf32> to vector<1x2xf32>
    %cst_177 = arith.constant 0.000000e+00 : f32
    %581 = vector.broadcast %cst_177 : f32 to vector<1x2xf32>
    %582 = arith.cmpf ogt, %580, %581 : vector<1x2xf32>
    %583 = arith.extui %582 : vector<1x2xi1> to vector<1x2xi32>
    %584 = arith.sitofp %583 : vector<1x2xi32> to vector<1x2xf32>
    %585 = vector.extract_strided_slice %584 {offsets = [0, 0], sizes = [1, 1], strides = [1, 1]} : vector<1x2xf32> to vector<1x1xf32>
    %586 = vector.broadcast %585 : vector<1x1xf32> to vector<1x2xf32>
    %587 = arith.mulf %584, %586 : vector<1x2xf32>
    %588 = vector.extract_strided_slice %580 {offsets = [0, 0], sizes = [1, 1], strides = [1, 1]} : vector<1x2xf32> to vector<1x1xf32>
    %cst_178 = arith.constant 0.000000e+00 : f32
    %589 = vector.broadcast %cst_178 : f32 to vector<1x1xf32>
    %590 = arith.cmpf ogt, %588, %589 : vector<1x1xf32>
    %591 = vector.extract_strided_slice %580 {offsets = [0, 1], sizes = [1, 1], strides = [1, 1]} : vector<1x2xf32> to vector<1x1xf32>
    %cst_179 = arith.constant 0.000000e+00 : f32
    %592 = vector.broadcast %cst_179 : f32 to vector<1x1xf32>
    %593 = arith.cmpf ogt, %591, %592 : vector<1x1xf32>
    %c4_180 = arith.constant 4 : index
    %c0_181 = arith.constant 0 : index
    %594 = vector.load %arg0[%c4_180, %c0_181] : memref<11x384xf32, #tpu.memory_space<vmem>>, vector<1x256xf32>
    %c5_182 = arith.constant 5 : index
    %c0_183 = arith.constant 0 : index
    %595 = vector.load %arg0[%c5_182, %c0_183] : memref<11x384xf32, #tpu.memory_space<vmem>>, vector<1x256xf32>
    %c6_184 = arith.constant 6 : index
    %c0_185 = arith.constant 0 : index
    %596 = vector.load %arg0[%c6_184, %c0_185] : memref<11x384xf32, #tpu.memory_space<vmem>>, vector<1x256xf32>
    %597 = vector.shape_cast %593 : vector<1x1xi1> to vector<1x1xi1>
    %598 = vector.broadcast %597 : vector<1x1xi1> to vector<1x256xi1>
    %599 = arith.select %598, %596, %595 : vector<1x256xi1>, vector<1x256xf32>
    %600 = vector.shape_cast %590 : vector<1x1xi1> to vector<1x1xi1>
    %601 = vector.broadcast %600 : vector<1x1xi1> to vector<1x256xi1>
    %602 = arith.select %601, %599, %594 : vector<1x256xi1>, vector<1x256xf32>
    %c10_186 = arith.constant 10 : index
    %c1_187 = arith.constant 1 : index
    %603 = vector.load %arg2[%c10_186, %c1_187] : memref<45x3xf32, #tpu.memory_space<vmem>>, vector<1x2xf32>
    tpu.vector_store %arg2[%c10_186, %c1_187], %587 {strides = array<i32>} : memref<45x3xf32, #tpu.memory_space<vmem>>, vector<1x2xf32>,
    %604 = vector.extract_strided_slice %579 {offsets = [0, 0], sizes = [1, 256], strides = [1, 1]} : vector<1x384xf32> to vector<1x256xf32>
    %605 = arith.addf %602, %604 : vector<1x256xf32>
    %606 = arith.negf %605 : vector<1x256xf32>
    %607 = math.exp %606 : vector<1x256xf32>
    %cst_188 = arith.constant 1.000000e+00 : f32
    %608 = vector.broadcast %cst_188 : f32 to vector<1x256xf32>
    %609 = arith.addf %608, %607 : vector<1x256xf32>
    %610 = arith.divf %608, %609 : vector<1x256xf32>
    %611 = vector.extract_strided_slice %610 {offsets = [0, 0], sizes = [1, 64], strides = [1, 1]} : vector<1x256xf32> to vector<1x64xf32>
    %612 = vector.extract_strided_slice %610 {offsets = [0, 64], sizes = [1, 64], strides = [1, 1]} : vector<1x256xf32> to vector<1x64xf32>
    %613 = vector.extract_strided_slice %610 {offsets = [0, 128], sizes = [1, 64], strides = [1, 1]} : vector<1x256xf32> to vector<1x64xf32>
    %cst_189 = arith.constant 2.000000e+00 : f32
    %614 = vector.broadcast %cst_189 : f32 to vector<1x64xf32>
    %615 = arith.mulf %614, %613 : vector<1x64xf32>
    %cst_190 = arith.constant 1.000000e+00 : f32
    %616 = vector.broadcast %cst_190 : f32 to vector<1x64xf32>
    %617 = arith.subf %615, %616 : vector<1x64xf32>
    %618 = vector.extract_strided_slice %610 {offsets = [0, 192], sizes = [1, 64], strides = [1, 1]} : vector<1x256xf32> to vector<1x64xf32>
    %619 = arith.mulf %612, %575 : vector<1x64xf32>
    %620 = arith.mulf %611, %617 : vector<1x64xf32>
    %621 = arith.addf %619, %620 : vector<1x64xf32>
    %622 = math.tanh %621 : vector<1x64xf32>
    %623 = arith.mulf %618, %622 : vector<1x64xf32>
    %cst_191 = arith.constant dense<0.000000e+00> : vector<1x384xf32>
    %624 = tpu.matmul %623, %2, %cst_191 {dimension_numbers = #tpu.dot_dimension_numbers<[1], [0], [0], [1], [0, 0, 1, 1], [], []>} : vector<1x64xf32>, vector<64x384xf32>, vector<1x384xf32> -> vector<1x384xf32>
    %625 = arith.addf %624, %3 : vector<1x384xf32>
    %626 = vector.extract_strided_slice %625 {offsets = [0, 260], sizes = [1, 2], strides = [1, 1]} : vector<1x384xf32> to vector<1x2xf32>
    %cst_192 = arith.constant 0.000000e+00 : f32
    %627 = vector.broadcast %cst_192 : f32 to vector<1x2xf32>
    %628 = arith.cmpf ogt, %626, %627 : vector<1x2xf32>
    %629 = arith.extui %628 : vector<1x2xi1> to vector<1x2xi32>
    %630 = arith.sitofp %629 : vector<1x2xi32> to vector<1x2xf32>
    %631 = vector.extract_strided_slice %630 {offsets = [0, 0], sizes = [1, 1], strides = [1, 1]} : vector<1x2xf32> to vector<1x1xf32>
    %632 = vector.broadcast %631 : vector<1x1xf32> to vector<1x2xf32>
    %633 = arith.mulf %630, %632 : vector<1x2xf32>
    %634 = vector.extract_strided_slice %626 {offsets = [0, 0], sizes = [1, 1], strides = [1, 1]} : vector<1x2xf32> to vector<1x1xf32>
    %cst_193 = arith.constant 0.000000e+00 : f32
    %635 = vector.broadcast %cst_193 : f32 to vector<1x1xf32>
    %636 = arith.cmpf ogt, %634, %635 : vector<1x1xf32>
    %637 = vector.extract_strided_slice %626 {offsets = [0, 1], sizes = [1, 1], strides = [1, 1]} : vector<1x2xf32> to vector<1x1xf32>
    %cst_194 = arith.constant 0.000000e+00 : f32
    %638 = vector.broadcast %cst_194 : f32 to vector<1x1xf32>
    %639 = arith.cmpf ogt, %637, %638 : vector<1x1xf32>
    %c7_195 = arith.constant 7 : index
    %c0_196 = arith.constant 0 : index
    %640 = vector.load %arg0[%c7_195, %c0_196] : memref<11x384xf32, #tpu.memory_space<vmem>>, vector<1x256xf32>
    %c8_197 = arith.constant 8 : index
    %c0_198 = arith.constant 0 : index
    %641 = vector.load %arg0[%c8_197, %c0_198] : memref<11x384xf32, #tpu.memory_space<vmem>>, vector<1x256xf32>
    %c9_199 = arith.constant 9 : index
    %c0_200 = arith.constant 0 : index
    %642 = vector.load %arg0[%c9_199, %c0_200] : memref<11x384xf32, #tpu.memory_space<vmem>>, vector<1x256xf32>
    %643 = vector.shape_cast %639 : vector<1x1xi1> to vector<1x1xi1>
    %644 = vector.broadcast %643 : vector<1x1xi1> to vector<1x256xi1>
    %645 = arith.select %644, %642, %641 : vector<1x256xi1>, vector<1x256xf32>
    %646 = vector.shape_cast %636 : vector<1x1xi1> to vector<1x1xi1>
    %647 = vector.broadcast %646 : vector<1x1xi1> to vector<1x256xi1>
    %648 = arith.select %647, %645, %640 : vector<1x256xi1>, vector<1x256xf32>
    %c30 = arith.constant 30 : index
    %c1_201 = arith.constant 1 : index
    %649 = vector.load %arg2[%c30, %c1_201] : memref<45x3xf32, #tpu.memory_space<vmem>>, vector<1x2xf32>
    tpu.vector_store %arg2[%c30, %c1_201], %633 {strides = array<i32>} : memref<45x3xf32, #tpu.memory_space<vmem>>, vector<1x2xf32>,
    %650 = vector.extract_strided_slice %625 {offsets = [0, 0], sizes = [1, 256], strides = [1, 1]} : vector<1x384xf32> to vector<1x256xf32>
    %651 = arith.addf %648, %650 : vector<1x256xf32>
    %652 = arith.negf %651 : vector<1x256xf32>
    %653 = math.exp %652 : vector<1x256xf32>
    %cst_202 = arith.constant 1.000000e+00 : f32
    %654 = vector.broadcast %cst_202 : f32 to vector<1x256xf32>
    %655 = arith.addf %654, %653 : vector<1x256xf32>
    %656 = arith.divf %654, %655 : vector<1x256xf32>
    %657 = vector.extract_strided_slice %656 {offsets = [0, 0], sizes = [1, 64], strides = [1, 1]} : vector<1x256xf32> to vector<1x64xf32>
    %658 = vector.extract_strided_slice %656 {offsets = [0, 64], sizes = [1, 64], strides = [1, 1]} : vector<1x256xf32> to vector<1x64xf32>
    %659 = vector.extract_strided_slice %656 {offsets = [0, 128], sizes = [1, 64], strides = [1, 1]} : vector<1x256xf32> to vector<1x64xf32>
    %cst_203 = arith.constant 2.000000e+00 : f32
    %660 = vector.broadcast %cst_203 : f32 to vector<1x64xf32>
    %661 = arith.mulf %660, %659 : vector<1x64xf32>
    %cst_204 = arith.constant 1.000000e+00 : f32
    %662 = vector.broadcast %cst_204 : f32 to vector<1x64xf32>
    %663 = arith.subf %661, %662 : vector<1x64xf32>
    %664 = vector.extract_strided_slice %656 {offsets = [0, 192], sizes = [1, 64], strides = [1, 1]} : vector<1x256xf32> to vector<1x64xf32>
    %665 = arith.mulf %658, %621 : vector<1x64xf32>
    %666 = arith.mulf %657, %663 : vector<1x64xf32>
    %667 = arith.addf %665, %666 : vector<1x64xf32>
    %668 = math.tanh %667 : vector<1x64xf32>
    %669 = arith.mulf %664, %668 : vector<1x64xf32>
    %cst_205 = arith.constant dense<0.000000e+00> : vector<1x384xf32>
    %670 = tpu.matmul %669, %2, %cst_205 {dimension_numbers = #tpu.dot_dimension_numbers<[1], [0], [0], [1], [0, 0, 1, 1], [], []>} : vector<1x64xf32>, vector<64x384xf32>, vector<1x384xf32> -> vector<1x384xf32>
    %671 = arith.addf %670, %3 : vector<1x384xf32>
    %672 = vector.extract_strided_slice %671 {offsets = [0, 258], sizes = [1, 2], strides = [1, 1]} : vector<1x384xf32> to vector<1x2xf32>
    %cst_206 = arith.constant 0.000000e+00 : f32
    %673 = vector.broadcast %cst_206 : f32 to vector<1x2xf32>
    %674 = arith.cmpf ogt, %672, %673 : vector<1x2xf32>
    %675 = arith.extui %674 : vector<1x2xi1> to vector<1x2xi32>
    %676 = arith.sitofp %675 : vector<1x2xi32> to vector<1x2xf32>
    %677 = vector.extract_strided_slice %676 {offsets = [0, 0], sizes = [1, 1], strides = [1, 1]} : vector<1x2xf32> to vector<1x1xf32>
    %678 = vector.broadcast %677 : vector<1x1xf32> to vector<1x2xf32>
    %679 = arith.mulf %676, %678 : vector<1x2xf32>
    %680 = vector.extract_strided_slice %672 {offsets = [0, 0], sizes = [1, 1], strides = [1, 1]} : vector<1x2xf32> to vector<1x1xf32>
    %cst_207 = arith.constant 0.000000e+00 : f32
    %681 = vector.broadcast %cst_207 : f32 to vector<1x1xf32>
    %682 = arith.cmpf ogt, %680, %681 : vector<1x1xf32>
    %683 = vector.extract_strided_slice %672 {offsets = [0, 1], sizes = [1, 1], strides = [1, 1]} : vector<1x2xf32> to vector<1x1xf32>
    %cst_208 = arith.constant 0.000000e+00 : f32
    %684 = vector.broadcast %cst_208 : f32 to vector<1x1xf32>
    %685 = arith.cmpf ogt, %683, %684 : vector<1x1xf32>
    %c4_209 = arith.constant 4 : index
    %c0_210 = arith.constant 0 : index
    %686 = vector.load %arg0[%c4_209, %c0_210] : memref<11x384xf32, #tpu.memory_space<vmem>>, vector<1x256xf32>
    %c5_211 = arith.constant 5 : index
    %c0_212 = arith.constant 0 : index
    %687 = vector.load %arg0[%c5_211, %c0_212] : memref<11x384xf32, #tpu.memory_space<vmem>>, vector<1x256xf32>
    %c6_213 = arith.constant 6 : index
    %c0_214 = arith.constant 0 : index
    %688 = vector.load %arg0[%c6_213, %c0_214] : memref<11x384xf32, #tpu.memory_space<vmem>>, vector<1x256xf32>
    %689 = vector.shape_cast %685 : vector<1x1xi1> to vector<1x1xi1>
    %690 = vector.broadcast %689 : vector<1x1xi1> to vector<1x256xi1>
    %691 = arith.select %690, %688, %687 : vector<1x256xi1>, vector<1x256xf32>
    %692 = vector.shape_cast %682 : vector<1x1xi1> to vector<1x1xi1>
    %693 = vector.broadcast %692 : vector<1x1xi1> to vector<1x256xi1>
    %694 = arith.select %693, %691, %686 : vector<1x256xi1>, vector<1x256xf32>
    %c11 = arith.constant 11 : index
    %c1_215 = arith.constant 1 : index
    %695 = vector.load %arg2[%c11, %c1_215] : memref<45x3xf32, #tpu.memory_space<vmem>>, vector<1x2xf32>
    tpu.vector_store %arg2[%c11, %c1_215], %679 {strides = array<i32>} : memref<45x3xf32, #tpu.memory_space<vmem>>, vector<1x2xf32>,
    %696 = vector.extract_strided_slice %671 {offsets = [0, 0], sizes = [1, 256], strides = [1, 1]} : vector<1x384xf32> to vector<1x256xf32>
    %697 = arith.addf %694, %696 : vector<1x256xf32>
    %698 = arith.negf %697 : vector<1x256xf32>
    %699 = math.exp %698 : vector<1x256xf32>
    %cst_216 = arith.constant 1.000000e+00 : f32
    %700 = vector.broadcast %cst_216 : f32 to vector<1x256xf32>
    %701 = arith.addf %700, %699 : vector<1x256xf32>
    %702 = arith.divf %700, %701 : vector<1x256xf32>
    %703 = vector.extract_strided_slice %702 {offsets = [0, 0], sizes = [1, 64], strides = [1, 1]} : vector<1x256xf32> to vector<1x64xf32>
    %704 = vector.extract_strided_slice %702 {offsets = [0, 64], sizes = [1, 64], strides = [1, 1]} : vector<1x256xf32> to vector<1x64xf32>
    %705 = vector.extract_strided_slice %702 {offsets = [0, 128], sizes = [1, 64], strides = [1, 1]} : vector<1x256xf32> to vector<1x64xf32>
    %cst_217 = arith.constant 2.000000e+00 : f32
    %706 = vector.broadcast %cst_217 : f32 to vector<1x64xf32>
    %707 = arith.mulf %706, %705 : vector<1x64xf32>
    %cst_218 = arith.constant 1.000000e+00 : f32
    %708 = vector.broadcast %cst_218 : f32 to vector<1x64xf32>
    %709 = arith.subf %707, %708 : vector<1x64xf32>
    %710 = vector.extract_strided_slice %702 {offsets = [0, 192], sizes = [1, 64], strides = [1, 1]} : vector<1x256xf32> to vector<1x64xf32>
    %711 = arith.mulf %704, %667 : vector<1x64xf32>
    %712 = arith.mulf %703, %709 : vector<1x64xf32>
    %713 = arith.addf %711, %712 : vector<1x64xf32>
    %714 = math.tanh %713 : vector<1x64xf32>
    %715 = arith.mulf %710, %714 : vector<1x64xf32>
    %cst_219 = arith.constant dense<0.000000e+00> : vector<1x384xf32>
    %716 = tpu.matmul %715, %2, %cst_219 {dimension_numbers = #tpu.dot_dimension_numbers<[1], [0], [0], [1], [0, 0, 1, 1], [], []>} : vector<1x64xf32>, vector<64x384xf32>, vector<1x384xf32> -> vector<1x384xf32>
    %717 = arith.addf %716, %3 : vector<1x384xf32>
    %718 = vector.extract_strided_slice %717 {offsets = [0, 260], sizes = [1, 2], strides = [1, 1]} : vector<1x384xf32> to vector<1x2xf32>
    %cst_220 = arith.constant 0.000000e+00 : f32
    %719 = vector.broadcast %cst_220 : f32 to vector<1x2xf32>
    %720 = arith.cmpf ogt, %718, %719 : vector<1x2xf32>
    %721 = arith.extui %720 : vector<1x2xi1> to vector<1x2xi32>
    %722 = arith.sitofp %721 : vector<1x2xi32> to vector<1x2xf32>
    %723 = vector.extract_strided_slice %722 {offsets = [0, 0], sizes = [1, 1], strides = [1, 1]} : vector<1x2xf32> to vector<1x1xf32>
    %724 = vector.broadcast %723 : vector<1x1xf32> to vector<1x2xf32>
    %725 = arith.mulf %722, %724 : vector<1x2xf32>
    %726 = vector.extract_strided_slice %718 {offsets = [0, 0], sizes = [1, 1], strides = [1, 1]} : vector<1x2xf32> to vector<1x1xf32>
    %cst_221 = arith.constant 0.000000e+00 : f32
    %727 = vector.broadcast %cst_221 : f32 to vector<1x1xf32>
    %728 = arith.cmpf ogt, %726, %727 : vector<1x1xf32>
    %729 = vector.extract_strided_slice %718 {offsets = [0, 1], sizes = [1, 1], strides = [1, 1]} : vector<1x2xf32> to vector<1x1xf32>
    %cst_222 = arith.constant 0.000000e+00 : f32
    %730 = vector.broadcast %cst_222 : f32 to vector<1x1xf32>
    %731 = arith.cmpf ogt, %729, %730 : vector<1x1xf32>
    %c7_223 = arith.constant 7 : index
    %c0_224 = arith.constant 0 : index
    %732 = vector.load %arg0[%c7_223, %c0_224] : memref<11x384xf32, #tpu.memory_space<vmem>>, vector<1x256xf32>
    %c8_225 = arith.constant 8 : index
    %c0_226 = arith.constant 0 : index
    %733 = vector.load %arg0[%c8_225, %c0_226] : memref<11x384xf32, #tpu.memory_space<vmem>>, vector<1x256xf32>
    %c9_227 = arith.constant 9 : index
    %c0_228 = arith.constant 0 : index
    %734 = vector.load %arg0[%c9_227, %c0_228] : memref<11x384xf32, #tpu.memory_space<vmem>>, vector<1x256xf32>
    %735 = vector.shape_cast %731 : vector<1x1xi1> to vector<1x1xi1>
    %736 = vector.broadcast %735 : vector<1x1xi1> to vector<1x256xi1>
    %737 = arith.select %736, %734, %733 : vector<1x256xi1>, vector<1x256xf32>
    %738 = vector.shape_cast %728 : vector<1x1xi1> to vector<1x1xi1>
    %739 = vector.broadcast %738 : vector<1x1xi1> to vector<1x256xi1>
    %740 = arith.select %739, %737, %732 : vector<1x256xi1>, vector<1x256xf32>
    %c31 = arith.constant 31 : index
    %c1_229 = arith.constant 1 : index
    %741 = vector.load %arg2[%c31, %c1_229] : memref<45x3xf32, #tpu.memory_space<vmem>>, vector<1x2xf32>
    tpu.vector_store %arg2[%c31, %c1_229], %725 {strides = array<i32>} : memref<45x3xf32, #tpu.memory_space<vmem>>, vector<1x2xf32>,
    %742 = vector.extract_strided_slice %717 {offsets = [0, 0], sizes = [1, 256], strides = [1, 1]} : vector<1x384xf32> to vector<1x256xf32>
    %743 = arith.addf %740, %742 : vector<1x256xf32>
    %744 = arith.negf %743 : vector<1x256xf32>
    %745 = math.exp %744 : vector<1x256xf32>
    %cst_230 = arith.constant 1.000000e+00 : f32
    %746 = vector.broadcast %cst_230 : f32 to vector<1x256xf32>
    %747 = arith.addf %746, %745 : vector<1x256xf32>
    %748 = arith.divf %746, %747 : vector<1x256xf32>
    %749 = vector.extract_strided_slice %748 {offsets = [0, 0], sizes = [1, 64], strides = [1, 1]} : vector<1x256xf32> to vector<1x64xf32>
    %750 = vector.extract_strided_slice %748 {offsets = [0, 64], sizes = [1, 64], strides = [1, 1]} : vector<1x256xf32> to vector<1x64xf32>
    %751 = vector.extract_strided_slice %748 {offsets = [0, 128], sizes = [1, 64], strides = [1, 1]} : vector<1x256xf32> to vector<1x64xf32>
    %cst_231 = arith.constant 2.000000e+00 : f32
    %752 = vector.broadcast %cst_231 : f32 to vector<1x64xf32>
    %753 = arith.mulf %752, %751 : vector<1x64xf32>
    %cst_232 = arith.constant 1.000000e+00 : f32
    %754 = vector.broadcast %cst_232 : f32 to vector<1x64xf32>
    %755 = arith.subf %753, %754 : vector<1x64xf32>
    %756 = vector.extract_strided_slice %748 {offsets = [0, 192], sizes = [1, 64], strides = [1, 1]} : vector<1x256xf32> to vector<1x64xf32>
    %757 = arith.mulf %750, %713 : vector<1x64xf32>
    %758 = arith.mulf %749, %755 : vector<1x64xf32>
    %759 = arith.addf %757, %758 : vector<1x64xf32>
    %760 = math.tanh %759 : vector<1x64xf32>
    %761 = arith.mulf %756, %760 : vector<1x64xf32>
    %cst_233 = arith.constant dense<0.000000e+00> : vector<1x384xf32>
    %762 = tpu.matmul %761, %2, %cst_233 {dimension_numbers = #tpu.dot_dimension_numbers<[1], [0], [0], [1], [0, 0, 1, 1], [], []>} : vector<1x64xf32>, vector<64x384xf32>, vector<1x384xf32> -> vector<1x384xf32>
    %763 = arith.addf %762, %3 : vector<1x384xf32>
    %764 = vector.extract_strided_slice %763 {offsets = [0, 258], sizes = [1, 2], strides = [1, 1]} : vector<1x384xf32> to vector<1x2xf32>
    %cst_234 = arith.constant 0.000000e+00 : f32
    %765 = vector.broadcast %cst_234 : f32 to vector<1x2xf32>
    %766 = arith.cmpf ogt, %764, %765 : vector<1x2xf32>
    %767 = arith.extui %766 : vector<1x2xi1> to vector<1x2xi32>
    %768 = arith.sitofp %767 : vector<1x2xi32> to vector<1x2xf32>
    %769 = vector.extract_strided_slice %768 {offsets = [0, 0], sizes = [1, 1], strides = [1, 1]} : vector<1x2xf32> to vector<1x1xf32>
    %770 = vector.broadcast %769 : vector<1x1xf32> to vector<1x2xf32>
    %771 = arith.mulf %768, %770 : vector<1x2xf32>
    %772 = vector.extract_strided_slice %764 {offsets = [0, 0], sizes = [1, 1], strides = [1, 1]} : vector<1x2xf32> to vector<1x1xf32>
    %cst_235 = arith.constant 0.000000e+00 : f32
    %773 = vector.broadcast %cst_235 : f32 to vector<1x1xf32>
    %774 = arith.cmpf ogt, %772, %773 : vector<1x1xf32>
    %775 = vector.extract_strided_slice %764 {offsets = [0, 1], sizes = [1, 1], strides = [1, 1]} : vector<1x2xf32> to vector<1x1xf32>
    %cst_236 = arith.constant 0.000000e+00 : f32
    %776 = vector.broadcast %cst_236 : f32 to vector<1x1xf32>
    %777 = arith.cmpf ogt, %775, %776 : vector<1x1xf32>
    %c4_237 = arith.constant 4 : index
    %c0_238 = arith.constant 0 : index
    %778 = vector.load %arg0[%c4_237, %c0_238] : memref<11x384xf32, #tpu.memory_space<vmem>>, vector<1x256xf32>
    %c5_239 = arith.constant 5 : index
    %c0_240 = arith.constant 0 : index
    %779 = vector.load %arg0[%c5_239, %c0_240] : memref<11x384xf32, #tpu.memory_space<vmem>>, vector<1x256xf32>
    %c6_241 = arith.constant 6 : index
    %c0_242 = arith.constant 0 : index
    %780 = vector.load %arg0[%c6_241, %c0_242] : memref<11x384xf32, #tpu.memory_space<vmem>>, vector<1x256xf32>
    %781 = vector.shape_cast %777 : vector<1x1xi1> to vector<1x1xi1>
    %782 = vector.broadcast %781 : vector<1x1xi1> to vector<1x256xi1>
    %783 = arith.select %782, %780, %779 : vector<1x256xi1>, vector<1x256xf32>
    %784 = vector.shape_cast %774 : vector<1x1xi1> to vector<1x1xi1>
    %785 = vector.broadcast %784 : vector<1x1xi1> to vector<1x256xi1>
    %786 = arith.select %785, %783, %778 : vector<1x256xi1>, vector<1x256xf32>
    %c12 = arith.constant 12 : index
    %c1_243 = arith.constant 1 : index
    %787 = vector.load %arg2[%c12, %c1_243] : memref<45x3xf32, #tpu.memory_space<vmem>>, vector<1x2xf32>
    tpu.vector_store %arg2[%c12, %c1_243], %771 {strides = array<i32>} : memref<45x3xf32, #tpu.memory_space<vmem>>, vector<1x2xf32>,
    %788 = vector.extract_strided_slice %763 {offsets = [0, 0], sizes = [1, 256], strides = [1, 1]} : vector<1x384xf32> to vector<1x256xf32>
    %789 = arith.addf %786, %788 : vector<1x256xf32>
    %790 = arith.negf %789 : vector<1x256xf32>
    %791 = math.exp %790 : vector<1x256xf32>
    %cst_244 = arith.constant 1.000000e+00 : f32
    %792 = vector.broadcast %cst_244 : f32 to vector<1x256xf32>
    %793 = arith.addf %792, %791 : vector<1x256xf32>
    %794 = arith.divf %792, %793 : vector<1x256xf32>
    %795 = vector.extract_strided_slice %794 {offsets = [0, 0], sizes = [1, 64], strides = [1, 1]} : vector<1x256xf32> to vector<1x64xf32>
    %796 = vector.extract_strided_slice %794 {offsets = [0, 64], sizes = [1, 64], strides = [1, 1]} : vector<1x256xf32> to vector<1x64xf32>
    %797 = vector.extract_strided_slice %794 {offsets = [0, 128], sizes = [1, 64], strides = [1, 1]} : vector<1x256xf32> to vector<1x64xf32>
    %cst_245 = arith.constant 2.000000e+00 : f32
    %798 = vector.broadcast %cst_245 : f32 to vector<1x64xf32>
    %799 = arith.mulf %798, %797 : vector<1x64xf32>
    %cst_246 = arith.constant 1.000000e+00 : f32
    %800 = vector.broadcast %cst_246 : f32 to vector<1x64xf32>
    %801 = arith.subf %799, %800 : vector<1x64xf32>
    %802 = vector.extract_strided_slice %794 {offsets = [0, 192], sizes = [1, 64], strides = [1, 1]} : vector<1x256xf32> to vector<1x64xf32>
    %803 = arith.mulf %796, %759 : vector<1x64xf32>
    %804 = arith.mulf %795, %801 : vector<1x64xf32>
    %805 = arith.addf %803, %804 : vector<1x64xf32>
    %806 = math.tanh %805 : vector<1x64xf32>
    %807 = arith.mulf %802, %806 : vector<1x64xf32>
    %cst_247 = arith.constant dense<0.000000e+00> : vector<1x384xf32>
    %808 = tpu.matmul %807, %2, %cst_247 {dimension_numbers = #tpu.dot_dimension_numbers<[1], [0], [0], [1], [0, 0, 1, 1], [], []>} : vector<1x64xf32>, vector<64x384xf32>, vector<1x384xf32> -> vector<1x384xf32>
    %809 = arith.addf %808, %3 : vector<1x384xf32>
    %810 = vector.extract_strided_slice %809 {offsets = [0, 260], sizes = [1, 2], strides = [1, 1]} : vector<1x384xf32> to vector<1x2xf32>
    %cst_248 = arith.constant 0.000000e+00 : f32
    %811 = vector.broadcast %cst_248 : f32 to vector<1x2xf32>
    %812 = arith.cmpf ogt, %810, %811 : vector<1x2xf32>
    %813 = arith.extui %812 : vector<1x2xi1> to vector<1x2xi32>
    %814 = arith.sitofp %813 : vector<1x2xi32> to vector<1x2xf32>
    %815 = vector.extract_strided_slice %814 {offsets = [0, 0], sizes = [1, 1], strides = [1, 1]} : vector<1x2xf32> to vector<1x1xf32>
    %816 = vector.broadcast %815 : vector<1x1xf32> to vector<1x2xf32>
    %817 = arith.mulf %814, %816 : vector<1x2xf32>
    %818 = vector.extract_strided_slice %810 {offsets = [0, 0], sizes = [1, 1], strides = [1, 1]} : vector<1x2xf32> to vector<1x1xf32>
    %cst_249 = arith.constant 0.000000e+00 : f32
    %819 = vector.broadcast %cst_249 : f32 to vector<1x1xf32>
    %820 = arith.cmpf ogt, %818, %819 : vector<1x1xf32>
    %821 = vector.extract_strided_slice %810 {offsets = [0, 1], sizes = [1, 1], strides = [1, 1]} : vector<1x2xf32> to vector<1x1xf32>
    %cst_250 = arith.constant 0.000000e+00 : f32
    %822 = vector.broadcast %cst_250 : f32 to vector<1x1xf32>
    %823 = arith.cmpf ogt, %821, %822 : vector<1x1xf32>
    %c7_251 = arith.constant 7 : index
    %c0_252 = arith.constant 0 : index
    %824 = vector.load %arg0[%c7_251, %c0_252] : memref<11x384xf32, #tpu.memory_space<vmem>>, vector<1x256xf32>
    %c8_253 = arith.constant 8 : index
    %c0_254 = arith.constant 0 : index
    %825 = vector.load %arg0[%c8_253, %c0_254] : memref<11x384xf32, #tpu.memory_space<vmem>>, vector<1x256xf32>
    %c9_255 = arith.constant 9 : index
    %c0_256 = arith.constant 0 : index
    %826 = vector.load %arg0[%c9_255, %c0_256] : memref<11x384xf32, #tpu.memory_space<vmem>>, vector<1x256xf32>
    %827 = vector.shape_cast %823 : vector<1x1xi1> to vector<1x1xi1>
    %828 = vector.broadcast %827 : vector<1x1xi1> to vector<1x256xi1>
    %829 = arith.select %828, %826, %825 : vector<1x256xi1>, vector<1x256xf32>
    %830 = vector.shape_cast %820 : vector<1x1xi1> to vector<1x1xi1>
    %831 = vector.broadcast %830 : vector<1x1xi1> to vector<1x256xi1>
    %832 = arith.select %831, %829, %824 : vector<1x256xi1>, vector<1x256xf32>
    %c32 = arith.constant 32 : index
    %c1_257 = arith.constant 1 : index
    %833 = vector.load %arg2[%c32, %c1_257] : memref<45x3xf32, #tpu.memory_space<vmem>>, vector<1x2xf32>
    tpu.vector_store %arg2[%c32, %c1_257], %817 {strides = array<i32>} : memref<45x3xf32, #tpu.memory_space<vmem>>, vector<1x2xf32>,
    %834 = vector.extract_strided_slice %809 {offsets = [0, 0], sizes = [1, 256], strides = [1, 1]} : vector<1x384xf32> to vector<1x256xf32>
    %835 = arith.addf %832, %834 : vector<1x256xf32>
    %836 = arith.negf %835 : vector<1x256xf32>
    %837 = math.exp %836 : vector<1x256xf32>
    %cst_258 = arith.constant 1.000000e+00 : f32
    %838 = vector.broadcast %cst_258 : f32 to vector<1x256xf32>
    %839 = arith.addf %838, %837 : vector<1x256xf32>
    %840 = arith.divf %838, %839 : vector<1x256xf32>
    %841 = vector.extract_strided_slice %840 {offsets = [0, 0], sizes = [1, 64], strides = [1, 1]} : vector<1x256xf32> to vector<1x64xf32>
    %842 = vector.extract_strided_slice %840 {offsets = [0, 64], sizes = [1, 64], strides = [1, 1]} : vector<1x256xf32> to vector<1x64xf32>
    %843 = vector.extract_strided_slice %840 {offsets = [0, 128], sizes = [1, 64], strides = [1, 1]} : vector<1x256xf32> to vector<1x64xf32>
    %cst_259 = arith.constant 2.000000e+00 : f32
    %844 = vector.broadcast %cst_259 : f32 to vector<1x64xf32>
    %845 = arith.mulf %844, %843 : vector<1x64xf32>
    %cst_260 = arith.constant 1.000000e+00 : f32
    %846 = vector.broadcast %cst_260 : f32 to vector<1x64xf32>
    %847 = arith.subf %845, %846 : vector<1x64xf32>
    %848 = vector.extract_strided_slice %840 {offsets = [0, 192], sizes = [1, 64], strides = [1, 1]} : vector<1x256xf32> to vector<1x64xf32>
    %849 = arith.mulf %842, %805 : vector<1x64xf32>
    %850 = arith.mulf %841, %847 : vector<1x64xf32>
    %851 = arith.addf %849, %850 : vector<1x64xf32>
    %852 = math.tanh %851 : vector<1x64xf32>
    %853 = arith.mulf %848, %852 : vector<1x64xf32>
    %cst_261 = arith.constant dense<0.000000e+00> : vector<1x384xf32>
    %854 = tpu.matmul %853, %2, %cst_261 {dimension_numbers = #tpu.dot_dimension_numbers<[1], [0], [0], [1], [0, 0, 1, 1], [], []>} : vector<1x64xf32>, vector<64x384xf32>, vector<1x384xf32> -> vector<1x384xf32>
    %855 = arith.addf %854, %3 : vector<1x384xf32>
    %856 = vector.extract_strided_slice %855 {offsets = [0, 256], sizes = [1, 2], strides = [1, 1]} : vector<1x384xf32> to vector<1x2xf32>
    %cst_262 = arith.constant 0.000000e+00 : f32
    %857 = vector.broadcast %cst_262 : f32 to vector<1x2xf32>
    %858 = arith.cmpf ogt, %856, %857 : vector<1x2xf32>
    %859 = arith.extui %858 : vector<1x2xi1> to vector<1x2xi32>
    %860 = arith.sitofp %859 : vector<1x2xi32> to vector<1x2xf32>
    %861 = vector.extract_strided_slice %860 {offsets = [0, 0], sizes = [1, 1], strides = [1, 1]} : vector<1x2xf32> to vector<1x1xf32>
    %862 = vector.broadcast %861 : vector<1x1xf32> to vector<1x2xf32>
    %863 = arith.mulf %860, %862 : vector<1x2xf32>
    %864 = vector.extract_strided_slice %856 {offsets = [0, 0], sizes = [1, 1], strides = [1, 1]} : vector<1x2xf32> to vector<1x1xf32>
    %cst_263 = arith.constant 0.000000e+00 : f32
    %865 = vector.broadcast %cst_263 : f32 to vector<1x1xf32>
    %866 = arith.cmpf ogt, %864, %865 : vector<1x1xf32>
    %867 = vector.extract_strided_slice %856 {offsets = [0, 1], sizes = [1, 1], strides = [1, 1]} : vector<1x2xf32> to vector<1x1xf32>
    %cst_264 = arith.constant 0.000000e+00 : f32
    %868 = vector.broadcast %cst_264 : f32 to vector<1x1xf32>
    %869 = arith.cmpf ogt, %867, %868 : vector<1x1xf32>
    %c1_265 = arith.constant 1 : index
    %c0_266 = arith.constant 0 : index
    %870 = vector.load %arg0[%c1_265, %c0_266] : memref<11x384xf32, #tpu.memory_space<vmem>>, vector<1x256xf32>
    %c2_267 = arith.constant 2 : index
    %c0_268 = arith.constant 0 : index
    %871 = vector.load %arg0[%c2_267, %c0_268] : memref<11x384xf32, #tpu.memory_space<vmem>>, vector<1x256xf32>
    %c3_269 = arith.constant 3 : index
    %c0_270 = arith.constant 0 : index
    %872 = vector.load %arg0[%c3_269, %c0_270] : memref<11x384xf32, #tpu.memory_space<vmem>>, vector<1x256xf32>
    %873 = vector.shape_cast %869 : vector<1x1xi1> to vector<1x1xi1>
    %874 = vector.broadcast %873 : vector<1x1xi1> to vector<1x256xi1>
    %875 = arith.select %874, %872, %871 : vector<1x256xi1>, vector<1x256xf32>
    %876 = vector.shape_cast %866 : vector<1x1xi1> to vector<1x1xi1>
    %877 = vector.broadcast %876 : vector<1x1xi1> to vector<1x256xi1>
    %878 = arith.select %877, %875, %870 : vector<1x256xi1>, vector<1x256xf32>
    %c2_271 = arith.constant 2 : index
    %c1_272 = arith.constant 1 : index
    %879 = vector.load %arg2[%c2_271, %c1_272] : memref<45x3xf32, #tpu.memory_space<vmem>>, vector<1x2xf32>
    tpu.vector_store %arg2[%c2_271, %c1_272], %863 {strides = array<i32>} : memref<45x3xf32, #tpu.memory_space<vmem>>, vector<1x2xf32>,
    %880 = vector.extract_strided_slice %855 {offsets = [0, 0], sizes = [1, 256], strides = [1, 1]} : vector<1x384xf32> to vector<1x256xf32>
    %881 = arith.addf %878, %880 : vector<1x256xf32>
    %882 = arith.negf %881 : vector<1x256xf32>
    %883 = math.exp %882 : vector<1x256xf32>
    %cst_273 = arith.constant 1.000000e+00 : f32
    %884 = vector.broadcast %cst_273 : f32 to vector<1x256xf32>
    %885 = arith.addf %884, %883 : vector<1x256xf32>
    %886 = arith.divf %884, %885 : vector<1x256xf32>
    %887 = vector.extract_strided_slice %886 {offsets = [0, 0], sizes = [1, 64], strides = [1, 1]} : vector<1x256xf32> to vector<1x64xf32>
    %888 = vector.extract_strided_slice %886 {offsets = [0, 64], sizes = [1, 64], strides = [1, 1]} : vector<1x256xf32> to vector<1x64xf32>
    %889 = vector.extract_strided_slice %886 {offsets = [0, 128], sizes = [1, 64], strides = [1, 1]} : vector<1x256xf32> to vector<1x64xf32>
    %cst_274 = arith.constant 2.000000e+00 : f32
    %890 = vector.broadcast %cst_274 : f32 to vector<1x64xf32>
    %891 = arith.mulf %890, %889 : vector<1x64xf32>
    %cst_275 = arith.constant 1.000000e+00 : f32
    %892 = vector.broadcast %cst_275 : f32 to vector<1x64xf32>
    %893 = arith.subf %891, %892 : vector<1x64xf32>
    %894 = vector.extract_strided_slice %886 {offsets = [0, 192], sizes = [1, 64], strides = [1, 1]} : vector<1x256xf32> to vector<1x64xf32>
    %895 = arith.mulf %888, %851 : vector<1x64xf32>
    %896 = arith.mulf %887, %893 : vector<1x64xf32>
    %897 = arith.addf %895, %896 : vector<1x64xf32>
    %898 = math.tanh %897 : vector<1x64xf32>
    %899 = arith.mulf %894, %898 : vector<1x64xf32>
    %cst_276 = arith.constant dense<0.000000e+00> : vector<1x384xf32>
    %900 = tpu.matmul %899, %2, %cst_276 {dimension_numbers = #tpu.dot_dimension_numbers<[1], [0], [0], [1], [0, 0, 1, 1], [], []>} : vector<1x64xf32>, vector<64x384xf32>, vector<1x384xf32> -> vector<1x384xf32>
    %901 = arith.addf %900, %3 : vector<1x384xf32>
    %902 = vector.extract_strided_slice %901 {offsets = [0, 258], sizes = [1, 2], strides = [1, 1]} : vector<1x384xf32> to vector<1x2xf32>
    %cst_277 = arith.constant 0.000000e+00 : f32
    %903 = vector.broadcast %cst_277 : f32 to vector<1x2xf32>
    %904 = arith.cmpf ogt, %902, %903 : vector<1x2xf32>
    %905 = arith.extui %904 : vector<1x2xi1> to vector<1x2xi32>
    %906 = arith.sitofp %905 : vector<1x2xi32> to vector<1x2xf32>
    %907 = vector.extract_strided_slice %906 {offsets = [0, 0], sizes = [1, 1], strides = [1, 1]} : vector<1x2xf32> to vector<1x1xf32>
    %908 = vector.broadcast %907 : vector<1x1xf32> to vector<1x2xf32>
    %909 = arith.mulf %906, %908 : vector<1x2xf32>
    %910 = vector.extract_strided_slice %902 {offsets = [0, 0], sizes = [1, 1], strides = [1, 1]} : vector<1x2xf32> to vector<1x1xf32>
    %cst_278 = arith.constant 0.000000e+00 : f32
    %911 = vector.broadcast %cst_278 : f32 to vector<1x1xf32>
    %912 = arith.cmpf ogt, %910, %911 : vector<1x1xf32>
    %913 = vector.extract_strided_slice %902 {offsets = [0, 1], sizes = [1, 1], strides = [1, 1]} : vector<1x2xf32> to vector<1x1xf32>
    %cst_279 = arith.constant 0.000000e+00 : f32
    %914 = vector.broadcast %cst_279 : f32 to vector<1x1xf32>
    %915 = arith.cmpf ogt, %913, %914 : vector<1x1xf32>
    %c4_280 = arith.constant 4 : index
    %c0_281 = arith.constant 0 : index
    %916 = vector.load %arg0[%c4_280, %c0_281] : memref<11x384xf32, #tpu.memory_space<vmem>>, vector<1x256xf32>
    %c5_282 = arith.constant 5 : index
    %c0_283 = arith.constant 0 : index
    %917 = vector.load %arg0[%c5_282, %c0_283] : memref<11x384xf32, #tpu.memory_space<vmem>>, vector<1x256xf32>
    %c6_284 = arith.constant 6 : index
    %c0_285 = arith.constant 0 : index
    %918 = vector.load %arg0[%c6_284, %c0_285] : memref<11x384xf32, #tpu.memory_space<vmem>>, vector<1x256xf32>
    %919 = vector.shape_cast %915 : vector<1x1xi1> to vector<1x1xi1>
    %920 = vector.broadcast %919 : vector<1x1xi1> to vector<1x256xi1>
    %921 = arith.select %920, %918, %917 : vector<1x256xi1>, vector<1x256xf32>
    %922 = vector.shape_cast %912 : vector<1x1xi1> to vector<1x1xi1>
    %923 = vector.broadcast %922 : vector<1x1xi1> to vector<1x256xi1>
    %924 = arith.select %923, %921, %916 : vector<1x256xi1>, vector<1x256xf32>
    %c13 = arith.constant 13 : index
    %c1_286 = arith.constant 1 : index
    %925 = vector.load %arg2[%c13, %c1_286] : memref<45x3xf32, #tpu.memory_space<vmem>>, vector<1x2xf32>
    tpu.vector_store %arg2[%c13, %c1_286], %909 {strides = array<i32>} : memref<45x3xf32, #tpu.memory_space<vmem>>, vector<1x2xf32>,
    %926 = vector.extract_strided_slice %901 {offsets = [0, 0], sizes = [1, 256], strides = [1, 1]} : vector<1x384xf32> to vector<1x256xf32>
    %927 = arith.addf %924, %926 : vector<1x256xf32>
    %928 = arith.negf %927 : vector<1x256xf32>
    %929 = math.exp %928 : vector<1x256xf32>
    %cst_287 = arith.constant 1.000000e+00 : f32
    %930 = vector.broadcast %cst_287 : f32 to vector<1x256xf32>
    %931 = arith.addf %930, %929 : vector<1x256xf32>
    %932 = arith.divf %930, %931 : vector<1x256xf32>
    %933 = vector.extract_strided_slice %932 {offsets = [0, 0], sizes = [1, 64], strides = [1, 1]} : vector<1x256xf32> to vector<1x64xf32>
    %934 = vector.extract_strided_slice %932 {offsets = [0, 64], sizes = [1, 64], strides = [1, 1]} : vector<1x256xf32> to vector<1x64xf32>
    %935 = vector.extract_strided_slice %932 {offsets = [0, 128], sizes = [1, 64], strides = [1, 1]} : vector<1x256xf32> to vector<1x64xf32>
    %cst_288 = arith.constant 2.000000e+00 : f32
    %936 = vector.broadcast %cst_288 : f32 to vector<1x64xf32>
    %937 = arith.mulf %936, %935 : vector<1x64xf32>
    %cst_289 = arith.constant 1.000000e+00 : f32
    %938 = vector.broadcast %cst_289 : f32 to vector<1x64xf32>
    %939 = arith.subf %937, %938 : vector<1x64xf32>
    %940 = vector.extract_strided_slice %932 {offsets = [0, 192], sizes = [1, 64], strides = [1, 1]} : vector<1x256xf32> to vector<1x64xf32>
    %941 = arith.mulf %934, %897 : vector<1x64xf32>
    %942 = arith.mulf %933, %939 : vector<1x64xf32>
    %943 = arith.addf %941, %942 : vector<1x64xf32>
    %944 = math.tanh %943 : vector<1x64xf32>
    %945 = arith.mulf %940, %944 : vector<1x64xf32>
    %cst_290 = arith.constant dense<0.000000e+00> : vector<1x384xf32>
    %946 = tpu.matmul %945, %2, %cst_290 {dimension_numbers = #tpu.dot_dimension_numbers<[1], [0], [0], [1], [0, 0, 1, 1], [], []>} : vector<1x64xf32>, vector<64x384xf32>, vector<1x384xf32> -> vector<1x384xf32>
    %947 = arith.addf %946, %3 : vector<1x384xf32>
    %948 = vector.extract_strided_slice %947 {offsets = [0, 260], sizes = [1, 2], strides = [1, 1]} : vector<1x384xf32> to vector<1x2xf32>
    %cst_291 = arith.constant 0.000000e+00 : f32
    %949 = vector.broadcast %cst_291 : f32 to vector<1x2xf32>
    %950 = arith.cmpf ogt, %948, %949 : vector<1x2xf32>
    %951 = arith.extui %950 : vector<1x2xi1> to vector<1x2xi32>
    %952 = arith.sitofp %951 : vector<1x2xi32> to vector<1x2xf32>
    %953 = vector.extract_strided_slice %952 {offsets = [0, 0], sizes = [1, 1], strides = [1, 1]} : vector<1x2xf32> to vector<1x1xf32>
    %954 = vector.broadcast %953 : vector<1x1xf32> to vector<1x2xf32>
    %955 = arith.mulf %952, %954 : vector<1x2xf32>
    %956 = vector.extract_strided_slice %948 {offsets = [0, 0], sizes = [1, 1], strides = [1, 1]} : vector<1x2xf32> to vector<1x1xf32>
    %cst_292 = arith.constant 0.000000e+00 : f32
    %957 = vector.broadcast %cst_292 : f32 to vector<1x1xf32>
    %958 = arith.cmpf ogt, %956, %957 : vector<1x1xf32>
    %959 = vector.extract_strided_slice %948 {offsets = [0, 1], sizes = [1, 1], strides = [1, 1]} : vector<1x2xf32> to vector<1x1xf32>
    %cst_293 = arith.constant 0.000000e+00 : f32
    %960 = vector.broadcast %cst_293 : f32 to vector<1x1xf32>
    %961 = arith.cmpf ogt, %959, %960 : vector<1x1xf32>
    %c7_294 = arith.constant 7 : index
    %c0_295 = arith.constant 0 : index
    %962 = vector.load %arg0[%c7_294, %c0_295] : memref<11x384xf32, #tpu.memory_space<vmem>>, vector<1x256xf32>
    %c8_296 = arith.constant 8 : index
    %c0_297 = arith.constant 0 : index
    %963 = vector.load %arg0[%c8_296, %c0_297] : memref<11x384xf32, #tpu.memory_space<vmem>>, vector<1x256xf32>
    %c9_298 = arith.constant 9 : index
    %c0_299 = arith.constant 0 : index
    %964 = vector.load %arg0[%c9_298, %c0_299] : memref<11x384xf32, #tpu.memory_space<vmem>>, vector<1x256xf32>
    %965 = vector.shape_cast %961 : vector<1x1xi1> to vector<1x1xi1>
    %966 = vector.broadcast %965 : vector<1x1xi1> to vector<1x256xi1>
    %967 = arith.select %966, %964, %963 : vector<1x256xi1>, vector<1x256xf32>
    %968 = vector.shape_cast %958 : vector<1x1xi1> to vector<1x1xi1>
    %969 = vector.broadcast %968 : vector<1x1xi1> to vector<1x256xi1>
    %970 = arith.select %969, %967, %962 : vector<1x256xi1>, vector<1x256xf32>
    %c33 = arith.constant 33 : index
    %c1_300 = arith.constant 1 : index
    %971 = vector.load %arg2[%c33, %c1_300] : memref<45x3xf32, #tpu.memory_space<vmem>>, vector<1x2xf32>
    tpu.vector_store %arg2[%c33, %c1_300], %955 {strides = array<i32>} : memref<45x3xf32, #tpu.memory_space<vmem>>, vector<1x2xf32>,
    %972 = vector.extract_strided_slice %947 {offsets = [0, 0], sizes = [1, 256], strides = [1, 1]} : vector<1x384xf32> to vector<1x256xf32>
    %973 = arith.addf %970, %972 : vector<1x256xf32>
    %974 = arith.negf %973 : vector<1x256xf32>
    %975 = math.exp %974 : vector<1x256xf32>
    %cst_301 = arith.constant 1.000000e+00 : f32
    %976 = vector.broadcast %cst_301 : f32 to vector<1x256xf32>
    %977 = arith.addf %976, %975 : vector<1x256xf32>
    %978 = arith.divf %976, %977 : vector<1x256xf32>
    %979 = vector.extract_strided_slice %978 {offsets = [0, 0], sizes = [1, 64], strides = [1, 1]} : vector<1x256xf32> to vector<1x64xf32>
    %980 = vector.extract_strided_slice %978 {offsets = [0, 64], sizes = [1, 64], strides = [1, 1]} : vector<1x256xf32> to vector<1x64xf32>
    %981 = vector.extract_strided_slice %978 {offsets = [0, 128], sizes = [1, 64], strides = [1, 1]} : vector<1x256xf32> to vector<1x64xf32>
    %cst_302 = arith.constant 2.000000e+00 : f32
    %982 = vector.broadcast %cst_302 : f32 to vector<1x64xf32>
    %983 = arith.mulf %982, %981 : vector<1x64xf32>
    %cst_303 = arith.constant 1.000000e+00 : f32
    %984 = vector.broadcast %cst_303 : f32 to vector<1x64xf32>
    %985 = arith.subf %983, %984 : vector<1x64xf32>
    %986 = vector.extract_strided_slice %978 {offsets = [0, 192], sizes = [1, 64], strides = [1, 1]} : vector<1x256xf32> to vector<1x64xf32>
    %987 = arith.mulf %980, %943 : vector<1x64xf32>
    %988 = arith.mulf %979, %985 : vector<1x64xf32>
    %989 = arith.addf %987, %988 : vector<1x64xf32>
    %990 = math.tanh %989 : vector<1x64xf32>
    %991 = arith.mulf %986, %990 : vector<1x64xf32>
    %cst_304 = arith.constant dense<0.000000e+00> : vector<1x384xf32>
    %992 = tpu.matmul %991, %2, %cst_304 {dimension_numbers = #tpu.dot_dimension_numbers<[1], [0], [0], [1], [0, 0, 1, 1], [], []>} : vector<1x64xf32>, vector<64x384xf32>, vector<1x384xf32> -> vector<1x384xf32>
    %993 = arith.addf %992, %3 : vector<1x384xf32>
    %994 = vector.extract_strided_slice %993 {offsets = [0, 258], sizes = [1, 2], strides = [1, 1]} : vector<1x384xf32> to vector<1x2xf32>
    %cst_305 = arith.constant 0.000000e+00 : f32
    %995 = vector.broadcast %cst_305 : f32 to vector<1x2xf32>
    %996 = arith.cmpf ogt, %994, %995 : vector<1x2xf32>
    %997 = arith.extui %996 : vector<1x2xi1> to vector<1x2xi32>
    %998 = arith.sitofp %997 : vector<1x2xi32> to vector<1x2xf32>
    %999 = vector.extract_strided_slice %998 {offsets = [0, 0], sizes = [1, 1], strides = [1, 1]} : vector<1x2xf32> to vector<1x1xf32>
    %1000 = vector.broadcast %999 : vector<1x1xf32> to vector<1x2xf32>
    %1001 = arith.mulf %998, %1000 : vector<1x2xf32>
    %1002 = vector.extract_strided_slice %994 {offsets = [0, 0], sizes = [1, 1], strides = [1, 1]} : vector<1x2xf32> to vector<1x1xf32>
    %cst_306 = arith.constant 0.000000e+00 : f32
    %1003 = vector.broadcast %cst_306 : f32 to vector<1x1xf32>
    %1004 = arith.cmpf ogt, %1002, %1003 : vector<1x1xf32>
    %1005 = vector.extract_strided_slice %994 {offsets = [0, 1], sizes = [1, 1], strides = [1, 1]} : vector<1x2xf32> to vector<1x1xf32>
    %cst_307 = arith.constant 0.000000e+00 : f32
    %1006 = vector.broadcast %cst_307 : f32 to vector<1x1xf32>
    %1007 = arith.cmpf ogt, %1005, %1006 : vector<1x1xf32>
    %c4_308 = arith.constant 4 : index
    %c0_309 = arith.constant 0 : index
    %1008 = vector.load %arg0[%c4_308, %c0_309] : memref<11x384xf32, #tpu.memory_space<vmem>>, vector<1x256xf32>
    %c5_310 = arith.constant 5 : index
    %c0_311 = arith.constant 0 : index
    %1009 = vector.load %arg0[%c5_310, %c0_311] : memref<11x384xf32, #tpu.memory_space<vmem>>, vector<1x256xf32>
    %c6_312 = arith.constant 6 : index
    %c0_313 = arith.constant 0 : index
    %1010 = vector.load %arg0[%c6_312, %c0_313] : memref<11x384xf32, #tpu.memory_space<vmem>>, vector<1x256xf32>
    %1011 = vector.shape_cast %1007 : vector<1x1xi1> to vector<1x1xi1>
    %1012 = vector.broadcast %1011 : vector<1x1xi1> to vector<1x256xi1>
    %1013 = arith.select %1012, %1010, %1009 : vector<1x256xi1>, vector<1x256xf32>
    %1014 = vector.shape_cast %1004 : vector<1x1xi1> to vector<1x1xi1>
    %1015 = vector.broadcast %1014 : vector<1x1xi1> to vector<1x256xi1>
    %1016 = arith.select %1015, %1013, %1008 : vector<1x256xi1>, vector<1x256xf32>
    %c14 = arith.constant 14 : index
    %c1_314 = arith.constant 1 : index
    %1017 = vector.load %arg2[%c14, %c1_314] : memref<45x3xf32, #tpu.memory_space<vmem>>, vector<1x2xf32>
    tpu.vector_store %arg2[%c14, %c1_314], %1001 {strides = array<i32>} : memref<45x3xf32, #tpu.memory_space<vmem>>, vector<1x2xf32>,
    %1018 = vector.extract_strided_slice %993 {offsets = [0, 0], sizes = [1, 256], strides = [1, 1]} : vector<1x384xf32> to vector<1x256xf32>
    %1019 = arith.addf %1016, %1018 : vector<1x256xf32>
    %1020 = arith.negf %1019 : vector<1x256xf32>
    %1021 = math.exp %1020 : vector<1x256xf32>
    %cst_315 = arith.constant 1.000000e+00 : f32
    %1022 = vector.broadcast %cst_315 : f32 to vector<1x256xf32>
    %1023 = arith.addf %1022, %1021 : vector<1x256xf32>
    %1024 = arith.divf %1022, %1023 : vector<1x256xf32>
    %1025 = vector.extract_strided_slice %1024 {offsets = [0, 0], sizes = [1, 64], strides = [1, 1]} : vector<1x256xf32> to vector<1x64xf32>
    %1026 = vector.extract_strided_slice %1024 {offsets = [0, 64], sizes = [1, 64], strides = [1, 1]} : vector<1x256xf32> to vector<1x64xf32>
    %1027 = vector.extract_strided_slice %1024 {offsets = [0, 128], sizes = [1, 64], strides = [1, 1]} : vector<1x256xf32> to vector<1x64xf32>
    %cst_316 = arith.constant 2.000000e+00 : f32
    %1028 = vector.broadcast %cst_316 : f32 to vector<1x64xf32>
    %1029 = arith.mulf %1028, %1027 : vector<1x64xf32>
    %cst_317 = arith.constant 1.000000e+00 : f32
    %1030 = vector.broadcast %cst_317 : f32 to vector<1x64xf32>
    %1031 = arith.subf %1029, %1030 : vector<1x64xf32>
    %1032 = vector.extract_strided_slice %1024 {offsets = [0, 192], sizes = [1, 64], strides = [1, 1]} : vector<1x256xf32> to vector<1x64xf32>
    %1033 = arith.mulf %1026, %989 : vector<1x64xf32>
    %1034 = arith.mulf %1025, %1031 : vector<1x64xf32>
    %1035 = arith.addf %1033, %1034 : vector<1x64xf32>
    %1036 = math.tanh %1035 : vector<1x64xf32>
    %1037 = arith.mulf %1032, %1036 : vector<1x64xf32>
    %cst_318 = arith.constant dense<0.000000e+00> : vector<1x384xf32>
    %1038 = tpu.matmul %1037, %2, %cst_318 {dimension_numbers = #tpu.dot_dimension_numbers<[1], [0], [0], [1], [0, 0, 1, 1], [], []>} : vector<1x64xf32>, vector<64x384xf32>, vector<1x384xf32> -> vector<1x384xf32>
    %1039 = arith.addf %1038, %3 : vector<1x384xf32>
    %1040 = vector.extract_strided_slice %1039 {offsets = [0, 260], sizes = [1, 2], strides = [1, 1]} : vector<1x384xf32> to vector<1x2xf32>
    %cst_319 = arith.constant 0.000000e+00 : f32
    %1041 = vector.broadcast %cst_319 : f32 to vector<1x2xf32>
    %1042 = arith.cmpf ogt, %1040, %1041 : vector<1x2xf32>
    %1043 = arith.extui %1042 : vector<1x2xi1> to vector<1x2xi32>
    %1044 = arith.sitofp %1043 : vector<1x2xi32> to vector<1x2xf32>
    %1045 = vector.extract_strided_slice %1044 {offsets = [0, 0], sizes = [1, 1], strides = [1, 1]} : vector<1x2xf32> to vector<1x1xf32>
    %1046 = vector.broadcast %1045 : vector<1x1xf32> to vector<1x2xf32>
    %1047 = arith.mulf %1044, %1046 : vector<1x2xf32>
    %1048 = vector.extract_strided_slice %1040 {offsets = [0, 0], sizes = [1, 1], strides = [1, 1]} : vector<1x2xf32> to vector<1x1xf32>
    %cst_320 = arith.constant 0.000000e+00 : f32
    %1049 = vector.broadcast %cst_320 : f32 to vector<1x1xf32>
    %1050 = arith.cmpf ogt, %1048, %1049 : vector<1x1xf32>
    %1051 = vector.extract_strided_slice %1040 {offsets = [0, 1], sizes = [1, 1], strides = [1, 1]} : vector<1x2xf32> to vector<1x1xf32>
    %cst_321 = arith.constant 0.000000e+00 : f32
    %1052 = vector.broadcast %cst_321 : f32 to vector<1x1xf32>
    %1053 = arith.cmpf ogt, %1051, %1052 : vector<1x1xf32>
    %c7_322 = arith.constant 7 : index
    %c0_323 = arith.constant 0 : index
    %1054 = vector.load %arg0[%c7_322, %c0_323] : memref<11x384xf32, #tpu.memory_space<vmem>>, vector<1x256xf32>
    %c8_324 = arith.constant 8 : index
    %c0_325 = arith.constant 0 : index
    %1055 = vector.load %arg0[%c8_324, %c0_325] : memref<11x384xf32, #tpu.memory_space<vmem>>, vector<1x256xf32>
    %c9_326 = arith.constant 9 : index
    %c0_327 = arith.constant 0 : index
    %1056 = vector.load %arg0[%c9_326, %c0_327] : memref<11x384xf32, #tpu.memory_space<vmem>>, vector<1x256xf32>
    %1057 = vector.shape_cast %1053 : vector<1x1xi1> to vector<1x1xi1>
    %1058 = vector.broadcast %1057 : vector<1x1xi1> to vector<1x256xi1>
    %1059 = arith.select %1058, %1056, %1055 : vector<1x256xi1>, vector<1x256xf32>
    %1060 = vector.shape_cast %1050 : vector<1x1xi1> to vector<1x1xi1>
    %1061 = vector.broadcast %1060 : vector<1x1xi1> to vector<1x256xi1>
    %1062 = arith.select %1061, %1059, %1054 : vector<1x256xi1>, vector<1x256xf32>
    %c34 = arith.constant 34 : index
    %c1_328 = arith.constant 1 : index
    %1063 = vector.load %arg2[%c34, %c1_328] : memref<45x3xf32, #tpu.memory_space<vmem>>, vector<1x2xf32>
    tpu.vector_store %arg2[%c34, %c1_328], %1047 {strides = array<i32>} : memref<45x3xf32, #tpu.memory_space<vmem>>, vector<1x2xf32>,
    %1064 = vector.extract_strided_slice %1039 {offsets = [0, 0], sizes = [1, 256], strides = [1, 1]} : vector<1x384xf32> to vector<1x256xf32>
    %1065 = arith.addf %1062, %1064 : vector<1x256xf32>
    %1066 = arith.negf %1065 : vector<1x256xf32>
    %1067 = math.exp %1066 : vector<1x256xf32>
    %cst_329 = arith.constant 1.000000e+00 : f32
    %1068 = vector.broadcast %cst_329 : f32 to vector<1x256xf32>
    %1069 = arith.addf %1068, %1067 : vector<1x256xf32>
    %1070 = arith.divf %1068, %1069 : vector<1x256xf32>
    %1071 = vector.extract_strided_slice %1070 {offsets = [0, 0], sizes = [1, 64], strides = [1, 1]} : vector<1x256xf32> to vector<1x64xf32>
    %1072 = vector.extract_strided_slice %1070 {offsets = [0, 64], sizes = [1, 64], strides = [1, 1]} : vector<1x256xf32> to vector<1x64xf32>
    %1073 = vector.extract_strided_slice %1070 {offsets = [0, 128], sizes = [1, 64], strides = [1, 1]} : vector<1x256xf32> to vector<1x64xf32>
    %cst_330 = arith.constant 2.000000e+00 : f32
    %1074 = vector.broadcast %cst_330 : f32 to vector<1x64xf32>
    %1075 = arith.mulf %1074, %1073 : vector<1x64xf32>
    %cst_331 = arith.constant 1.000000e+00 : f32
    %1076 = vector.broadcast %cst_331 : f32 to vector<1x64xf32>
    %1077 = arith.subf %1075, %1076 : vector<1x64xf32>
    %1078 = vector.extract_strided_slice %1070 {offsets = [0, 192], sizes = [1, 64], strides = [1, 1]} : vector<1x256xf32> to vector<1x64xf32>
    %1079 = arith.mulf %1072, %1035 : vector<1x64xf32>
    %1080 = arith.mulf %1071, %1077 : vector<1x64xf32>
    %1081 = arith.addf %1079, %1080 : vector<1x64xf32>
    %1082 = math.tanh %1081 : vector<1x64xf32>
    %1083 = arith.mulf %1078, %1082 : vector<1x64xf32>
    %cst_332 = arith.constant dense<0.000000e+00> : vector<1x384xf32>
    %1084 = tpu.matmul %1083, %2, %cst_332 {dimension_numbers = #tpu.dot_dimension_numbers<[1], [0], [0], [1], [0, 0, 1, 1], [], []>} : vector<1x64xf32>, vector<64x384xf32>, vector<1x384xf32> -> vector<1x384xf32>
    %1085 = arith.addf %1084, %3 : vector<1x384xf32>
    %1086 = vector.extract_strided_slice %1085 {offsets = [0, 258], sizes = [1, 2], strides = [1, 1]} : vector<1x384xf32> to vector<1x2xf32>
    %cst_333 = arith.constant 0.000000e+00 : f32
    %1087 = vector.broadcast %cst_333 : f32 to vector<1x2xf32>
    %1088 = arith.cmpf ogt, %1086, %1087 : vector<1x2xf32>
    %1089 = arith.extui %1088 : vector<1x2xi1> to vector<1x2xi32>
    %1090 = arith.sitofp %1089 : vector<1x2xi32> to vector<1x2xf32>
    %1091 = vector.extract_strided_slice %1090 {offsets = [0, 0], sizes = [1, 1], strides = [1, 1]} : vector<1x2xf32> to vector<1x1xf32>
    %1092 = vector.broadcast %1091 : vector<1x1xf32> to vector<1x2xf32>
    %1093 = arith.mulf %1090, %1092 : vector<1x2xf32>
    %1094 = vector.extract_strided_slice %1086 {offsets = [0, 0], sizes = [1, 1], strides = [1, 1]} : vector<1x2xf32> to vector<1x1xf32>
    %cst_334 = arith.constant 0.000000e+00 : f32
    %1095 = vector.broadcast %cst_334 : f32 to vector<1x1xf32>
    %1096 = arith.cmpf ogt, %1094, %1095 : vector<1x1xf32>
    %1097 = vector.extract_strided_slice %1086 {offsets = [0, 1], sizes = [1, 1], strides = [1, 1]} : vector<1x2xf32> to vector<1x1xf32>
    %cst_335 = arith.constant 0.000000e+00 : f32
    %1098 = vector.broadcast %cst_335 : f32 to vector<1x1xf32>
    %1099 = arith.cmpf ogt, %1097, %1098 : vector<1x1xf32>
    %c4_336 = arith.constant 4 : index
    %c0_337 = arith.constant 0 : index
    %1100 = vector.load %arg0[%c4_336, %c0_337] : memref<11x384xf32, #tpu.memory_space<vmem>>, vector<1x256xf32>
    %c5_338 = arith.constant 5 : index
    %c0_339 = arith.constant 0 : index
    %1101 = vector.load %arg0[%c5_338, %c0_339] : memref<11x384xf32, #tpu.memory_space<vmem>>, vector<1x256xf32>
    %c6_340 = arith.constant 6 : index
    %c0_341 = arith.constant 0 : index
    %1102 = vector.load %arg0[%c6_340, %c0_341] : memref<11x384xf32, #tpu.memory_space<vmem>>, vector<1x256xf32>
    %1103 = vector.shape_cast %1099 : vector<1x1xi1> to vector<1x1xi1>
    %1104 = vector.broadcast %1103 : vector<1x1xi1> to vector<1x256xi1>
    %1105 = arith.select %1104, %1102, %1101 : vector<1x256xi1>, vector<1x256xf32>
    %1106 = vector.shape_cast %1096 : vector<1x1xi1> to vector<1x1xi1>
    %1107 = vector.broadcast %1106 : vector<1x1xi1> to vector<1x256xi1>
    %1108 = arith.select %1107, %1105, %1100 : vector<1x256xi1>, vector<1x256xf32>
    %c15 = arith.constant 15 : index
    %c1_342 = arith.constant 1 : index
    %1109 = vector.load %arg2[%c15, %c1_342] : memref<45x3xf32, #tpu.memory_space<vmem>>, vector<1x2xf32>
    tpu.vector_store %arg2[%c15, %c1_342], %1093 {strides = array<i32>} : memref<45x3xf32, #tpu.memory_space<vmem>>, vector<1x2xf32>,
    %1110 = vector.extract_strided_slice %1085 {offsets = [0, 0], sizes = [1, 256], strides = [1, 1]} : vector<1x384xf32> to vector<1x256xf32>
    %1111 = arith.addf %1108, %1110 : vector<1x256xf32>
    %1112 = arith.negf %1111 : vector<1x256xf32>
    %1113 = math.exp %1112 : vector<1x256xf32>
    %cst_343 = arith.constant 1.000000e+00 : f32
    %1114 = vector.broadcast %cst_343 : f32 to vector<1x256xf32>
    %1115 = arith.addf %1114, %1113 : vector<1x256xf32>
    %1116 = arith.divf %1114, %1115 : vector<1x256xf32>
    %1117 = vector.extract_strided_slice %1116 {offsets = [0, 0], sizes = [1, 64], strides = [1, 1]} : vector<1x256xf32> to vector<1x64xf32>
    %1118 = vector.extract_strided_slice %1116 {offsets = [0, 64], sizes = [1, 64], strides = [1, 1]} : vector<1x256xf32> to vector<1x64xf32>
    %1119 = vector.extract_strided_slice %1116 {offsets = [0, 128], sizes = [1, 64], strides = [1, 1]} : vector<1x256xf32> to vector<1x64xf32>
    %cst_344 = arith.constant 2.000000e+00 : f32
    %1120 = vector.broadcast %cst_344 : f32 to vector<1x64xf32>
    %1121 = arith.mulf %1120, %1119 : vector<1x64xf32>
    %cst_345 = arith.constant 1.000000e+00 : f32
    %1122 = vector.broadcast %cst_345 : f32 to vector<1x64xf32>
    %1123 = arith.subf %1121, %1122 : vector<1x64xf32>
    %1124 = vector.extract_strided_slice %1116 {offsets = [0, 192], sizes = [1, 64], strides = [1, 1]} : vector<1x256xf32> to vector<1x64xf32>
    %1125 = arith.mulf %1118, %1081 : vector<1x64xf32>
    %1126 = arith.mulf %1117, %1123 : vector<1x64xf32>
    %1127 = arith.addf %1125, %1126 : vector<1x64xf32>
    %1128 = math.tanh %1127 : vector<1x64xf32>
    %1129 = arith.mulf %1124, %1128 : vector<1x64xf32>
    %cst_346 = arith.constant dense<0.000000e+00> : vector<1x384xf32>
    %1130 = tpu.matmul %1129, %2, %cst_346 {dimension_numbers = #tpu.dot_dimension_numbers<[1], [0], [0], [1], [0, 0, 1, 1], [], []>} : vector<1x64xf32>, vector<64x384xf32>, vector<1x384xf32> -> vector<1x384xf32>
    %1131 = arith.addf %1130, %3 : vector<1x384xf32>
    %1132 = vector.extract_strided_slice %1131 {offsets = [0, 260], sizes = [1, 2], strides = [1, 1]} : vector<1x384xf32> to vector<1x2xf32>
    %cst_347 = arith.constant 0.000000e+00 : f32
    %1133 = vector.broadcast %cst_347 : f32 to vector<1x2xf32>
    %1134 = arith.cmpf ogt, %1132, %1133 : vector<1x2xf32>
    %1135 = arith.extui %1134 : vector<1x2xi1> to vector<1x2xi32>
    %1136 = arith.sitofp %1135 : vector<1x2xi32> to vector<1x2xf32>
    %1137 = vector.extract_strided_slice %1136 {offsets = [0, 0], sizes = [1, 1], strides = [1, 1]} : vector<1x2xf32> to vector<1x1xf32>
    %1138 = vector.broadcast %1137 : vector<1x1xf32> to vector<1x2xf32>
    %1139 = arith.mulf %1136, %1138 : vector<1x2xf32>
    %1140 = vector.extract_strided_slice %1132 {offsets = [0, 0], sizes = [1, 1], strides = [1, 1]} : vector<1x2xf32> to vector<1x1xf32>
    %cst_348 = arith.constant 0.000000e+00 : f32
    %1141 = vector.broadcast %cst_348 : f32 to vector<1x1xf32>
    %1142 = arith.cmpf ogt, %1140, %1141 : vector<1x1xf32>
    %1143 = vector.extract_strided_slice %1132 {offsets = [0, 1], sizes = [1, 1], strides = [1, 1]} : vector<1x2xf32> to vector<1x1xf32>
    %cst_349 = arith.constant 0.000000e+00 : f32
    %1144 = vector.broadcast %cst_349 : f32 to vector<1x1xf32>
    %1145 = arith.cmpf ogt, %1143, %1144 : vector<1x1xf32>
    %c7_350 = arith.constant 7 : index
    %c0_351 = arith.constant 0 : index
    %1146 = vector.load %arg0[%c7_350, %c0_351] : memref<11x384xf32, #tpu.memory_space<vmem>>, vector<1x256xf32>
    %c8_352 = arith.constant 8 : index
    %c0_353 = arith.constant 0 : index
    %1147 = vector.load %arg0[%c8_352, %c0_353] : memref<11x384xf32, #tpu.memory_space<vmem>>, vector<1x256xf32>
    %c9_354 = arith.constant 9 : index
    %c0_355 = arith.constant 0 : index
    %1148 = vector.load %arg0[%c9_354, %c0_355] : memref<11x384xf32, #tpu.memory_space<vmem>>, vector<1x256xf32>
    %1149 = vector.shape_cast %1145 : vector<1x1xi1> to vector<1x1xi1>
    %1150 = vector.broadcast %1149 : vector<1x1xi1> to vector<1x256xi1>
    %1151 = arith.select %1150, %1148, %1147 : vector<1x256xi1>, vector<1x256xf32>
    %1152 = vector.shape_cast %1142 : vector<1x1xi1> to vector<1x1xi1>
    %1153 = vector.broadcast %1152 : vector<1x1xi1> to vector<1x256xi1>
    %1154 = arith.select %1153, %1151, %1146 : vector<1x256xi1>, vector<1x256xf32>
    %c35 = arith.constant 35 : index
    %c1_356 = arith.constant 1 : index
    %1155 = vector.load %arg2[%c35, %c1_356] : memref<45x3xf32, #tpu.memory_space<vmem>>, vector<1x2xf32>
    tpu.vector_store %arg2[%c35, %c1_356], %1139 {strides = array<i32>} : memref<45x3xf32, #tpu.memory_space<vmem>>, vector<1x2xf32>,
    %1156 = vector.extract_strided_slice %1131 {offsets = [0, 0], sizes = [1, 256], strides = [1, 1]} : vector<1x384xf32> to vector<1x256xf32>
    %1157 = arith.addf %1154, %1156 : vector<1x256xf32>
    %1158 = arith.negf %1157 : vector<1x256xf32>
    %1159 = math.exp %1158 : vector<1x256xf32>
    %cst_357 = arith.constant 1.000000e+00 : f32
    %1160 = vector.broadcast %cst_357 : f32 to vector<1x256xf32>
    %1161 = arith.addf %1160, %1159 : vector<1x256xf32>
    %1162 = arith.divf %1160, %1161 : vector<1x256xf32>
    %1163 = vector.extract_strided_slice %1162 {offsets = [0, 0], sizes = [1, 64], strides = [1, 1]} : vector<1x256xf32> to vector<1x64xf32>
    %1164 = vector.extract_strided_slice %1162 {offsets = [0, 64], sizes = [1, 64], strides = [1, 1]} : vector<1x256xf32> to vector<1x64xf32>
    %1165 = vector.extract_strided_slice %1162 {offsets = [0, 128], sizes = [1, 64], strides = [1, 1]} : vector<1x256xf32> to vector<1x64xf32>
    %cst_358 = arith.constant 2.000000e+00 : f32
    %1166 = vector.broadcast %cst_358 : f32 to vector<1x64xf32>
    %1167 = arith.mulf %1166, %1165 : vector<1x64xf32>
    %cst_359 = arith.constant 1.000000e+00 : f32
    %1168 = vector.broadcast %cst_359 : f32 to vector<1x64xf32>
    %1169 = arith.subf %1167, %1168 : vector<1x64xf32>
    %1170 = vector.extract_strided_slice %1162 {offsets = [0, 192], sizes = [1, 64], strides = [1, 1]} : vector<1x256xf32> to vector<1x64xf32>
    %1171 = arith.mulf %1164, %1127 : vector<1x64xf32>
    %1172 = arith.mulf %1163, %1169 : vector<1x64xf32>
    %1173 = arith.addf %1171, %1172 : vector<1x64xf32>
    %1174 = math.tanh %1173 : vector<1x64xf32>
    %1175 = arith.mulf %1170, %1174 : vector<1x64xf32>
    %cst_360 = arith.constant dense<0.000000e+00> : vector<1x384xf32>
    %1176 = tpu.matmul %1175, %2, %cst_360 {dimension_numbers = #tpu.dot_dimension_numbers<[1], [0], [0], [1], [0, 0, 1, 1], [], []>} : vector<1x64xf32>, vector<64x384xf32>, vector<1x384xf32> -> vector<1x384xf32>
    %1177 = arith.addf %1176, %3 : vector<1x384xf32>
    %1178 = vector.extract_strided_slice %1177 {offsets = [0, 258], sizes = [1, 2], strides = [1, 1]} : vector<1x384xf32> to vector<1x2xf32>
    %cst_361 = arith.constant 0.000000e+00 : f32
    %1179 = vector.broadcast %cst_361 : f32 to vector<1x2xf32>
    %1180 = arith.cmpf ogt, %1178, %1179 : vector<1x2xf32>
    %1181 = arith.extui %1180 : vector<1x2xi1> to vector<1x2xi32>
    %1182 = arith.sitofp %1181 : vector<1x2xi32> to vector<1x2xf32>
    %1183 = vector.extract_strided_slice %1182 {offsets = [0, 0], sizes = [1, 1], strides = [1, 1]} : vector<1x2xf32> to vector<1x1xf32>
    %1184 = vector.broadcast %1183 : vector<1x1xf32> to vector<1x2xf32>
    %1185 = arith.mulf %1182, %1184 : vector<1x2xf32>
    %1186 = vector.extract_strided_slice %1178 {offsets = [0, 0], sizes = [1, 1], strides = [1, 1]} : vector<1x2xf32> to vector<1x1xf32>
    %cst_362 = arith.constant 0.000000e+00 : f32
    %1187 = vector.broadcast %cst_362 : f32 to vector<1x1xf32>
    %1188 = arith.cmpf ogt, %1186, %1187 : vector<1x1xf32>
    %1189 = vector.extract_strided_slice %1178 {offsets = [0, 1], sizes = [1, 1], strides = [1, 1]} : vector<1x2xf32> to vector<1x1xf32>
    %cst_363 = arith.constant 0.000000e+00 : f32
    %1190 = vector.broadcast %cst_363 : f32 to vector<1x1xf32>
    %1191 = arith.cmpf ogt, %1189, %1190 : vector<1x1xf32>
    %c4_364 = arith.constant 4 : index
    %c0_365 = arith.constant 0 : index
    %1192 = vector.load %arg0[%c4_364, %c0_365] : memref<11x384xf32, #tpu.memory_space<vmem>>, vector<1x256xf32>
    %c5_366 = arith.constant 5 : index
    %c0_367 = arith.constant 0 : index
    %1193 = vector.load %arg0[%c5_366, %c0_367] : memref<11x384xf32, #tpu.memory_space<vmem>>, vector<1x256xf32>
    %c6_368 = arith.constant 6 : index
    %c0_369 = arith.constant 0 : index
    %1194 = vector.load %arg0[%c6_368, %c0_369] : memref<11x384xf32, #tpu.memory_space<vmem>>, vector<1x256xf32>
    %1195 = vector.shape_cast %1191 : vector<1x1xi1> to vector<1x1xi1>
    %1196 = vector.broadcast %1195 : vector<1x1xi1> to vector<1x256xi1>
    %1197 = arith.select %1196, %1194, %1193 : vector<1x256xi1>, vector<1x256xf32>
    %1198 = vector.shape_cast %1188 : vector<1x1xi1> to vector<1x1xi1>
    %1199 = vector.broadcast %1198 : vector<1x1xi1> to vector<1x256xi1>
    %1200 = arith.select %1199, %1197, %1192 : vector<1x256xi1>, vector<1x256xf32>
    %c16 = arith.constant 16 : index
    %c1_370 = arith.constant 1 : index
    %1201 = vector.load %arg2[%c16, %c1_370] : memref<45x3xf32, #tpu.memory_space<vmem>>, vector<1x2xf32>
    tpu.vector_store %arg2[%c16, %c1_370], %1185 {strides = array<i32>} : memref<45x3xf32, #tpu.memory_space<vmem>>, vector<1x2xf32>,
    %1202 = vector.extract_strided_slice %1177 {offsets = [0, 0], sizes = [1, 256], strides = [1, 1]} : vector<1x384xf32> to vector<1x256xf32>
    %1203 = arith.addf %1200, %1202 : vector<1x256xf32>
    %1204 = arith.negf %1203 : vector<1x256xf32>
    %1205 = math.exp %1204 : vector<1x256xf32>
    %cst_371 = arith.constant 1.000000e+00 : f32
    %1206 = vector.broadcast %cst_371 : f32 to vector<1x256xf32>
    %1207 = arith.addf %1206, %1205 : vector<1x256xf32>
    %1208 = arith.divf %1206, %1207 : vector<1x256xf32>
    %1209 = vector.extract_strided_slice %1208 {offsets = [0, 0], sizes = [1, 64], strides = [1, 1]} : vector<1x256xf32> to vector<1x64xf32>
    %1210 = vector.extract_strided_slice %1208 {offsets = [0, 64], sizes = [1, 64], strides = [1, 1]} : vector<1x256xf32> to vector<1x64xf32>
    %1211 = vector.extract_strided_slice %1208 {offsets = [0, 128], sizes = [1, 64], strides = [1, 1]} : vector<1x256xf32> to vector<1x64xf32>
    %cst_372 = arith.constant 2.000000e+00 : f32
    %1212 = vector.broadcast %cst_372 : f32 to vector<1x64xf32>
    %1213 = arith.mulf %1212, %1211 : vector<1x64xf32>
    %cst_373 = arith.constant 1.000000e+00 : f32
    %1214 = vector.broadcast %cst_373 : f32 to vector<1x64xf32>
    %1215 = arith.subf %1213, %1214 : vector<1x64xf32>
    %1216 = vector.extract_strided_slice %1208 {offsets = [0, 192], sizes = [1, 64], strides = [1, 1]} : vector<1x256xf32> to vector<1x64xf32>
    %1217 = arith.mulf %1210, %1173 : vector<1x64xf32>
    %1218 = arith.mulf %1209, %1215 : vector<1x64xf32>
    %1219 = arith.addf %1217, %1218 : vector<1x64xf32>
    %1220 = math.tanh %1219 : vector<1x64xf32>
    %1221 = arith.mulf %1216, %1220 : vector<1x64xf32>
    %cst_374 = arith.constant dense<0.000000e+00> : vector<1x384xf32>
    %1222 = tpu.matmul %1221, %2, %cst_374 {dimension_numbers = #tpu.dot_dimension_numbers<[1], [0], [0], [1], [0, 0, 1, 1], [], []>} : vector<1x64xf32>, vector<64x384xf32>, vector<1x384xf32> -> vector<1x384xf32>
    %1223 = arith.addf %1222, %3 : vector<1x384xf32>
    %1224 = vector.extract_strided_slice %1223 {offsets = [0, 260], sizes = [1, 2], strides = [1, 1]} : vector<1x384xf32> to vector<1x2xf32>
    %cst_375 = arith.constant 0.000000e+00 : f32
    %1225 = vector.broadcast %cst_375 : f32 to vector<1x2xf32>
    %1226 = arith.cmpf ogt, %1224, %1225 : vector<1x2xf32>
    %1227 = arith.extui %1226 : vector<1x2xi1> to vector<1x2xi32>
    %1228 = arith.sitofp %1227 : vector<1x2xi32> to vector<1x2xf32>
    %1229 = vector.extract_strided_slice %1228 {offsets = [0, 0], sizes = [1, 1], strides = [1, 1]} : vector<1x2xf32> to vector<1x1xf32>
    %1230 = vector.broadcast %1229 : vector<1x1xf32> to vector<1x2xf32>
    %1231 = arith.mulf %1228, %1230 : vector<1x2xf32>
    %1232 = vector.extract_strided_slice %1224 {offsets = [0, 0], sizes = [1, 1], strides = [1, 1]} : vector<1x2xf32> to vector<1x1xf32>
    %cst_376 = arith.constant 0.000000e+00 : f32
    %1233 = vector.broadcast %cst_376 : f32 to vector<1x1xf32>
    %1234 = arith.cmpf ogt, %1232, %1233 : vector<1x1xf32>
    %1235 = vector.extract_strided_slice %1224 {offsets = [0, 1], sizes = [1, 1], strides = [1, 1]} : vector<1x2xf32> to vector<1x1xf32>
    %cst_377 = arith.constant 0.000000e+00 : f32
    %1236 = vector.broadcast %cst_377 : f32 to vector<1x1xf32>
    %1237 = arith.cmpf ogt, %1235, %1236 : vector<1x1xf32>
    %c7_378 = arith.constant 7 : index
    %c0_379 = arith.constant 0 : index
    %1238 = vector.load %arg0[%c7_378, %c0_379] : memref<11x384xf32, #tpu.memory_space<vmem>>, vector<1x256xf32>
    %c8_380 = arith.constant 8 : index
    %c0_381 = arith.constant 0 : index
    %1239 = vector.load %arg0[%c8_380, %c0_381] : memref<11x384xf32, #tpu.memory_space<vmem>>, vector<1x256xf32>
    %c9_382 = arith.constant 9 : index
    %c0_383 = arith.constant 0 : index
    %1240 = vector.load %arg0[%c9_382, %c0_383] : memref<11x384xf32, #tpu.memory_space<vmem>>, vector<1x256xf32>
    %1241 = vector.shape_cast %1237 : vector<1x1xi1> to vector<1x1xi1>
    %1242 = vector.broadcast %1241 : vector<1x1xi1> to vector<1x256xi1>
    %1243 = arith.select %1242, %1240, %1239 : vector<1x256xi1>, vector<1x256xf32>
    %1244 = vector.shape_cast %1234 : vector<1x1xi1> to vector<1x1xi1>
    %1245 = vector.broadcast %1244 : vector<1x1xi1> to vector<1x256xi1>
    %1246 = arith.select %1245, %1243, %1238 : vector<1x256xi1>, vector<1x256xf32>
    %c36 = arith.constant 36 : index
    %c1_384 = arith.constant 1 : index
    %1247 = vector.load %arg2[%c36, %c1_384] : memref<45x3xf32, #tpu.memory_space<vmem>>, vector<1x2xf32>
    tpu.vector_store %arg2[%c36, %c1_384], %1231 {strides = array<i32>} : memref<45x3xf32, #tpu.memory_space<vmem>>, vector<1x2xf32>,
    %1248 = vector.extract_strided_slice %1223 {offsets = [0, 0], sizes = [1, 256], strides = [1, 1]} : vector<1x384xf32> to vector<1x256xf32>
    %1249 = arith.addf %1246, %1248 : vector<1x256xf32>
    %1250 = arith.negf %1249 : vector<1x256xf32>
    %1251 = math.exp %1250 : vector<1x256xf32>
    %cst_385 = arith.constant 1.000000e+00 : f32
    %1252 = vector.broadcast %cst_385 : f32 to vector<1x256xf32>
    %1253 = arith.addf %1252, %1251 : vector<1x256xf32>
    %1254 = arith.divf %1252, %1253 : vector<1x256xf32>
    %1255 = vector.extract_strided_slice %1254 {offsets = [0, 0], sizes = [1, 64], strides = [1, 1]} : vector<1x256xf32> to vector<1x64xf32>
    %1256 = vector.extract_strided_slice %1254 {offsets = [0, 64], sizes = [1, 64], strides = [1, 1]} : vector<1x256xf32> to vector<1x64xf32>
    %1257 = vector.extract_strided_slice %1254 {offsets = [0, 128], sizes = [1, 64], strides = [1, 1]} : vector<1x256xf32> to vector<1x64xf32>
    %cst_386 = arith.constant 2.000000e+00 : f32
    %1258 = vector.broadcast %cst_386 : f32 to vector<1x64xf32>
    %1259 = arith.mulf %1258, %1257 : vector<1x64xf32>
    %cst_387 = arith.constant 1.000000e+00 : f32
    %1260 = vector.broadcast %cst_387 : f32 to vector<1x64xf32>
    %1261 = arith.subf %1259, %1260 : vector<1x64xf32>
    %1262 = vector.extract_strided_slice %1254 {offsets = [0, 192], sizes = [1, 64], strides = [1, 1]} : vector<1x256xf32> to vector<1x64xf32>
    %1263 = arith.mulf %1256, %1219 : vector<1x64xf32>
    %1264 = arith.mulf %1255, %1261 : vector<1x64xf32>
    %1265 = arith.addf %1263, %1264 : vector<1x64xf32>
    %1266 = math.tanh %1265 : vector<1x64xf32>
    %1267 = arith.mulf %1262, %1266 : vector<1x64xf32>
    %cst_388 = arith.constant dense<0.000000e+00> : vector<1x384xf32>
    %1268 = tpu.matmul %1267, %2, %cst_388 {dimension_numbers = #tpu.dot_dimension_numbers<[1], [0], [0], [1], [0, 0, 1, 1], [], []>} : vector<1x64xf32>, vector<64x384xf32>, vector<1x384xf32> -> vector<1x384xf32>
    %1269 = arith.addf %1268, %3 : vector<1x384xf32>
    %1270 = vector.extract_strided_slice %1269 {offsets = [0, 256], sizes = [1, 2], strides = [1, 1]} : vector<1x384xf32> to vector<1x2xf32>
    %cst_389 = arith.constant 0.000000e+00 : f32
    %1271 = vector.broadcast %cst_389 : f32 to vector<1x2xf32>
    %1272 = arith.cmpf ogt, %1270, %1271 : vector<1x2xf32>
    %1273 = arith.extui %1272 : vector<1x2xi1> to vector<1x2xi32>
    %1274 = arith.sitofp %1273 : vector<1x2xi32> to vector<1x2xf32>
    %1275 = vector.extract_strided_slice %1274 {offsets = [0, 0], sizes = [1, 1], strides = [1, 1]} : vector<1x2xf32> to vector<1x1xf32>
    %1276 = vector.broadcast %1275 : vector<1x1xf32> to vector<1x2xf32>
    %1277 = arith.mulf %1274, %1276 : vector<1x2xf32>
    %1278 = vector.extract_strided_slice %1270 {offsets = [0, 0], sizes = [1, 1], strides = [1, 1]} : vector<1x2xf32> to vector<1x1xf32>
    %cst_390 = arith.constant 0.000000e+00 : f32
    %1279 = vector.broadcast %cst_390 : f32 to vector<1x1xf32>
    %1280 = arith.cmpf ogt, %1278, %1279 : vector<1x1xf32>
    %1281 = vector.extract_strided_slice %1270 {offsets = [0, 1], sizes = [1, 1], strides = [1, 1]} : vector<1x2xf32> to vector<1x1xf32>
    %cst_391 = arith.constant 0.000000e+00 : f32
    %1282 = vector.broadcast %cst_391 : f32 to vector<1x1xf32>
    %1283 = arith.cmpf ogt, %1281, %1282 : vector<1x1xf32>
    %c1_392 = arith.constant 1 : index
    %c0_393 = arith.constant 0 : index
    %1284 = vector.load %arg0[%c1_392, %c0_393] : memref<11x384xf32, #tpu.memory_space<vmem>>, vector<1x256xf32>
    %c2_394 = arith.constant 2 : index
    %c0_395 = arith.constant 0 : index
    %1285 = vector.load %arg0[%c2_394, %c0_395] : memref<11x384xf32, #tpu.memory_space<vmem>>, vector<1x256xf32>
    %c3_396 = arith.constant 3 : index
    %c0_397 = arith.constant 0 : index
    %1286 = vector.load %arg0[%c3_396, %c0_397] : memref<11x384xf32, #tpu.memory_space<vmem>>, vector<1x256xf32>
    %1287 = vector.shape_cast %1283 : vector<1x1xi1> to vector<1x1xi1>
    %1288 = vector.broadcast %1287 : vector<1x1xi1> to vector<1x256xi1>
    %1289 = arith.select %1288, %1286, %1285 : vector<1x256xi1>, vector<1x256xf32>
    %1290 = vector.shape_cast %1280 : vector<1x1xi1> to vector<1x1xi1>
    %1291 = vector.broadcast %1290 : vector<1x1xi1> to vector<1x256xi1>
    %1292 = arith.select %1291, %1289, %1284 : vector<1x256xi1>, vector<1x256xf32>
    %c3_398 = arith.constant 3 : index
    %c1_399 = arith.constant 1 : index
    %1293 = vector.load %arg2[%c3_398, %c1_399] : memref<45x3xf32, #tpu.memory_space<vmem>>, vector<1x2xf32>
    tpu.vector_store %arg2[%c3_398, %c1_399], %1277 {strides = array<i32>} : memref<45x3xf32, #tpu.memory_space<vmem>>, vector<1x2xf32>,
    %1294 = vector.extract_strided_slice %1269 {offsets = [0, 0], sizes = [1, 256], strides = [1, 1]} : vector<1x384xf32> to vector<1x256xf32>
    %1295 = arith.addf %1292, %1294 : vector<1x256xf32>
    %1296 = arith.negf %1295 : vector<1x256xf32>
    %1297 = math.exp %1296 : vector<1x256xf32>
    %cst_400 = arith.constant 1.000000e+00 : f32
    %1298 = vector.broadcast %cst_400 : f32 to vector<1x256xf32>
    %1299 = arith.addf %1298, %1297 : vector<1x256xf32>
    %1300 = arith.divf %1298, %1299 : vector<1x256xf32>
    %1301 = vector.extract_strided_slice %1300 {offsets = [0, 0], sizes = [1, 64], strides = [1, 1]} : vector<1x256xf32> to vector<1x64xf32>
    %1302 = vector.extract_strided_slice %1300 {offsets = [0, 64], sizes = [1, 64], strides = [1, 1]} : vector<1x256xf32> to vector<1x64xf32>
    %1303 = vector.extract_strided_slice %1300 {offsets = [0, 128], sizes = [1, 64], strides = [1, 1]} : vector<1x256xf32> to vector<1x64xf32>
    %cst_401 = arith.constant 2.000000e+00 : f32
    %1304 = vector.broadcast %cst_401 : f32 to vector<1x64xf32>
    %1305 = arith.mulf %1304, %1303 : vector<1x64xf32>
    %cst_402 = arith.constant 1.000000e+00 : f32
    %1306 = vector.broadcast %cst_402 : f32 to vector<1x64xf32>
    %1307 = arith.subf %1305, %1306 : vector<1x64xf32>
    %1308 = vector.extract_strided_slice %1300 {offsets = [0, 192], sizes = [1, 64], strides = [1, 1]} : vector<1x256xf32> to vector<1x64xf32>
    %1309 = arith.mulf %1302, %1265 : vector<1x64xf32>
    %1310 = arith.mulf %1301, %1307 : vector<1x64xf32>
    %1311 = arith.addf %1309, %1310 : vector<1x64xf32>
    %1312 = math.tanh %1311 : vector<1x64xf32>
    %1313 = arith.mulf %1308, %1312 : vector<1x64xf32>
    %cst_403 = arith.constant dense<0.000000e+00> : vector<1x384xf32>
    %1314 = tpu.matmul %1313, %2, %cst_403 {dimension_numbers = #tpu.dot_dimension_numbers<[1], [0], [0], [1], [0, 0, 1, 1], [], []>} : vector<1x64xf32>, vector<64x384xf32>, vector<1x384xf32> -> vector<1x384xf32>
    %1315 = arith.addf %1314, %3 : vector<1x384xf32>
    %1316 = vector.extract_strided_slice %1315 {offsets = [0, 258], sizes = [1, 2], strides = [1, 1]} : vector<1x384xf32> to vector<1x2xf32>
    %cst_404 = arith.constant 0.000000e+00 : f32
    %1317 = vector.broadcast %cst_404 : f32 to vector<1x2xf32>
    %1318 = arith.cmpf ogt, %1316, %1317 : vector<1x2xf32>
    %1319 = arith.extui %1318 : vector<1x2xi1> to vector<1x2xi32>
    %1320 = arith.sitofp %1319 : vector<1x2xi32> to vector<1x2xf32>
    %1321 = vector.extract_strided_slice %1320 {offsets = [0, 0], sizes = [1, 1], strides = [1, 1]} : vector<1x2xf32> to vector<1x1xf32>
    %1322 = vector.broadcast %1321 : vector<1x1xf32> to vector<1x2xf32>
    %1323 = arith.mulf %1320, %1322 : vector<1x2xf32>
    %1324 = vector.extract_strided_slice %1316 {offsets = [0, 0], sizes = [1, 1], strides = [1, 1]} : vector<1x2xf32> to vector<1x1xf32>
    %cst_405 = arith.constant 0.000000e+00 : f32
    %1325 = vector.broadcast %cst_405 : f32 to vector<1x1xf32>
    %1326 = arith.cmpf ogt, %1324, %1325 : vector<1x1xf32>
    %1327 = vector.extract_strided_slice %1316 {offsets = [0, 1], sizes = [1, 1], strides = [1, 1]} : vector<1x2xf32> to vector<1x1xf32>
    %cst_406 = arith.constant 0.000000e+00 : f32
    %1328 = vector.broadcast %cst_406 : f32 to vector<1x1xf32>
    %1329 = arith.cmpf ogt, %1327, %1328 : vector<1x1xf32>
    %c4_407 = arith.constant 4 : index
    %c0_408 = arith.constant 0 : index
    %1330 = vector.load %arg0[%c4_407, %c0_408] : memref<11x384xf32, #tpu.memory_space<vmem>>, vector<1x256xf32>
    %c5_409 = arith.constant 5 : index
    %c0_410 = arith.constant 0 : index
    %1331 = vector.load %arg0[%c5_409, %c0_410] : memref<11x384xf32, #tpu.memory_space<vmem>>, vector<1x256xf32>
    %c6_411 = arith.constant 6 : index
    %c0_412 = arith.constant 0 : index
    %1332 = vector.load %arg0[%c6_411, %c0_412] : memref<11x384xf32, #tpu.memory_space<vmem>>, vector<1x256xf32>
    %1333 = vector.shape_cast %1329 : vector<1x1xi1> to vector<1x1xi1>
    %1334 = vector.broadcast %1333 : vector<1x1xi1> to vector<1x256xi1>
    %1335 = arith.select %1334, %1332, %1331 : vector<1x256xi1>, vector<1x256xf32>
    %1336 = vector.shape_cast %1326 : vector<1x1xi1> to vector<1x1xi1>
    %1337 = vector.broadcast %1336 : vector<1x1xi1> to vector<1x256xi1>
    %1338 = arith.select %1337, %1335, %1330 : vector<1x256xi1>, vector<1x256xf32>
    %c17 = arith.constant 17 : index
    %c1_413 = arith.constant 1 : index
    %1339 = vector.load %arg2[%c17, %c1_413] : memref<45x3xf32, #tpu.memory_space<vmem>>, vector<1x2xf32>
    tpu.vector_store %arg2[%c17, %c1_413], %1323 {strides = array<i32>} : memref<45x3xf32, #tpu.memory_space<vmem>>, vector<1x2xf32>,
    %1340 = vector.extract_strided_slice %1315 {offsets = [0, 0], sizes = [1, 256], strides = [1, 1]} : vector<1x384xf32> to vector<1x256xf32>
    %1341 = arith.addf %1338, %1340 : vector<1x256xf32>
    %1342 = arith.negf %1341 : vector<1x256xf32>
    %1343 = math.exp %1342 : vector<1x256xf32>
    %cst_414 = arith.constant 1.000000e+00 : f32
    %1344 = vector.broadcast %cst_414 : f32 to vector<1x256xf32>
    %1345 = arith.addf %1344, %1343 : vector<1x256xf32>
    %1346 = arith.divf %1344, %1345 : vector<1x256xf32>
    %1347 = vector.extract_strided_slice %1346 {offsets = [0, 0], sizes = [1, 64], strides = [1, 1]} : vector<1x256xf32> to vector<1x64xf32>
    %1348 = vector.extract_strided_slice %1346 {offsets = [0, 64], sizes = [1, 64], strides = [1, 1]} : vector<1x256xf32> to vector<1x64xf32>
    %1349 = vector.extract_strided_slice %1346 {offsets = [0, 128], sizes = [1, 64], strides = [1, 1]} : vector<1x256xf32> to vector<1x64xf32>
    %cst_415 = arith.constant 2.000000e+00 : f32
    %1350 = vector.broadcast %cst_415 : f32 to vector<1x64xf32>
    %1351 = arith.mulf %1350, %1349 : vector<1x64xf32>
    %cst_416 = arith.constant 1.000000e+00 : f32
    %1352 = vector.broadcast %cst_416 : f32 to vector<1x64xf32>
    %1353 = arith.subf %1351, %1352 : vector<1x64xf32>
    %1354 = vector.extract_strided_slice %1346 {offsets = [0, 192], sizes = [1, 64], strides = [1, 1]} : vector<1x256xf32> to vector<1x64xf32>
    %1355 = arith.mulf %1348, %1311 : vector<1x64xf32>
    %1356 = arith.mulf %1347, %1353 : vector<1x64xf32>
    %1357 = arith.addf %1355, %1356 : vector<1x64xf32>
    %1358 = math.tanh %1357 : vector<1x64xf32>
    %1359 = arith.mulf %1354, %1358 : vector<1x64xf32>
    %cst_417 = arith.constant dense<0.000000e+00> : vector<1x384xf32>
    %1360 = tpu.matmul %1359, %2, %cst_417 {dimension_numbers = #tpu.dot_dimension_numbers<[1], [0], [0], [1], [0, 0, 1, 1], [], []>} : vector<1x64xf32>, vector<64x384xf32>, vector<1x384xf32> -> vector<1x384xf32>
    %1361 = arith.addf %1360, %3 : vector<1x384xf32>
    %1362 = vector.extract_strided_slice %1361 {offsets = [0, 260], sizes = [1, 2], strides = [1, 1]} : vector<1x384xf32> to vector<1x2xf32>
    %cst_418 = arith.constant 0.000000e+00 : f32
    %1363 = vector.broadcast %cst_418 : f32 to vector<1x2xf32>
    %1364 = arith.cmpf ogt, %1362, %1363 : vector<1x2xf32>
    %1365 = arith.extui %1364 : vector<1x2xi1> to vector<1x2xi32>
    %1366 = arith.sitofp %1365 : vector<1x2xi32> to vector<1x2xf32>
    %1367 = vector.extract_strided_slice %1366 {offsets = [0, 0], sizes = [1, 1], strides = [1, 1]} : vector<1x2xf32> to vector<1x1xf32>
    %1368 = vector.broadcast %1367 : vector<1x1xf32> to vector<1x2xf32>
    %1369 = arith.mulf %1366, %1368 : vector<1x2xf32>
    %1370 = vector.extract_strided_slice %1362 {offsets = [0, 0], sizes = [1, 1], strides = [1, 1]} : vector<1x2xf32> to vector<1x1xf32>
    %cst_419 = arith.constant 0.000000e+00 : f32
    %1371 = vector.broadcast %cst_419 : f32 to vector<1x1xf32>
    %1372 = arith.cmpf ogt, %1370, %1371 : vector<1x1xf32>
    %1373 = vector.extract_strided_slice %1362 {offsets = [0, 1], sizes = [1, 1], strides = [1, 1]} : vector<1x2xf32> to vector<1x1xf32>
    %cst_420 = arith.constant 0.000000e+00 : f32
    %1374 = vector.broadcast %cst_420 : f32 to vector<1x1xf32>
    %1375 = arith.cmpf ogt, %1373, %1374 : vector<1x1xf32>
    %c7_421 = arith.constant 7 : index
    %c0_422 = arith.constant 0 : index
    %1376 = vector.load %arg0[%c7_421, %c0_422] : memref<11x384xf32, #tpu.memory_space<vmem>>, vector<1x256xf32>
    %c8_423 = arith.constant 8 : index
    %c0_424 = arith.constant 0 : index
    %1377 = vector.load %arg0[%c8_423, %c0_424] : memref<11x384xf32, #tpu.memory_space<vmem>>, vector<1x256xf32>
    %c9_425 = arith.constant 9 : index
    %c0_426 = arith.constant 0 : index
    %1378 = vector.load %arg0[%c9_425, %c0_426] : memref<11x384xf32, #tpu.memory_space<vmem>>, vector<1x256xf32>
    %1379 = vector.shape_cast %1375 : vector<1x1xi1> to vector<1x1xi1>
    %1380 = vector.broadcast %1379 : vector<1x1xi1> to vector<1x256xi1>
    %1381 = arith.select %1380, %1378, %1377 : vector<1x256xi1>, vector<1x256xf32>
    %1382 = vector.shape_cast %1372 : vector<1x1xi1> to vector<1x1xi1>
    %1383 = vector.broadcast %1382 : vector<1x1xi1> to vector<1x256xi1>
    %1384 = arith.select %1383, %1381, %1376 : vector<1x256xi1>, vector<1x256xf32>
    %c37 = arith.constant 37 : index
    %c1_427 = arith.constant 1 : index
    %1385 = vector.load %arg2[%c37, %c1_427] : memref<45x3xf32, #tpu.memory_space<vmem>>, vector<1x2xf32>
    tpu.vector_store %arg2[%c37, %c1_427], %1369 {strides = array<i32>} : memref<45x3xf32, #tpu.memory_space<vmem>>, vector<1x2xf32>,
    %1386 = vector.extract_strided_slice %1361 {offsets = [0, 0], sizes = [1, 256], strides = [1, 1]} : vector<1x384xf32> to vector<1x256xf32>
    %1387 = arith.addf %1384, %1386 : vector<1x256xf32>
    %1388 = arith.negf %1387 : vector<1x256xf32>
    %1389 = math.exp %1388 : vector<1x256xf32>
    %cst_428 = arith.constant 1.000000e+00 : f32
    %1390 = vector.broadcast %cst_428 : f32 to vector<1x256xf32>
    %1391 = arith.addf %1390, %1389 : vector<1x256xf32>
    %1392 = arith.divf %1390, %1391 : vector<1x256xf32>
    %1393 = vector.extract_strided_slice %1392 {offsets = [0, 0], sizes = [1, 64], strides = [1, 1]} : vector<1x256xf32> to vector<1x64xf32>
    %1394 = vector.extract_strided_slice %1392 {offsets = [0, 64], sizes = [1, 64], strides = [1, 1]} : vector<1x256xf32> to vector<1x64xf32>
    %1395 = vector.extract_strided_slice %1392 {offsets = [0, 128], sizes = [1, 64], strides = [1, 1]} : vector<1x256xf32> to vector<1x64xf32>
    %cst_429 = arith.constant 2.000000e+00 : f32
    %1396 = vector.broadcast %cst_429 : f32 to vector<1x64xf32>
    %1397 = arith.mulf %1396, %1395 : vector<1x64xf32>
    %cst_430 = arith.constant 1.000000e+00 : f32
    %1398 = vector.broadcast %cst_430 : f32 to vector<1x64xf32>
    %1399 = arith.subf %1397, %1398 : vector<1x64xf32>
    %1400 = vector.extract_strided_slice %1392 {offsets = [0, 192], sizes = [1, 64], strides = [1, 1]} : vector<1x256xf32> to vector<1x64xf32>
    %1401 = arith.mulf %1394, %1357 : vector<1x64xf32>
    %1402 = arith.mulf %1393, %1399 : vector<1x64xf32>
    %1403 = arith.addf %1401, %1402 : vector<1x64xf32>
    %1404 = math.tanh %1403 : vector<1x64xf32>
    %1405 = arith.mulf %1400, %1404 : vector<1x64xf32>
    %cst_431 = arith.constant dense<0.000000e+00> : vector<1x384xf32>
    %1406 = tpu.matmul %1405, %2, %cst_431 {dimension_numbers = #tpu.dot_dimension_numbers<[1], [0], [0], [1], [0, 0, 1, 1], [], []>} : vector<1x64xf32>, vector<64x384xf32>, vector<1x384xf32> -> vector<1x384xf32>
    %1407 = arith.addf %1406, %3 : vector<1x384xf32>
    %1408 = vector.extract_strided_slice %1407 {offsets = [0, 258], sizes = [1, 2], strides = [1, 1]} : vector<1x384xf32> to vector<1x2xf32>
    %cst_432 = arith.constant 0.000000e+00 : f32
    %1409 = vector.broadcast %cst_432 : f32 to vector<1x2xf32>
    %1410 = arith.cmpf ogt, %1408, %1409 : vector<1x2xf32>
    %1411 = arith.extui %1410 : vector<1x2xi1> to vector<1x2xi32>
    %1412 = arith.sitofp %1411 : vector<1x2xi32> to vector<1x2xf32>
    %1413 = vector.extract_strided_slice %1412 {offsets = [0, 0], sizes = [1, 1], strides = [1, 1]} : vector<1x2xf32> to vector<1x1xf32>
    %1414 = vector.broadcast %1413 : vector<1x1xf32> to vector<1x2xf32>
    %1415 = arith.mulf %1412, %1414 : vector<1x2xf32>
    %1416 = vector.extract_strided_slice %1408 {offsets = [0, 0], sizes = [1, 1], strides = [1, 1]} : vector<1x2xf32> to vector<1x1xf32>
    %cst_433 = arith.constant 0.000000e+00 : f32
    %1417 = vector.broadcast %cst_433 : f32 to vector<1x1xf32>
    %1418 = arith.cmpf ogt, %1416, %1417 : vector<1x1xf32>
    %1419 = vector.extract_strided_slice %1408 {offsets = [0, 1], sizes = [1, 1], strides = [1, 1]} : vector<1x2xf32> to vector<1x1xf32>
    %cst_434 = arith.constant 0.000000e+00 : f32
    %1420 = vector.broadcast %cst_434 : f32 to vector<1x1xf32>
    %1421 = arith.cmpf ogt, %1419, %1420 : vector<1x1xf32>
    %c4_435 = arith.constant 4 : index
    %c0_436 = arith.constant 0 : index
    %1422 = vector.load %arg0[%c4_435, %c0_436] : memref<11x384xf32, #tpu.memory_space<vmem>>, vector<1x256xf32>
    %c5_437 = arith.constant 5 : index
    %c0_438 = arith.constant 0 : index
    %1423 = vector.load %arg0[%c5_437, %c0_438] : memref<11x384xf32, #tpu.memory_space<vmem>>, vector<1x256xf32>
    %c6_439 = arith.constant 6 : index
    %c0_440 = arith.constant 0 : index
    %1424 = vector.load %arg0[%c6_439, %c0_440] : memref<11x384xf32, #tpu.memory_space<vmem>>, vector<1x256xf32>
    %1425 = vector.shape_cast %1421 : vector<1x1xi1> to vector<1x1xi1>
    %1426 = vector.broadcast %1425 : vector<1x1xi1> to vector<1x256xi1>
    %1427 = arith.select %1426, %1424, %1423 : vector<1x256xi1>, vector<1x256xf32>
    %1428 = vector.shape_cast %1418 : vector<1x1xi1> to vector<1x1xi1>
    %1429 = vector.broadcast %1428 : vector<1x1xi1> to vector<1x256xi1>
    %1430 = arith.select %1429, %1427, %1422 : vector<1x256xi1>, vector<1x256xf32>
    %c18 = arith.constant 18 : index
    %c1_441 = arith.constant 1 : index
    %1431 = vector.load %arg2[%c18, %c1_441] : memref<45x3xf32, #tpu.memory_space<vmem>>, vector<1x2xf32>
    tpu.vector_store %arg2[%c18, %c1_441], %1415 {strides = array<i32>} : memref<45x3xf32, #tpu.memory_space<vmem>>, vector<1x2xf32>,
    %1432 = vector.extract_strided_slice %1407 {offsets = [0, 0], sizes = [1, 256], strides = [1, 1]} : vector<1x384xf32> to vector<1x256xf32>
    %1433 = arith.addf %1430, %1432 : vector<1x256xf32>
    %1434 = arith.negf %1433 : vector<1x256xf32>
    %1435 = math.exp %1434 : vector<1x256xf32>
    %cst_442 = arith.constant 1.000000e+00 : f32
    %1436 = vector.broadcast %cst_442 : f32 to vector<1x256xf32>
    %1437 = arith.addf %1436, %1435 : vector<1x256xf32>
    %1438 = arith.divf %1436, %1437 : vector<1x256xf32>
    %1439 = vector.extract_strided_slice %1438 {offsets = [0, 0], sizes = [1, 64], strides = [1, 1]} : vector<1x256xf32> to vector<1x64xf32>
    %1440 = vector.extract_strided_slice %1438 {offsets = [0, 64], sizes = [1, 64], strides = [1, 1]} : vector<1x256xf32> to vector<1x64xf32>
    %1441 = vector.extract_strided_slice %1438 {offsets = [0, 128], sizes = [1, 64], strides = [1, 1]} : vector<1x256xf32> to vector<1x64xf32>
    %cst_443 = arith.constant 2.000000e+00 : f32
    %1442 = vector.broadcast %cst_443 : f32 to vector<1x64xf32>
    %1443 = arith.mulf %1442, %1441 : vector<1x64xf32>
    %cst_444 = arith.constant 1.000000e+00 : f32
    %1444 = vector.broadcast %cst_444 : f32 to vector<1x64xf32>
    %1445 = arith.subf %1443, %1444 : vector<1x64xf32>
    %1446 = vector.extract_strided_slice %1438 {offsets = [0, 192], sizes = [1, 64], strides = [1, 1]} : vector<1x256xf32> to vector<1x64xf32>
    %1447 = arith.mulf %1440, %1403 : vector<1x64xf32>
    %1448 = arith.mulf %1439, %1445 : vector<1x64xf32>
    %1449 = arith.addf %1447, %1448 : vector<1x64xf32>
    %1450 = math.tanh %1449 : vector<1x64xf32>
    %1451 = arith.mulf %1446, %1450 : vector<1x64xf32>
    %cst_445 = arith.constant dense<0.000000e+00> : vector<1x384xf32>
    %1452 = tpu.matmul %1451, %2, %cst_445 {dimension_numbers = #tpu.dot_dimension_numbers<[1], [0], [0], [1], [0, 0, 1, 1], [], []>} : vector<1x64xf32>, vector<64x384xf32>, vector<1x384xf32> -> vector<1x384xf32>
    %1453 = arith.addf %1452, %3 : vector<1x384xf32>
    %1454 = vector.extract_strided_slice %1453 {offsets = [0, 260], sizes = [1, 2], strides = [1, 1]} : vector<1x384xf32> to vector<1x2xf32>
    %cst_446 = arith.constant 0.000000e+00 : f32
    %1455 = vector.broadcast %cst_446 : f32 to vector<1x2xf32>
    %1456 = arith.cmpf ogt, %1454, %1455 : vector<1x2xf32>
    %1457 = arith.extui %1456 : vector<1x2xi1> to vector<1x2xi32>
    %1458 = arith.sitofp %1457 : vector<1x2xi32> to vector<1x2xf32>
    %1459 = vector.extract_strided_slice %1458 {offsets = [0, 0], sizes = [1, 1], strides = [1, 1]} : vector<1x2xf32> to vector<1x1xf32>
    %1460 = vector.broadcast %1459 : vector<1x1xf32> to vector<1x2xf32>
    %1461 = arith.mulf %1458, %1460 : vector<1x2xf32>
    %1462 = vector.extract_strided_slice %1454 {offsets = [0, 0], sizes = [1, 1], strides = [1, 1]} : vector<1x2xf32> to vector<1x1xf32>
    %cst_447 = arith.constant 0.000000e+00 : f32
    %1463 = vector.broadcast %cst_447 : f32 to vector<1x1xf32>
    %1464 = arith.cmpf ogt, %1462, %1463 : vector<1x1xf32>
    %1465 = vector.extract_strided_slice %1454 {offsets = [0, 1], sizes = [1, 1], strides = [1, 1]} : vector<1x2xf32> to vector<1x1xf32>
    %cst_448 = arith.constant 0.000000e+00 : f32
    %1466 = vector.broadcast %cst_448 : f32 to vector<1x1xf32>
    %1467 = arith.cmpf ogt, %1465, %1466 : vector<1x1xf32>
    %c7_449 = arith.constant 7 : index
    %c0_450 = arith.constant 0 : index
    %1468 = vector.load %arg0[%c7_449, %c0_450] : memref<11x384xf32, #tpu.memory_space<vmem>>, vector<1x256xf32>
    %c8_451 = arith.constant 8 : index
    %c0_452 = arith.constant 0 : index
    %1469 = vector.load %arg0[%c8_451, %c0_452] : memref<11x384xf32, #tpu.memory_space<vmem>>, vector<1x256xf32>
    %c9_453 = arith.constant 9 : index
    %c0_454 = arith.constant 0 : index
    %1470 = vector.load %arg0[%c9_453, %c0_454] : memref<11x384xf32, #tpu.memory_space<vmem>>, vector<1x256xf32>
    %1471 = vector.shape_cast %1467 : vector<1x1xi1> to vector<1x1xi1>
    %1472 = vector.broadcast %1471 : vector<1x1xi1> to vector<1x256xi1>
    %1473 = arith.select %1472, %1470, %1469 : vector<1x256xi1>, vector<1x256xf32>
    %1474 = vector.shape_cast %1464 : vector<1x1xi1> to vector<1x1xi1>
    %1475 = vector.broadcast %1474 : vector<1x1xi1> to vector<1x256xi1>
    %1476 = arith.select %1475, %1473, %1468 : vector<1x256xi1>, vector<1x256xf32>
    %c38 = arith.constant 38 : index
    %c1_455 = arith.constant 1 : index
    %1477 = vector.load %arg2[%c38, %c1_455] : memref<45x3xf32, #tpu.memory_space<vmem>>, vector<1x2xf32>
    tpu.vector_store %arg2[%c38, %c1_455], %1461 {strides = array<i32>} : memref<45x3xf32, #tpu.memory_space<vmem>>, vector<1x2xf32>,
    %1478 = vector.extract_strided_slice %1453 {offsets = [0, 0], sizes = [1, 256], strides = [1, 1]} : vector<1x384xf32> to vector<1x256xf32>
    %1479 = arith.addf %1476, %1478 : vector<1x256xf32>
    %1480 = arith.negf %1479 : vector<1x256xf32>
    %1481 = math.exp %1480 : vector<1x256xf32>
    %cst_456 = arith.constant 1.000000e+00 : f32
    %1482 = vector.broadcast %cst_456 : f32 to vector<1x256xf32>
    %1483 = arith.addf %1482, %1481 : vector<1x256xf32>
    %1484 = arith.divf %1482, %1483 : vector<1x256xf32>
    %1485 = vector.extract_strided_slice %1484 {offsets = [0, 0], sizes = [1, 64], strides = [1, 1]} : vector<1x256xf32> to vector<1x64xf32>
    %1486 = vector.extract_strided_slice %1484 {offsets = [0, 64], sizes = [1, 64], strides = [1, 1]} : vector<1x256xf32> to vector<1x64xf32>
    %1487 = vector.extract_strided_slice %1484 {offsets = [0, 128], sizes = [1, 64], strides = [1, 1]} : vector<1x256xf32> to vector<1x64xf32>
    %cst_457 = arith.constant 2.000000e+00 : f32
    %1488 = vector.broadcast %cst_457 : f32 to vector<1x64xf32>
    %1489 = arith.mulf %1488, %1487 : vector<1x64xf32>
    %cst_458 = arith.constant 1.000000e+00 : f32
    %1490 = vector.broadcast %cst_458 : f32 to vector<1x64xf32>
    %1491 = arith.subf %1489, %1490 : vector<1x64xf32>
    %1492 = vector.extract_strided_slice %1484 {offsets = [0, 192], sizes = [1, 64], strides = [1, 1]} : vector<1x256xf32> to vector<1x64xf32>
    %1493 = arith.mulf %1486, %1449 : vector<1x64xf32>
    %1494 = arith.mulf %1485, %1491 : vector<1x64xf32>
    %1495 = arith.addf %1493, %1494 : vector<1x64xf32>
    %1496 = math.tanh %1495 : vector<1x64xf32>
    %1497 = arith.mulf %1492, %1496 : vector<1x64xf32>
    %cst_459 = arith.constant dense<0.000000e+00> : vector<1x384xf32>
    %1498 = tpu.matmul %1497, %2, %cst_459 {dimension_numbers = #tpu.dot_dimension_numbers<[1], [0], [0], [1], [0, 0, 1, 1], [], []>} : vector<1x64xf32>, vector<64x384xf32>, vector<1x384xf32> -> vector<1x384xf32>
    %1499 = arith.addf %1498, %3 : vector<1x384xf32>
    %1500 = vector.extract_strided_slice %1499 {offsets = [0, 258], sizes = [1, 2], strides = [1, 1]} : vector<1x384xf32> to vector<1x2xf32>
    %cst_460 = arith.constant 0.000000e+00 : f32
    %1501 = vector.broadcast %cst_460 : f32 to vector<1x2xf32>
    %1502 = arith.cmpf ogt, %1500, %1501 : vector<1x2xf32>
    %1503 = arith.extui %1502 : vector<1x2xi1> to vector<1x2xi32>
    %1504 = arith.sitofp %1503 : vector<1x2xi32> to vector<1x2xf32>
    %1505 = vector.extract_strided_slice %1504 {offsets = [0, 0], sizes = [1, 1], strides = [1, 1]} : vector<1x2xf32> to vector<1x1xf32>
    %1506 = vector.broadcast %1505 : vector<1x1xf32> to vector<1x2xf32>
    %1507 = arith.mulf %1504, %1506 : vector<1x2xf32>
    %1508 = vector.extract_strided_slice %1500 {offsets = [0, 0], sizes = [1, 1], strides = [1, 1]} : vector<1x2xf32> to vector<1x1xf32>
    %cst_461 = arith.constant 0.000000e+00 : f32
    %1509 = vector.broadcast %cst_461 : f32 to vector<1x1xf32>
    %1510 = arith.cmpf ogt, %1508, %1509 : vector<1x1xf32>
    %1511 = vector.extract_strided_slice %1500 {offsets = [0, 1], sizes = [1, 1], strides = [1, 1]} : vector<1x2xf32> to vector<1x1xf32>
    %cst_462 = arith.constant 0.000000e+00 : f32
    %1512 = vector.broadcast %cst_462 : f32 to vector<1x1xf32>
    %1513 = arith.cmpf ogt, %1511, %1512 : vector<1x1xf32>
    %c4_463 = arith.constant 4 : index
    %c0_464 = arith.constant 0 : index
    %1514 = vector.load %arg0[%c4_463, %c0_464] : memref<11x384xf32, #tpu.memory_space<vmem>>, vector<1x256xf32>
    %c5_465 = arith.constant 5 : index
    %c0_466 = arith.constant 0 : index
    %1515 = vector.load %arg0[%c5_465, %c0_466] : memref<11x384xf32, #tpu.memory_space<vmem>>, vector<1x256xf32>
    %c6_467 = arith.constant 6 : index
    %c0_468 = arith.constant 0 : index
    %1516 = vector.load %arg0[%c6_467, %c0_468] : memref<11x384xf32, #tpu.memory_space<vmem>>, vector<1x256xf32>
    %1517 = vector.shape_cast %1513 : vector<1x1xi1> to vector<1x1xi1>
    %1518 = vector.broadcast %1517 : vector<1x1xi1> to vector<1x256xi1>
    %1519 = arith.select %1518, %1516, %1515 : vector<1x256xi1>, vector<1x256xf32>
    %1520 = vector.shape_cast %1510 : vector<1x1xi1> to vector<1x1xi1>
    %1521 = vector.broadcast %1520 : vector<1x1xi1> to vector<1x256xi1>
    %1522 = arith.select %1521, %1519, %1514 : vector<1x256xi1>, vector<1x256xf32>
    %c19 = arith.constant 19 : index
    %c1_469 = arith.constant 1 : index
    %1523 = vector.load %arg2[%c19, %c1_469] : memref<45x3xf32, #tpu.memory_space<vmem>>, vector<1x2xf32>
    tpu.vector_store %arg2[%c19, %c1_469], %1507 {strides = array<i32>} : memref<45x3xf32, #tpu.memory_space<vmem>>, vector<1x2xf32>,
    %1524 = vector.extract_strided_slice %1499 {offsets = [0, 0], sizes = [1, 256], strides = [1, 1]} : vector<1x384xf32> to vector<1x256xf32>
    %1525 = arith.addf %1522, %1524 : vector<1x256xf32>
    %1526 = arith.negf %1525 : vector<1x256xf32>
    %1527 = math.exp %1526 : vector<1x256xf32>
    %cst_470 = arith.constant 1.000000e+00 : f32
    %1528 = vector.broadcast %cst_470 : f32 to vector<1x256xf32>
    %1529 = arith.addf %1528, %1527 : vector<1x256xf32>
    %1530 = arith.divf %1528, %1529 : vector<1x256xf32>
    %1531 = vector.extract_strided_slice %1530 {offsets = [0, 0], sizes = [1, 64], strides = [1, 1]} : vector<1x256xf32> to vector<1x64xf32>
    %1532 = vector.extract_strided_slice %1530 {offsets = [0, 64], sizes = [1, 64], strides = [1, 1]} : vector<1x256xf32> to vector<1x64xf32>
    %1533 = vector.extract_strided_slice %1530 {offsets = [0, 128], sizes = [1, 64], strides = [1, 1]} : vector<1x256xf32> to vector<1x64xf32>
    %cst_471 = arith.constant 2.000000e+00 : f32
    %1534 = vector.broadcast %cst_471 : f32 to vector<1x64xf32>
    %1535 = arith.mulf %1534, %1533 : vector<1x64xf32>
    %cst_472 = arith.constant 1.000000e+00 : f32
    %1536 = vector.broadcast %cst_472 : f32 to vector<1x64xf32>
    %1537 = arith.subf %1535, %1536 : vector<1x64xf32>
    %1538 = vector.extract_strided_slice %1530 {offsets = [0, 192], sizes = [1, 64], strides = [1, 1]} : vector<1x256xf32> to vector<1x64xf32>
    %1539 = arith.mulf %1532, %1495 : vector<1x64xf32>
    %1540 = arith.mulf %1531, %1537 : vector<1x64xf32>
    %1541 = arith.addf %1539, %1540 : vector<1x64xf32>
    %1542 = math.tanh %1541 : vector<1x64xf32>
    %1543 = arith.mulf %1538, %1542 : vector<1x64xf32>
    %cst_473 = arith.constant dense<0.000000e+00> : vector<1x384xf32>
    %1544 = tpu.matmul %1543, %2, %cst_473 {dimension_numbers = #tpu.dot_dimension_numbers<[1], [0], [0], [1], [0, 0, 1, 1], [], []>} : vector<1x64xf32>, vector<64x384xf32>, vector<1x384xf32> -> vector<1x384xf32>
    %1545 = arith.addf %1544, %3 : vector<1x384xf32>
    %1546 = vector.extract_strided_slice %1545 {offsets = [0, 260], sizes = [1, 2], strides = [1, 1]} : vector<1x384xf32> to vector<1x2xf32>
    %cst_474 = arith.constant 0.000000e+00 : f32
    %1547 = vector.broadcast %cst_474 : f32 to vector<1x2xf32>
    %1548 = arith.cmpf ogt, %1546, %1547 : vector<1x2xf32>
    %1549 = arith.extui %1548 : vector<1x2xi1> to vector<1x2xi32>
    %1550 = arith.sitofp %1549 : vector<1x2xi32> to vector<1x2xf32>
    %1551 = vector.extract_strided_slice %1550 {offsets = [0, 0], sizes = [1, 1], strides = [1, 1]} : vector<1x2xf32> to vector<1x1xf32>
    %1552 = vector.broadcast %1551 : vector<1x1xf32> to vector<1x2xf32>
    %1553 = arith.mulf %1550, %1552 : vector<1x2xf32>
    %1554 = vector.extract_strided_slice %1546 {offsets = [0, 0], sizes = [1, 1], strides = [1, 1]} : vector<1x2xf32> to vector<1x1xf32>
    %cst_475 = arith.constant 0.000000e+00 : f32
    %1555 = vector.broadcast %cst_475 : f32 to vector<1x1xf32>
    %1556 = arith.cmpf ogt, %1554, %1555 : vector<1x1xf32>
    %1557 = vector.extract_strided_slice %1546 {offsets = [0, 1], sizes = [1, 1], strides = [1, 1]} : vector<1x2xf32> to vector<1x1xf32>
    %cst_476 = arith.constant 0.000000e+00 : f32
    %1558 = vector.broadcast %cst_476 : f32 to vector<1x1xf32>
    %1559 = arith.cmpf ogt, %1557, %1558 : vector<1x1xf32>
    %c7_477 = arith.constant 7 : index
    %c0_478 = arith.constant 0 : index
    %1560 = vector.load %arg0[%c7_477, %c0_478] : memref<11x384xf32, #tpu.memory_space<vmem>>, vector<1x256xf32>
    %c8_479 = arith.constant 8 : index
    %c0_480 = arith.constant 0 : index
    %1561 = vector.load %arg0[%c8_479, %c0_480] : memref<11x384xf32, #tpu.memory_space<vmem>>, vector<1x256xf32>
    %c9_481 = arith.constant 9 : index
    %c0_482 = arith.constant 0 : index
    %1562 = vector.load %arg0[%c9_481, %c0_482] : memref<11x384xf32, #tpu.memory_space<vmem>>, vector<1x256xf32>
    %1563 = vector.shape_cast %1559 : vector<1x1xi1> to vector<1x1xi1>
    %1564 = vector.broadcast %1563 : vector<1x1xi1> to vector<1x256xi1>
    %1565 = arith.select %1564, %1562, %1561 : vector<1x256xi1>, vector<1x256xf32>
    %1566 = vector.shape_cast %1556 : vector<1x1xi1> to vector<1x1xi1>
    %1567 = vector.broadcast %1566 : vector<1x1xi1> to vector<1x256xi1>
    %1568 = arith.select %1567, %1565, %1560 : vector<1x256xi1>, vector<1x256xf32>
    %c39 = arith.constant 39 : index
    %c1_483 = arith.constant 1 : index
    %1569 = vector.load %arg2[%c39, %c1_483] : memref<45x3xf32, #tpu.memory_space<vmem>>, vector<1x2xf32>
    tpu.vector_store %arg2[%c39, %c1_483], %1553 {strides = array<i32>} : memref<45x3xf32, #tpu.memory_space<vmem>>, vector<1x2xf32>,
    %1570 = vector.extract_strided_slice %1545 {offsets = [0, 0], sizes = [1, 256], strides = [1, 1]} : vector<1x384xf32> to vector<1x256xf32>
    %1571 = arith.addf %1568, %1570 : vector<1x256xf32>
    %1572 = arith.negf %1571 : vector<1x256xf32>
    %1573 = math.exp %1572 : vector<1x256xf32>
    %cst_484 = arith.constant 1.000000e+00 : f32
    %1574 = vector.broadcast %cst_484 : f32 to vector<1x256xf32>
    %1575 = arith.addf %1574, %1573 : vector<1x256xf32>
    %1576 = arith.divf %1574, %1575 : vector<1x256xf32>
    %1577 = vector.extract_strided_slice %1576 {offsets = [0, 0], sizes = [1, 64], strides = [1, 1]} : vector<1x256xf32> to vector<1x64xf32>
    %1578 = vector.extract_strided_slice %1576 {offsets = [0, 64], sizes = [1, 64], strides = [1, 1]} : vector<1x256xf32> to vector<1x64xf32>
    %1579 = vector.extract_strided_slice %1576 {offsets = [0, 128], sizes = [1, 64], strides = [1, 1]} : vector<1x256xf32> to vector<1x64xf32>
    %cst_485 = arith.constant 2.000000e+00 : f32
    %1580 = vector.broadcast %cst_485 : f32 to vector<1x64xf32>
    %1581 = arith.mulf %1580, %1579 : vector<1x64xf32>
    %cst_486 = arith.constant 1.000000e+00 : f32
    %1582 = vector.broadcast %cst_486 : f32 to vector<1x64xf32>
    %1583 = arith.subf %1581, %1582 : vector<1x64xf32>
    %1584 = vector.extract_strided_slice %1576 {offsets = [0, 192], sizes = [1, 64], strides = [1, 1]} : vector<1x256xf32> to vector<1x64xf32>
    %1585 = arith.mulf %1578, %1541 : vector<1x64xf32>
    %1586 = arith.mulf %1577, %1583 : vector<1x64xf32>
    %1587 = arith.addf %1585, %1586 : vector<1x64xf32>
    %1588 = math.tanh %1587 : vector<1x64xf32>
    %1589 = arith.mulf %1584, %1588 : vector<1x64xf32>
    %cst_487 = arith.constant dense<0.000000e+00> : vector<1x384xf32>
    %1590 = tpu.matmul %1589, %2, %cst_487 {dimension_numbers = #tpu.dot_dimension_numbers<[1], [0], [0], [1], [0, 0, 1, 1], [], []>} : vector<1x64xf32>, vector<64x384xf32>, vector<1x384xf32> -> vector<1x384xf32>
    %1591 = arith.addf %1590, %3 : vector<1x384xf32>
    %1592 = vector.extract_strided_slice %1591 {offsets = [0, 258], sizes = [1, 2], strides = [1, 1]} : vector<1x384xf32> to vector<1x2xf32>
    %cst_488 = arith.constant 0.000000e+00 : f32
    %1593 = vector.broadcast %cst_488 : f32 to vector<1x2xf32>
    %1594 = arith.cmpf ogt, %1592, %1593 : vector<1x2xf32>
    %1595 = arith.extui %1594 : vector<1x2xi1> to vector<1x2xi32>
    %1596 = arith.sitofp %1595 : vector<1x2xi32> to vector<1x2xf32>
    %1597 = vector.extract_strided_slice %1596 {offsets = [0, 0], sizes = [1, 1], strides = [1, 1]} : vector<1x2xf32> to vector<1x1xf32>
    %1598 = vector.broadcast %1597 : vector<1x1xf32> to vector<1x2xf32>
    %1599 = arith.mulf %1596, %1598 : vector<1x2xf32>
    %1600 = vector.extract_strided_slice %1592 {offsets = [0, 0], sizes = [1, 1], strides = [1, 1]} : vector<1x2xf32> to vector<1x1xf32>
    %cst_489 = arith.constant 0.000000e+00 : f32
    %1601 = vector.broadcast %cst_489 : f32 to vector<1x1xf32>
    %1602 = arith.cmpf ogt, %1600, %1601 : vector<1x1xf32>
    %1603 = vector.extract_strided_slice %1592 {offsets = [0, 1], sizes = [1, 1], strides = [1, 1]} : vector<1x2xf32> to vector<1x1xf32>
    %cst_490 = arith.constant 0.000000e+00 : f32
    %1604 = vector.broadcast %cst_490 : f32 to vector<1x1xf32>
    %1605 = arith.cmpf ogt, %1603, %1604 : vector<1x1xf32>
    %c4_491 = arith.constant 4 : index
    %c0_492 = arith.constant 0 : index
    %1606 = vector.load %arg0[%c4_491, %c0_492] : memref<11x384xf32, #tpu.memory_space<vmem>>, vector<1x256xf32>
    %c5_493 = arith.constant 5 : index
    %c0_494 = arith.constant 0 : index
    %1607 = vector.load %arg0[%c5_493, %c0_494] : memref<11x384xf32, #tpu.memory_space<vmem>>, vector<1x256xf32>
    %c6_495 = arith.constant 6 : index
    %c0_496 = arith.constant 0 : index
    %1608 = vector.load %arg0[%c6_495, %c0_496] : memref<11x384xf32, #tpu.memory_space<vmem>>, vector<1x256xf32>
    %1609 = vector.shape_cast %1605 : vector<1x1xi1> to vector<1x1xi1>
    %1610 = vector.broadcast %1609 : vector<1x1xi1> to vector<1x256xi1>
    %1611 = arith.select %1610, %1608, %1607 : vector<1x256xi1>, vector<1x256xf32>
    %1612 = vector.shape_cast %1602 : vector<1x1xi1> to vector<1x1xi1>
    %1613 = vector.broadcast %1612 : vector<1x1xi1> to vector<1x256xi1>
    %1614 = arith.select %1613, %1611, %1606 : vector<1x256xi1>, vector<1x256xf32>
    %c20 = arith.constant 20 : index
    %c1_497 = arith.constant 1 : index
    %1615 = vector.load %arg2[%c20, %c1_497] : memref<45x3xf32, #tpu.memory_space<vmem>>, vector<1x2xf32>
    tpu.vector_store %arg2[%c20, %c1_497], %1599 {strides = array<i32>} : memref<45x3xf32, #tpu.memory_space<vmem>>, vector<1x2xf32>,
    %1616 = vector.extract_strided_slice %1591 {offsets = [0, 0], sizes = [1, 256], strides = [1, 1]} : vector<1x384xf32> to vector<1x256xf32>
    %1617 = arith.addf %1614, %1616 : vector<1x256xf32>
    %1618 = arith.negf %1617 : vector<1x256xf32>
    %1619 = math.exp %1618 : vector<1x256xf32>
    %cst_498 = arith.constant 1.000000e+00 : f32
    %1620 = vector.broadcast %cst_498 : f32 to vector<1x256xf32>
    %1621 = arith.addf %1620, %1619 : vector<1x256xf32>
    %1622 = arith.divf %1620, %1621 : vector<1x256xf32>
    %1623 = vector.extract_strided_slice %1622 {offsets = [0, 0], sizes = [1, 64], strides = [1, 1]} : vector<1x256xf32> to vector<1x64xf32>
    %1624 = vector.extract_strided_slice %1622 {offsets = [0, 64], sizes = [1, 64], strides = [1, 1]} : vector<1x256xf32> to vector<1x64xf32>
    %1625 = vector.extract_strided_slice %1622 {offsets = [0, 128], sizes = [1, 64], strides = [1, 1]} : vector<1x256xf32> to vector<1x64xf32>
    %cst_499 = arith.constant 2.000000e+00 : f32
    %1626 = vector.broadcast %cst_499 : f32 to vector<1x64xf32>
    %1627 = arith.mulf %1626, %1625 : vector<1x64xf32>
    %cst_500 = arith.constant 1.000000e+00 : f32
    %1628 = vector.broadcast %cst_500 : f32 to vector<1x64xf32>
    %1629 = arith.subf %1627, %1628 : vector<1x64xf32>
    %1630 = vector.extract_strided_slice %1622 {offsets = [0, 192], sizes = [1, 64], strides = [1, 1]} : vector<1x256xf32> to vector<1x64xf32>
    %1631 = arith.mulf %1624, %1587 : vector<1x64xf32>
    %1632 = arith.mulf %1623, %1629 : vector<1x64xf32>
    %1633 = arith.addf %1631, %1632 : vector<1x64xf32>
    %1634 = math.tanh %1633 : vector<1x64xf32>
    %1635 = arith.mulf %1630, %1634 : vector<1x64xf32>
    %cst_501 = arith.constant dense<0.000000e+00> : vector<1x384xf32>
    %1636 = tpu.matmul %1635, %2, %cst_501 {dimension_numbers = #tpu.dot_dimension_numbers<[1], [0], [0], [1], [0, 0, 1, 1], [], []>} : vector<1x64xf32>, vector<64x384xf32>, vector<1x384xf32> -> vector<1x384xf32>
    %1637 = arith.addf %1636, %3 : vector<1x384xf32>
    %1638 = vector.extract_strided_slice %1637 {offsets = [0, 260], sizes = [1, 2], strides = [1, 1]} : vector<1x384xf32> to vector<1x2xf32>
    %cst_502 = arith.constant 0.000000e+00 : f32
    %1639 = vector.broadcast %cst_502 : f32 to vector<1x2xf32>
    %1640 = arith.cmpf ogt, %1638, %1639 : vector<1x2xf32>
    %1641 = arith.extui %1640 : vector<1x2xi1> to vector<1x2xi32>
    %1642 = arith.sitofp %1641 : vector<1x2xi32> to vector<1x2xf32>
    %1643 = vector.extract_strided_slice %1642 {offsets = [0, 0], sizes = [1, 1], strides = [1, 1]} : vector<1x2xf32> to vector<1x1xf32>
    %1644 = vector.broadcast %1643 : vector<1x1xf32> to vector<1x2xf32>
    %1645 = arith.mulf %1642, %1644 : vector<1x2xf32>
    %1646 = vector.extract_strided_slice %1638 {offsets = [0, 0], sizes = [1, 1], strides = [1, 1]} : vector<1x2xf32> to vector<1x1xf32>
    %cst_503 = arith.constant 0.000000e+00 : f32
    %1647 = vector.broadcast %cst_503 : f32 to vector<1x1xf32>
    %1648 = arith.cmpf ogt, %1646, %1647 : vector<1x1xf32>
    %1649 = vector.extract_strided_slice %1638 {offsets = [0, 1], sizes = [1, 1], strides = [1, 1]} : vector<1x2xf32> to vector<1x1xf32>
    %cst_504 = arith.constant 0.000000e+00 : f32
    %1650 = vector.broadcast %cst_504 : f32 to vector<1x1xf32>
    %1651 = arith.cmpf ogt, %1649, %1650 : vector<1x1xf32>
    %c7_505 = arith.constant 7 : index
    %c0_506 = arith.constant 0 : index
    %1652 = vector.load %arg0[%c7_505, %c0_506] : memref<11x384xf32, #tpu.memory_space<vmem>>, vector<1x256xf32>
    %c8_507 = arith.constant 8 : index
    %c0_508 = arith.constant 0 : index
    %1653 = vector.load %arg0[%c8_507, %c0_508] : memref<11x384xf32, #tpu.memory_space<vmem>>, vector<1x256xf32>
    %c9_509 = arith.constant 9 : index
    %c0_510 = arith.constant 0 : index
    %1654 = vector.load %arg0[%c9_509, %c0_510] : memref<11x384xf32, #tpu.memory_space<vmem>>, vector<1x256xf32>
    %1655 = vector.shape_cast %1651 : vector<1x1xi1> to vector<1x1xi1>
    %1656 = vector.broadcast %1655 : vector<1x1xi1> to vector<1x256xi1>
    %1657 = arith.select %1656, %1654, %1653 : vector<1x256xi1>, vector<1x256xf32>
    %1658 = vector.shape_cast %1648 : vector<1x1xi1> to vector<1x1xi1>
    %1659 = vector.broadcast %1658 : vector<1x1xi1> to vector<1x256xi1>
    %1660 = arith.select %1659, %1657, %1652 : vector<1x256xi1>, vector<1x256xf32>
    %c40 = arith.constant 40 : index
    %c1_511 = arith.constant 1 : index
    %1661 = vector.load %arg2[%c40, %c1_511] : memref<45x3xf32, #tpu.memory_space<vmem>>, vector<1x2xf32>
    tpu.vector_store %arg2[%c40, %c1_511], %1645 {strides = array<i32>} : memref<45x3xf32, #tpu.memory_space<vmem>>, vector<1x2xf32>,
    %1662 = vector.extract_strided_slice %1637 {offsets = [0, 0], sizes = [1, 256], strides = [1, 1]} : vector<1x384xf32> to vector<1x256xf32>
    %1663 = arith.addf %1660, %1662 : vector<1x256xf32>
    %1664 = arith.negf %1663 : vector<1x256xf32>
    %1665 = math.exp %1664 : vector<1x256xf32>
    %cst_512 = arith.constant 1.000000e+00 : f32
    %1666 = vector.broadcast %cst_512 : f32 to vector<1x256xf32>
    %1667 = arith.addf %1666, %1665 : vector<1x256xf32>
    %1668 = arith.divf %1666, %1667 : vector<1x256xf32>
    %1669 = vector.extract_strided_slice %1668 {offsets = [0, 0], sizes = [1, 64], strides = [1, 1]} : vector<1x256xf32> to vector<1x64xf32>
    %1670 = vector.extract_strided_slice %1668 {offsets = [0, 64], sizes = [1, 64], strides = [1, 1]} : vector<1x256xf32> to vector<1x64xf32>
    %1671 = vector.extract_strided_slice %1668 {offsets = [0, 128], sizes = [1, 64], strides = [1, 1]} : vector<1x256xf32> to vector<1x64xf32>
    %cst_513 = arith.constant 2.000000e+00 : f32
    %1672 = vector.broadcast %cst_513 : f32 to vector<1x64xf32>
    %1673 = arith.mulf %1672, %1671 : vector<1x64xf32>
    %cst_514 = arith.constant 1.000000e+00 : f32
    %1674 = vector.broadcast %cst_514 : f32 to vector<1x64xf32>
    %1675 = arith.subf %1673, %1674 : vector<1x64xf32>
    %1676 = vector.extract_strided_slice %1668 {offsets = [0, 192], sizes = [1, 64], strides = [1, 1]} : vector<1x256xf32> to vector<1x64xf32>
    %1677 = arith.mulf %1670, %1633 : vector<1x64xf32>
    %1678 = arith.mulf %1669, %1675 : vector<1x64xf32>
    %1679 = arith.addf %1677, %1678 : vector<1x64xf32>
    %1680 = math.tanh %1679 : vector<1x64xf32>
    %1681 = arith.mulf %1676, %1680 : vector<1x64xf32>
    %cst_515 = arith.constant dense<0.000000e+00> : vector<1x384xf32>
    %1682 = tpu.matmul %1681, %2, %cst_515 {dimension_numbers = #tpu.dot_dimension_numbers<[1], [0], [0], [1], [0, 0, 1, 1], [], []>} : vector<1x64xf32>, vector<64x384xf32>, vector<1x384xf32> -> vector<1x384xf32>
    %1683 = arith.addf %1682, %3 : vector<1x384xf32>
    %1684 = vector.extract_strided_slice %1683 {offsets = [0, 256], sizes = [1, 2], strides = [1, 1]} : vector<1x384xf32> to vector<1x2xf32>
    %cst_516 = arith.constant 0.000000e+00 : f32
    %1685 = vector.broadcast %cst_516 : f32 to vector<1x2xf32>
    %1686 = arith.cmpf ogt, %1684, %1685 : vector<1x2xf32>
    %1687 = arith.extui %1686 : vector<1x2xi1> to vector<1x2xi32>
    %1688 = arith.sitofp %1687 : vector<1x2xi32> to vector<1x2xf32>
    %1689 = vector.extract_strided_slice %1688 {offsets = [0, 0], sizes = [1, 1], strides = [1, 1]} : vector<1x2xf32> to vector<1x1xf32>
    %1690 = vector.broadcast %1689 : vector<1x1xf32> to vector<1x2xf32>
    %1691 = arith.mulf %1688, %1690 : vector<1x2xf32>
    %1692 = vector.extract_strided_slice %1684 {offsets = [0, 0], sizes = [1, 1], strides = [1, 1]} : vector<1x2xf32> to vector<1x1xf32>
    %cst_517 = arith.constant 0.000000e+00 : f32
    %1693 = vector.broadcast %cst_517 : f32 to vector<1x1xf32>
    %1694 = arith.cmpf ogt, %1692, %1693 : vector<1x1xf32>
    %1695 = vector.extract_strided_slice %1684 {offsets = [0, 1], sizes = [1, 1], strides = [1, 1]} : vector<1x2xf32> to vector<1x1xf32>
    %cst_518 = arith.constant 0.000000e+00 : f32
    %1696 = vector.broadcast %cst_518 : f32 to vector<1x1xf32>
    %1697 = arith.cmpf ogt, %1695, %1696 : vector<1x1xf32>
    %c1_519 = arith.constant 1 : index
    %c0_520 = arith.constant 0 : index
    %1698 = vector.load %arg0[%c1_519, %c0_520] : memref<11x384xf32, #tpu.memory_space<vmem>>, vector<1x256xf32>
    %c2_521 = arith.constant 2 : index
    %c0_522 = arith.constant 0 : index
    %1699 = vector.load %arg0[%c2_521, %c0_522] : memref<11x384xf32, #tpu.memory_space<vmem>>, vector<1x256xf32>
    %c3_523 = arith.constant 3 : index
    %c0_524 = arith.constant 0 : index
    %1700 = vector.load %arg0[%c3_523, %c0_524] : memref<11x384xf32, #tpu.memory_space<vmem>>, vector<1x256xf32>
    %1701 = vector.shape_cast %1697 : vector<1x1xi1> to vector<1x1xi1>
    %1702 = vector.broadcast %1701 : vector<1x1xi1> to vector<1x256xi1>
    %1703 = arith.select %1702, %1700, %1699 : vector<1x256xi1>, vector<1x256xf32>
    %1704 = vector.shape_cast %1694 : vector<1x1xi1> to vector<1x1xi1>
    %1705 = vector.broadcast %1704 : vector<1x1xi1> to vector<1x256xi1>
    %1706 = arith.select %1705, %1703, %1698 : vector<1x256xi1>, vector<1x256xf32>
    %c4_525 = arith.constant 4 : index
    %c1_526 = arith.constant 1 : index
    %1707 = vector.load %arg2[%c4_525, %c1_526] : memref<45x3xf32, #tpu.memory_space<vmem>>, vector<1x2xf32>
    tpu.vector_store %arg2[%c4_525, %c1_526], %1691 {strides = array<i32>} : memref<45x3xf32, #tpu.memory_space<vmem>>, vector<1x2xf32>,
    %1708 = vector.extract_strided_slice %1683 {offsets = [0, 0], sizes = [1, 256], strides = [1, 1]} : vector<1x384xf32> to vector<1x256xf32>
    %1709 = arith.addf %1706, %1708 : vector<1x256xf32>
    %1710 = arith.negf %1709 : vector<1x256xf32>
    %1711 = math.exp %1710 : vector<1x256xf32>
    %cst_527 = arith.constant 1.000000e+00 : f32
    %1712 = vector.broadcast %cst_527 : f32 to vector<1x256xf32>
    %1713 = arith.addf %1712, %1711 : vector<1x256xf32>
    %1714 = arith.divf %1712, %1713 : vector<1x256xf32>
    %1715 = vector.extract_strided_slice %1714 {offsets = [0, 0], sizes = [1, 64], strides = [1, 1]} : vector<1x256xf32> to vector<1x64xf32>
    %1716 = vector.extract_strided_slice %1714 {offsets = [0, 64], sizes = [1, 64], strides = [1, 1]} : vector<1x256xf32> to vector<1x64xf32>
    %1717 = vector.extract_strided_slice %1714 {offsets = [0, 128], sizes = [1, 64], strides = [1, 1]} : vector<1x256xf32> to vector<1x64xf32>
    %cst_528 = arith.constant 2.000000e+00 : f32
    %1718 = vector.broadcast %cst_528 : f32 to vector<1x64xf32>
    %1719 = arith.mulf %1718, %1717 : vector<1x64xf32>
    %cst_529 = arith.constant 1.000000e+00 : f32
    %1720 = vector.broadcast %cst_529 : f32 to vector<1x64xf32>
    %1721 = arith.subf %1719, %1720 : vector<1x64xf32>
    %1722 = vector.extract_strided_slice %1714 {offsets = [0, 192], sizes = [1, 64], strides = [1, 1]} : vector<1x256xf32> to vector<1x64xf32>
    %1723 = arith.mulf %1716, %1679 : vector<1x64xf32>
    %1724 = arith.mulf %1715, %1721 : vector<1x64xf32>
    %1725 = arith.addf %1723, %1724 : vector<1x64xf32>
    %1726 = math.tanh %1725 : vector<1x64xf32>
    %1727 = arith.mulf %1722, %1726 : vector<1x64xf32>
    %cst_530 = arith.constant dense<0.000000e+00> : vector<1x384xf32>
    %1728 = tpu.matmul %1727, %2, %cst_530 {dimension_numbers = #tpu.dot_dimension_numbers<[1], [0], [0], [1], [0, 0, 1, 1], [], []>} : vector<1x64xf32>, vector<64x384xf32>, vector<1x384xf32> -> vector<1x384xf32>
    %1729 = arith.addf %1728, %3 : vector<1x384xf32>
    %1730 = vector.extract_strided_slice %1729 {offsets = [0, 258], sizes = [1, 2], strides = [1, 1]} : vector<1x384xf32> to vector<1x2xf32>
    %cst_531 = arith.constant 0.000000e+00 : f32
    %1731 = vector.broadcast %cst_531 : f32 to vector<1x2xf32>
    %1732 = arith.cmpf ogt, %1730, %1731 : vector<1x2xf32>
    %1733 = arith.extui %1732 : vector<1x2xi1> to vector<1x2xi32>
    %1734 = arith.sitofp %1733 : vector<1x2xi32> to vector<1x2xf32>
    %1735 = vector.extract_strided_slice %1734 {offsets = [0, 0], sizes = [1, 1], strides = [1, 1]} : vector<1x2xf32> to vector<1x1xf32>
    %1736 = vector.broadcast %1735 : vector<1x1xf32> to vector<1x2xf32>
    %1737 = arith.mulf %1734, %1736 : vector<1x2xf32>
    %1738 = vector.extract_strided_slice %1730 {offsets = [0, 0], sizes = [1, 1], strides = [1, 1]} : vector<1x2xf32> to vector<1x1xf32>
    %cst_532 = arith.constant 0.000000e+00 : f32
    %1739 = vector.broadcast %cst_532 : f32 to vector<1x1xf32>
    %1740 = arith.cmpf ogt, %1738, %1739 : vector<1x1xf32>
    %1741 = vector.extract_strided_slice %1730 {offsets = [0, 1], sizes = [1, 1], strides = [1, 1]} : vector<1x2xf32> to vector<1x1xf32>
    %cst_533 = arith.constant 0.000000e+00 : f32
    %1742 = vector.broadcast %cst_533 : f32 to vector<1x1xf32>
    %1743 = arith.cmpf ogt, %1741, %1742 : vector<1x1xf32>
    %c4_534 = arith.constant 4 : index
    %c0_535 = arith.constant 0 : index
    %1744 = vector.load %arg0[%c4_534, %c0_535] : memref<11x384xf32, #tpu.memory_space<vmem>>, vector<1x256xf32>
    %c5_536 = arith.constant 5 : index
    %c0_537 = arith.constant 0 : index
    %1745 = vector.load %arg0[%c5_536, %c0_537] : memref<11x384xf32, #tpu.memory_space<vmem>>, vector<1x256xf32>
    %c6_538 = arith.constant 6 : index
    %c0_539 = arith.constant 0 : index
    %1746 = vector.load %arg0[%c6_538, %c0_539] : memref<11x384xf32, #tpu.memory_space<vmem>>, vector<1x256xf32>
    %1747 = vector.shape_cast %1743 : vector<1x1xi1> to vector<1x1xi1>
    %1748 = vector.broadcast %1747 : vector<1x1xi1> to vector<1x256xi1>
    %1749 = arith.select %1748, %1746, %1745 : vector<1x256xi1>, vector<1x256xf32>
    %1750 = vector.shape_cast %1740 : vector<1x1xi1> to vector<1x1xi1>
    %1751 = vector.broadcast %1750 : vector<1x1xi1> to vector<1x256xi1>
    %1752 = arith.select %1751, %1749, %1744 : vector<1x256xi1>, vector<1x256xf32>
    %c21 = arith.constant 21 : index
    %c1_540 = arith.constant 1 : index
    %1753 = vector.load %arg2[%c21, %c1_540] : memref<45x3xf32, #tpu.memory_space<vmem>>, vector<1x2xf32>
    tpu.vector_store %arg2[%c21, %c1_540], %1737 {strides = array<i32>} : memref<45x3xf32, #tpu.memory_space<vmem>>, vector<1x2xf32>,
    %1754 = vector.extract_strided_slice %1729 {offsets = [0, 0], sizes = [1, 256], strides = [1, 1]} : vector<1x384xf32> to vector<1x256xf32>
    %1755 = arith.addf %1752, %1754 : vector<1x256xf32>
    %1756 = arith.negf %1755 : vector<1x256xf32>
    %1757 = math.exp %1756 : vector<1x256xf32>
    %cst_541 = arith.constant 1.000000e+00 : f32
    %1758 = vector.broadcast %cst_541 : f32 to vector<1x256xf32>
    %1759 = arith.addf %1758, %1757 : vector<1x256xf32>
    %1760 = arith.divf %1758, %1759 : vector<1x256xf32>
    %1761 = vector.extract_strided_slice %1760 {offsets = [0, 0], sizes = [1, 64], strides = [1, 1]} : vector<1x256xf32> to vector<1x64xf32>
    %1762 = vector.extract_strided_slice %1760 {offsets = [0, 64], sizes = [1, 64], strides = [1, 1]} : vector<1x256xf32> to vector<1x64xf32>
    %1763 = vector.extract_strided_slice %1760 {offsets = [0, 128], sizes = [1, 64], strides = [1, 1]} : vector<1x256xf32> to vector<1x64xf32>
    %cst_542 = arith.constant 2.000000e+00 : f32
    %1764 = vector.broadcast %cst_542 : f32 to vector<1x64xf32>
    %1765 = arith.mulf %1764, %1763 : vector<1x64xf32>
    %cst_543 = arith.constant 1.000000e+00 : f32
    %1766 = vector.broadcast %cst_543 : f32 to vector<1x64xf32>
    %1767 = arith.subf %1765, %1766 : vector<1x64xf32>
    %1768 = vector.extract_strided_slice %1760 {offsets = [0, 192], sizes = [1, 64], strides = [1, 1]} : vector<1x256xf32> to vector<1x64xf32>
    %1769 = arith.mulf %1762, %1725 : vector<1x64xf32>
    %1770 = arith.mulf %1761, %1767 : vector<1x64xf32>
    %1771 = arith.addf %1769, %1770 : vector<1x64xf32>
    %1772 = math.tanh %1771 : vector<1x64xf32>
    %1773 = arith.mulf %1768, %1772 : vector<1x64xf32>
    %cst_544 = arith.constant dense<0.000000e+00> : vector<1x384xf32>
    %1774 = tpu.matmul %1773, %2, %cst_544 {dimension_numbers = #tpu.dot_dimension_numbers<[1], [0], [0], [1], [0, 0, 1, 1], [], []>} : vector<1x64xf32>, vector<64x384xf32>, vector<1x384xf32> -> vector<1x384xf32>
    %1775 = arith.addf %1774, %3 : vector<1x384xf32>
    %1776 = vector.extract_strided_slice %1775 {offsets = [0, 260], sizes = [1, 2], strides = [1, 1]} : vector<1x384xf32> to vector<1x2xf32>
    %cst_545 = arith.constant 0.000000e+00 : f32
    %1777 = vector.broadcast %cst_545 : f32 to vector<1x2xf32>
    %1778 = arith.cmpf ogt, %1776, %1777 : vector<1x2xf32>
    %1779 = arith.extui %1778 : vector<1x2xi1> to vector<1x2xi32>
    %1780 = arith.sitofp %1779 : vector<1x2xi32> to vector<1x2xf32>
    %1781 = vector.extract_strided_slice %1780 {offsets = [0, 0], sizes = [1, 1], strides = [1, 1]} : vector<1x2xf32> to vector<1x1xf32>
    %1782 = vector.broadcast %1781 : vector<1x1xf32> to vector<1x2xf32>
    %1783 = arith.mulf %1780, %1782 : vector<1x2xf32>
    %1784 = vector.extract_strided_slice %1776 {offsets = [0, 0], sizes = [1, 1], strides = [1, 1]} : vector<1x2xf32> to vector<1x1xf32>
    %cst_546 = arith.constant 0.000000e+00 : f32
    %1785 = vector.broadcast %cst_546 : f32 to vector<1x1xf32>
    %1786 = arith.cmpf ogt, %1784, %1785 : vector<1x1xf32>
    %1787 = vector.extract_strided_slice %1776 {offsets = [0, 1], sizes = [1, 1], strides = [1, 1]} : vector<1x2xf32> to vector<1x1xf32>
    %cst_547 = arith.constant 0.000000e+00 : f32
    %1788 = vector.broadcast %cst_547 : f32 to vector<1x1xf32>
    %1789 = arith.cmpf ogt, %1787, %1788 : vector<1x1xf32>
    %c7_548 = arith.constant 7 : index
    %c0_549 = arith.constant 0 : index
    %1790 = vector.load %arg0[%c7_548, %c0_549] : memref<11x384xf32, #tpu.memory_space<vmem>>, vector<1x256xf32>
    %c8_550 = arith.constant 8 : index
    %c0_551 = arith.constant 0 : index
    %1791 = vector.load %arg0[%c8_550, %c0_551] : memref<11x384xf32, #tpu.memory_space<vmem>>, vector<1x256xf32>
    %c9_552 = arith.constant 9 : index
    %c0_553 = arith.constant 0 : index
    %1792 = vector.load %arg0[%c9_552, %c0_553] : memref<11x384xf32, #tpu.memory_space<vmem>>, vector<1x256xf32>
    %1793 = vector.shape_cast %1789 : vector<1x1xi1> to vector<1x1xi1>
    %1794 = vector.broadcast %1793 : vector<1x1xi1> to vector<1x256xi1>
    %1795 = arith.select %1794, %1792, %1791 : vector<1x256xi1>, vector<1x256xf32>
    %1796 = vector.shape_cast %1786 : vector<1x1xi1> to vector<1x1xi1>
    %1797 = vector.broadcast %1796 : vector<1x1xi1> to vector<1x256xi1>
    %1798 = arith.select %1797, %1795, %1790 : vector<1x256xi1>, vector<1x256xf32>
    %c41 = arith.constant 41 : index
    %c1_554 = arith.constant 1 : index
    %1799 = vector.load %arg2[%c41, %c1_554] : memref<45x3xf32, #tpu.memory_space<vmem>>, vector<1x2xf32>
    tpu.vector_store %arg2[%c41, %c1_554], %1783 {strides = array<i32>} : memref<45x3xf32, #tpu.memory_space<vmem>>, vector<1x2xf32>,
    %1800 = vector.extract_strided_slice %1775 {offsets = [0, 0], sizes = [1, 256], strides = [1, 1]} : vector<1x384xf32> to vector<1x256xf32>
    %1801 = arith.addf %1798, %1800 : vector<1x256xf32>
    %1802 = arith.negf %1801 : vector<1x256xf32>
    %1803 = math.exp %1802 : vector<1x256xf32>
    %cst_555 = arith.constant 1.000000e+00 : f32
    %1804 = vector.broadcast %cst_555 : f32 to vector<1x256xf32>
    %1805 = arith.addf %1804, %1803 : vector<1x256xf32>
    %1806 = arith.divf %1804, %1805 : vector<1x256xf32>
    %1807 = vector.extract_strided_slice %1806 {offsets = [0, 0], sizes = [1, 64], strides = [1, 1]} : vector<1x256xf32> to vector<1x64xf32>
    %1808 = vector.extract_strided_slice %1806 {offsets = [0, 64], sizes = [1, 64], strides = [1, 1]} : vector<1x256xf32> to vector<1x64xf32>
    %1809 = vector.extract_strided_slice %1806 {offsets = [0, 128], sizes = [1, 64], strides = [1, 1]} : vector<1x256xf32> to vector<1x64xf32>
    %cst_556 = arith.constant 2.000000e+00 : f32
    %1810 = vector.broadcast %cst_556 : f32 to vector<1x64xf32>
    %1811 = arith.mulf %1810, %1809 : vector<1x64xf32>
    %cst_557 = arith.constant 1.000000e+00 : f32
    %1812 = vector.broadcast %cst_557 : f32 to vector<1x64xf32>
    %1813 = arith.subf %1811, %1812 : vector<1x64xf32>
    %1814 = vector.extract_strided_slice %1806 {offsets = [0, 192], sizes = [1, 64], strides = [1, 1]} : vector<1x256xf32> to vector<1x64xf32>
    %1815 = arith.mulf %1808, %1771 : vector<1x64xf32>
    %1816 = arith.mulf %1807, %1813 : vector<1x64xf32>
    %1817 = arith.addf %1815, %1816 : vector<1x64xf32>
    %1818 = math.tanh %1817 : vector<1x64xf32>
    %1819 = arith.mulf %1814, %1818 : vector<1x64xf32>
    %cst_558 = arith.constant dense<0.000000e+00> : vector<1x384xf32>
    %1820 = tpu.matmul %1819, %2, %cst_558 {dimension_numbers = #tpu.dot_dimension_numbers<[1], [0], [0], [1], [0, 0, 1, 1], [], []>} : vector<1x64xf32>, vector<64x384xf32>, vector<1x384xf32> -> vector<1x384xf32>
    %1821 = arith.addf %1820, %3 : vector<1x384xf32>
    %1822 = vector.extract_strided_slice %1821 {offsets = [0, 258], sizes = [1, 2], strides = [1, 1]} : vector<1x384xf32> to vector<1x2xf32>
    %cst_559 = arith.constant 0.000000e+00 : f32
    %1823 = vector.broadcast %cst_559 : f32 to vector<1x2xf32>
    %1824 = arith.cmpf ogt, %1822, %1823 : vector<1x2xf32>
    %1825 = arith.extui %1824 : vector<1x2xi1> to vector<1x2xi32>
    %1826 = arith.sitofp %1825 : vector<1x2xi32> to vector<1x2xf32>
    %1827 = vector.extract_strided_slice %1826 {offsets = [0, 0], sizes = [1, 1], strides = [1, 1]} : vector<1x2xf32> to vector<1x1xf32>
    %1828 = vector.broadcast %1827 : vector<1x1xf32> to vector<1x2xf32>
    %1829 = arith.mulf %1826, %1828 : vector<1x2xf32>
    %1830 = vector.extract_strided_slice %1822 {offsets = [0, 0], sizes = [1, 1], strides = [1, 1]} : vector<1x2xf32> to vector<1x1xf32>
    %cst_560 = arith.constant 0.000000e+00 : f32
    %1831 = vector.broadcast %cst_560 : f32 to vector<1x1xf32>
    %1832 = arith.cmpf ogt, %1830, %1831 : vector<1x1xf32>
    %1833 = vector.extract_strided_slice %1822 {offsets = [0, 1], sizes = [1, 1], strides = [1, 1]} : vector<1x2xf32> to vector<1x1xf32>
    %cst_561 = arith.constant 0.000000e+00 : f32
    %1834 = vector.broadcast %cst_561 : f32 to vector<1x1xf32>
    %1835 = arith.cmpf ogt, %1833, %1834 : vector<1x1xf32>
    %c4_562 = arith.constant 4 : index
    %c0_563 = arith.constant 0 : index
    %1836 = vector.load %arg0[%c4_562, %c0_563] : memref<11x384xf32, #tpu.memory_space<vmem>>, vector<1x256xf32>
    %c5_564 = arith.constant 5 : index
    %c0_565 = arith.constant 0 : index
    %1837 = vector.load %arg0[%c5_564, %c0_565] : memref<11x384xf32, #tpu.memory_space<vmem>>, vector<1x256xf32>
    %c6_566 = arith.constant 6 : index
    %c0_567 = arith.constant 0 : index
    %1838 = vector.load %arg0[%c6_566, %c0_567] : memref<11x384xf32, #tpu.memory_space<vmem>>, vector<1x256xf32>
    %1839 = vector.shape_cast %1835 : vector<1x1xi1> to vector<1x1xi1>
    %1840 = vector.broadcast %1839 : vector<1x1xi1> to vector<1x256xi1>
    %1841 = arith.select %1840, %1838, %1837 : vector<1x256xi1>, vector<1x256xf32>
    %1842 = vector.shape_cast %1832 : vector<1x1xi1> to vector<1x1xi1>
    %1843 = vector.broadcast %1842 : vector<1x1xi1> to vector<1x256xi1>
    %1844 = arith.select %1843, %1841, %1836 : vector<1x256xi1>, vector<1x256xf32>
    %c22 = arith.constant 22 : index
    %c1_568 = arith.constant 1 : index
    %1845 = vector.load %arg2[%c22, %c1_568] : memref<45x3xf32, #tpu.memory_space<vmem>>, vector<1x2xf32>
    tpu.vector_store %arg2[%c22, %c1_568], %1829 {strides = array<i32>} : memref<45x3xf32, #tpu.memory_space<vmem>>, vector<1x2xf32>,
    %1846 = vector.extract_strided_slice %1821 {offsets = [0, 0], sizes = [1, 256], strides = [1, 1]} : vector<1x384xf32> to vector<1x256xf32>
    %1847 = arith.addf %1844, %1846 : vector<1x256xf32>
    %1848 = arith.negf %1847 : vector<1x256xf32>
    %1849 = math.exp %1848 : vector<1x256xf32>
    %cst_569 = arith.constant 1.000000e+00 : f32
    %1850 = vector.broadcast %cst_569 : f32 to vector<1x256xf32>
    %1851 = arith.addf %1850, %1849 : vector<1x256xf32>
    %1852 = arith.divf %1850, %1851 : vector<1x256xf32>
    %1853 = vector.extract_strided_slice %1852 {offsets = [0, 0], sizes = [1, 64], strides = [1, 1]} : vector<1x256xf32> to vector<1x64xf32>
    %1854 = vector.extract_strided_slice %1852 {offsets = [0, 64], sizes = [1, 64], strides = [1, 1]} : vector<1x256xf32> to vector<1x64xf32>
    %1855 = vector.extract_strided_slice %1852 {offsets = [0, 128], sizes = [1, 64], strides = [1, 1]} : vector<1x256xf32> to vector<1x64xf32>
    %cst_570 = arith.constant 2.000000e+00 : f32
    %1856 = vector.broadcast %cst_570 : f32 to vector<1x64xf32>
    %1857 = arith.mulf %1856, %1855 : vector<1x64xf32>
    %cst_571 = arith.constant 1.000000e+00 : f32
    %1858 = vector.broadcast %cst_571 : f32 to vector<1x64xf32>
    %1859 = arith.subf %1857, %1858 : vector<1x64xf32>
    %1860 = vector.extract_strided_slice %1852 {offsets = [0, 192], sizes = [1, 64], strides = [1, 1]} : vector<1x256xf32> to vector<1x64xf32>
    %1861 = arith.mulf %1854, %1817 : vector<1x64xf32>
    %1862 = arith.mulf %1853, %1859 : vector<1x64xf32>
    %1863 = arith.addf %1861, %1862 : vector<1x64xf32>
    %1864 = math.tanh %1863 : vector<1x64xf32>
    %1865 = arith.mulf %1860, %1864 : vector<1x64xf32>
    %cst_572 = arith.constant dense<0.000000e+00> : vector<1x384xf32>
    %1866 = tpu.matmul %1865, %2, %cst_572 {dimension_numbers = #tpu.dot_dimension_numbers<[1], [0], [0], [1], [0, 0, 1, 1], [], []>} : vector<1x64xf32>, vector<64x384xf32>, vector<1x384xf32> -> vector<1x384xf32>
    %1867 = arith.addf %1866, %3 : vector<1x384xf32>
    %1868 = vector.extract_strided_slice %1867 {offsets = [0, 260], sizes = [1, 2], strides = [1, 1]} : vector<1x384xf32> to vector<1x2xf32>
    %cst_573 = arith.constant 0.000000e+00 : f32
    %1869 = vector.broadcast %cst_573 : f32 to vector<1x2xf32>
    %1870 = arith.cmpf ogt, %1868, %1869 : vector<1x2xf32>
    %1871 = arith.extui %1870 : vector<1x2xi1> to vector<1x2xi32>
    %1872 = arith.sitofp %1871 : vector<1x2xi32> to vector<1x2xf32>
    %1873 = vector.extract_strided_slice %1872 {offsets = [0, 0], sizes = [1, 1], strides = [1, 1]} : vector<1x2xf32> to vector<1x1xf32>
    %1874 = vector.broadcast %1873 : vector<1x1xf32> to vector<1x2xf32>
    %1875 = arith.mulf %1872, %1874 : vector<1x2xf32>
    %1876 = vector.extract_strided_slice %1868 {offsets = [0, 0], sizes = [1, 1], strides = [1, 1]} : vector<1x2xf32> to vector<1x1xf32>
    %cst_574 = arith.constant 0.000000e+00 : f32
    %1877 = vector.broadcast %cst_574 : f32 to vector<1x1xf32>
    %1878 = arith.cmpf ogt, %1876, %1877 : vector<1x1xf32>
    %1879 = vector.extract_strided_slice %1868 {offsets = [0, 1], sizes = [1, 1], strides = [1, 1]} : vector<1x2xf32> to vector<1x1xf32>
    %cst_575 = arith.constant 0.000000e+00 : f32
    %1880 = vector.broadcast %cst_575 : f32 to vector<1x1xf32>
    %1881 = arith.cmpf ogt, %1879, %1880 : vector<1x1xf32>
    %c7_576 = arith.constant 7 : index
    %c0_577 = arith.constant 0 : index
    %1882 = vector.load %arg0[%c7_576, %c0_577] : memref<11x384xf32, #tpu.memory_space<vmem>>, vector<1x256xf32>
    %c8_578 = arith.constant 8 : index
    %c0_579 = arith.constant 0 : index
    %1883 = vector.load %arg0[%c8_578, %c0_579] : memref<11x384xf32, #tpu.memory_space<vmem>>, vector<1x256xf32>
    %c9_580 = arith.constant 9 : index
    %c0_581 = arith.constant 0 : index
    %1884 = vector.load %arg0[%c9_580, %c0_581] : memref<11x384xf32, #tpu.memory_space<vmem>>, vector<1x256xf32>
    %1885 = vector.shape_cast %1881 : vector<1x1xi1> to vector<1x1xi1>
    %1886 = vector.broadcast %1885 : vector<1x1xi1> to vector<1x256xi1>
    %1887 = arith.select %1886, %1884, %1883 : vector<1x256xi1>, vector<1x256xf32>
    %1888 = vector.shape_cast %1878 : vector<1x1xi1> to vector<1x1xi1>
    %1889 = vector.broadcast %1888 : vector<1x1xi1> to vector<1x256xi1>
    %1890 = arith.select %1889, %1887, %1882 : vector<1x256xi1>, vector<1x256xf32>
    %c42 = arith.constant 42 : index
    %c1_582 = arith.constant 1 : index
    %1891 = vector.load %arg2[%c42, %c1_582] : memref<45x3xf32, #tpu.memory_space<vmem>>, vector<1x2xf32>
    tpu.vector_store %arg2[%c42, %c1_582], %1875 {strides = array<i32>} : memref<45x3xf32, #tpu.memory_space<vmem>>, vector<1x2xf32>,
    %1892 = vector.extract_strided_slice %1867 {offsets = [0, 0], sizes = [1, 256], strides = [1, 1]} : vector<1x384xf32> to vector<1x256xf32>
    %1893 = arith.addf %1890, %1892 : vector<1x256xf32>
    %1894 = arith.negf %1893 : vector<1x256xf32>
    %1895 = math.exp %1894 : vector<1x256xf32>
    %cst_583 = arith.constant 1.000000e+00 : f32
    %1896 = vector.broadcast %cst_583 : f32 to vector<1x256xf32>
    %1897 = arith.addf %1896, %1895 : vector<1x256xf32>
    %1898 = arith.divf %1896, %1897 : vector<1x256xf32>
    %1899 = vector.extract_strided_slice %1898 {offsets = [0, 0], sizes = [1, 64], strides = [1, 1]} : vector<1x256xf32> to vector<1x64xf32>
    %1900 = vector.extract_strided_slice %1898 {offsets = [0, 64], sizes = [1, 64], strides = [1, 1]} : vector<1x256xf32> to vector<1x64xf32>
    %1901 = vector.extract_strided_slice %1898 {offsets = [0, 128], sizes = [1, 64], strides = [1, 1]} : vector<1x256xf32> to vector<1x64xf32>
    %cst_584 = arith.constant 2.000000e+00 : f32
    %1902 = vector.broadcast %cst_584 : f32 to vector<1x64xf32>
    %1903 = arith.mulf %1902, %1901 : vector<1x64xf32>
    %cst_585 = arith.constant 1.000000e+00 : f32
    %1904 = vector.broadcast %cst_585 : f32 to vector<1x64xf32>
    %1905 = arith.subf %1903, %1904 : vector<1x64xf32>
    %1906 = vector.extract_strided_slice %1898 {offsets = [0, 192], sizes = [1, 64], strides = [1, 1]} : vector<1x256xf32> to vector<1x64xf32>
    %1907 = arith.mulf %1900, %1863 : vector<1x64xf32>
    %1908 = arith.mulf %1899, %1905 : vector<1x64xf32>
    %1909 = arith.addf %1907, %1908 : vector<1x64xf32>
    %1910 = math.tanh %1909 : vector<1x64xf32>
    %1911 = arith.mulf %1906, %1910 : vector<1x64xf32>
    %cst_586 = arith.constant dense<0.000000e+00> : vector<1x384xf32>
    %1912 = tpu.matmul %1911, %2, %cst_586 {dimension_numbers = #tpu.dot_dimension_numbers<[1], [0], [0], [1], [0, 0, 1, 1], [], []>} : vector<1x64xf32>, vector<64x384xf32>, vector<1x384xf32> -> vector<1x384xf32>
    %1913 = arith.addf %1912, %3 : vector<1x384xf32>
    %1914 = vector.extract_strided_slice %1913 {offsets = [0, 258], sizes = [1, 2], strides = [1, 1]} : vector<1x384xf32> to vector<1x2xf32>
    %cst_587 = arith.constant 0.000000e+00 : f32
    %1915 = vector.broadcast %cst_587 : f32 to vector<1x2xf32>
    %1916 = arith.cmpf ogt, %1914, %1915 : vector<1x2xf32>
    %1917 = arith.extui %1916 : vector<1x2xi1> to vector<1x2xi32>
    %1918 = arith.sitofp %1917 : vector<1x2xi32> to vector<1x2xf32>
    %1919 = vector.extract_strided_slice %1918 {offsets = [0, 0], sizes = [1, 1], strides = [1, 1]} : vector<1x2xf32> to vector<1x1xf32>
    %1920 = vector.broadcast %1919 : vector<1x1xf32> to vector<1x2xf32>
    %1921 = arith.mulf %1918, %1920 : vector<1x2xf32>
    %1922 = vector.extract_strided_slice %1914 {offsets = [0, 0], sizes = [1, 1], strides = [1, 1]} : vector<1x2xf32> to vector<1x1xf32>
    %cst_588 = arith.constant 0.000000e+00 : f32
    %1923 = vector.broadcast %cst_588 : f32 to vector<1x1xf32>
    %1924 = arith.cmpf ogt, %1922, %1923 : vector<1x1xf32>
    %1925 = vector.extract_strided_slice %1914 {offsets = [0, 1], sizes = [1, 1], strides = [1, 1]} : vector<1x2xf32> to vector<1x1xf32>
    %cst_589 = arith.constant 0.000000e+00 : f32
    %1926 = vector.broadcast %cst_589 : f32 to vector<1x1xf32>
    %1927 = arith.cmpf ogt, %1925, %1926 : vector<1x1xf32>
    %c4_590 = arith.constant 4 : index
    %c0_591 = arith.constant 0 : index
    %1928 = vector.load %arg0[%c4_590, %c0_591] : memref<11x384xf32, #tpu.memory_space<vmem>>, vector<1x256xf32>
    %c5_592 = arith.constant 5 : index
    %c0_593 = arith.constant 0 : index
    %1929 = vector.load %arg0[%c5_592, %c0_593] : memref<11x384xf32, #tpu.memory_space<vmem>>, vector<1x256xf32>
    %c6_594 = arith.constant 6 : index
    %c0_595 = arith.constant 0 : index
    %1930 = vector.load %arg0[%c6_594, %c0_595] : memref<11x384xf32, #tpu.memory_space<vmem>>, vector<1x256xf32>
    %1931 = vector.shape_cast %1927 : vector<1x1xi1> to vector<1x1xi1>
    %1932 = vector.broadcast %1931 : vector<1x1xi1> to vector<1x256xi1>
    %1933 = arith.select %1932, %1930, %1929 : vector<1x256xi1>, vector<1x256xf32>
    %1934 = vector.shape_cast %1924 : vector<1x1xi1> to vector<1x1xi1>
    %1935 = vector.broadcast %1934 : vector<1x1xi1> to vector<1x256xi1>
    %1936 = arith.select %1935, %1933, %1928 : vector<1x256xi1>, vector<1x256xf32>
    %c23 = arith.constant 23 : index
    %c1_596 = arith.constant 1 : index
    %1937 = vector.load %arg2[%c23, %c1_596] : memref<45x3xf32, #tpu.memory_space<vmem>>, vector<1x2xf32>
    tpu.vector_store %arg2[%c23, %c1_596], %1921 {strides = array<i32>} : memref<45x3xf32, #tpu.memory_space<vmem>>, vector<1x2xf32>,
    %1938 = vector.extract_strided_slice %1913 {offsets = [0, 0], sizes = [1, 256], strides = [1, 1]} : vector<1x384xf32> to vector<1x256xf32>
    %1939 = arith.addf %1936, %1938 : vector<1x256xf32>
    %1940 = arith.negf %1939 : vector<1x256xf32>
    %1941 = math.exp %1940 : vector<1x256xf32>
    %cst_597 = arith.constant 1.000000e+00 : f32
    %1942 = vector.broadcast %cst_597 : f32 to vector<1x256xf32>
    %1943 = arith.addf %1942, %1941 : vector<1x256xf32>
    %1944 = arith.divf %1942, %1943 : vector<1x256xf32>
    %1945 = vector.extract_strided_slice %1944 {offsets = [0, 0], sizes = [1, 64], strides = [1, 1]} : vector<1x256xf32> to vector<1x64xf32>
    %1946 = vector.extract_strided_slice %1944 {offsets = [0, 64], sizes = [1, 64], strides = [1, 1]} : vector<1x256xf32> to vector<1x64xf32>
    %1947 = vector.extract_strided_slice %1944 {offsets = [0, 128], sizes = [1, 64], strides = [1, 1]} : vector<1x256xf32> to vector<1x64xf32>
    %cst_598 = arith.constant 2.000000e+00 : f32
    %1948 = vector.broadcast %cst_598 : f32 to vector<1x64xf32>
    %1949 = arith.mulf %1948, %1947 : vector<1x64xf32>
    %cst_599 = arith.constant 1.000000e+00 : f32
    %1950 = vector.broadcast %cst_599 : f32 to vector<1x64xf32>
    %1951 = arith.subf %1949, %1950 : vector<1x64xf32>
    %1952 = vector.extract_strided_slice %1944 {offsets = [0, 192], sizes = [1, 64], strides = [1, 1]} : vector<1x256xf32> to vector<1x64xf32>
    %1953 = arith.mulf %1946, %1909 : vector<1x64xf32>
    %1954 = arith.mulf %1945, %1951 : vector<1x64xf32>
    %1955 = arith.addf %1953, %1954 : vector<1x64xf32>
    %1956 = math.tanh %1955 : vector<1x64xf32>
    %1957 = arith.mulf %1952, %1956 : vector<1x64xf32>
    %cst_600 = arith.constant dense<0.000000e+00> : vector<1x384xf32>
    %1958 = tpu.matmul %1957, %2, %cst_600 {dimension_numbers = #tpu.dot_dimension_numbers<[1], [0], [0], [1], [0, 0, 1, 1], [], []>} : vector<1x64xf32>, vector<64x384xf32>, vector<1x384xf32> -> vector<1x384xf32>
    %1959 = arith.addf %1958, %3 : vector<1x384xf32>
    %1960 = vector.extract_strided_slice %1959 {offsets = [0, 260], sizes = [1, 2], strides = [1, 1]} : vector<1x384xf32> to vector<1x2xf32>
    %cst_601 = arith.constant 0.000000e+00 : f32
    %1961 = vector.broadcast %cst_601 : f32 to vector<1x2xf32>
    %1962 = arith.cmpf ogt, %1960, %1961 : vector<1x2xf32>
    %1963 = arith.extui %1962 : vector<1x2xi1> to vector<1x2xi32>
    %1964 = arith.sitofp %1963 : vector<1x2xi32> to vector<1x2xf32>
    %1965 = vector.extract_strided_slice %1964 {offsets = [0, 0], sizes = [1, 1], strides = [1, 1]} : vector<1x2xf32> to vector<1x1xf32>
    %1966 = vector.broadcast %1965 : vector<1x1xf32> to vector<1x2xf32>
    %1967 = arith.mulf %1964, %1966 : vector<1x2xf32>
    %1968 = vector.extract_strided_slice %1960 {offsets = [0, 0], sizes = [1, 1], strides = [1, 1]} : vector<1x2xf32> to vector<1x1xf32>
    %cst_602 = arith.constant 0.000000e+00 : f32
    %1969 = vector.broadcast %cst_602 : f32 to vector<1x1xf32>
    %1970 = arith.cmpf ogt, %1968, %1969 : vector<1x1xf32>
    %1971 = vector.extract_strided_slice %1960 {offsets = [0, 1], sizes = [1, 1], strides = [1, 1]} : vector<1x2xf32> to vector<1x1xf32>
    %cst_603 = arith.constant 0.000000e+00 : f32
    %1972 = vector.broadcast %cst_603 : f32 to vector<1x1xf32>
    %1973 = arith.cmpf ogt, %1971, %1972 : vector<1x1xf32>
    %c7_604 = arith.constant 7 : index
    %c0_605 = arith.constant 0 : index
    %1974 = vector.load %arg0[%c7_604, %c0_605] : memref<11x384xf32, #tpu.memory_space<vmem>>, vector<1x256xf32>
    %c8_606 = arith.constant 8 : index
    %c0_607 = arith.constant 0 : index
    %1975 = vector.load %arg0[%c8_606, %c0_607] : memref<11x384xf32, #tpu.memory_space<vmem>>, vector<1x256xf32>
    %c9_608 = arith.constant 9 : index
    %c0_609 = arith.constant 0 : index
    %1976 = vector.load %arg0[%c9_608, %c0_609] : memref<11x384xf32, #tpu.memory_space<vmem>>, vector<1x256xf32>
    %1977 = vector.shape_cast %1973 : vector<1x1xi1> to vector<1x1xi1>
    %1978 = vector.broadcast %1977 : vector<1x1xi1> to vector<1x256xi1>
    %1979 = arith.select %1978, %1976, %1975 : vector<1x256xi1>, vector<1x256xf32>
    %1980 = vector.shape_cast %1970 : vector<1x1xi1> to vector<1x1xi1>
    %1981 = vector.broadcast %1980 : vector<1x1xi1> to vector<1x256xi1>
    %1982 = arith.select %1981, %1979, %1974 : vector<1x256xi1>, vector<1x256xf32>
    %c43 = arith.constant 43 : index
    %c1_610 = arith.constant 1 : index
    %1983 = vector.load %arg2[%c43, %c1_610] : memref<45x3xf32, #tpu.memory_space<vmem>>, vector<1x2xf32>
    tpu.vector_store %arg2[%c43, %c1_610], %1967 {strides = array<i32>} : memref<45x3xf32, #tpu.memory_space<vmem>>, vector<1x2xf32>,
    %1984 = vector.extract_strided_slice %1959 {offsets = [0, 0], sizes = [1, 256], strides = [1, 1]} : vector<1x384xf32> to vector<1x256xf32>
    %1985 = arith.addf %1982, %1984 : vector<1x256xf32>
    %1986 = arith.negf %1985 : vector<1x256xf32>
    %1987 = math.exp %1986 : vector<1x256xf32>
    %cst_611 = arith.constant 1.000000e+00 : f32
    %1988 = vector.broadcast %cst_611 : f32 to vector<1x256xf32>
    %1989 = arith.addf %1988, %1987 : vector<1x256xf32>
    %1990 = arith.divf %1988, %1989 : vector<1x256xf32>
    %1991 = vector.extract_strided_slice %1990 {offsets = [0, 0], sizes = [1, 64], strides = [1, 1]} : vector<1x256xf32> to vector<1x64xf32>
    %1992 = vector.extract_strided_slice %1990 {offsets = [0, 64], sizes = [1, 64], strides = [1, 1]} : vector<1x256xf32> to vector<1x64xf32>
    %1993 = vector.extract_strided_slice %1990 {offsets = [0, 128], sizes = [1, 64], strides = [1, 1]} : vector<1x256xf32> to vector<1x64xf32>
    %cst_612 = arith.constant 2.000000e+00 : f32
    %1994 = vector.broadcast %cst_612 : f32 to vector<1x64xf32>
    %1995 = arith.mulf %1994, %1993 : vector<1x64xf32>
    %cst_613 = arith.constant 1.000000e+00 : f32
    %1996 = vector.broadcast %cst_613 : f32 to vector<1x64xf32>
    %1997 = arith.subf %1995, %1996 : vector<1x64xf32>
    %1998 = vector.extract_strided_slice %1990 {offsets = [0, 192], sizes = [1, 64], strides = [1, 1]} : vector<1x256xf32> to vector<1x64xf32>
    %1999 = arith.mulf %1992, %1955 : vector<1x64xf32>
    %2000 = arith.mulf %1991, %1997 : vector<1x64xf32>
    %2001 = arith.addf %1999, %2000 : vector<1x64xf32>
    %2002 = math.tanh %2001 : vector<1x64xf32>
    %2003 = arith.mulf %1998, %2002 : vector<1x64xf32>
    %cst_614 = arith.constant dense<0.000000e+00> : vector<1x384xf32>
    %2004 = tpu.matmul %2003, %2, %cst_614 {dimension_numbers = #tpu.dot_dimension_numbers<[1], [0], [0], [1], [0, 0, 1, 1], [], []>} : vector<1x64xf32>, vector<64x384xf32>, vector<1x384xf32> -> vector<1x384xf32>
    %2005 = arith.addf %2004, %3 : vector<1x384xf32>
    %2006 = vector.extract_strided_slice %2005 {offsets = [0, 258], sizes = [1, 2], strides = [1, 1]} : vector<1x384xf32> to vector<1x2xf32>
    %cst_615 = arith.constant 0.000000e+00 : f32
    %2007 = vector.broadcast %cst_615 : f32 to vector<1x2xf32>
    %2008 = arith.cmpf ogt, %2006, %2007 : vector<1x2xf32>
    %2009 = arith.extui %2008 : vector<1x2xi1> to vector<1x2xi32>
    %2010 = arith.sitofp %2009 : vector<1x2xi32> to vector<1x2xf32>
    %2011 = vector.extract_strided_slice %2010 {offsets = [0, 0], sizes = [1, 1], strides = [1, 1]} : vector<1x2xf32> to vector<1x1xf32>
    %2012 = vector.broadcast %2011 : vector<1x1xf32> to vector<1x2xf32>
    %2013 = arith.mulf %2010, %2012 : vector<1x2xf32>
    %2014 = vector.extract_strided_slice %2006 {offsets = [0, 0], sizes = [1, 1], strides = [1, 1]} : vector<1x2xf32> to vector<1x1xf32>
    %cst_616 = arith.constant 0.000000e+00 : f32
    %2015 = vector.broadcast %cst_616 : f32 to vector<1x1xf32>
    %2016 = arith.cmpf ogt, %2014, %2015 : vector<1x1xf32>
    %2017 = vector.extract_strided_slice %2006 {offsets = [0, 1], sizes = [1, 1], strides = [1, 1]} : vector<1x2xf32> to vector<1x1xf32>
    %cst_617 = arith.constant 0.000000e+00 : f32
    %2018 = vector.broadcast %cst_617 : f32 to vector<1x1xf32>
    %2019 = arith.cmpf ogt, %2017, %2018 : vector<1x1xf32>
    %c4_618 = arith.constant 4 : index
    %c0_619 = arith.constant 0 : index
    %2020 = vector.load %arg0[%c4_618, %c0_619] : memref<11x384xf32, #tpu.memory_space<vmem>>, vector<1x256xf32>
    %c5_620 = arith.constant 5 : index
    %c0_621 = arith.constant 0 : index
    %2021 = vector.load %arg0[%c5_620, %c0_621] : memref<11x384xf32, #tpu.memory_space<vmem>>, vector<1x256xf32>
    %c6_622 = arith.constant 6 : index
    %c0_623 = arith.constant 0 : index
    %2022 = vector.load %arg0[%c6_622, %c0_623] : memref<11x384xf32, #tpu.memory_space<vmem>>, vector<1x256xf32>
    %2023 = vector.shape_cast %2019 : vector<1x1xi1> to vector<1x1xi1>
    %2024 = vector.broadcast %2023 : vector<1x1xi1> to vector<1x256xi1>
    %2025 = arith.select %2024, %2022, %2021 : vector<1x256xi1>, vector<1x256xf32>
    %2026 = vector.shape_cast %2016 : vector<1x1xi1> to vector<1x1xi1>
    %2027 = vector.broadcast %2026 : vector<1x1xi1> to vector<1x256xi1>
    %2028 = arith.select %2027, %2025, %2020 : vector<1x256xi1>, vector<1x256xf32>
    %c24 = arith.constant 24 : index
    %c1_624 = arith.constant 1 : index
    %2029 = vector.load %arg2[%c24, %c1_624] : memref<45x3xf32, #tpu.memory_space<vmem>>, vector<1x2xf32>
    tpu.vector_store %arg2[%c24, %c1_624], %2013 {strides = array<i32>} : memref<45x3xf32, #tpu.memory_space<vmem>>, vector<1x2xf32>,
    %2030 = vector.extract_strided_slice %2005 {offsets = [0, 0], sizes = [1, 256], strides = [1, 1]} : vector<1x384xf32> to vector<1x256xf32>
    %2031 = arith.addf %2028, %2030 : vector<1x256xf32>
    %2032 = arith.negf %2031 : vector<1x256xf32>
    %2033 = math.exp %2032 : vector<1x256xf32>
    %cst_625 = arith.constant 1.000000e+00 : f32
    %2034 = vector.broadcast %cst_625 : f32 to vector<1x256xf32>
    %2035 = arith.addf %2034, %2033 : vector<1x256xf32>
    %2036 = arith.divf %2034, %2035 : vector<1x256xf32>
    %2037 = vector.extract_strided_slice %2036 {offsets = [0, 0], sizes = [1, 64], strides = [1, 1]} : vector<1x256xf32> to vector<1x64xf32>
    %2038 = vector.extract_strided_slice %2036 {offsets = [0, 64], sizes = [1, 64], strides = [1, 1]} : vector<1x256xf32> to vector<1x64xf32>
    %2039 = vector.extract_strided_slice %2036 {offsets = [0, 128], sizes = [1, 64], strides = [1, 1]} : vector<1x256xf32> to vector<1x64xf32>
    %cst_626 = arith.constant 2.000000e+00 : f32
    %2040 = vector.broadcast %cst_626 : f32 to vector<1x64xf32>
    %2041 = arith.mulf %2040, %2039 : vector<1x64xf32>
    %cst_627 = arith.constant 1.000000e+00 : f32
    %2042 = vector.broadcast %cst_627 : f32 to vector<1x64xf32>
    %2043 = arith.subf %2041, %2042 : vector<1x64xf32>
    %2044 = vector.extract_strided_slice %2036 {offsets = [0, 192], sizes = [1, 64], strides = [1, 1]} : vector<1x256xf32> to vector<1x64xf32>
    %2045 = arith.mulf %2038, %2001 : vector<1x64xf32>
    %2046 = arith.mulf %2037, %2043 : vector<1x64xf32>
    %2047 = arith.addf %2045, %2046 : vector<1x64xf32>
    %2048 = math.tanh %2047 : vector<1x64xf32>
    %2049 = arith.mulf %2044, %2048 : vector<1x64xf32>
    %cst_628 = arith.constant dense<0.000000e+00> : vector<1x384xf32>
    %2050 = tpu.matmul %2049, %2, %cst_628 {dimension_numbers = #tpu.dot_dimension_numbers<[1], [0], [0], [1], [0, 0, 1, 1], [], []>} : vector<1x64xf32>, vector<64x384xf32>, vector<1x384xf32> -> vector<1x384xf32>
    %2051 = arith.addf %2050, %3 : vector<1x384xf32>
    %2052 = vector.extract_strided_slice %2051 {offsets = [0, 260], sizes = [1, 2], strides = [1, 1]} : vector<1x384xf32> to vector<1x2xf32>
    %cst_629 = arith.constant 0.000000e+00 : f32
    %2053 = vector.broadcast %cst_629 : f32 to vector<1x2xf32>
    %2054 = arith.cmpf ogt, %2052, %2053 : vector<1x2xf32>
    %2055 = arith.extui %2054 : vector<1x2xi1> to vector<1x2xi32>
    %2056 = arith.sitofp %2055 : vector<1x2xi32> to vector<1x2xf32>
    %2057 = vector.extract_strided_slice %2056 {offsets = [0, 0], sizes = [1, 1], strides = [1, 1]} : vector<1x2xf32> to vector<1x1xf32>
    %2058 = vector.broadcast %2057 : vector<1x1xf32> to vector<1x2xf32>
    %2059 = arith.mulf %2056, %2058 : vector<1x2xf32>
    %c44 = arith.constant 44 : index
    %c1_630 = arith.constant 1 : index
    %2060 = vector.load %arg2[%c44, %c1_630] : memref<45x3xf32, #tpu.memory_space<vmem>>, vector<1x2xf32>
    tpu.vector_store %arg2[%c44, %c1_630], %2059 {strides = array<i32>} : memref<45x3xf32, #tpu.memory_space<vmem>>, vector<1x2xf32>,
    return
  }
}

</mosaic_0001>

<llo_original>
// kernel: controller_forward.1
$region0: #{controller_forward.1}
  #allocation0 [shape = 'u32[]', space=smem, size = 0x4, offset = 0x4, fixed_abs, tag = 'smem constant byte address 0x4 - core index']
  #allocation1 [shape = 'u32[72,128]{1,0:T(1,128)}', space=vmem, size = 0x9000, scoped, tag = 'internal scratch']
  %s0 = inlined_call_operand.vmem [shape: f32[11,384], index: 0, kind: input, shape index: {}]
  %s1 = inlined_call_operand.hbm [shape: f32[64,384], index: 1, kind: input, shape index: {}]
  %s2 = inlined_call_operand.vmem [shape: f32[45,3], index: 2, kind: output, shape index: {}]
  %s3 = sld [smem:[#allocation0]]
  $region22: #{controller_forward.1} parent=0
    _
  %s5 = ssub.s32 1, %s3
  %s6 = scalar_select 0, %s5, %s3
  $region1: #{controller_forward.1} parent=0
    #allocation2 [shape = 'u8[98304]{0}', space=vmem, size = 0x18000, scoped, tag = 'input window, operand 1, single buffered']
    #allocation3 [shape = 's32[1]{0}', space=sflag, size = 0x4, scoped, tag = 'scoped memory for controller_forward.1']
    %7 = vsyncpa [#allocation3], 0
    // Predicated region
    $region2: #{controller_forward.1} parent=1 // pred_check
      _
    $region3: #{controller_forward.1} parent=1 // pred_check_branch
      %9 = sbr.rel (0) target = $region5
    $region4: #{controller_forward.1} parent=1 // pred_region
      _
    $region5: #{controller_forward.1} parent=1 // pred_fallthru
      _
    // Predicated region
    $region6: #{controller_forward.1} parent=1 // pred_check
      _
    $region7: #{controller_forward.1} parent=1 // pred_check_branch
      %11 = sbr.rel (0) target = $region9
    $region8: #{controller_forward.1} parent=1 // pred_region
      %13 = vsyncadd [#allocation3], 0
      %s14 = sshll.u32 %s1, 4
      %s15 = int_to_ptr.hbm [resolvable:$true] %s14
      %s16 = sshll.u32 [#allocation2], 4
      %s17 = int_to_ptr.vmem [resolvable:$true] %s16
      %22 = dma.hbm_to_vmem [thread:$0]  %s15, 3072, %s17, [#allocation3], 384, 384, 24
    $region9: #{controller_forward.1} parent=1 // pred_fallthru
      _
    // Predicated region
    $region10: #{controller_forward.1} parent=1 // pred_check
      _
    $region11: #{controller_forward.1} parent=1 // pred_check_branch
      %24 = sbr.rel (0) target = $region13
    $region12: #{controller_forward.1} parent=1 // pred_region
      %26 = dma.done [#allocation3], 3072
    $region13: #{controller_forward.1} parent=1 // pred_fallthru
      _
    %vm27 = vcmask 23552
    %28 = vst.msk [vmem:[%s2] sm:$0xff] %vm27, 1.0
    %29 = vst.msk [vmem:[%s2 + $0x8] sm:$0xff] %vm27, 1.0
    %30 = vst.msk [vmem:[%s2 + $0x10] sm:$0xff] %vm27, 1.0
    %31 = vst.msk [vmem:[%s2 + $0x18] sm:$0xff] %vm27, 1.0
    %32 = vst.msk [vmem:[%s2 + $0x20] sm:$0xff] %vm27, 1.0
    %vm33 = vcmask 20480
    %34 = vst.msk [vmem:[%s2 + $0x28] sm:$0x1f] %vm33, 1.0
    %v35 = vld [vmem:[#allocation2] sm:$0xff]
    %v36 = vld [vmem:[#allocation2 + $0x8] sm:$0xff]
    %v37 = vld [vmem:[#allocation2 + $0x10] sm:$0xff]
    %v38 = vld [vmem:[#allocation2 + $0x18] sm:$0xff]
    %v39 = vld [vmem:[#allocation2 + $0x20] sm:$0xff]
    %v40 = vld [vmem:[#allocation2 + $0x28] sm:$0xff]
    %v41 = vld [vmem:[#allocation2 + $0x30] sm:$0xff]
    %v42 = vld [vmem:[#allocation2 + $0x38] sm:$0xff]
    %v43 = vld [vmem:[#allocation2 + $0x40] sm:$0xff]
    %v44 = vld [vmem:[#allocation2 + $0x48] sm:$0xff]
    %v45 = vld [vmem:[#allocation2 + $0x50] sm:$0xff]
    %v46 = vld [vmem:[#allocation2 + $0x58] sm:$0xff]
    %v47 = vld [vmem:[#allocation2 + $0x60] sm:$0xff]
    %v48 = vld [vmem:[#allocation2 + $0x68] sm:$0xff]
    %v49 = vld [vmem:[#allocation2 + $0x70] sm:$0xff]
    %v50 = vld [vmem:[#allocation2 + $0x78] sm:$0xff]
    %v51 = vld [vmem:[#allocation2 + $0x80] sm:$0xff]
    %v52 = vld [vmem:[#allocation2 + $0x88] sm:$0xff]
    %v53 = vld [vmem:[#allocation2 + $0x90] sm:$0xff]
    %v54 = vld [vmem:[#allocation2 + $0x98] sm:$0xff]
    %v55 = vld [vmem:[#allocation2 + $0xa0] sm:$0xff]
    %v56 = vld [vmem:[#allocation2 + $0xa8] sm:$0xff]
    %v57 = vld [vmem:[#allocation2 + $0xb0] sm:$0xff]
    %v58 = vld [vmem:[#allocation2 + $0xb8] sm:$0xff]
    %s59 = scalar_lea.vmem %s0, 26
    %v60 = vld [vmem:[%s59] ss:$8 sm:$0x7]
    %v61 = vld [vmem:[%s0] ss:$8 sm:$0x3]
    %v62 = vadd.f32 %v61, %v60
    %v63 = vxor.u32 %v62, 2147483648
    %v64 = vmul.f32 %v63, 1.442695
    %v65 = vpow.pop %v64
    %v66 = vadd.f32 %v65, 1.0
    %v67 = vrcp.pop %v66
    %v68 = vmul.f32 %v66, %v67
    %v69 = vsub.f32 1.0, %v68
    %v70 = vmul.f32 %v67, %v69
    %v71 = vadd.f32 %v67, %v70
    %vm72 = vweird.f32 %v66
    %vm73 = vweird.f32 %v67
    %vm74 = vmor %vm72, %vm73
    %v75 = vsel %vm74, %v67, %v71
    %v76 = vand.u32 2147483647, %v66
    %vm77 = vcmp.eq.f32.partialorder %v76, 8.507059e+37
    %v78 = vand.u32 %v66, 2147483648
    %v79 = vor.u32 1.1754944e-38, %v78
    %v80 = vsel %vm77, %v79, %v75
    %v81 = vmul.f32 1.0, %v80
    %v83 = vrot.slane %v81, 1
    %v85 = vmul.f32 %v83, 2.0
    %v86 = vsub.f32 %v85, 1.0
    %v87 = vmul.f32 %v81, 0.0
    %v88 = vmul.f32 %v81, %v86
    %90 = vrot.lane.b32.xlu0 %v88, 64
    %v91 = vpop.permute.xlu0 %90
    %v93 = vadd.f32 %v87, %v91
    %v94 = vtanh.pop %v93
    %95 = vrot.lane.b32.xlu0 %v81, 64
    %v96 = vpop.permute.xlu0 %95
    %v97 = vrot.slane %v96, 1
    %100 = vrot.lane.b32.xlu0 %v94, 64
    %v101 = vpop.permute.xlu0 %100
    %v103 = vmul.f32 %v97, %v101
    %v105 = vperm.slane %v60, 0
    %v106 = vperm.slane %v60, 1
    %v107 = vperm.slane %v60, 2
    %vm111 = vcmask 523264
    %v113 = vsel %vm111, %v103, 0
    %115 = vmatpush.msra.mxu0 0.0
    %116 = vmatpush.msra.mxu0 0.0
    %117 = vmatpush.msra.mxu0 0.0
    %118 = vmatpush.msra.mxu0 0.0
    %119 = vmatpush.msra.mxu0 0.0
    %120 = vmatpush.msra.mxu0 0.0
    %121 = vmatpush.msra.mxu0 0.0
    %122 = vmatpush.msra.mxu0 0.0
    %123 = vmatpush.msra.mxu0 %v56
    %124 = vmatpush.msra.mxu0 %v53
    %125 = vmatpush.msra.mxu0 %v50
    %126 = vmatpush.msra.mxu0 %v47
    %127 = vmatpush.msra.mxu0 %v44
    %128 = vmatpush.msra.mxu0 %v41
    %129 = vmatpush.msra.mxu0 %v38
    %130 = vmatpush.msra.mxu0 %v35
    %131 = vmatmul.f32.gmra.mxu0 %v113
    %v132 = vpop.f32.mrf.mxu0
    %v133 = vadd.f32 %v105, %v132
    %134 = vdwg.mxu0
    %135 = vmatpush.msra.mxu0 0.0
    %136 = vmatpush.msra.mxu0 0.0
    %137 = vmatpush.msra.mxu0 0.0
    %138 = vmatpush.msra.mxu0 0.0
    %139 = vmatpush.msra.mxu0 0.0
    %140 = vmatpush.msra.mxu0 0.0
    %141 = vmatpush.msra.mxu0 0.0
    %142 = vmatpush.msra.mxu0 0.0
    %143 = vmatpush.msra.mxu0 %v57
    %144 = vmatpush.msra.mxu0 %v54
    %145 = vmatpush.msra.mxu0 %v51
    %146 = vmatpush.msra.mxu0 %v48
    %147 = vmatpush.msra.mxu0 %v45
    %148 = vmatpush.msra.mxu0 %v42
    %149 = vmatpush.msra.mxu0 %v39
    %150 = vmatpush.msra.mxu0 %v36
    %151 = vmatmul.f32.gmra.mxu0 %v113
    %v152 = vpop.f32.mrf.mxu0
    %v153 = vadd.f32 %v106, %v152
    %154 = vdwg.mxu0
    %155 = vmatpush.msra.mxu0 0.0
    %156 = vmatpush.msra.mxu0 0.0
    %157 = vmatpush.msra.mxu0 0.0
    %158 = vmatpush.msra.mxu0 0.0
    %159 = vmatpush.msra.mxu0 0.0
    %160 = vmatpush.msra.mxu0 0.0
    %161 = vmatpush.msra.mxu0 0.0
    %162 = vmatpush.msra.mxu0 0.0
    %163 = vmatpush.msra.mxu0 %v58
    %164 = vmatpush.msra.mxu0 %v55
    %165 = vmatpush.msra.mxu0 %v52
    %166 = vmatpush.msra.mxu0 %v49
    %167 = vmatpush.msra.mxu0 %v46
    %168 = vmatpush.msra.mxu0 %v43
    %169 = vmatpush.msra.mxu0 %v40
    %170 = vmatpush.msra.mxu0 %v37
    %171 = vmatmul.f32.gmra.mxu0 %v113
    %v172 = vpop.f32.mrf.mxu0
    %v173 = vadd.f32 %v107, %v172
    %174 = vdwg.mxu0
    %vm175 = vcmp.gt.f32.partialorder %v173, 0.0
    %v176 = vsel %vm175, 1, 0
    %v177 = vcvt.s32.f32 %v176
    %179 = vset.pattern.permute.xlu0 0
    %180 = vperm.xlu0 %179, %v177
    %v181 = vpop.permute.xlu0 %180
    %v183 = vmul.f32 %v177, %v181
    %s184 = scalar_lea.vmem %s0, 1
    %v185 = vld [vmem:[%s184] ss:$8 sm:$0x3]
    %s186 = scalar_lea.vmem %s0, 2
    %v187 = vld [vmem:[%s186] ss:$8 sm:$0x3]
    %s188 = scalar_lea.vmem %s0, 3
    %v189 = vld [vmem:[%s188] ss:$8 sm:$0x3]
    %190 = vset.pattern.permute.xlu0 1
    %191 = vperm.xlu0 %190, %v176
    %v192 = vpop.permute.xlu0 %191
    %vm193 = vcmp.eq.s32.totalorder %v192, 1
    %v195 = vperm.slane %v189, 0
    %v196 = vperm.slane %v189, 1
    %v200 = vperm.slane %v187, 0
    %v201 = vperm.slane %v187, 1
    %v204 = vsel %vm193, %v195, %v200
    %v205 = vsel %vm193, %v196, %v201
    %206 = vset.pattern.permute.xlu0 0
    %207 = vperm.xlu0 %206, %v176
    %v208 = vpop.permute.xlu0 %207
    %vm209 = vcmp.eq.s32.totalorder %v208, 1
    %v211 = vperm.slane %v185, 0
    %v212 = vperm.slane %v185, 1
    %v215 = vsel %vm209, %v204, %v211
    %v216 = vsel %vm209, %v205, %v212
    %218 = vrot.lane.b32.xlu0 %v183, 1
    %v219 = vpop.permute.xlu0 %218
    %vm221 = vcmask 16392
    %222 = vst.msk [vmem:[%s2] sm:$0x1] %vm221, %v219
    %v223 = vadd.f32 %v215, %v133
    %v224 = vadd.f32 %v216, %v153
    %v225 = vxor.u32 %v223, 2147483648
    %v226 = vxor.u32 %v224, 2147483648
    %v227 = vmul.f32 %v225, 1.442695
    %v228 = vpow.pop %v227
    %v229 = vmul.f32 %v226, 1.442695
    %v230 = vpow.pop %v229
    %v231 = vadd.f32 %v228, 1.0
    %v232 = vadd.f32 %v230, 1.0
    %v233 = vrcp.pop %v231
    %v234 = vmul.f32 %v231, %v233
    %v235 = vsub.f32 1.0, %v234
    %v236 = vmul.f32 %v233, %v235
    %v237 = vadd.f32 %v233, %v236
    %vm238 = vweird.f32 %v231
    %vm239 = vweird.f32 %v233
    %vm240 = vmor %vm238, %vm239
    %v241 = vsel %vm240, %v233, %v237
    %v242 = vand.u32 2147483647, %v231
    %vm243 = vcmp.eq.f32.partialorder %v242, 8.507059e+37
    %v244 = vand.u32 %v231, 2147483648
    %v245 = vor.u32 1.1754944e-38, %v244
    %v246 = vsel %vm243, %v245, %v241
    %v247 = vmul.f32 1.0, %v246
    %v248 = vrcp.pop %v232
    %v249 = vmul.f32 %v232, %v248
    %v250 = vsub.f32 1.0, %v249
    %v251 = vmul.f32 %v248, %v250
    %v252 = vadd.f32 %v248, %v251
    %vm253 = vweird.f32 %v232
    %vm254 = vweird.f32 %v248
    %vm255 = vmor %vm253, %vm254
    %v256 = vsel %vm255, %v248, %v252
    %v257 = vand.u32 2147483647, %v232
    %vm258 = vcmp.eq.f32.partialorder %v257, 8.507059e+37
    %v259 = vand.u32 %v232, 2147483648
    %v260 = vor.u32 1.1754944e-38, %v259
    %v261 = vsel %vm258, %v260, %v256
    %v262 = vmul.f32 1.0, %v261
    %v263 = vmul.f32 %v262, 2.0
    %v264 = vsub.f32 %v263, 1.0
    %v265 = vmul.f32 %v247, %v93
    %v266 = vmul.f32 %v247, %v264
    %268 = vrot.lane.b32.xlu0 %v266, 64
    %v269 = vpop.permute.xlu0 %268
    %v271 = vadd.f32 %v265, %v269
    %v272 = vtanh.pop %v271
    %v273 = vmul.f32 %v262, %v272
    %275 = vrot.lane.b32.xlu0 %v273, 64
    %v276 = vpop.permute.xlu0 %275
    %v277 = vsel %vm111, %v276, 0
    %279 = vmatpush.msra.mxu0 0.0
    %280 = vmatpush.msra.mxu0 0.0
    %281 = vmatpush.msra.mxu0 0.0
    %282 = vmatpush.msra.mxu0 0.0
    %283 = vmatpush.msra.mxu0 0.0
    %284 = vmatpush.msra.mxu0 0.0
    %285 = vmatpush.msra.mxu0 0.0
    %286 = vmatpush.msra.mxu0 0.0
    %287 = vmatpush.msra.mxu0 %v56
    %288 = vmatpush.msra.mxu0 %v53
    %289 = vmatpush.msra.mxu0 %v50
    %290 = vmatpush.msra.mxu0 %v47
    %291 = vmatpush.msra.mxu0 %v44
    %292 = vmatpush.msra.mxu0 %v41
    %293 = vmatpush.msra.mxu0 %v38
    %294 = vmatpush.msra.mxu0 %v35
    %295 = vmatmul.f32.gmra.mxu0 %v277
    %v296 = vpop.f32.mrf.mxu0
    %v297 = vadd.f32 %v105, %v296
    %298 = vdwg.mxu0
    %299 = vmatpush.msra.mxu0 0.0
    %300 = vmatpush.msra.mxu0 0.0
    %301 = vmatpush.msra.mxu0 0.0
    %302 = vmatpush.msra.mxu0 0.0
    %303 = vmatpush.msra.mxu0 0.0
    %304 = vmatpush.msra.mxu0 0.0
    %305 = vmatpush.msra.mxu0 0.0
    %306 = vmatpush.msra.mxu0 0.0
    %307 = vmatpush.msra.mxu0 %v57
    %308 = vmatpush.msra.mxu0 %v54
    %309 = vmatpush.msra.mxu0 %v51
    %310 = vmatpush.msra.mxu0 %v48
    %311 = vmatpush.msra.mxu0 %v45
    %312 = vmatpush.msra.mxu0 %v42
    %313 = vmatpush.msra.mxu0 %v39
    %314 = vmatpush.msra.mxu0 %v36
    %315 = vmatmul.f32.gmra.mxu0 %v277
    %v316 = vpop.f32.mrf.mxu0
    %v317 = vadd.f32 %v106, %v316
    %318 = vdwg.mxu0
    %319 = vmatpush.msra.mxu0 0.0
    %320 = vmatpush.msra.mxu0 0.0
    %321 = vmatpush.msra.mxu0 0.0
    %322 = vmatpush.msra.mxu0 0.0
    %323 = vmatpush.msra.mxu0 0.0
    %324 = vmatpush.msra.mxu0 0.0
    %325 = vmatpush.msra.mxu0 0.0
    %326 = vmatpush.msra.mxu0 0.0
    %327 = vmatpush.msra.mxu0 %v58
    %328 = vmatpush.msra.mxu0 %v55
    %329 = vmatpush.msra.mxu0 %v52
    %330 = vmatpush.msra.mxu0 %v49
    %331 = vmatpush.msra.mxu0 %v46
    %332 = vmatpush.msra.mxu0 %v43
    %333 = vmatpush.msra.mxu0 %v40
    %334 = vmatpush.msra.mxu0 %v37
    %335 = vmatmul.f32.gmra.mxu0 %v277
    %v336 = vpop.f32.mrf.mxu0
    %v337 = vadd.f32 %v107, %v336
    %338 = vdwg.mxu0
    %vm339 = vcmp.gt.f32.partialorder %v337, 0.0
    %v340 = vsel %vm339, 1, 0
    %v341 = vcvt.s32.f32 %v340
    %343 = vset.pattern.permute.xlu0 2
    %344 = vperm.xlu0 %343, %v341
    %v345 = vpop.permute.xlu0 %344
    %v347 = vmul.f32 %v341, %v345
    %s348 = scalar_lea.vmem %s0, 4
    %v349 = vld [vmem:[%s348] ss:$8 sm:$0x3]
    %s350 = scalar_lea.vmem %s0, 5
    %v351 = vld [vmem:[%s350] ss:$8 sm:$0x3]
    %s352 = scalar_lea.vmem %s0, 6
    %v353 = vld [vmem:[%s352] ss:$8 sm:$0x3]
    %354 = vset.pattern.permute.xlu0 3
    %355 = vperm.xlu0 %354, %v340
    %v356 = vpop.permute.xlu0 %355
    %vm357 = vcmp.eq.s32.totalorder %v356, 1
    %v359 = vperm.slane %v353, 0
    %v360 = vperm.slane %v353, 1
    %v364 = vperm.slane %v351, 0
    %v365 = vperm.slane %v351, 1
    %v368 = vsel %vm357, %v359, %v364
    %v369 = vsel %vm357, %v360, %v365
    %370 = vset.pattern.permute.xlu0 2
    %371 = vperm.xlu0 %370, %v340
    %v372 = vpop.permute.xlu0 %371
    %vm373 = vcmp.eq.s32.totalorder %v372, 1
    %v375 = vperm.slane %v349, 0
    %v376 = vperm.slane %v349, 1
    %v379 = vsel %vm373, %v368, %v375
    %v380 = vsel %vm373, %v369, %v376
    %382 = vrot.lane.b32.xlu0 %v347, 127
    %v383 = vpop.permute.xlu0 %382
    %385 = vst.msk [vmem:[%s2 + $0x5] sm:$0x1] %vm221, %v383
    %v386 = vadd.f32 %v379, %v297
    %v387 = vadd.f32 %v380, %v317
    %v388 = vxor.u32 %v386, 2147483648
    %v389 = vxor.u32 %v387, 2147483648
    %v390 = vmul.f32 %v388, 1.442695
    %v391 = vpow.pop %v390
    %v392 = vmul.f32 %v389, 1.442695
    %v393 = vpow.pop %v392
    %v394 = vadd.f32 %v391, 1.0
    %v395 = vadd.f32 %v393, 1.0
    %v396 = vrcp.pop %v394
    %v397 = vmul.f32 %v394, %v396
    %v398 = vsub.f32 1.0, %v397
    %v399 = vmul.f32 %v396, %v398
    %v400 = vadd.f32 %v396, %v399
    %vm401 = vweird.f32 %v394
    %vm402 = vweird.f32 %v396
    %vm403 = vmor %vm401, %vm402
    %v404 = vsel %vm403, %v396, %v400
    %v405 = vand.u32 2147483647, %v394
    %vm406 = vcmp.eq.f32.partialorder %v405, 8.507059e+37
    %v407 = vand.u32 %v394, 2147483648
    %v408 = vor.u32 1.1754944e-38, %v407
    %v409 = vsel %vm406, %v408, %v404
    %v410 = vmul.f32 1.0, %v409
    %v411 = vrcp.pop %v395
    %v412 = vmul.f32 %v395, %v411
    %v413 = vsub.f32 1.0, %v412
    %v414 = vmul.f32 %v411, %v413
    %v415 = vadd.f32 %v411, %v414
    %vm416 = vweird.f32 %v395
    %vm417 = vweird.f32 %v411
    %vm418 = vmor %vm416, %vm417
    %v419 = vsel %vm418, %v411, %v415
    %v420 = vand.u32 2147483647, %v395
    %vm421 = vcmp.eq.f32.partialorder %v420, 8.507059e+37
    %v422 = vand.u32 %v395, 2147483648
    %v423 = vor.u32 1.1754944e-38, %v422
    %v424 = vsel %vm421, %v423, %v419
    %v425 = vmul.f32 1.0, %v424
    %v426 = vmul.f32 %v425, 2.0
    %v427 = vsub.f32 %v426, 1.0
    %v428 = vmul.f32 %v410, %v271
    %v429 = vmul.f32 %v410, %v427
    %431 = vrot.lane.b32.xlu0 %v429, 64
    %v432 = vpop.permute.xlu0 %431
    %v434 = vadd.f32 %v428, %v432
    %v435 = vtanh.pop %v434
    %v436 = vmul.f32 %v425, %v435
    %438 = vrot.lane.b32.xlu0 %v436, 64
    %v439 = vpop.permute.xlu0 %438
    %v440 = vsel %vm111, %v439, 0
    %442 = vmatpush.msra.mxu0 0.0
    %443 = vmatpush.msra.mxu0 0.0
    %444 = vmatpush.msra.mxu0 0.0
    %445 = vmatpush.msra.mxu0 0.0
    %446 = vmatpush.msra.mxu0 0.0
    %447 = vmatpush.msra.mxu0 0.0
    %448 = vmatpush.msra.mxu0 0.0
    %449 = vmatpush.msra.mxu0 0.0
    %450 = vmatpush.msra.mxu0 %v56
    %451 = vmatpush.msra.mxu0 %v53
    %452 = vmatpush.msra.mxu0 %v50
    %453 = vmatpush.msra.mxu0 %v47
    %454 = vmatpush.msra.mxu0 %v44
    %455 = vmatpush.msra.mxu0 %v41
    %456 = vmatpush.msra.mxu0 %v38
    %457 = vmatpush.msra.mxu0 %v35
    %458 = vmatmul.f32.gmra.mxu0 %v440
    %v459 = vpop.f32.mrf.mxu0
    %v460 = vadd.f32 %v105, %v459
    %461 = vdwg.mxu0
    %462 = vmatpush.msra.mxu0 0.0
    %463 = vmatpush.msra.mxu0 0.0
    %464 = vmatpush.msra.mxu0 0.0
    %465 = vmatpush.msra.mxu0 0.0
    %466 = vmatpush.msra.mxu0 0.0
    %467 = vmatpush.msra.mxu0 0.0
    %468 = vmatpush.msra.mxu0 0.0
    %469 = vmatpush.msra.mxu0 0.0
    %470 = vmatpush.msra.mxu0 %v57
    %471 = vmatpush.msra.mxu0 %v54
    %472 = vmatpush.msra.mxu0 %v51
    %473 = vmatpush.msra.mxu0 %v48
    %474 = vmatpush.msra.mxu0 %v45
    %475 = vmatpush.msra.mxu0 %v42
    %476 = vmatpush.msra.mxu0 %v39
    %477 = vmatpush.msra.mxu0 %v36
    %478 = vmatmul.f32.gmra.mxu0 %v440
    %v479 = vpop.f32.mrf.mxu0
    %v480 = vadd.f32 %v106, %v479
    %481 = vdwg.mxu0
    %482 = vmatpush.msra.mxu0 0.0
    %483 = vmatpush.msra.mxu0 0.0
    %484 = vmatpush.msra.mxu0 0.0
    %485 = vmatpush.msra.mxu0 0.0
    %486 = vmatpush.msra.mxu0 0.0
    %487 = vmatpush.msra.mxu0 0.0
    %488 = vmatpush.msra.mxu0 0.0
    %489 = vmatpush.msra.mxu0 0.0
    %490 = vmatpush.msra.mxu0 %v58
    %491 = vmatpush.msra.mxu0 %v55
    %492 = vmatpush.msra.mxu0 %v52
    %493 = vmatpush.msra.mxu0 %v49
    %494 = vmatpush.msra.mxu0 %v46
    %495 = vmatpush.msra.mxu0 %v43
    %496 = vmatpush.msra.mxu0 %v40
    %497 = vmatpush.msra.mxu0 %v37
    %498 = vmatmul.f32.gmra.mxu0 %v440
    %v499 = vpop.f32.mrf.mxu0
    %v500 = vadd.f32 %v107, %v499
    %501 = vdwg.mxu0
    %vm502 = vcmp.gt.f32.partialorder %v500, 0.0
    %v503 = vsel %vm502, 1, 0
    %v504 = vcvt.s32.f32 %v503
    %506 = vset.pattern.permute.xlu0 4
    %507 = vperm.xlu0 %506, %v504
    %v508 = vpop.permute.xlu0 %507
    %v510 = vmul.f32 %v504, %v508
    %s511 = scalar_lea.vmem %s0, 7
    %v512 = vld [vmem:[%s511] ss:$8 sm:$0x3]
    %s513 = scalar_lea.vmem %s0, 24
    %v514 = vld [vmem:[%s513] ss:$8 sm:$0x3]
    %s515 = scalar_lea.vmem %s0, 25
    %v516 = vld [vmem:[%s515] ss:$8 sm:$0x3]
    %517 = vset.pattern.permute.xlu0 5
    %518 = vperm.xlu0 %517, %v503
    %v519 = vpop.permute.xlu0 %518
    %vm520 = vcmp.eq.s32.totalorder %v519, 1
    %v522 = vperm.slane %v516, 0
    %v523 = vperm.slane %v516, 1
    %v527 = vperm.slane %v514, 0
    %v528 = vperm.slane %v514, 1
    %v531 = vsel %vm520, %v522, %v527
    %v532 = vsel %vm520, %v523, %v528
    %533 = vset.pattern.permute.xlu0 4
    %534 = vperm.xlu0 %533, %v503
    %v535 = vpop.permute.xlu0 %534
    %vm536 = vcmp.eq.s32.totalorder %v535, 1
    %v538 = vperm.slane %v512, 0
    %v539 = vperm.slane %v512, 1
    %v542 = vsel %vm536, %v531, %v538
    %v543 = vsel %vm536, %v532, %v539
    %545 = vrot.lane.b32.xlu0 %v510, 125
    %v546 = vpop.permute.xlu0 %545
    %548 = vst.msk [vmem:[%s2 + $0x19] sm:$0x1] %vm221, %v546
    %v549 = vadd.f32 %v542, %v460
    %v550 = vadd.f32 %v543, %v480
    %v551 = vxor.u32 %v549, 2147483648
    %v552 = vxor.u32 %v550, 2147483648
    %v553 = vmul.f32 %v551, 1.442695
    %v554 = vpow.pop %v553
    %v555 = vmul.f32 %v552, 1.442695
    %v556 = vpow.pop %v555
    %v557 = vadd.f32 %v554, 1.0
    %v558 = vadd.f32 %v556, 1.0
    %v559 = vrcp.pop %v557
    %v560 = vmul.f32 %v557, %v559
    %v561 = vsub.f32 1.0, %v560
    %v562 = vmul.f32 %v559, %v561
    %v563 = vadd.f32 %v559, %v562
    %vm564 = vweird.f32 %v557
    %vm565 = vweird.f32 %v559
    %vm566 = vmor %vm564, %vm565
    %v567 = vsel %vm566, %v559, %v563
    %v568 = vand.u32 2147483647, %v557
    %vm569 = vcmp.eq.f32.partialorder %v568, 8.507059e+37
    %v570 = vand.u32 %v557, 2147483648
    %v571 = vor.u32 1.1754944e-38, %v570
    %v572 = vsel %vm569, %v571, %v567
    %v573 = vmul.f32 1.0, %v572
    %v574 = vrcp.pop %v558
    %v575 = vmul.f32 %v558, %v574
    %v576 = vsub.f32 1.0, %v575
    %v577 = vmul.f32 %v574, %v576
    %v578 = vadd.f32 %v574, %v577
    %vm579 = vweird.f32 %v558
    %vm580 = vweird.f32 %v574
    %vm581 = vmor %vm579, %vm580
    %v582 = vsel %vm581, %v574, %v578
    %v583 = vand.u32 2147483647, %v558
    %vm584 = vcmp.eq.f32.partialorder %v583, 8.507059e+37
    %v585 = vand.u32 %v558, 2147483648
    %v586 = vor.u32 1.1754944e-38, %v585
    %v587 = vsel %vm584, %v586, %v582
    %v588 = vmul.f32 1.0, %v587
    %v589 = vmul.f32 %v588, 2.0
    %v590 = vsub.f32 %v589, 1.0
    %v591 = vmul.f32 %v573, %v434
    %v592 = vmul.f32 %v573, %v590
    %594 = vrot.lane.b32.xlu0 %v592, 64
    %v595 = vpop.permute.xlu0 %594
    %v597 = vadd.f32 %v591, %v595
    %v598 = vtanh.pop %v597
    %v599 = vmul.f32 %v588, %v598
    %601 = vrot.lane.b32.xlu0 %v599, 64
    %v602 = vpop.permute.xlu0 %601
    %v603 = vsel %vm111, %v602, 0
    %605 = vmatpush.msra.mxu0 0.0
    %606 = vmatpush.msra.mxu0 0.0
    %607 = vmatpush.msra.mxu0 0.0
    %608 = vmatpush.msra.mxu0 0.0
    %609 = vmatpush.msra.mxu0 0.0
    %610 = vmatpush.msra.mxu0 0.0
    %611 = vmatpush.msra.mxu0 0.0
    %612 = vmatpush.msra.mxu0 0.0
    %613 = vmatpush.msra.mxu0 %v56
    %614 = vmatpush.msra.mxu0 %v53
    %615 = vmatpush.msra.mxu0 %v50
    %616 = vmatpush.msra.mxu0 %v47
    %617 = vmatpush.msra.mxu0 %v44
    %618 = vmatpush.msra.mxu0 %v41
    %619 = vmatpush.msra.mxu0 %v38
    %620 = vmatpush.msra.mxu0 %v35
    %621 = vmatmul.f32.gmra.mxu0 %v603
    %v622 = vpop.f32.mrf.mxu0
    %v623 = vadd.f32 %v105, %v622
    %624 = vdwg.mxu0
    %625 = vmatpush.msra.mxu0 0.0
    %626 = vmatpush.msra.mxu0 0.0
    %627 = vmatpush.msra.mxu0 0.0
    %628 = vmatpush.msra.mxu0 0.0
    %629 = vmatpush.msra.mxu0 0.0
    %630 = vmatpush.msra.mxu0 0.0
    %631 = vmatpush.msra.mxu0 0.0
    %632 = vmatpush.msra.mxu0 0.0
    %633 = vmatpush.msra.mxu0 %v57
    %634 = vmatpush.msra.mxu0 %v54
    %635 = vmatpush.msra.mxu0 %v51
    %636 = vmatpush.msra.mxu0 %v48
    %637 = vmatpush.msra.mxu0 %v45
    %638 = vmatpush.msra.mxu0 %v42
    %639 = vmatpush.msra.mxu0 %v39
    %640 = vmatpush.msra.mxu0 %v36
    %641 = vmatmul.f32.gmra.mxu0 %v603
    %v642 = vpop.f32.mrf.mxu0
    %v643 = vadd.f32 %v106, %v642
    %644 = vdwg.mxu0
    %645 = vmatpush.msra.mxu0 0.0
    %646 = vmatpush.msra.mxu0 0.0
    %647 = vmatpush.msra.mxu0 0.0
    %648 = vmatpush.msra.mxu0 0.0
    %649 = vmatpush.msra.mxu0 0.0
    %650 = vmatpush.msra.mxu0 0.0
    %651 = vmatpush.msra.mxu0 0.0
    %652 = vmatpush.msra.mxu0 0.0
    %653 = vmatpush.msra.mxu0 %v58
    %654 = vmatpush.msra.mxu0 %v55
    %655 = vmatpush.msra.mxu0 %v52
    %656 = vmatpush.msra.mxu0 %v49
    %657 = vmatpush.msra.mxu0 %v46
    %658 = vmatpush.msra.mxu0 %v43
    %659 = vmatpush.msra.mxu0 %v40
    %660 = vmatpush.msra.mxu0 %v37
    %661 = vmatmul.f32.gmra.mxu0 %v603
    %v662 = vpop.f32.mrf.mxu0
    %v663 = vadd.f32 %v107, %v662
    %664 = vdwg.mxu0
    %vm665 = vcmp.gt.f32.partialorder %v663, 0.0
    %v666 = vsel %vm665, 1, 0
    %v667 = vcvt.s32.f32 %v666
    %669 = vset.pattern.permute.xlu0 2
    %670 = vperm.xlu0 %669, %v667
    %v671 = vpop.permute.xlu0 %670
    %v673 = vmul.f32 %v667, %v671
    %v674 = vld [vmem:[%s348] ss:$8 sm:$0x3]
    %v675 = vld [vmem:[%s350] ss:$8 sm:$0x3]
    %v676 = vld [vmem:[%s352] ss:$8 sm:$0x3]
    %677 = vset.pattern.permute.xlu0 3
    %678 = vperm.xlu0 %677, %v666
    %v679 = vpop.permute.xlu0 %678
    %vm680 = vcmp.eq.s32.totalorder %v679, 1
    %v682 = vperm.slane %v676, 0
    %v683 = vperm.slane %v676, 1
    %v687 = vperm.slane %v675, 0
    %v688 = vperm.slane %v675, 1
    %v691 = vsel %vm680, %v682, %v687
    %v692 = vsel %vm680, %v683, %v688
    %693 = vset.pattern.permute.xlu0 2
    %694 = vperm.xlu0 %693, %v666
    %v695 = vpop.permute.xlu0 %694
    %vm696 = vcmp.eq.s32.totalorder %v695, 1
    %v698 = vperm.slane %v674, 0
    %v699 = vperm.slane %v674, 1
    %v702 = vsel %vm696, %v691, %v698
    %v703 = vsel %vm696, %v692, %v699
    %705 = vrot.lane.b32.xlu0 %v673, 127
    %v706 = vpop.permute.xlu0 %705
    %708 = vst.msk [vmem:[%s2 + $0x6] sm:$0x1] %vm221, %v706
    %v709 = vadd.f32 %v702, %v623
    %v710 = vadd.f32 %v703, %v643
    %v711 = vxor.u32 %v709, 2147483648
    %v712 = vxor.u32 %v710, 2147483648
    %v713 = vmul.f32 %v711, 1.442695
    %v714 = vpow.pop %v713
    %v715 = vmul.f32 %v712, 1.442695
    %v716 = vpow.pop %v715
    %v717 = vadd.f32 %v714, 1.0
    %v718 = vadd.f32 %v716, 1.0
    %v719 = vrcp.pop %v717
    %v720 = vmul.f32 %v717, %v719
    %v721 = vsub.f32 1.0, %v720
    %v722 = vmul.f32 %v719, %v721
    %v723 = vadd.f32 %v719, %v722
    %vm724 = vweird.f32 %v717
    %vm725 = vweird.f32 %v719
    %vm726 = vmor %vm724, %vm725
    %v727 = vsel %vm726, %v719, %v723
    %v728 = vand.u32 2147483647, %v717
    %vm729 = vcmp.eq.f32.partialorder %v728, 8.507059e+37
    %v730 = vand.u32 %v717, 2147483648
    %v731 = vor.u32 1.1754944e-38, %v730
    %v732 = vsel %vm729, %v731, %v727
    %v733 = vmul.f32 1.0, %v732
    %v734 = vrcp.pop %v718
    %v735 = vmul.f32 %v718, %v734
    %v736 = vsub.f32 1.0, %v735
    %v737 = vmul.f32 %v734, %v736
    %v738 = vadd.f32 %v734, %v737
    %vm739 = vweird.f32 %v718
    %vm740 = vweird.f32 %v734
    %vm741 = vmor %vm739, %vm740
    %v742 = vsel %vm741, %v734, %v738
    %v743 = vand.u32 2147483647, %v718
    %vm744 = vcmp.eq.f32.partialorder %v743, 8.507059e+37
    %v745 = vand.u32 %v718, 2147483648
    %v746 = vor.u32 1.1754944e-38, %v745
    %v747 = vsel %vm744, %v746, %v742
    %v748 = vmul.f32 1.0, %v747
    %v749 = vmul.f32 %v748, 2.0
    %v750 = vsub.f32 %v749, 1.0
    %v751 = vmul.f32 %v733, %v597
    %v752 = vmul.f32 %v733, %v750
    %754 = vrot.lane.b32.xlu0 %v752, 64
    %v755 = vpop.permute.xlu0 %754
    %v757 = vadd.f32 %v751, %v755
    %v758 = vtanh.pop %v757
    %v759 = vmul.f32 %v748, %v758
    %761 = vrot.lane.b32.xlu0 %v759, 64
    %v762 = vpop.permute.xlu0 %761
    %v763 = vsel %vm111, %v762, 0
    %765 = vmatpush.msra.mxu0 0.0
    %766 = vmatpush.msra.mxu0 0.0
    %767 = vmatpush.msra.mxu0 0.0
    %768 = vmatpush.msra.mxu0 0.0
    %769 = vmatpush.msra.mxu0 0.0
    %770 = vmatpush.msra.mxu0 0.0
    %771 = vmatpush.msra.mxu0 0.0
    %772 = vmatpush.msra.mxu0 0.0
    %773 = vmatpush.msra.mxu0 %v56
    %774 = vmatpush.msra.mxu0 %v53
    %775 = vmatpush.msra.mxu0 %v50
    %776 = vmatpush.msra.mxu0 %v47
    %777 = vmatpush.msra.mxu0 %v44
    %778 = vmatpush.msra.mxu0 %v41
    %779 = vmatpush.msra.mxu0 %v38
    %780 = vmatpush.msra.mxu0 %v35
    %781 = vmatmul.f32.gmra.mxu0 %v763
    %v782 = vpop.f32.mrf.mxu0
    %v783 = vadd.f32 %v105, %v782
    %784 = vdwg.mxu0
    %785 = vmatpush.msra.mxu0 0.0
    %786 = vmatpush.msra.mxu0 0.0
    %787 = vmatpush.msra.mxu0 0.0
    %788 = vmatpush.msra.mxu0 0.0
    %789 = vmatpush.msra.mxu0 0.0
    %790 = vmatpush.msra.mxu0 0.0
    %791 = vmatpush.msra.mxu0 0.0
    %792 = vmatpush.msra.mxu0 0.0
    %793 = vmatpush.msra.mxu0 %v57
    %794 = vmatpush.msra.mxu0 %v54
    %795 = vmatpush.msra.mxu0 %v51
    %796 = vmatpush.msra.mxu0 %v48
    %797 = vmatpush.msra.mxu0 %v45
    %798 = vmatpush.msra.mxu0 %v42
    %799 = vmatpush.msra.mxu0 %v39
    %800 = vmatpush.msra.mxu0 %v36
    %801 = vmatmul.f32.gmra.mxu0 %v763
    %v802 = vpop.f32.mrf.mxu0
    %v803 = vadd.f32 %v106, %v802
    %804 = vdwg.mxu0
    %805 = vmatpush.msra.mxu0 0.0
    %806 = vmatpush.msra.mxu0 0.0
    %807 = vmatpush.msra.mxu0 0.0
    %808 = vmatpush.msra.mxu0 0.0
    %809 = vmatpush.msra.mxu0 0.0
    %810 = vmatpush.msra.mxu0 0.0
    %811 = vmatpush.msra.mxu0 0.0
    %812 = vmatpush.msra.mxu0 0.0
    %813 = vmatpush.msra.mxu0 %v58
    %814 = vmatpush.msra.mxu0 %v55
    %815 = vmatpush.msra.mxu0 %v52
    %816 = vmatpush.msra.mxu0 %v49
    %817 = vmatpush.msra.mxu0 %v46
    %818 = vmatpush.msra.mxu0 %v43
    %819 = vmatpush.msra.mxu0 %v40
    %820 = vmatpush.msra.mxu0 %v37
    %821 = vmatmul.f32.gmra.mxu0 %v763
    %v822 = vpop.f32.mrf.mxu0
    %v823 = vadd.f32 %v107, %v822
    %824 = vdwg.mxu0
    %vm825 = vcmp.gt.f32.partialorder %v823, 0.0
    %v826 = vsel %vm825, 1, 0
    %v827 = vcvt.s32.f32 %v826
    %829 = vset.pattern.permute.xlu0 4
    %830 = vperm.xlu0 %829, %v827
    %v831 = vpop.permute.xlu0 %830
    %v833 = vmul.f32 %v827, %v831
    %v834 = vld [vmem:[%s511] ss:$8 sm:$0x3]
    %v835 = vld [vmem:[%s513] ss:$8 sm:$0x3]
    %v836 = vld [vmem:[%s515] ss:$8 sm:$0x3]
    %837 = vset.pattern.permute.xlu0 5
    %838 = vperm.xlu0 %837, %v826
    %v839 = vpop.permute.xlu0 %838
    %vm840 = vcmp.eq.s32.totalorder %v839, 1
    %v842 = vperm.slane %v836, 0
    %v843 = vperm.slane %v836, 1
    %v847 = vperm.slane %v835, 0
    %v848 = vperm.slane %v835, 1
    %v851 = vsel %vm840, %v842, %v847
    %v852 = vsel %vm840, %v843, %v848
    %853 = vset.pattern.permute.xlu0 4
    %854 = vperm.xlu0 %853, %v826
    %v855 = vpop.permute.xlu0 %854
    %vm856 = vcmp.eq.s32.totalorder %v855, 1
    %v858 = vperm.slane %v834, 0
    %v859 = vperm.slane %v834, 1
    %v862 = vsel %vm856, %v851, %v858
    %v863 = vsel %vm856, %v852, %v859
    %865 = vrot.lane.b32.xlu0 %v833, 125
    %v866 = vpop.permute.xlu0 %865
    %868 = vst.msk [vmem:[%s2 + $0x1a] sm:$0x1] %vm221, %v866
    %v869 = vadd.f32 %v862, %v783
    %v870 = vadd.f32 %v863, %v803
    %v871 = vxor.u32 %v869, 2147483648
    %v872 = vxor.u32 %v870, 2147483648
    %v873 = vmul.f32 %v871, 1.442695
    %v874 = vpow.pop %v873
    %v875 = vmul.f32 %v872, 1.442695
    %v876 = vpow.pop %v875
    %v877 = vadd.f32 %v874, 1.0
    %v878 = vadd.f32 %v876, 1.0
    %v879 = vrcp.pop %v877
    %v880 = vmul.f32 %v877, %v879
    %v881 = vsub.f32 1.0, %v880
    %v882 = vmul.f32 %v879, %v881
    %v883 = vadd.f32 %v879, %v882
    %vm884 = vweird.f32 %v877
    %vm885 = vweird.f32 %v879
    %vm886 = vmor %vm884, %vm885
    %v887 = vsel %vm886, %v879, %v883
    %v888 = vand.u32 2147483647, %v877
    %vm889 = vcmp.eq.f32.partialorder %v888, 8.507059e+37
    %v890 = vand.u32 %v877, 2147483648
    %v891 = vor.u32 1.1754944e-38, %v890
    %v892 = vsel %vm889, %v891, %v887
    %v893 = vmul.f32 1.0, %v892
    %v894 = vrcp.pop %v878
    %v895 = vmul.f32 %v878, %v894
    %v896 = vsub.f32 1.0, %v895
    %v897 = vmul.f32 %v894, %v896
    %v898 = vadd.f32 %v894, %v897
    %vm899 = vweird.f32 %v878
    %vm900 = vweird.f32 %v894
    %vm901 = vmor %vm899, %vm900
    %v902 = vsel %vm901, %v894, %v898
    %v903 = vand.u32 2147483647, %v878
    %vm904 = vcmp.eq.f32.partialorder %v903, 8.507059e+37
    %v905 = vand.u32 %v878, 2147483648
    %v906 = vor.u32 1.1754944e-38, %v905
    %v907 = vsel %vm904, %v906, %v902
    %v908 = vmul.f32 1.0, %v907
    %v909 = vmul.f32 %v908, 2.0
    %v910 = vsub.f32 %v909, 1.0
    %v911 = vmul.f32 %v893, %v757
    %v912 = vmul.f32 %v893, %v910
    %914 = vrot.lane.b32.xlu0 %v912, 64
    %v915 = vpop.permute.xlu0 %914
    %v917 = vadd.f32 %v911, %v915
    %v918 = vtanh.pop %v917
    %v919 = vmul.f32 %v908, %v918
    %921 = vrot.lane.b32.xlu0 %v919, 64
    %v922 = vpop.permute.xlu0 %921
    %v923 = vsel %vm111, %v922, 0
    %925 = vmatpush.msra.mxu0 0.0
    %926 = vmatpush.msra.mxu0 0.0
    %927 = vmatpush.msra.mxu0 0.0
    %928 = vmatpush.msra.mxu0 0.0
    %929 = vmatpush.msra.mxu0 0.0
    %930 = vmatpush.msra.mxu0 0.0
    %931 = vmatpush.msra.mxu0 0.0
    %932 = vmatpush.msra.mxu0 0.0
    %933 = vmatpush.msra.mxu0 %v56
    %934 = vmatpush.msra.mxu0 %v53
    %935 = vmatpush.msra.mxu0 %v50
    %936 = vmatpush.msra.mxu0 %v47
    %937 = vmatpush.msra.mxu0 %v44
    %938 = vmatpush.msra.mxu0 %v41
    %939 = vmatpush.msra.mxu0 %v38
    %940 = vmatpush.msra.mxu0 %v35
    %941 = vmatmul.f32.gmra.mxu0 %v923
    %v942 = vpop.f32.mrf.mxu0
    %v943 = vadd.f32 %v105, %v942
    %944 = vdwg.mxu0
    %945 = vmatpush.msra.mxu0 0.0
    %946 = vmatpush.msra.mxu0 0.0
    %947 = vmatpush.msra.mxu0 0.0
    %948 = vmatpush.msra.mxu0 0.0
    %949 = vmatpush.msra.mxu0 0.0
    %950 = vmatpush.msra.mxu0 0.0
    %951 = vmatpush.msra.mxu0 0.0
    %952 = vmatpush.msra.mxu0 0.0
    %953 = vmatpush.msra.mxu0 %v57
    %954 = vmatpush.msra.mxu0 %v54
    %955 = vmatpush.msra.mxu0 %v51
    %956 = vmatpush.msra.mxu0 %v48
    %957 = vmatpush.msra.mxu0 %v45
    %958 = vmatpush.msra.mxu0 %v42
    %959 = vmatpush.msra.mxu0 %v39
    %960 = vmatpush.msra.mxu0 %v36
    %961 = vmatmul.f32.gmra.mxu0 %v923
    %v962 = vpop.f32.mrf.mxu0
    %v963 = vadd.f32 %v106, %v962
    %964 = vdwg.mxu0
    %965 = vmatpush.msra.mxu0 0.0
    %966 = vmatpush.msra.mxu0 0.0
    %967 = vmatpush.msra.mxu0 0.0
    %968 = vmatpush.msra.mxu0 0.0
    %969 = vmatpush.msra.mxu0 0.0
    %970 = vmatpush.msra.mxu0 0.0
    %971 = vmatpush.msra.mxu0 0.0
    %972 = vmatpush.msra.mxu0 0.0
    %973 = vmatpush.msra.mxu0 %v58
    %974 = vmatpush.msra.mxu0 %v55
    %975 = vmatpush.msra.mxu0 %v52
    %976 = vmatpush.msra.mxu0 %v49
    %977 = vmatpush.msra.mxu0 %v46
    %978 = vmatpush.msra.mxu0 %v43
    %979 = vmatpush.msra.mxu0 %v40
    %980 = vmatpush.msra.mxu0 %v37
    %981 = vmatmul.f32.gmra.mxu0 %v923
    %v982 = vpop.f32.mrf.mxu0
    %v983 = vadd.f32 %v107, %v982
    %984 = vdwg.mxu0
    %vm985 = vcmp.gt.f32.partialorder %v983, 0.0
    %v986 = vsel %vm985, 1, 0
    %v987 = vcvt.s32.f32 %v986
    %989 = vset.pattern.permute.xlu0 2
    %990 = vperm.xlu0 %989, %v987
    %v991 = vpop.permute.xlu0 %990
    %v993 = vmul.f32 %v987, %v991
    %v994 = vld [vmem:[%s348] ss:$8 sm:$0x3]
    %v995 = vld [vmem:[%s350] ss:$8 sm:$0x3]
    %v996 = vld [vmem:[%s352] ss:$8 sm:$0x3]
    %997 = vset.pattern.permute.xlu0 3
    %998 = vperm.xlu0 %997, %v986
    %v999 = vpop.permute.xlu0 %998
    %vm1000 = vcmp.eq.s32.totalorder %v999, 1
    %v1002 = vperm.slane %v996, 0
    %v1003 = vperm.slane %v996, 1
    %v1007 = vperm.slane %v995, 0
    %v1008 = vperm.slane %v995, 1
    %v1011 = vsel %vm1000, %v1002, %v1007
    %v1012 = vsel %vm1000, %v1003, %v1008
    %1013 = vset.pattern.permute.xlu0 2
    %1014 = vperm.xlu0 %1013, %v986
    %v1015 = vpop.permute.xlu0 %1014
    %vm1016 = vcmp.eq.s32.totalorder %v1015, 1
    %v1018 = vperm.slane %v994, 0
    %v1019 = vperm.slane %v994, 1
    %v1022 = vsel %vm1016, %v1011, %v1018
    %v1023 = vsel %vm1016, %v1012, %v1019
    %1025 = vrot.lane.b32.xlu0 %v993, 127
    %v1026 = vpop.permute.xlu0 %1025
    %1028 = vst.msk [vmem:[%s2 + $0x7] sm:$0x1] %vm221, %v1026
    %v1029 = vadd.f32 %v1022, %v943
    %v1030 = vadd.f32 %v1023, %v963
    %v1031 = vxor.u32 %v1029, 2147483648
    %v1032 = vxor.u32 %v1030, 2147483648
    %v1033 = vmul.f32 %v1031, 1.442695
    %v1034 = vpow.pop %v1033
    %v1035 = vmul.f32 %v1032, 1.442695
    %v1036 = vpow.pop %v1035
    %v1037 = vadd.f32 %v1034, 1.0
    %v1038 = vadd.f32 %v1036, 1.0
    %v1039 = vrcp.pop %v1037
    %v1040 = vmul.f32 %v1037, %v1039
    %v1041 = vsub.f32 1.0, %v1040
    %v1042 = vmul.f32 %v1039, %v1041
    %v1043 = vadd.f32 %v1039, %v1042
    %vm1044 = vweird.f32 %v1037
    %vm1045 = vweird.f32 %v1039
    %vm1046 = vmor %vm1044, %vm1045
    %v1047 = vsel %vm1046, %v1039, %v1043
    %v1048 = vand.u32 2147483647, %v1037
    %vm1049 = vcmp.eq.f32.partialorder %v1048, 8.507059e+37
    %v1050 = vand.u32 %v1037, 2147483648
    %v1051 = vor.u32 1.1754944e-38, %v1050
    %v1052 = vsel %vm1049, %v1051, %v1047
    %v1053 = vmul.f32 1.0, %v1052
    %v1054 = vrcp.pop %v1038
    %v1055 = vmul.f32 %v1038, %v1054
    %v1056 = vsub.f32 1.0, %v1055
    %v1057 = vmul.f32 %v1054, %v1056
    %v1058 = vadd.f32 %v1054, %v1057
    %vm1059 = vweird.f32 %v1038
    %vm1060 = vweird.f32 %v1054
    %vm1061 = vmor %vm1059, %vm1060
    %v1062 = vsel %vm1061, %v1054, %v1058
    %v1063 = vand.u32 2147483647, %v1038
    %vm1064 = vcmp.eq.f32.partialorder %v1063, 8.507059e+37
    %v1065 = vand.u32 %v1038, 2147483648
    %v1066 = vor.u32 1.1754944e-38, %v1065
    %v1067 = vsel %vm1064, %v1066, %v1062
    %v1068 = vmul.f32 1.0, %v1067
    %v1069 = vmul.f32 %v1068, 2.0
    %v1070 = vsub.f32 %v1069, 1.0
    %v1071 = vmul.f32 %v1053, %v917
    %v1072 = vmul.f32 %v1053, %v1070
    %1074 = vrot.lane.b32.xlu0 %v1072, 64
    %v1075 = vpop.permute.xlu0 %1074
    %v1077 = vadd.f32 %v1071, %v1075
    %v1078 = vtanh.pop %v1077
    %v1079 = vmul.f32 %v1068, %v1078
    %1081 = vrot.lane.b32.xlu0 %v1079, 64
    %v1082 = vpop.permute.xlu0 %1081
    %v1083 = vsel %vm111, %v1082, 0
    %1085 = vmatpush.msra.mxu0 0.0
    %1086 = vmatpush.msra.mxu0 0.0
    %1087 = vmatpush.msra.mxu0 0.0
    %1088 = vmatpush.msra.mxu0 0.0
    %1089 = vmatpush.msra.mxu0 0.0
    %1090 = vmatpush.msra.mxu0 0.0
    %1091 = vmatpush.msra.mxu0 0.0
    %1092 = vmatpush.msra.mxu0 0.0
    %1093 = vmatpush.msra.mxu0 %v56
    %1094 = vmatpush.msra.mxu0 %v53
    %1095 = vmatpush.msra.mxu0 %v50
    %1096 = vmatpush.msra.mxu0 %v47
    %1097 = vmatpush.msra.mxu0 %v44
    %1098 = vmatpush.msra.mxu0 %v41
    %1099 = vmatpush.msra.mxu0 %v38
    %1100 = vmatpush.msra.mxu0 %v35
    %1101 = vmatmul.f32.gmra.mxu0 %v1083
    %v1102 = vpop.f32.mrf.mxu0
    %v1103 = vadd.f32 %v105, %v1102
    %1104 = vdwg.mxu0
    %1105 = vmatpush.msra.mxu0 0.0
    %1106 = vmatpush.msra.mxu0 0.0
    %1107 = vmatpush.msra.mxu0 0.0
    %1108 = vmatpush.msra.mxu0 0.0
    %1109 = vmatpush.msra.mxu0 0.0
    %1110 = vmatpush.msra.mxu0 0.0
    %1111 = vmatpush.msra.mxu0 0.0
    %1112 = vmatpush.msra.mxu0 0.0
    %1113 = vmatpush.msra.mxu0 %v57
    %1114 = vmatpush.msra.mxu0 %v54
    %1115 = vmatpush.msra.mxu0 %v51
    %1116 = vmatpush.msra.mxu0 %v48
    %1117 = vmatpush.msra.mxu0 %v45
    %1118 = vmatpush.msra.mxu0 %v42
    %1119 = vmatpush.msra.mxu0 %v39
    %1120 = vmatpush.msra.mxu0 %v36
    %1121 = vmatmul.f32.gmra.mxu0 %v1083
    %v1122 = vpop.f32.mrf.mxu0
    %v1123 = vadd.f32 %v106, %v1122
    %1124 = vdwg.mxu0
    %1125 = vmatpush.msra.mxu0 0.0
    %1126 = vmatpush.msra.mxu0 0.0
    %1127 = vmatpush.msra.mxu0 0.0
    %1128 = vmatpush.msra.mxu0 0.0
    %1129 = vmatpush.msra.mxu0 0.0
    %1130 = vmatpush.msra.mxu0 0.0
    %1131 = vmatpush.msra.mxu0 0.0
    %1132 = vmatpush.msra.mxu0 0.0
    %1133 = vmatpush.msra.mxu0 %v58
    %1134 = vmatpush.msra.mxu0 %v55
    %1135 = vmatpush.msra.mxu0 %v52
    %1136 = vmatpush.msra.mxu0 %v49
    %1137 = vmatpush.msra.mxu0 %v46
    %1138 = vmatpush.msra.mxu0 %v43
    %1139 = vmatpush.msra.mxu0 %v40
    %1140 = vmatpush.msra.mxu0 %v37
    %1141 = vmatmul.f32.gmra.mxu0 %v1083
    %v1142 = vpop.f32.mrf.mxu0
    %v1143 = vadd.f32 %v107, %v1142
    %1144 = vdwg.mxu0
    %vm1145 = vcmp.gt.f32.partialorder %v1143, 0.0
    %v1146 = vsel %vm1145, 1, 0
    %v1147 = vcvt.s32.f32 %v1146
    %1149 = vset.pattern.permute.xlu0 4
    %1150 = vperm.xlu0 %1149, %v1147
    %v1151 = vpop.permute.xlu0 %1150
    %v1153 = vmul.f32 %v1147, %v1151
    %v1154 = vld [vmem:[%s511] ss:$8 sm:$0x3]
    %v1155 = vld [vmem:[%s513] ss:$8 sm:$0x3]
    %v1156 = vld [vmem:[%s515] ss:$8 sm:$0x3]
    %1157 = vset.pattern.permute.xlu0 5
    %1158 = vperm.xlu0 %1157, %v1146
    %v1159 = vpop.permute.xlu0 %1158
    %vm1160 = vcmp.eq.s32.totalorder %v1159, 1
    %v1162 = vperm.slane %v1156, 0
    %v1163 = vperm.slane %v1156, 1
    %v1167 = vperm.slane %v1155, 0
    %v1168 = vperm.slane %v1155, 1
    %v1171 = vsel %vm1160, %v1162, %v1167
    %v1172 = vsel %vm1160, %v1163, %v1168
    %1173 = vset.pattern.permute.xlu0 4
    %1174 = vperm.xlu0 %1173, %v1146
    %v1175 = vpop.permute.xlu0 %1174
    %vm1176 = vcmp.eq.s32.totalorder %v1175, 1
    %v1178 = vperm.slane %v1154, 0
    %v1179 = vperm.slane %v1154, 1
    %v1182 = vsel %vm1176, %v1171, %v1178
    %v1183 = vsel %vm1176, %v1172, %v1179
    %1185 = vrot.lane.b32.xlu0 %v1153, 125
    %v1186 = vpop.permute.xlu0 %1185
    %1188 = vst.msk [vmem:[%s2 + $0x1b] sm:$0x1] %vm221, %v1186
    %v1189 = vadd.f32 %v1182, %v1103
    %v1190 = vadd.f32 %v1183, %v1123
    %v1191 = vxor.u32 %v1189, 2147483648
    %v1192 = vxor.u32 %v1190, 2147483648
    %v1193 = vmul.f32 %v1191, 1.442695
    %v1194 = vpow.pop %v1193
    %v1195 = vmul.f32 %v1192, 1.442695
    %v1196 = vpow.pop %v1195
    %v1197 = vadd.f32 %v1194, 1.0
    %v1198 = vadd.f32 %v1196, 1.0
    %v1199 = vrcp.pop %v1197
    %v1200 = vmul.f32 %v1197, %v1199
    %v1201 = vsub.f32 1.0, %v1200
    %v1202 = vmul.f32 %v1199, %v1201
    %v1203 = vadd.f32 %v1199, %v1202
    %vm1204 = vweird.f32 %v1197
    %vm1205 = vweird.f32 %v1199
    %vm1206 = vmor %vm1204, %vm1205
    %v1207 = vsel %vm1206, %v1199, %v1203
    %v1208 = vand.u32 2147483647, %v1197
    %vm1209 = vcmp.eq.f32.partialorder %v1208, 8.507059e+37
    %v1210 = vand.u32 %v1197, 2147483648
    %v1211 = vor.u32 1.1754944e-38, %v1210
    %v1212 = vsel %vm1209, %v1211, %v1207
    %v1213 = vmul.f32 1.0, %v1212
    %v1214 = vrcp.pop %v1198
    %v1215 = vmul.f32 %v1198, %v1214
    %v1216 = vsub.f32 1.0, %v1215
    %v1217 = vmul.f32 %v1214, %v1216
    %v1218 = vadd.f32 %v1214, %v1217
    %vm1219 = vweird.f32 %v1198
    %vm1220 = vweird.f32 %v1214
    %vm1221 = vmor %vm1219, %vm1220
    %v1222 = vsel %vm1221, %v1214, %v1218
    %v1223 = vand.u32 2147483647, %v1198
    %vm1224 = vcmp.eq.f32.partialorder %v1223, 8.507059e+37
    %v1225 = vand.u32 %v1198, 2147483648
    %v1226 = vor.u32 1.1754944e-38, %v1225
    %v1227 = vsel %vm1224, %v1226, %v1222
    %v1228 = vmul.f32 1.0, %v1227
    %v1229 = vmul.f32 %v1228, 2.0
    %v1230 = vsub.f32 %v1229, 1.0
    %v1231 = vmul.f32 %v1213, %v1077
    %v1232 = vmul.f32 %v1213, %v1230
    %1234 = vrot.lane.b32.xlu0 %v1232, 64
    %v1235 = vpop.permute.xlu0 %1234
    %v1237 = vadd.f32 %v1231, %v1235
    %v1238 = vtanh.pop %v1237
    %v1239 = vmul.f32 %v1228, %v1238
    %1241 = vrot.lane.b32.xlu0 %v1239, 64
    %v1242 = vpop.permute.xlu0 %1241
    %v1243 = vsel %vm111, %v1242, 0
    %1245 = vmatpush.msra.mxu0 0.0
    %1246 = vmatpush.msra.mxu0 0.0
    %1247 = vmatpush.msra.mxu0 0.0
    %1248 = vmatpush.msra.mxu0 0.0
    %1249 = vmatpush.msra.mxu0 0.0
    %1250 = vmatpush.msra.mxu0 0.0
    %1251 = vmatpush.msra.mxu0 0.0
    %1252 = vmatpush.msra.mxu0 0.0
    %1253 = vmatpush.msra.mxu0 %v56
    %1254 = vmatpush.msra.mxu0 %v53
    %1255 = vmatpush.msra.mxu0 %v50
    %1256 = vmatpush.msra.mxu0 %v47
    %1257 = vmatpush.msra.mxu0 %v44
    %1258 = vmatpush.msra.mxu0 %v41
    %1259 = vmatpush.msra.mxu0 %v38
    %1260 = vmatpush.msra.mxu0 %v35
    %1261 = vmatmul.f32.gmra.mxu0 %v1243
    %v1262 = vpop.f32.mrf.mxu0
    %v1263 = vadd.f32 %v105, %v1262
    %1264 = vdwg.mxu0
    %1265 = vmatpush.msra.mxu0 0.0
    %1266 = vmatpush.msra.mxu0 0.0
    %1267 = vmatpush.msra.mxu0 0.0
    %1268 = vmatpush.msra.mxu0 0.0
    %1269 = vmatpush.msra.mxu0 0.0
    %1270 = vmatpush.msra.mxu0 0.0
    %1271 = vmatpush.msra.mxu0 0.0
    %1272 = vmatpush.msra.mxu0 0.0
    %1273 = vmatpush.msra.mxu0 %v57
    %1274 = vmatpush.msra.mxu0 %v54
    %1275 = vmatpush.msra.mxu0 %v51
    %1276 = vmatpush.msra.mxu0 %v48
    %1277 = vmatpush.msra.mxu0 %v45
    %1278 = vmatpush.msra.mxu0 %v42
    %1279 = vmatpush.msra.mxu0 %v39
    %1280 = vmatpush.msra.mxu0 %v36
    %1281 = vmatmul.f32.gmra.mxu0 %v1243
    %v1282 = vpop.f32.mrf.mxu0
    %v1283 = vadd.f32 %v106, %v1282
    %1284 = vdwg.mxu0
    %1285 = vmatpush.msra.mxu0 0.0
    %1286 = vmatpush.msra.mxu0 0.0
    %1287 = vmatpush.msra.mxu0 0.0
    %1288 = vmatpush.msra.mxu0 0.0
    %1289 = vmatpush.msra.mxu0 0.0
    %1290 = vmatpush.msra.mxu0 0.0
    %1291 = vmatpush.msra.mxu0 0.0
    %1292 = vmatpush.msra.mxu0 0.0
    %1293 = vmatpush.msra.mxu0 %v58
    %1294 = vmatpush.msra.mxu0 %v55
    %1295 = vmatpush.msra.mxu0 %v52
    %1296 = vmatpush.msra.mxu0 %v49
    %1297 = vmatpush.msra.mxu0 %v46
    %1298 = vmatpush.msra.mxu0 %v43
    %1299 = vmatpush.msra.mxu0 %v40
    %1300 = vmatpush.msra.mxu0 %v37
    %1301 = vmatmul.f32.gmra.mxu0 %v1243
    %v1302 = vpop.f32.mrf.mxu0
    %v1303 = vadd.f32 %v107, %v1302
    %1304 = vdwg.mxu0
    %vm1305 = vcmp.gt.f32.partialorder %v1303, 0.0
    %v1306 = vsel %vm1305, 1, 0
    %v1307 = vcvt.s32.f32 %v1306
    %1309 = vset.pattern.permute.xlu0 2
    %1310 = vperm.xlu0 %1309, %v1307
    %v1311 = vpop.permute.xlu0 %1310
    %v1313 = vmul.f32 %v1307, %v1311
    %v1314 = vld [vmem:[%s348] ss:$8 sm:$0x3]
    %v1315 = vld [vmem:[%s350] ss:$8 sm:$0x3]
    %v1316 = vld [vmem:[%s352] ss:$8 sm:$0x3]
    %1317 = vset.pattern.permute.xlu0 3
    %1318 = vperm.xlu0 %1317, %v1306
    %v1319 = vpop.permute.xlu0 %1318
    %vm1320 = vcmp.eq.s32.totalorder %v1319, 1
    %v1322 = vperm.slane %v1316, 0
    %v1323 = vperm.slane %v1316, 1
    %v1327 = vperm.slane %v1315, 0
    %v1328 = vperm.slane %v1315, 1
    %v1331 = vsel %vm1320, %v1322, %v1327
    %v1332 = vsel %vm1320, %v1323, %v1328
    %1333 = vset.pattern.permute.xlu0 2
    %1334 = vperm.xlu0 %1333, %v1306
    %v1335 = vpop.permute.xlu0 %1334
    %vm1336 = vcmp.eq.s32.totalorder %v1335, 1
    %v1338 = vperm.slane %v1314, 0
    %v1339 = vperm.slane %v1314, 1
    %v1342 = vsel %vm1336, %v1331, %v1338
    %v1343 = vsel %vm1336, %v1332, %v1339
    %1345 = vrot.lane.b32.xlu0 %v1313, 127
    %v1346 = vpop.permute.xlu0 %1345
    %1348 = vst.msk [vmem:[%s2 + $0x8] sm:$0x1] %vm221, %v1346
    %v1349 = vadd.f32 %v1342, %v1263
    %v1350 = vadd.f32 %v1343, %v1283
    %v1351 = vxor.u32 %v1349, 2147483648
    %v1352 = vxor.u32 %v1350, 2147483648
    %v1353 = vmul.f32 %v1351, 1.442695
    %v1354 = vpow.pop %v1353
    %v1355 = vmul.f32 %v1352, 1.442695
    %v1356 = vpow.pop %v1355
    %v1357 = vadd.f32 %v1354, 1.0
    %v1358 = vadd.f32 %v1356, 1.0
    %v1359 = vrcp.pop %v1357
    %v1360 = vmul.f32 %v1357, %v1359
    %v1361 = vsub.f32 1.0, %v1360
    %v1362 = vmul.f32 %v1359, %v1361
    %v1363 = vadd.f32 %v1359, %v1362
    %vm1364 = vweird.f32 %v1357
    %vm1365 = vweird.f32 %v1359
    %vm1366 = vmor %vm1364, %vm1365
    %v1367 = vsel %vm1366, %v1359, %v1363
    %v1368 = vand.u32 2147483647, %v1357
    %vm1369 = vcmp.eq.f32.partialorder %v1368, 8.507059e+37
    %v1370 = vand.u32 %v1357, 2147483648
    %v1371 = vor.u32 1.1754944e-38, %v1370
    %v1372 = vsel %vm1369, %v1371, %v1367
    %v1373 = vmul.f32 1.0, %v1372
    %v1374 = vrcp.pop %v1358
    %v1375 = vmul.f32 %v1358, %v1374
    %v1376 = vsub.f32 1.0, %v1375
    %v1377 = vmul.f32 %v1374, %v1376
    %v1378 = vadd.f32 %v1374, %v1377
    %vm1379 = vweird.f32 %v1358
    %vm1380 = vweird.f32 %v1374
    %vm1381 = vmor %vm1379, %vm1380
    %v1382 = vsel %vm1381, %v1374, %v1378
    %v1383 = vand.u32 2147483647, %v1358
    %vm1384 = vcmp.eq.f32.partialorder %v1383, 8.507059e+37
    %v1385 = vand.u32 %v1358, 2147483648
    %v1386 = vor.u32 1.1754944e-38, %v1385
    %v1387 = vsel %vm1384, %v1386, %v1382
    %v1388 = vmul.f32 1.0, %v1387
    %v1389 = vmul.f32 %v1388, 2.0
    %v1390 = vsub.f32 %v1389, 1.0
    %v1391 = vmul.f32 %v1373, %v1237
    %v1392 = vmul.f32 %v1373, %v1390
    %1394 = vrot.lane.b32.xlu0 %v1392, 64
    %v1395 = vpop.permute.xlu0 %1394
    %v1397 = vadd.f32 %v1391, %v1395
    %v1398 = vtanh.pop %v1397
    %v1399 = vmul.f32 %v1388, %v1398
    %1401 = vrot.lane.b32.xlu0 %v1399, 64
    %v1402 = vpop.permute.xlu0 %1401
    %v1403 = vsel %vm111, %v1402, 0
    %1405 = vmatpush.msra.mxu0 0.0
    %1406 = vmatpush.msra.mxu0 0.0
    %1407 = vmatpush.msra.mxu0 0.0
    %1408 = vmatpush.msra.mxu0 0.0
    %1409 = vmatpush.msra.mxu0 0.0
    %1410 = vmatpush.msra.mxu0 0.0
    %1411 = vmatpush.msra.mxu0 0.0
    %1412 = vmatpush.msra.mxu0 0.0
    %1413 = vmatpush.msra.mxu0 %v56
    %1414 = vmatpush.msra.mxu0 %v53
    %1415 = vmatpush.msra.mxu0 %v50
    %1416 = vmatpush.msra.mxu0 %v47
    %1417 = vmatpush.msra.mxu0 %v44
    %1418 = vmatpush.msra.mxu0 %v41
    %1419 = vmatpush.msra.mxu0 %v38
    %1420 = vmatpush.msra.mxu0 %v35
    %1421 = vmatmul.f32.gmra.mxu0 %v1403
    %v1422 = vpop.f32.mrf.mxu0
    %v1423 = vadd.f32 %v105, %v1422
    %1424 = vdwg.mxu0
    %1425 = vmatpush.msra.mxu0 0.0
    %1426 = vmatpush.msra.mxu0 0.0
    %1427 = vmatpush.msra.mxu0 0.0
    %1428 = vmatpush.msra.mxu0 0.0
    %1429 = vmatpush.msra.mxu0 0.0
    %1430 = vmatpush.msra.mxu0 0.0
    %1431 = vmatpush.msra.mxu0 0.0
    %1432 = vmatpush.msra.mxu0 0.0
    %1433 = vmatpush.msra.mxu0 %v57
    %1434 = vmatpush.msra.mxu0 %v54
    %1435 = vmatpush.msra.mxu0 %v51
    %1436 = vmatpush.msra.mxu0 %v48
    %1437 = vmatpush.msra.mxu0 %v45
    %1438 = vmatpush.msra.mxu0 %v42
    %1439 = vmatpush.msra.mxu0 %v39
    %1440 = vmatpush.msra.mxu0 %v36
    %1441 = vmatmul.f32.gmra.mxu0 %v1403
    %v1442 = vpop.f32.mrf.mxu0
    %v1443 = vadd.f32 %v106, %v1442
    %1444 = vdwg.mxu0
    %1445 = vmatpush.msra.mxu0 0.0
    %1446 = vmatpush.msra.mxu0 0.0
    %1447 = vmatpush.msra.mxu0 0.0
    %1448 = vmatpush.msra.mxu0 0.0
    %1449 = vmatpush.msra.mxu0 0.0
    %1450 = vmatpush.msra.mxu0 0.0
    %1451 = vmatpush.msra.mxu0 0.0
    %1452 = vmatpush.msra.mxu0 0.0
    %1453 = vmatpush.msra.mxu0 %v58
    %1454 = vmatpush.msra.mxu0 %v55
    %1455 = vmatpush.msra.mxu0 %v52
    %1456 = vmatpush.msra.mxu0 %v49
    %1457 = vmatpush.msra.mxu0 %v46
    %1458 = vmatpush.msra.mxu0 %v43
    %1459 = vmatpush.msra.mxu0 %v40
    %1460 = vmatpush.msra.mxu0 %v37
    %1461 = vmatmul.f32.gmra.mxu0 %v1403
    %v1462 = vpop.f32.mrf.mxu0
    %v1463 = vadd.f32 %v107, %v1462
    %1464 = vdwg.mxu0
    %vm1465 = vcmp.gt.f32.partialorder %v1463, 0.0
    %v1466 = vsel %vm1465, 1, 0
    %v1467 = vcvt.s32.f32 %v1466
    %1469 = vset.pattern.permute.xlu0 4
    %1470 = vperm.xlu0 %1469, %v1467
    %v1471 = vpop.permute.xlu0 %1470
    %v1473 = vmul.f32 %v1467, %v1471
    %v1474 = vld [vmem:[%s511] ss:$8 sm:$0x3]
    %v1475 = vld [vmem:[%s513] ss:$8 sm:$0x3]
    %v1476 = vld [vmem:[%s515] ss:$8 sm:$0x3]
    %1477 = vset.pattern.permute.xlu0 5
    %1478 = vperm.xlu0 %1477, %v1466
    %v1479 = vpop.permute.xlu0 %1478
    %vm1480 = vcmp.eq.s32.totalorder %v1479, 1
    %v1482 = vperm.slane %v1476, 0
    %v1483 = vperm.slane %v1476, 1
    %v1487 = vperm.slane %v1475, 0
    %v1488 = vperm.slane %v1475, 1
    %v1491 = vsel %vm1480, %v1482, %v1487
    %v1492 = vsel %vm1480, %v1483, %v1488
    %1493 = vset.pattern.permute.xlu0 4
    %1494 = vperm.xlu0 %1493, %v1466
    %v1495 = vpop.permute.xlu0 %1494
    %vm1496 = vcmp.eq.s32.totalorder %v1495, 1
    %v1498 = vperm.slane %v1474, 0
    %v1499 = vperm.slane %v1474, 1
    %v1502 = vsel %vm1496, %v1491, %v1498
    %v1503 = vsel %vm1496, %v1492, %v1499
    %1505 = vrot.lane.b32.xlu0 %v1473, 125
    %v1506 = vpop.permute.xlu0 %1505
    %1508 = vst.msk [vmem:[%s2 + $0x1c] sm:$0x1] %vm221, %v1506
    %v1509 = vadd.f32 %v1502, %v1423
    %v1510 = vadd.f32 %v1503, %v1443
    %v1511 = vxor.u32 %v1509, 2147483648
    %v1512 = vxor.u32 %v1510, 2147483648
    %v1513 = vmul.f32 %v1511, 1.442695
    %v1514 = vpow.pop %v1513
    %v1515 = vmul.f32 %v1512, 1.442695
    %v1516 = vpow.pop %v1515
    %v1517 = vadd.f32 %v1514, 1.0
    %v1518 = vadd.f32 %v1516, 1.0
    %v1519 = vrcp.pop %v1517
    %v1520 = vmul.f32 %v1517, %v1519
    %v1521 = vsub.f32 1.0, %v1520
    %v1522 = vmul.f32 %v1519, %v1521
    %v1523 = vadd.f32 %v1519, %v1522
    %vm1524 = vweird.f32 %v1517
    %vm1525 = vweird.f32 %v1519
    %vm1526 = vmor %vm1524, %vm1525
    %v1527 = vsel %vm1526, %v1519, %v1523
    %v1528 = vand.u32 2147483647, %v1517
    %vm1529 = vcmp.eq.f32.partialorder %v1528, 8.507059e+37
    %v1530 = vand.u32 %v1517, 2147483648
    %v1531 = vor.u32 1.1754944e-38, %v1530
    %v1532 = vsel %vm1529, %v1531, %v1527
    %v1533 = vmul.f32 1.0, %v1532
    %v1534 = vrcp.pop %v1518
    %v1535 = vmul.f32 %v1518, %v1534
    %v1536 = vsub.f32 1.0, %v1535
    %v1537 = vmul.f32 %v1534, %v1536
    %v1538 = vadd.f32 %v1534, %v1537
    %vm1539 = vweird.f32 %v1518
    %vm1540 = vweird.f32 %v1534
    %vm1541 = vmor %vm1539, %vm1540
    %v1542 = vsel %vm1541, %v1534, %v1538
    %v1543 = vand.u32 2147483647, %v1518
    %vm1544 = vcmp.eq.f32.partialorder %v1543, 8.507059e+37
    %v1545 = vand.u32 %v1518, 2147483648
    %v1546 = vor.u32 1.1754944e-38, %v1545
    %v1547 = vsel %vm1544, %v1546, %v1542
    %v1548 = vmul.f32 1.0, %v1547
    %v1549 = vmul.f32 %v1548, 2.0
    %v1550 = vsub.f32 %v1549, 1.0
    %v1551 = vmul.f32 %v1533, %v1397
    %v1552 = vmul.f32 %v1533, %v1550
    %1554 = vrot.lane.b32.xlu0 %v1552, 64
    %v1555 = vpop.permute.xlu0 %1554
    %v1557 = vadd.f32 %v1551, %v1555
    %v1558 = vtanh.pop %v1557
    %v1559 = vmul.f32 %v1548, %v1558
    %1561 = vrot.lane.b32.xlu0 %v1559, 64
    %v1562 = vpop.permute.xlu0 %1561
    %v1563 = vsel %vm111, %v1562, 0
    %1565 = vmatpush.msra.mxu0 0.0
    %1566 = vmatpush.msra.mxu0 0.0
    %1567 = vmatpush.msra.mxu0 0.0
    %1568 = vmatpush.msra.mxu0 0.0
    %1569 = vmatpush.msra.mxu0 0.0
    %1570 = vmatpush.msra.mxu0 0.0
    %1571 = vmatpush.msra.mxu0 0.0
    %1572 = vmatpush.msra.mxu0 0.0
    %1573 = vmatpush.msra.mxu0 %v56
    %1574 = vmatpush.msra.mxu0 %v53
    %1575 = vmatpush.msra.mxu0 %v50
    %1576 = vmatpush.msra.mxu0 %v47
    %1577 = vmatpush.msra.mxu0 %v44
    %1578 = vmatpush.msra.mxu0 %v41
    %1579 = vmatpush.msra.mxu0 %v38
    %1580 = vmatpush.msra.mxu0 %v35
    %1581 = vmatmul.f32.gmra.mxu0 %v1563
    %v1582 = vpop.f32.mrf.mxu0
    %v1583 = vadd.f32 %v105, %v1582
    %1584 = vdwg.mxu0
    %1585 = vmatpush.msra.mxu0 0.0
    %1586 = vmatpush.msra.mxu0 0.0
    %1587 = vmatpush.msra.mxu0 0.0
    %1588 = vmatpush.msra.mxu0 0.0
    %1589 = vmatpush.msra.mxu0 0.0
    %1590 = vmatpush.msra.mxu0 0.0
    %1591 = vmatpush.msra.mxu0 0.0
    %1592 = vmatpush.msra.mxu0 0.0
    %1593 = vmatpush.msra.mxu0 %v57
    %1594 = vmatpush.msra.mxu0 %v54
    %1595 = vmatpush.msra.mxu0 %v51
    %1596 = vmatpush.msra.mxu0 %v48
    %1597 = vmatpush.msra.mxu0 %v45
    %1598 = vmatpush.msra.mxu0 %v42
    %1599 = vmatpush.msra.mxu0 %v39
    %1600 = vmatpush.msra.mxu0 %v36
    %1601 = vmatmul.f32.gmra.mxu0 %v1563
    %v1602 = vpop.f32.mrf.mxu0
    %v1603 = vadd.f32 %v106, %v1602
    %1604 = vdwg.mxu0
    %1605 = vmatpush.msra.mxu0 0.0
    %1606 = vmatpush.msra.mxu0 0.0
    %1607 = vmatpush.msra.mxu0 0.0
    %1608 = vmatpush.msra.mxu0 0.0
    %1609 = vmatpush.msra.mxu0 0.0
    %1610 = vmatpush.msra.mxu0 0.0
    %1611 = vmatpush.msra.mxu0 0.0
    %1612 = vmatpush.msra.mxu0 0.0
    %1613 = vmatpush.msra.mxu0 %v58
    %1614 = vmatpush.msra.mxu0 %v55
    %1615 = vmatpush.msra.mxu0 %v52
    %1616 = vmatpush.msra.mxu0 %v49
    %1617 = vmatpush.msra.mxu0 %v46
    %1618 = vmatpush.msra.mxu0 %v43
    %1619 = vmatpush.msra.mxu0 %v40
    %1620 = vmatpush.msra.mxu0 %v37
    %1621 = vmatmul.f32.gmra.mxu0 %v1563
    %v1622 = vpop.f32.mrf.mxu0
    %v1623 = vadd.f32 %v107, %v1622
    %1624 = vdwg.mxu0
    %vm1625 = vcmp.gt.f32.partialorder %v1623, 0.0
    %v1626 = vsel %vm1625, 1, 0
    %v1627 = vcvt.s32.f32 %v1626
    %1629 = vset.pattern.permute.xlu0 0
    %1630 = vperm.xlu0 %1629, %v1627
    %v1631 = vpop.permute.xlu0 %1630
    %v1633 = vmul.f32 %v1627, %v1631
    %v1634 = vld [vmem:[%s184] ss:$8 sm:$0x3]
    %v1635 = vld [vmem:[%s186] ss:$8 sm:$0x3]
    %v1636 = vld [vmem:[%s188] ss:$8 sm:$0x3]
    %1637 = vset.pattern.permute.xlu0 1
    %1638 = vperm.xlu0 %1637, %v1626
    %v1639 = vpop.permute.xlu0 %1638
    %vm1640 = vcmp.eq.s32.totalorder %v1639, 1
    %v1642 = vperm.slane %v1636, 0
    %v1643 = vperm.slane %v1636, 1
    %v1647 = vperm.slane %v1635, 0
    %v1648 = vperm.slane %v1635, 1
    %v1651 = vsel %vm1640, %v1642, %v1647
    %v1652 = vsel %vm1640, %v1643, %v1648
    %1653 = vset.pattern.permute.xlu0 0
    %1654 = vperm.xlu0 %1653, %v1626
    %v1655 = vpop.permute.xlu0 %1654
    %vm1656 = vcmp.eq.s32.totalorder %v1655, 1
    %v1658 = vperm.slane %v1634, 0
    %v1659 = vperm.slane %v1634, 1
    %v1662 = vsel %vm1656, %v1651, %v1658
    %v1663 = vsel %vm1656, %v1652, %v1659
    %1665 = vrot.lane.b32.xlu0 %v1633, 1
    %v1666 = vpop.permute.xlu0 %1665
    %1668 = vst.msk [vmem:[%s2 + $0x1] sm:$0x1] %vm221, %v1666
    %v1669 = vadd.f32 %v1662, %v1583
    %v1670 = vadd.f32 %v1663, %v1603
    %v1671 = vxor.u32 %v1669, 2147483648
    %v1672 = vxor.u32 %v1670, 2147483648
    %v1673 = vmul.f32 %v1671, 1.442695
    %v1674 = vpow.pop %v1673
    %v1675 = vmul.f32 %v1672, 1.442695
    %v1676 = vpow.pop %v1675
    %v1677 = vadd.f32 %v1674, 1.0
    %v1678 = vadd.f32 %v1676, 1.0
    %v1679 = vrcp.pop %v1677
    %v1680 = vmul.f32 %v1677, %v1679
    %v1681 = vsub.f32 1.0, %v1680
    %v1682 = vmul.f32 %v1679, %v1681
    %v1683 = vadd.f32 %v1679, %v1682
    %vm1684 = vweird.f32 %v1677
    %vm1685 = vweird.f32 %v1679
    %vm1686 = vmor %vm1684, %vm1685
    %v1687 = vsel %vm1686, %v1679, %v1683
    %v1688 = vand.u32 2147483647, %v1677
    %vm1689 = vcmp.eq.f32.partialorder %v1688, 8.507059e+37
    %v1690 = vand.u32 %v1677, 2147483648
    %v1691 = vor.u32 1.1754944e-38, %v1690
    %v1692 = vsel %vm1689, %v1691, %v1687
    %v1693 = vmul.f32 1.0, %v1692
    %v1694 = vrcp.pop %v1678
    %v1695 = vmul.f32 %v1678, %v1694
    %v1696 = vsub.f32 1.0, %v1695
    %v1697 = vmul.f32 %v1694, %v1696
    %v1698 = vadd.f32 %v1694, %v1697
    %vm1699 = vweird.f32 %v1678
    %vm1700 = vweird.f32 %v1694
    %vm1701 = vmor %vm1699, %vm1700
    %v1702 = vsel %vm1701, %v1694, %v1698
    %v1703 = vand.u32 2147483647, %v1678
    %vm1704 = vcmp.eq.f32.partialorder %v1703, 8.507059e+37
    %v1705 = vand.u32 %v1678, 2147483648
    %v1706 = vor.u32 1.1754944e-38, %v1705
    %v1707 = vsel %vm1704, %v1706, %v1702
    %v1708 = vmul.f32 1.0, %v1707
    %v1709 = vmul.f32 %v1708, 2.0
    %v1710 = vsub.f32 %v1709, 1.0
    %v1711 = vmul.f32 %v1693, %v1557
    %v1712 = vmul.f32 %v1693, %v1710
    %1714 = vrot.lane.b32.xlu0 %v1712, 64
    %v1715 = vpop.permute.xlu0 %1714
    %v1717 = vadd.f32 %v1711, %v1715
    %v1718 = vtanh.pop %v1717
    %v1719 = vmul.f32 %v1708, %v1718
    %1721 = vrot.lane.b32.xlu0 %v1719, 64
    %v1722 = vpop.permute.xlu0 %1721
    %v1723 = vsel %vm111, %v1722, 0
    %1725 = vmatpush.msra.mxu0 0.0
    %1726 = vmatpush.msra.mxu0 0.0
    %1727 = vmatpush.msra.mxu0 0.0
    %1728 = vmatpush.msra.mxu0 0.0
    %1729 = vmatpush.msra.mxu0 0.0
    %1730 = vmatpush.msra.mxu0 0.0
    %1731 = vmatpush.msra.mxu0 0.0
    %1732 = vmatpush.msra.mxu0 0.0
    %1733 = vmatpush.msra.mxu0 %v56
    %1734 = vmatpush.msra.mxu0 %v53
    %1735 = vmatpush.msra.mxu0 %v50
    %1736 = vmatpush.msra.mxu0 %v47
    %1737 = vmatpush.msra.mxu0 %v44
    %1738 = vmatpush.msra.mxu0 %v41
    %1739 = vmatpush.msra.mxu0 %v38
    %1740 = vmatpush.msra.mxu0 %v35
    %1741 = vmatmul.f32.gmra.mxu0 %v1723
    %v1742 = vpop.f32.mrf.mxu0
    %v1743 = vadd.f32 %v105, %v1742
    %1744 = vdwg.mxu0
    %1745 = vmatpush.msra.mxu0 0.0
    %1746 = vmatpush.msra.mxu0 0.0
    %1747 = vmatpush.msra.mxu0 0.0
    %1748 = vmatpush.msra.mxu0 0.0
    %1749 = vmatpush.msra.mxu0 0.0
    %1750 = vmatpush.msra.mxu0 0.0
    %1751 = vmatpush.msra.mxu0 0.0
    %1752 = vmatpush.msra.mxu0 0.0
    %1753 = vmatpush.msra.mxu0 %v57
    %1754 = vmatpush.msra.mxu0 %v54
    %1755 = vmatpush.msra.mxu0 %v51
    %1756 = vmatpush.msra.mxu0 %v48
    %1757 = vmatpush.msra.mxu0 %v45
    %1758 = vmatpush.msra.mxu0 %v42
    %1759 = vmatpush.msra.mxu0 %v39
    %1760 = vmatpush.msra.mxu0 %v36
    %1761 = vmatmul.f32.gmra.mxu0 %v1723
    %v1762 = vpop.f32.mrf.mxu0
    %v1763 = vadd.f32 %v106, %v1762
    %1764 = vdwg.mxu0
    %1765 = vmatpush.msra.mxu0 0.0
    %1766 = vmatpush.msra.mxu0 0.0
    %1767 = vmatpush.msra.mxu0 0.0
    %1768 = vmatpush.msra.mxu0 0.0
    %1769 = vmatpush.msra.mxu0 0.0
    %1770 = vmatpush.msra.mxu0 0.0
    %1771 = vmatpush.msra.mxu0 0.0
    %1772 = vmatpush.msra.mxu0 0.0
    %1773 = vmatpush.msra.mxu0 %v58
    %1774 = vmatpush.msra.mxu0 %v55
    %1775 = vmatpush.msra.mxu0 %v52
    %1776 = vmatpush.msra.mxu0 %v49
    %1777 = vmatpush.msra.mxu0 %v46
    %1778 = vmatpush.msra.mxu0 %v43
    %1779 = vmatpush.msra.mxu0 %v40
    %1780 = vmatpush.msra.mxu0 %v37
    %1781 = vmatmul.f32.gmra.mxu0 %v1723
    %v1782 = vpop.f32.mrf.mxu0
    %v1783 = vadd.f32 %v107, %v1782
    %1784 = vdwg.mxu0
    %vm1785 = vcmp.gt.f32.partialorder %v1783, 0.0
    %v1786 = vsel %vm1785, 1, 0
    %v1787 = vcvt.s32.f32 %v1786
    %1789 = vset.pattern.permute.xlu0 2
    %1790 = vperm.xlu0 %1789, %v1787
    %v1791 = vpop.permute.xlu0 %1790
    %v1793 = vmul.f32 %v1787, %v1791
    %v1794 = vld [vmem:[%s348] ss:$8 sm:$0x3]
    %v1795 = vld [vmem:[%s350] ss:$8 sm:$0x3]
    %v1796 = vld [vmem:[%s352] ss:$8 sm:$0x3]
    %1797 = vset.pattern.permute.xlu0 3
    %1798 = vperm.xlu0 %1797, %v1786
    %v1799 = vpop.permute.xlu0 %1798
    %vm1800 = vcmp.eq.s32.totalorder %v1799, 1
    %v1802 = vperm.slane %v1796, 0
    %v1803 = vperm.slane %v1796, 1
    %v1807 = vperm.slane %v1795, 0
    %v1808 = vperm.slane %v1795, 1
    %v1811 = vsel %vm1800, %v1802, %v1807
    %v1812 = vsel %vm1800, %v1803, %v1808
    %1813 = vset.pattern.permute.xlu0 2
    %1814 = vperm.xlu0 %1813, %v1786
    %v1815 = vpop.permute.xlu0 %1814
    %vm1816 = vcmp.eq.s32.totalorder %v1815, 1
    %v1818 = vperm.slane %v1794, 0
    %v1819 = vperm.slane %v1794, 1
    %v1822 = vsel %vm1816, %v1811, %v1818
    %v1823 = vsel %vm1816, %v1812, %v1819
    %1825 = vrot.lane.b32.xlu0 %v1793, 127
    %v1826 = vpop.permute.xlu0 %1825
    %1828 = vst.msk [vmem:[%s2 + $0x9] sm:$0x1] %vm221, %v1826
    %v1829 = vadd.f32 %v1822, %v1743
    %v1830 = vadd.f32 %v1823, %v1763
    %v1831 = vxor.u32 %v1829, 2147483648
    %v1832 = vxor.u32 %v1830, 2147483648
    %v1833 = vmul.f32 %v1831, 1.442695
    %v1834 = vpow.pop %v1833
    %v1835 = vmul.f32 %v1832, 1.442695
    %v1836 = vpow.pop %v1835
    %v1837 = vadd.f32 %v1834, 1.0
    %v1838 = vadd.f32 %v1836, 1.0
    %v1839 = vrcp.pop %v1837
    %v1840 = vmul.f32 %v1837, %v1839
    %v1841 = vsub.f32 1.0, %v1840
    %v1842 = vmul.f32 %v1839, %v1841
    %v1843 = vadd.f32 %v1839, %v1842
    %vm1844 = vweird.f32 %v1837
    %vm1845 = vweird.f32 %v1839
    %vm1846 = vmor %vm1844, %vm1845
    %v1847 = vsel %vm1846, %v1839, %v1843
    %v1848 = vand.u32 2147483647, %v1837
    %vm1849 = vcmp.eq.f32.partialorder %v1848, 8.507059e+37
    %v1850 = vand.u32 %v1837, 2147483648
    %v1851 = vor.u32 1.1754944e-38, %v1850
    %v1852 = vsel %vm1849, %v1851, %v1847
    %v1853 = vmul.f32 1.0, %v1852
    %v1854 = vrcp.pop %v1838
    %v1855 = vmul.f32 %v1838, %v1854
    %v1856 = vsub.f32 1.0, %v1855
    %v1857 = vmul.f32 %v1854, %v1856
    %v1858 = vadd.f32 %v1854, %v1857
    %vm1859 = vweird.f32 %v1838
    %vm1860 = vweird.f32 %v1854
    %vm1861 = vmor %vm1859, %vm1860
    %v1862 = vsel %vm1861, %v1854, %v1858
    %v1863 = vand.u32 2147483647, %v1838
    %vm1864 = vcmp.eq.f32.partialorder %v1863, 8.507059e+37
    %v1865 = vand.u32 %v1838, 2147483648
    %v1866 = vor.u32 1.1754944e-38, %v1865
    %v1867 = vsel %vm1864, %v1866, %v1862
    %v1868 = vmul.f32 1.0, %v1867
    %v1869 = vmul.f32 %v1868, 2.0
    %v1870 = vsub.f32 %v1869, 1.0
    %v1871 = vmul.f32 %v1853, %v1717
    %v1872 = vmul.f32 %v1853, %v1870
    %1874 = vrot.lane.b32.xlu0 %v1872, 64
    %v1875 = vpop.permute.xlu0 %1874
    %v1877 = vadd.f32 %v1871, %v1875
    %v1878 = vtanh.pop %v1877
    %v1879 = vmul.f32 %v1868, %v1878
    %1881 = vrot.lane.b32.xlu0 %v1879, 64
    %v1882 = vpop.permute.xlu0 %1881
    %v1883 = vsel %vm111, %v1882, 0
    %1885 = vmatpush.msra.mxu0 0.0
    %1886 = vmatpush.msra.mxu0 0.0
    %1887 = vmatpush.msra.mxu0 0.0
    %1888 = vmatpush.msra.mxu0 0.0
    %1889 = vmatpush.msra.mxu0 0.0
    %1890 = vmatpush.msra.mxu0 0.0
    %1891 = vmatpush.msra.mxu0 0.0
    %1892 = vmatpush.msra.mxu0 0.0
    %1893 = vmatpush.msra.mxu0 %v56
    %1894 = vmatpush.msra.mxu0 %v53
    %1895 = vmatpush.msra.mxu0 %v50
    %1896 = vmatpush.msra.mxu0 %v47
    %1897 = vmatpush.msra.mxu0 %v44
    %1898 = vmatpush.msra.mxu0 %v41
    %1899 = vmatpush.msra.mxu0 %v38
    %1900 = vmatpush.msra.mxu0 %v35
    %1901 = vmatmul.f32.gmra.mxu0 %v1883
    %v1902 = vpop.f32.mrf.mxu0
    %v1903 = vadd.f32 %v105, %v1902
    %1904 = vdwg.mxu0
    %1905 = vmatpush.msra.mxu0 0.0
    %1906 = vmatpush.msra.mxu0 0.0
    %1907 = vmatpush.msra.mxu0 0.0
    %1908 = vmatpush.msra.mxu0 0.0
    %1909 = vmatpush.msra.mxu0 0.0
    %1910 = vmatpush.msra.mxu0 0.0
    %1911 = vmatpush.msra.mxu0 0.0
    %1912 = vmatpush.msra.mxu0 0.0
    %1913 = vmatpush.msra.mxu0 %v57
    %1914 = vmatpush.msra.mxu0 %v54
    %1915 = vmatpush.msra.mxu0 %v51
    %1916 = vmatpush.msra.mxu0 %v48
    %1917 = vmatpush.msra.mxu0 %v45
    %1918 = vmatpush.msra.mxu0 %v42
    %1919 = vmatpush.msra.mxu0 %v39
    %1920 = vmatpush.msra.mxu0 %v36
    %1921 = vmatmul.f32.gmra.mxu0 %v1883
    %v1922 = vpop.f32.mrf.mxu0
    %v1923 = vadd.f32 %v106, %v1922
    %1924 = vdwg.mxu0
    %1925 = vmatpush.msra.mxu0 0.0
    %1926 = vmatpush.msra.mxu0 0.0
    %1927 = vmatpush.msra.mxu0 0.0
    %1928 = vmatpush.msra.mxu0 0.0
    %1929 = vmatpush.msra.mxu0 0.0
    %1930 = vmatpush.msra.mxu0 0.0
    %1931 = vmatpush.msra.mxu0 0.0
    %1932 = vmatpush.msra.mxu0 0.0
    %1933 = vmatpush.msra.mxu0 %v58
    %1934 = vmatpush.msra.mxu0 %v55
    %1935 = vmatpush.msra.mxu0 %v52
    %1936 = vmatpush.msra.mxu0 %v49
    %1937 = vmatpush.msra.mxu0 %v46
    %1938 = vmatpush.msra.mxu0 %v43
    %1939 = vmatpush.msra.mxu0 %v40
    %1940 = vmatpush.msra.mxu0 %v37
    %1941 = vmatmul.f32.gmra.mxu0 %v1883
    %v1942 = vpop.f32.mrf.mxu0
    %v1943 = vadd.f32 %v107, %v1942
    %1944 = vdwg.mxu0
    %vm1945 = vcmp.gt.f32.partialorder %v1943, 0.0
    %v1946 = vsel %vm1945, 1, 0
    %v1947 = vcvt.s32.f32 %v1946
    %1949 = vset.pattern.permute.xlu0 4
    %1950 = vperm.xlu0 %1949, %v1947
    %v1951 = vpop.permute.xlu0 %1950
    %v1953 = vmul.f32 %v1947, %v1951
    %v1954 = vld [vmem:[%s511] ss:$8 sm:$0x3]
    %v1955 = vld [vmem:[%s513] ss:$8 sm:$0x3]
    %v1956 = vld [vmem:[%s515] ss:$8 sm:$0x3]
    %1957 = vset.pattern.permute.xlu0 5
    %1958 = vperm.xlu0 %1957, %v1946
    %v1959 = vpop.permute.xlu0 %1958
    %vm1960 = vcmp.eq.s32.totalorder %v1959, 1
    %v1962 = vperm.slane %v1956, 0
    %v1963 = vperm.slane %v1956, 1
    %v1967 = vperm.slane %v1955, 0
    %v1968 = vperm.slane %v1955, 1
    %v1971 = vsel %vm1960, %v1962, %v1967
    %v1972 = vsel %vm1960, %v1963, %v1968
    %1973 = vset.pattern.permute.xlu0 4
    %1974 = vperm.xlu0 %1973, %v1946
    %v1975 = vpop.permute.xlu0 %1974
    %vm1976 = vcmp.eq.s32.totalorder %v1975, 1
    %v1978 = vperm.slane %v1954, 0
    %v1979 = vperm.slane %v1954, 1
    %v1982 = vsel %vm1976, %v1971, %v1978
    %v1983 = vsel %vm1976, %v1972, %v1979
    %1985 = vrot.lane.b32.xlu0 %v1953, 125
    %v1986 = vpop.permute.xlu0 %1985
    %1988 = vst.msk [vmem:[%s2 + $0x1d] sm:$0x1] %vm221, %v1986
    %v1989 = vadd.f32 %v1982, %v1903
    %v1990 = vadd.f32 %v1983, %v1923
    %v1991 = vxor.u32 %v1989, 2147483648
    %v1992 = vxor.u32 %v1990, 2147483648
    %v1993 = vmul.f32 %v1991, 1.442695
    %v1994 = vpow.pop %v1993
    %v1995 = vmul.f32 %v1992, 1.442695
    %v1996 = vpow.pop %v1995
    %v1997 = vadd.f32 %v1994, 1.0
    %v1998 = vadd.f32 %v1996, 1.0
    %v1999 = vrcp.pop %v1997
    %v2000 = vmul.f32 %v1997, %v1999
    %v2001 = vsub.f32 1.0, %v2000
    %v2002 = vmul.f32 %v1999, %v2001
    %v2003 = vadd.f32 %v1999, %v2002
    %vm2004 = vweird.f32 %v1997
    %vm2005 = vweird.f32 %v1999
    %vm2006 = vmor %vm2004, %vm2005
    %v2007 = vsel %vm2006, %v1999, %v2003
    %v2008 = vand.u32 2147483647, %v1997
    %vm2009 = vcmp.eq.f32.partialorder %v2008, 8.507059e+37
    %v2010 = vand.u32 %v1997, 2147483648
    %v2011 = vor.u32 1.1754944e-38, %v2010
    %v2012 = vsel %vm2009, %v2011, %v2007
    %v2013 = vmul.f32 1.0, %v2012
    %v2014 = vrcp.pop %v1998
    %v2015 = vmul.f32 %v1998, %v2014
    %v2016 = vsub.f32 1.0, %v2015
    %v2017 = vmul.f32 %v2014, %v2016
    %v2018 = vadd.f32 %v2014, %v2017
    %vm2019 = vweird.f32 %v1998
    %vm2020 = vweird.f32 %v2014
    %vm2021 = vmor %vm2019, %vm2020
    %v2022 = vsel %vm2021, %v2014, %v2018
    %v2023 = vand.u32 2147483647, %v1998
    %vm2024 = vcmp.eq.f32.partialorder %v2023, 8.507059e+37
    %v2025 = vand.u32 %v1998, 2147483648
    %v2026 = vor.u32 1.1754944e-38, %v2025
    %v2027 = vsel %vm2024, %v2026, %v2022
    %v2028 = vmul.f32 1.0, %v2027
    %v2029 = vmul.f32 %v2028, 2.0
    %v2030 = vsub.f32 %v2029, 1.0
    %v2031 = vmul.f32 %v2013, %v1877
    %v2032 = vmul.f32 %v2013, %v2030
    %2034 = vrot.lane.b32.xlu0 %v2032, 64
    %v2035 = vpop.permute.xlu0 %2034
    %v2037 = vadd.f32 %v2031, %v2035
    %v2038 = vtanh.pop %v2037
    %v2039 = vmul.f32 %v2028, %v2038
    %2041 = vrot.lane.b32.xlu0 %v2039, 64
    %v2042 = vpop.permute.xlu0 %2041
    %v2043 = vsel %vm111, %v2042, 0
    %2045 = vmatpush.msra.mxu0 0.0
    %2046 = vmatpush.msra.mxu0 0.0
    %2047 = vmatpush.msra.mxu0 0.0
    %2048 = vmatpush.msra.mxu0 0.0
    %2049 = vmatpush.msra.mxu0 0.0
    %2050 = vmatpush.msra.mxu0 0.0
    %2051 = vmatpush.msra.mxu0 0.0
    %2052 = vmatpush.msra.mxu0 0.0
    %2053 = vmatpush.msra.mxu0 %v56
    %2054 = vmatpush.msra.mxu0 %v53
    %2055 = vmatpush.msra.mxu0 %v50
    %2056 = vmatpush.msra.mxu0 %v47
    %2057 = vmatpush.msra.mxu0 %v44
    %2058 = vmatpush.msra.mxu0 %v41
    %2059 = vmatpush.msra.mxu0 %v38
    %2060 = vmatpush.msra.mxu0 %v35
    %2061 = vmatmul.f32.gmra.mxu0 %v2043
    %v2062 = vpop.f32.mrf.mxu0
    %v2063 = vadd.f32 %v105, %v2062
    %2064 = vdwg.mxu0
    %2065 = vmatpush.msra.mxu0 0.0
    %2066 = vmatpush.msra.mxu0 0.0
    %2067 = vmatpush.msra.mxu0 0.0
    %2068 = vmatpush.msra.mxu0 0.0
    %2069 = vmatpush.msra.mxu0 0.0
    %2070 = vmatpush.msra.mxu0 0.0
    %2071 = vmatpush.msra.mxu0 0.0
    %2072 = vmatpush.msra.mxu0 0.0
    %2073 = vmatpush.msra.mxu0 %v57
    %2074 = vmatpush.msra.mxu0 %v54
    %2075 = vmatpush.msra.mxu0 %v51
    %2076 = vmatpush.msra.mxu0 %v48
    %2077 = vmatpush.msra.mxu0 %v45
    %2078 = vmatpush.msra.mxu0 %v42
    %2079 = vmatpush.msra.mxu0 %v39
    %2080 = vmatpush.msra.mxu0 %v36
    %2081 = vmatmul.f32.gmra.mxu0 %v2043
    %v2082 = vpop.f32.mrf.mxu0
    %v2083 = vadd.f32 %v106, %v2082
    %2084 = vdwg.mxu0
    %2085 = vmatpush.msra.mxu0 0.0
    %2086 = vmatpush.msra.mxu0 0.0
    %2087 = vmatpush.msra.mxu0 0.0
    %2088 = vmatpush.msra.mxu0 0.0
    %2089 = vmatpush.msra.mxu0 0.0
    %2090 = vmatpush.msra.mxu0 0.0
    %2091 = vmatpush.msra.mxu0 0.0
    %2092 = vmatpush.msra.mxu0 0.0
    %2093 = vmatpush.msra.mxu0 %v58
    %2094 = vmatpush.msra.mxu0 %v55
    %2095 = vmatpush.msra.mxu0 %v52
    %2096 = vmatpush.msra.mxu0 %v49
    %2097 = vmatpush.msra.mxu0 %v46
    %2098 = vmatpush.msra.mxu0 %v43
    %2099 = vmatpush.msra.mxu0 %v40
    %2100 = vmatpush.msra.mxu0 %v37
    %2101 = vmatmul.f32.gmra.mxu0 %v2043
    %v2102 = vpop.f32.mrf.mxu0
    %v2103 = vadd.f32 %v107, %v2102
    %2104 = vdwg.mxu0
    %vm2105 = vcmp.gt.f32.partialorder %v2103, 0.0
    %v2106 = vsel %vm2105, 1, 0
    %v2107 = vcvt.s32.f32 %v2106
    %2109 = vset.pattern.permute.xlu0 2
    %2110 = vperm.xlu0 %2109, %v2107
    %v2111 = vpop.permute.xlu0 %2110
    %v2113 = vmul.f32 %v2107, %v2111
    %v2114 = vld [vmem:[%s348] ss:$8 sm:$0x3]
    %v2115 = vld [vmem:[%s350] ss:$8 sm:$0x3]
    %v2116 = vld [vmem:[%s352] ss:$8 sm:$0x3]
    %2117 = vset.pattern.permute.xlu0 3
    %2118 = vperm.xlu0 %2117, %v2106
    %v2119 = vpop.permute.xlu0 %2118
    %vm2120 = vcmp.eq.s32.totalorder %v2119, 1
    %v2122 = vperm.slane %v2116, 0
    %v2123 = vperm.slane %v2116, 1
    %v2127 = vperm.slane %v2115, 0
    %v2128 = vperm.slane %v2115, 1
    %v2131 = vsel %vm2120, %v2122, %v2127
    %v2132 = vsel %vm2120, %v2123, %v2128
    %2133 = vset.pattern.permute.xlu0 2
    %2134 = vperm.xlu0 %2133, %v2106
    %v2135 = vpop.permute.xlu0 %2134
    %vm2136 = vcmp.eq.s32.totalorder %v2135, 1
    %v2138 = vperm.slane %v2114, 0
    %v2139 = vperm.slane %v2114, 1
    %v2142 = vsel %vm2136, %v2131, %v2138
    %v2143 = vsel %vm2136, %v2132, %v2139
    %2145 = vrot.lane.b32.xlu0 %v2113, 127
    %v2146 = vpop.permute.xlu0 %2145
    %2148 = vst.msk [vmem:[%s2 + $0xa] sm:$0x1] %vm221, %v2146
    %v2149 = vadd.f32 %v2142, %v2063
    %v2150 = vadd.f32 %v2143, %v2083
    %v2151 = vxor.u32 %v2149, 2147483648
    %v2152 = vxor.u32 %v2150, 2147483648
    %v2153 = vmul.f32 %v2151, 1.442695
    %v2154 = vpow.pop %v2153
    %v2155 = vmul.f32 %v2152, 1.442695
    %v2156 = vpow.pop %v2155
    %v2157 = vadd.f32 %v2154, 1.0
    %v2158 = vadd.f32 %v2156, 1.0
    %v2159 = vrcp.pop %v2157
    %v2160 = vmul.f32 %v2157, %v2159
    %v2161 = vsub.f32 1.0, %v2160
    %v2162 = vmul.f32 %v2159, %v2161
    %v2163 = vadd.f32 %v2159, %v2162
    %vm2164 = vweird.f32 %v2157
    %vm2165 = vweird.f32 %v2159
    %vm2166 = vmor %vm2164, %vm2165
    %v2167 = vsel %vm2166, %v2159, %v2163
    %v2168 = vand.u32 2147483647, %v2157
    %vm2169 = vcmp.eq.f32.partialorder %v2168, 8.507059e+37
    %v2170 = vand.u32 %v2157, 2147483648
    %v2171 = vor.u32 1.1754944e-38, %v2170
    %v2172 = vsel %vm2169, %v2171, %v2167
    %v2173 = vmul.f32 1.0, %v2172
    %v2174 = vrcp.pop %v2158
    %v2175 = vmul.f32 %v2158, %v2174
    %v2176 = vsub.f32 1.0, %v2175
    %v2177 = vmul.f32 %v2174, %v2176
    %v2178 = vadd.f32 %v2174, %v2177
    %vm2179 = vweird.f32 %v2158
    %vm2180 = vweird.f32 %v2174
    %vm2181 = vmor %vm2179, %vm2180
    %v2182 = vsel %vm2181, %v2174, %v2178
    %v2183 = vand.u32 2147483647, %v2158
    %vm2184 = vcmp.eq.f32.partialorder %v2183, 8.507059e+37
    %v2185 = vand.u32 %v2158, 2147483648
    %v2186 = vor.u32 1.1754944e-38, %v2185
    %v2187 = vsel %vm2184, %v2186, %v2182
    %v2188 = vmul.f32 1.0, %v2187
    %v2189 = vmul.f32 %v2188, 2.0
    %v2190 = vsub.f32 %v2189, 1.0
    %v2191 = vmul.f32 %v2173, %v2037
    %v2192 = vmul.f32 %v2173, %v2190
    %2194 = vrot.lane.b32.xlu0 %v2192, 64
    %v2195 = vpop.permute.xlu0 %2194
    %v2197 = vadd.f32 %v2191, %v2195
    %v2198 = vtanh.pop %v2197
    %v2199 = vmul.f32 %v2188, %v2198
    %2201 = vrot.lane.b32.xlu0 %v2199, 64
    %v2202 = vpop.permute.xlu0 %2201
    %v2203 = vsel %vm111, %v2202, 0
    %2205 = vmatpush.msra.mxu0 0.0
    %2206 = vmatpush.msra.mxu0 0.0
    %2207 = vmatpush.msra.mxu0 0.0
    %2208 = vmatpush.msra.mxu0 0.0
    %2209 = vmatpush.msra.mxu0 0.0
    %2210 = vmatpush.msra.mxu0 0.0
    %2211 = vmatpush.msra.mxu0 0.0
    %2212 = vmatpush.msra.mxu0 0.0
    %2213 = vmatpush.msra.mxu0 %v56
    %2214 = vmatpush.msra.mxu0 %v53
    %2215 = vmatpush.msra.mxu0 %v50
    %2216 = vmatpush.msra.mxu0 %v47
    %2217 = vmatpush.msra.mxu0 %v44
    %2218 = vmatpush.msra.mxu0 %v41
    %2219 = vmatpush.msra.mxu0 %v38
    %2220 = vmatpush.msra.mxu0 %v35
    %2221 = vmatmul.f32.gmra.mxu0 %v2203
    %v2222 = vpop.f32.mrf.mxu0
    %v2223 = vadd.f32 %v105, %v2222
    %2224 = vdwg.mxu0
    %2225 = vmatpush.msra.mxu0 0.0
    %2226 = vmatpush.msra.mxu0 0.0
    %2227 = vmatpush.msra.mxu0 0.0
    %2228 = vmatpush.msra.mxu0 0.0
    %2229 = vmatpush.msra.mxu0 0.0
    %2230 = vmatpush.msra.mxu0 0.0
    %2231 = vmatpush.msra.mxu0 0.0
    %2232 = vmatpush.msra.mxu0 0.0
    %2233 = vmatpush.msra.mxu0 %v57
    %2234 = vmatpush.msra.mxu0 %v54
    %2235 = vmatpush.msra.mxu0 %v51
    %2236 = vmatpush.msra.mxu0 %v48
    %2237 = vmatpush.msra.mxu0 %v45
    %2238 = vmatpush.msra.mxu0 %v42
    %2239 = vmatpush.msra.mxu0 %v39
    %2240 = vmatpush.msra.mxu0 %v36
    %2241 = vmatmul.f32.gmra.mxu0 %v2203
    %v2242 = vpop.f32.mrf.mxu0
    %v2243 = vadd.f32 %v106, %v2242
    %2244 = vdwg.mxu0
    %2245 = vmatpush.msra.mxu0 0.0
    %2246 = vmatpush.msra.mxu0 0.0
    %2247 = vmatpush.msra.mxu0 0.0
    %2248 = vmatpush.msra.mxu0 0.0
    %2249 = vmatpush.msra.mxu0 0.0
    %2250 = vmatpush.msra.mxu0 0.0
    %2251 = vmatpush.msra.mxu0 0.0
    %2252 = vmatpush.msra.mxu0 0.0
    %2253 = vmatpush.msra.mxu0 %v58
    %2254 = vmatpush.msra.mxu0 %v55
    %2255 = vmatpush.msra.mxu0 %v52
    %2256 = vmatpush.msra.mxu0 %v49
    %2257 = vmatpush.msra.mxu0 %v46
    %2258 = vmatpush.msra.mxu0 %v43
    %2259 = vmatpush.msra.mxu0 %v40
    %2260 = vmatpush.msra.mxu0 %v37
    %2261 = vmatmul.f32.gmra.mxu0 %v2203
    %v2262 = vpop.f32.mrf.mxu0
    %v2263 = vadd.f32 %v107, %v2262
    %2264 = vdwg.mxu0
    %vm2265 = vcmp.gt.f32.partialorder %v2263, 0.0
    %v2266 = vsel %vm2265, 1, 0
    %v2267 = vcvt.s32.f32 %v2266
    %2269 = vset.pattern.permute.xlu0 4
    %2270 = vperm.xlu0 %2269, %v2267
    %v2271 = vpop.permute.xlu0 %2270
    %v2273 = vmul.f32 %v2267, %v2271
    %v2274 = vld [vmem:[%s511] ss:$8 sm:$0x3]
    %v2275 = vld [vmem:[%s513] ss:$8 sm:$0x3]
    %v2276 = vld [vmem:[%s515] ss:$8 sm:$0x3]
    %2277 = vset.pattern.permute.xlu0 5
    %2278 = vperm.xlu0 %2277, %v2266
    %v2279 = vpop.permute.xlu0 %2278
    %vm2280 = vcmp.eq.s32.totalorder %v2279, 1
    %v2282 = vperm.slane %v2276, 0
    %v2283 = vperm.slane %v2276, 1
    %v2287 = vperm.slane %v2275, 0
    %v2288 = vperm.slane %v2275, 1
    %v2291 = vsel %vm2280, %v2282, %v2287
    %v2292 = vsel %vm2280, %v2283, %v2288
    %2293 = vset.pattern.permute.xlu0 4
    %2294 = vperm.xlu0 %2293, %v2266
    %v2295 = vpop.permute.xlu0 %2294
    %vm2296 = vcmp.eq.s32.totalorder %v2295, 1
    %v2298 = vperm.slane %v2274, 0
    %v2299 = vperm.slane %v2274, 1
    %v2302 = vsel %vm2296, %v2291, %v2298
    %v2303 = vsel %vm2296, %v2292, %v2299
    %2305 = vrot.lane.b32.xlu0 %v2273, 125
    %v2306 = vpop.permute.xlu0 %2305
    %2308 = vst.msk [vmem:[%s2 + $0x1e] sm:$0x1] %vm221, %v2306
    %v2309 = vadd.f32 %v2302, %v2223
    %v2310 = vadd.f32 %v2303, %v2243
    %v2311 = vxor.u32 %v2309, 2147483648
    %v2312 = vxor.u32 %v2310, 2147483648
    %v2313 = vmul.f32 %v2311, 1.442695
    %v2314 = vpow.pop %v2313
    %v2315 = vmul.f32 %v2312, 1.442695
    %v2316 = vpow.pop %v2315
    %v2317 = vadd.f32 %v2314, 1.0
    %v2318 = vadd.f32 %v2316, 1.0
    %v2319 = vrcp.pop %v2317
    %v2320 = vmul.f32 %v2317, %v2319
    %v2321 = vsub.f32 1.0, %v2320
    %v2322 = vmul.f32 %v2319, %v2321
    %v2323 = vadd.f32 %v2319, %v2322
    %vm2324 = vweird.f32 %v2317
    %vm2325 = vweird.f32 %v2319
    %vm2326 = vmor %vm2324, %vm2325
    %v2327 = vsel %vm2326, %v2319, %v2323
    %v2328 = vand.u32 2147483647, %v2317
    %vm2329 = vcmp.eq.f32.partialorder %v2328, 8.507059e+37
    %v2330 = vand.u32 %v2317, 2147483648
    %v2331 = vor.u32 1.1754944e-38, %v2330
    %v2332 = vsel %vm2329, %v2331, %v2327
    %v2333 = vmul.f32 1.0, %v2332
    %v2334 = vrcp.pop %v2318
    %v2335 = vmul.f32 %v2318, %v2334
    %v2336 = vsub.f32 1.0, %v2335
    %v2337 = vmul.f32 %v2334, %v2336
    %v2338 = vadd.f32 %v2334, %v2337
    %vm2339 = vweird.f32 %v2318
    %vm2340 = vweird.f32 %v2334
    %vm2341 = vmor %vm2339, %vm2340
    %v2342 = vsel %vm2341, %v2334, %v2338
    %v2343 = vand.u32 2147483647, %v2318
    %vm2344 = vcmp.eq.f32.partialorder %v2343, 8.507059e+37
    %v2345 = vand.u32 %v2318, 2147483648
    %v2346 = vor.u32 1.1754944e-38, %v2345
    %v2347 = vsel %vm2344, %v2346, %v2342
    %v2348 = vmul.f32 1.0, %v2347
    %v2349 = vmul.f32 %v2348, 2.0
    %v2350 = vsub.f32 %v2349, 1.0
    %v2351 = vmul.f32 %v2333, %v2197
    %v2352 = vmul.f32 %v2333, %v2350
    %2354 = vrot.lane.b32.xlu0 %v2352, 64
    %v2355 = vpop.permute.xlu0 %2354
    %v2357 = vadd.f32 %v2351, %v2355
    %v2358 = vtanh.pop %v2357
    %v2359 = vmul.f32 %v2348, %v2358
    %2361 = vrot.lane.b32.xlu0 %v2359, 64
    %v2362 = vpop.permute.xlu0 %2361
    %v2363 = vsel %vm111, %v2362, 0
    %2365 = vmatpush.msra.mxu0 0.0
    %2366 = vmatpush.msra.mxu0 0.0
    %2367 = vmatpush.msra.mxu0 0.0
    %2368 = vmatpush.msra.mxu0 0.0
    %2369 = vmatpush.msra.mxu0 0.0
    %2370 = vmatpush.msra.mxu0 0.0
    %2371 = vmatpush.msra.mxu0 0.0
    %2372 = vmatpush.msra.mxu0 0.0
    %2373 = vmatpush.msra.mxu0 %v56
    %2374 = vmatpush.msra.mxu0 %v53
    %2375 = vmatpush.msra.mxu0 %v50
    %2376 = vmatpush.msra.mxu0 %v47
    %2377 = vmatpush.msra.mxu0 %v44
    %2378 = vmatpush.msra.mxu0 %v41
    %2379 = vmatpush.msra.mxu0 %v38
    %2380 = vmatpush.msra.mxu0 %v35
    %2381 = vmatmul.f32.gmra.mxu0 %v2363
    %v2382 = vpop.f32.mrf.mxu0
    %v2383 = vadd.f32 %v105, %v2382
    %2384 = vdwg.mxu0
    %2385 = vmatpush.msra.mxu0 0.0
    %2386 = vmatpush.msra.mxu0 0.0
    %2387 = vmatpush.msra.mxu0 0.0
    %2388 = vmatpush.msra.mxu0 0.0
    %2389 = vmatpush.msra.mxu0 0.0
    %2390 = vmatpush.msra.mxu0 0.0
    %2391 = vmatpush.msra.mxu0 0.0
    %2392 = vmatpush.msra.mxu0 0.0
    %2393 = vmatpush.msra.mxu0 %v57
    %2394 = vmatpush.msra.mxu0 %v54
    %2395 = vmatpush.msra.mxu0 %v51
    %2396 = vmatpush.msra.mxu0 %v48
    %2397 = vmatpush.msra.mxu0 %v45
    %2398 = vmatpush.msra.mxu0 %v42
    %2399 = vmatpush.msra.mxu0 %v39
    %2400 = vmatpush.msra.mxu0 %v36
    %2401 = vmatmul.f32.gmra.mxu0 %v2363
    %v2402 = vpop.f32.mrf.mxu0
    %v2403 = vadd.f32 %v106, %v2402
    %2404 = vdwg.mxu0
    %2405 = vmatpush.msra.mxu0 0.0
    %2406 = vmatpush.msra.mxu0 0.0
    %2407 = vmatpush.msra.mxu0 0.0
    %2408 = vmatpush.msra.mxu0 0.0
    %2409 = vmatpush.msra.mxu0 0.0
    %2410 = vmatpush.msra.mxu0 0.0
    %2411 = vmatpush.msra.mxu0 0.0
    %2412 = vmatpush.msra.mxu0 0.0
    %2413 = vmatpush.msra.mxu0 %v58
    %2414 = vmatpush.msra.mxu0 %v55
    %2415 = vmatpush.msra.mxu0 %v52
    %2416 = vmatpush.msra.mxu0 %v49
    %2417 = vmatpush.msra.mxu0 %v46
    %2418 = vmatpush.msra.mxu0 %v43
    %2419 = vmatpush.msra.mxu0 %v40
    %2420 = vmatpush.msra.mxu0 %v37
    %2421 = vmatmul.f32.gmra.mxu0 %v2363
    %v2422 = vpop.f32.mrf.mxu0
    %v2423 = vadd.f32 %v107, %v2422
    %2424 = vdwg.mxu0
    %vm2425 = vcmp.gt.f32.partialorder %v2423, 0.0
    %v2426 = vsel %vm2425, 1, 0
    %v2427 = vcvt.s32.f32 %v2426
    %2429 = vset.pattern.permute.xlu0 2
    %2430 = vperm.xlu0 %2429, %v2427
    %v2431 = vpop.permute.xlu0 %2430
    %v2433 = vmul.f32 %v2427, %v2431
    %v2434 = vld [vmem:[%s348] ss:$8 sm:$0x3]
    %v2435 = vld [vmem:[%s350] ss:$8 sm:$0x3]
    %v2436 = vld [vmem:[%s352] ss:$8 sm:$0x3]
    %2437 = vset.pattern.permute.xlu0 3
    %2438 = vperm.xlu0 %2437, %v2426
    %v2439 = vpop.permute.xlu0 %2438
    %vm2440 = vcmp.eq.s32.totalorder %v2439, 1
    %v2442 = vperm.slane %v2436, 0
    %v2443 = vperm.slane %v2436, 1
    %v2447 = vperm.slane %v2435, 0
    %v2448 = vperm.slane %v2435, 1
    %v2451 = vsel %vm2440, %v2442, %v2447
    %v2452 = vsel %vm2440, %v2443, %v2448
    %2453 = vset.pattern.permute.xlu0 2
    %2454 = vperm.xlu0 %2453, %v2426
    %v2455 = vpop.permute.xlu0 %2454
    %vm2456 = vcmp.eq.s32.totalorder %v2455, 1
    %v2458 = vperm.slane %v2434, 0
    %v2459 = vperm.slane %v2434, 1
    %v2462 = vsel %vm2456, %v2451, %v2458
    %v2463 = vsel %vm2456, %v2452, %v2459
    %2465 = vrot.lane.b32.xlu0 %v2433, 127
    %v2466 = vpop.permute.xlu0 %2465
    %2468 = vst.msk [vmem:[%s2 + $0xb] sm:$0x1] %vm221, %v2466
    %v2469 = vadd.f32 %v2462, %v2383
    %v2470 = vadd.f32 %v2463, %v2403
    %v2471 = vxor.u32 %v2469, 2147483648
    %v2472 = vxor.u32 %v2470, 2147483648
    %v2473 = vmul.f32 %v2471, 1.442695
    %v2474 = vpow.pop %v2473
    %v2475 = vmul.f32 %v2472, 1.442695
    %v2476 = vpow.pop %v2475
    %v2477 = vadd.f32 %v2474, 1.0
    %v2478 = vadd.f32 %v2476, 1.0
    %v2479 = vrcp.pop %v2477
    %v2480 = vmul.f32 %v2477, %v2479
    %v2481 = vsub.f32 1.0, %v2480
    %v2482 = vmul.f32 %v2479, %v2481
    %v2483 = vadd.f32 %v2479, %v2482
    %vm2484 = vweird.f32 %v2477
    %vm2485 = vweird.f32 %v2479
    %vm2486 = vmor %vm2484, %vm2485
    %v2487 = vsel %vm2486, %v2479, %v2483
    %v2488 = vand.u32 2147483647, %v2477
    %vm2489 = vcmp.eq.f32.partialorder %v2488, 8.507059e+37
    %v2490 = vand.u32 %v2477, 2147483648
    %v2491 = vor.u32 1.1754944e-38, %v2490
    %v2492 = vsel %vm2489, %v2491, %v2487
    %v2493 = vmul.f32 1.0, %v2492
    %v2494 = vrcp.pop %v2478
    %v2495 = vmul.f32 %v2478, %v2494
    %v2496 = vsub.f32 1.0, %v2495
    %v2497 = vmul.f32 %v2494, %v2496
    %v2498 = vadd.f32 %v2494, %v2497
    %vm2499 = vweird.f32 %v2478
    %vm2500 = vweird.f32 %v2494
    %vm2501 = vmor %vm2499, %vm2500
    %v2502 = vsel %vm2501, %v2494, %v2498
    %v2503 = vand.u32 2147483647, %v2478
    %vm2504 = vcmp.eq.f32.partialorder %v2503, 8.507059e+37
    %v2505 = vand.u32 %v2478, 2147483648
    %v2506 = vor.u32 1.1754944e-38, %v2505
    %v2507 = vsel %vm2504, %v2506, %v2502
    %v2508 = vmul.f32 1.0, %v2507
    %v2509 = vmul.f32 %v2508, 2.0
    %v2510 = vsub.f32 %v2509, 1.0
    %v2511 = vmul.f32 %v2493, %v2357
    %v2512 = vmul.f32 %v2493, %v2510
    %2514 = vrot.lane.b32.xlu0 %v2512, 64
    %v2515 = vpop.permute.xlu0 %2514
    %v2517 = vadd.f32 %v2511, %v2515
    %v2518 = vtanh.pop %v2517
    %v2519 = vmul.f32 %v2508, %v2518
    %2521 = vrot.lane.b32.xlu0 %v2519, 64
    %v2522 = vpop.permute.xlu0 %2521
    %v2523 = vsel %vm111, %v2522, 0
    %2525 = vmatpush.msra.mxu0 0.0
    %2526 = vmatpush.msra.mxu0 0.0
    %2527 = vmatpush.msra.mxu0 0.0
    %2528 = vmatpush.msra.mxu0 0.0
    %2529 = vmatpush.msra.mxu0 0.0
    %2530 = vmatpush.msra.mxu0 0.0
    %2531 = vmatpush.msra.mxu0 0.0
    %2532 = vmatpush.msra.mxu0 0.0
    %2533 = vmatpush.msra.mxu0 %v56
    %2534 = vmatpush.msra.mxu0 %v53
    %2535 = vmatpush.msra.mxu0 %v50
    %2536 = vmatpush.msra.mxu0 %v47
    %2537 = vmatpush.msra.mxu0 %v44
    %2538 = vmatpush.msra.mxu0 %v41
    %2539 = vmatpush.msra.mxu0 %v38
    %2540 = vmatpush.msra.mxu0 %v35
    %2541 = vmatmul.f32.gmra.mxu0 %v2523
    %v2542 = vpop.f32.mrf.mxu0
    %v2543 = vadd.f32 %v105, %v2542
    %2544 = vdwg.mxu0
    %2545 = vmatpush.msra.mxu0 0.0
    %2546 = vmatpush.msra.mxu0 0.0
    %2547 = vmatpush.msra.mxu0 0.0
    %2548 = vmatpush.msra.mxu0 0.0
    %2549 = vmatpush.msra.mxu0 0.0
    %2550 = vmatpush.msra.mxu0 0.0
    %2551 = vmatpush.msra.mxu0 0.0
    %2552 = vmatpush.msra.mxu0 0.0
    %2553 = vmatpush.msra.mxu0 %v57
    %2554 = vmatpush.msra.mxu0 %v54
    %2555 = vmatpush.msra.mxu0 %v51
    %2556 = vmatpush.msra.mxu0 %v48
    %2557 = vmatpush.msra.mxu0 %v45
    %2558 = vmatpush.msra.mxu0 %v42
    %2559 = vmatpush.msra.mxu0 %v39
    %2560 = vmatpush.msra.mxu0 %v36
    %2561 = vmatmul.f32.gmra.mxu0 %v2523
    %v2562 = vpop.f32.mrf.mxu0
    %v2563 = vadd.f32 %v106, %v2562
    %2564 = vdwg.mxu0
    %2565 = vmatpush.msra.mxu0 0.0
    %2566 = vmatpush.msra.mxu0 0.0
    %2567 = vmatpush.msra.mxu0 0.0
    %2568 = vmatpush.msra.mxu0 0.0
    %2569 = vmatpush.msra.mxu0 0.0
    %2570 = vmatpush.msra.mxu0 0.0
    %2571 = vmatpush.msra.mxu0 0.0
    %2572 = vmatpush.msra.mxu0 0.0
    %2573 = vmatpush.msra.mxu0 %v58
    %2574 = vmatpush.msra.mxu0 %v55
    %2575 = vmatpush.msra.mxu0 %v52
    %2576 = vmatpush.msra.mxu0 %v49
    %2577 = vmatpush.msra.mxu0 %v46
    %2578 = vmatpush.msra.mxu0 %v43
    %2579 = vmatpush.msra.mxu0 %v40
    %2580 = vmatpush.msra.mxu0 %v37
    %2581 = vmatmul.f32.gmra.mxu0 %v2523
    %v2582 = vpop.f32.mrf.mxu0
    %v2583 = vadd.f32 %v107, %v2582
    %2584 = vdwg.mxu0
    %vm2585 = vcmp.gt.f32.partialorder %v2583, 0.0
    %v2586 = vsel %vm2585, 1, 0
    %v2587 = vcvt.s32.f32 %v2586
    %2589 = vset.pattern.permute.xlu0 4
    %2590 = vperm.xlu0 %2589, %v2587
    %v2591 = vpop.permute.xlu0 %2590
    %v2593 = vmul.f32 %v2587, %v2591
    %v2594 = vld [vmem:[%s511] ss:$8 sm:$0x3]
    %v2595 = vld [vmem:[%s513] ss:$8 sm:$0x3]
    %v2596 = vld [vmem:[%s515] ss:$8 sm:$0x3]
    %2597 = vset.pattern.permute.xlu0 5
    %2598 = vperm.xlu0 %2597, %v2586
    %v2599 = vpop.permute.xlu0 %2598
    %vm2600 = vcmp.eq.s32.totalorder %v2599, 1
    %v2602 = vperm.slane %v2596, 0
    %v2603 = vperm.slane %v2596, 1
    %v2607 = vperm.slane %v2595, 0
    %v2608 = vperm.slane %v2595, 1
    %v2611 = vsel %vm2600, %v2602, %v2607
    %v2612 = vsel %vm2600, %v2603, %v2608
    %2613 = vset.pattern.permute.xlu0 4
    %2614 = vperm.xlu0 %2613, %v2586
    %v2615 = vpop.permute.xlu0 %2614
    %vm2616 = vcmp.eq.s32.totalorder %v2615, 1
    %v2618 = vperm.slane %v2594, 0
    %v2619 = vperm.slane %v2594, 1
    %v2622 = vsel %vm2616, %v2611, %v2618
    %v2623 = vsel %vm2616, %v2612, %v2619
    %2625 = vrot.lane.b32.xlu0 %v2593, 125
    %v2626 = vpop.permute.xlu0 %2625
    %2628 = vst.msk [vmem:[%s2 + $0x1f] sm:$0x1] %vm221, %v2626
    %v2629 = vadd.f32 %v2622, %v2543
    %v2630 = vadd.f32 %v2623, %v2563
    %v2631 = vxor.u32 %v2629, 2147483648
    %v2632 = vxor.u32 %v2630, 2147483648
    %v2633 = vmul.f32 %v2631, 1.442695
    %v2634 = vpow.pop %v2633
    %v2635 = vmul.f32 %v2632, 1.442695
    %v2636 = vpow.pop %v2635
    %v2637 = vadd.f32 %v2634, 1.0
    %v2638 = vadd.f32 %v2636, 1.0
    %v2639 = vrcp.pop %v2637
    %v2640 = vmul.f32 %v2637, %v2639
    %v2641 = vsub.f32 1.0, %v2640
    %v2642 = vmul.f32 %v2639, %v2641
    %v2643 = vadd.f32 %v2639, %v2642
    %vm2644 = vweird.f32 %v2637
    %vm2645 = vweird.f32 %v2639
    %vm2646 = vmor %vm2644, %vm2645
    %v2647 = vsel %vm2646, %v2639, %v2643
    %v2648 = vand.u32 2147483647, %v2637
    %vm2649 = vcmp.eq.f32.partialorder %v2648, 8.507059e+37
    %v2650 = vand.u32 %v2637, 2147483648
    %v2651 = vor.u32 1.1754944e-38, %v2650
    %v2652 = vsel %vm2649, %v2651, %v2647
    %v2653 = vmul.f32 1.0, %v2652
    %v2654 = vrcp.pop %v2638
    %v2655 = vmul.f32 %v2638, %v2654
    %v2656 = vsub.f32 1.0, %v2655
    %v2657 = vmul.f32 %v2654, %v2656
    %v2658 = vadd.f32 %v2654, %v2657
    %vm2659 = vweird.f32 %v2638
    %vm2660 = vweird.f32 %v2654
    %vm2661 = vmor %vm2659, %vm2660
    %v2662 = vsel %vm2661, %v2654, %v2658
    %v2663 = vand.u32 2147483647, %v2638
    %vm2664 = vcmp.eq.f32.partialorder %v2663, 8.507059e+37
    %v2665 = vand.u32 %v2638, 2147483648
    %v2666 = vor.u32 1.1754944e-38, %v2665
    %v2667 = vsel %vm2664, %v2666, %v2662
    %v2668 = vmul.f32 1.0, %v2667
    %v2669 = vmul.f32 %v2668, 2.0
    %v2670 = vsub.f32 %v2669, 1.0
    %v2671 = vmul.f32 %v2653, %v2517
    %v2672 = vmul.f32 %v2653, %v2670
    %2674 = vrot.lane.b32.xlu0 %v2672, 64
    %v2675 = vpop.permute.xlu0 %2674
    %v2677 = vadd.f32 %v2671, %v2675
    %v2678 = vtanh.pop %v2677
    %v2679 = vmul.f32 %v2668, %v2678
    %2681 = vrot.lane.b32.xlu0 %v2679, 64
    %v2682 = vpop.permute.xlu0 %2681
    %v2683 = vsel %vm111, %v2682, 0
    %2685 = vmatpush.msra.mxu0 0.0
    %2686 = vmatpush.msra.mxu0 0.0
    %2687 = vmatpush.msra.mxu0 0.0
    %2688 = vmatpush.msra.mxu0 0.0
    %2689 = vmatpush.msra.mxu0 0.0
    %2690 = vmatpush.msra.mxu0 0.0
    %2691 = vmatpush.msra.mxu0 0.0
    %2692 = vmatpush.msra.mxu0 0.0
    %2693 = vmatpush.msra.mxu0 %v56
    %2694 = vmatpush.msra.mxu0 %v53
    %2695 = vmatpush.msra.mxu0 %v50
    %2696 = vmatpush.msra.mxu0 %v47
    %2697 = vmatpush.msra.mxu0 %v44
    %2698 = vmatpush.msra.mxu0 %v41
    %2699 = vmatpush.msra.mxu0 %v38
    %2700 = vmatpush.msra.mxu0 %v35
    %2701 = vmatmul.f32.gmra.mxu0 %v2683
    %v2702 = vpop.f32.mrf.mxu0
    %v2703 = vadd.f32 %v105, %v2702
    %2704 = vdwg.mxu0
    %2705 = vmatpush.msra.mxu0 0.0
    %2706 = vmatpush.msra.mxu0 0.0
    %2707 = vmatpush.msra.mxu0 0.0
    %2708 = vmatpush.msra.mxu0 0.0
    %2709 = vmatpush.msra.mxu0 0.0
    %2710 = vmatpush.msra.mxu0 0.0
    %2711 = vmatpush.msra.mxu0 0.0
    %2712 = vmatpush.msra.mxu0 0.0
    %2713 = vmatpush.msra.mxu0 %v57
    %2714 = vmatpush.msra.mxu0 %v54
    %2715 = vmatpush.msra.mxu0 %v51
    %2716 = vmatpush.msra.mxu0 %v48
    %2717 = vmatpush.msra.mxu0 %v45
    %2718 = vmatpush.msra.mxu0 %v42
    %2719 = vmatpush.msra.mxu0 %v39
    %2720 = vmatpush.msra.mxu0 %v36
    %2721 = vmatmul.f32.gmra.mxu0 %v2683
    %v2722 = vpop.f32.mrf.mxu0
    %v2723 = vadd.f32 %v106, %v2722
    %2724 = vdwg.mxu0
    %2725 = vmatpush.msra.mxu0 0.0
    %2726 = vmatpush.msra.mxu0 0.0
    %2727 = vmatpush.msra.mxu0 0.0
    %2728 = vmatpush.msra.mxu0 0.0
    %2729 = vmatpush.msra.mxu0 0.0
    %2730 = vmatpush.msra.mxu0 0.0
    %2731 = vmatpush.msra.mxu0 0.0
    %2732 = vmatpush.msra.mxu0 0.0
    %2733 = vmatpush.msra.mxu0 %v58
    %2734 = vmatpush.msra.mxu0 %v55
    %2735 = vmatpush.msra.mxu0 %v52
    %2736 = vmatpush.msra.mxu0 %v49
    %2737 = vmatpush.msra.mxu0 %v46
    %2738 = vmatpush.msra.mxu0 %v43
    %2739 = vmatpush.msra.mxu0 %v40
    %2740 = vmatpush.msra.mxu0 %v37
    %2741 = vmatmul.f32.gmra.mxu0 %v2683
    %v2742 = vpop.f32.mrf.mxu0
    %v2743 = vadd.f32 %v107, %v2742
    %2744 = vdwg.mxu0
    %vm2745 = vcmp.gt.f32.partialorder %v2743, 0.0
    %v2746 = vsel %vm2745, 1, 0
    %v2747 = vcvt.s32.f32 %v2746
    %2749 = vset.pattern.permute.xlu0 2
    %2750 = vperm.xlu0 %2749, %v2747
    %v2751 = vpop.permute.xlu0 %2750
    %v2753 = vmul.f32 %v2747, %v2751
    %v2754 = vld [vmem:[%s348] ss:$8 sm:$0x3]
    %v2755 = vld [vmem:[%s350] ss:$8 sm:$0x3]
    %v2756 = vld [vmem:[%s352] ss:$8 sm:$0x3]
    %2757 = vset.pattern.permute.xlu0 3
    %2758 = vperm.xlu0 %2757, %v2746
    %v2759 = vpop.permute.xlu0 %2758
    %vm2760 = vcmp.eq.s32.totalorder %v2759, 1
    %v2762 = vperm.slane %v2756, 0
    %v2763 = vperm.slane %v2756, 1
    %v2767 = vperm.slane %v2755, 0
    %v2768 = vperm.slane %v2755, 1
    %v2771 = vsel %vm2760, %v2762, %v2767
    %v2772 = vsel %vm2760, %v2763, %v2768
    %2773 = vset.pattern.permute.xlu0 2
    %2774 = vperm.xlu0 %2773, %v2746
    %v2775 = vpop.permute.xlu0 %2774
    %vm2776 = vcmp.eq.s32.totalorder %v2775, 1
    %v2778 = vperm.slane %v2754, 0
    %v2779 = vperm.slane %v2754, 1
    %v2782 = vsel %vm2776, %v2771, %v2778
    %v2783 = vsel %vm2776, %v2772, %v2779
    %2785 = vrot.lane.b32.xlu0 %v2753, 127
    %v2786 = vpop.permute.xlu0 %2785
    %2788 = vst.msk [vmem:[%s2 + $0xc] sm:$0x1] %vm221, %v2786
    %v2789 = vadd.f32 %v2782, %v2703
    %v2790 = vadd.f32 %v2783, %v2723
    %v2791 = vxor.u32 %v2789, 2147483648
    %v2792 = vxor.u32 %v2790, 2147483648
    %v2793 = vmul.f32 %v2791, 1.442695
    %v2794 = vpow.pop %v2793
    %v2795 = vmul.f32 %v2792, 1.442695
    %v2796 = vpow.pop %v2795
    %v2797 = vadd.f32 %v2794, 1.0
    %v2798 = vadd.f32 %v2796, 1.0
    %v2799 = vrcp.pop %v2797
    %v2800 = vmul.f32 %v2797, %v2799
    %v2801 = vsub.f32 1.0, %v2800
    %v2802 = vmul.f32 %v2799, %v2801
    %v2803 = vadd.f32 %v2799, %v2802
    %vm2804 = vweird.f32 %v2797
    %vm2805 = vweird.f32 %v2799
    %vm2806 = vmor %vm2804, %vm2805
    %v2807 = vsel %vm2806, %v2799, %v2803
    %v2808 = vand.u32 2147483647, %v2797
    %vm2809 = vcmp.eq.f32.partialorder %v2808, 8.507059e+37
    %v2810 = vand.u32 %v2797, 2147483648
    %v2811 = vor.u32 1.1754944e-38, %v2810
    %v2812 = vsel %vm2809, %v2811, %v2807
    %v2813 = vmul.f32 1.0, %v2812
    %v2814 = vrcp.pop %v2798
    %v2815 = vmul.f32 %v2798, %v2814
    %v2816 = vsub.f32 1.0, %v2815
    %v2817 = vmul.f32 %v2814, %v2816
    %v2818 = vadd.f32 %v2814, %v2817
    %vm2819 = vweird.f32 %v2798
    %vm2820 = vweird.f32 %v2814
    %vm2821 = vmor %vm2819, %vm2820
    %v2822 = vsel %vm2821, %v2814, %v2818
    %v2823 = vand.u32 2147483647, %v2798
    %vm2824 = vcmp.eq.f32.partialorder %v2823, 8.507059e+37
    %v2825 = vand.u32 %v2798, 2147483648
    %v2826 = vor.u32 1.1754944e-38, %v2825
    %v2827 = vsel %vm2824, %v2826, %v2822
    %v2828 = vmul.f32 1.0, %v2827
    %v2829 = vmul.f32 %v2828, 2.0
    %v2830 = vsub.f32 %v2829, 1.0
    %v2831 = vmul.f32 %v2813, %v2677
    %v2832 = vmul.f32 %v2813, %v2830
    %2834 = vrot.lane.b32.xlu0 %v2832, 64
    %v2835 = vpop.permute.xlu0 %2834
    %v2837 = vadd.f32 %v2831, %v2835
    %v2838 = vtanh.pop %v2837
    %v2839 = vmul.f32 %v2828, %v2838
    %2841 = vrot.lane.b32.xlu0 %v2839, 64
    %v2842 = vpop.permute.xlu0 %2841
    %v2843 = vsel %vm111, %v2842, 0
    %2845 = vmatpush.msra.mxu0 0.0
    %2846 = vmatpush.msra.mxu0 0.0
    %2847 = vmatpush.msra.mxu0 0.0
    %2848 = vmatpush.msra.mxu0 0.0
    %2849 = vmatpush.msra.mxu0 0.0
    %2850 = vmatpush.msra.mxu0 0.0
    %2851 = vmatpush.msra.mxu0 0.0
    %2852 = vmatpush.msra.mxu0 0.0
    %2853 = vmatpush.msra.mxu0 %v56
    %2854 = vmatpush.msra.mxu0 %v53
    %2855 = vmatpush.msra.mxu0 %v50
    %2856 = vmatpush.msra.mxu0 %v47
    %2857 = vmatpush.msra.mxu0 %v44
    %2858 = vmatpush.msra.mxu0 %v41
    %2859 = vmatpush.msra.mxu0 %v38
    %2860 = vmatpush.msra.mxu0 %v35
    %2861 = vmatmul.f32.gmra.mxu0 %v2843
    %v2862 = vpop.f32.mrf.mxu0
    %v2863 = vadd.f32 %v105, %v2862
    %2864 = vdwg.mxu0
    %2865 = vmatpush.msra.mxu0 0.0
    %2866 = vmatpush.msra.mxu0 0.0
    %2867 = vmatpush.msra.mxu0 0.0
    %2868 = vmatpush.msra.mxu0 0.0
    %2869 = vmatpush.msra.mxu0 0.0
    %2870 = vmatpush.msra.mxu0 0.0
    %2871 = vmatpush.msra.mxu0 0.0
    %2872 = vmatpush.msra.mxu0 0.0
    %2873 = vmatpush.msra.mxu0 %v57
    %2874 = vmatpush.msra.mxu0 %v54
    %2875 = vmatpush.msra.mxu0 %v51
    %2876 = vmatpush.msra.mxu0 %v48
    %2877 = vmatpush.msra.mxu0 %v45
    %2878 = vmatpush.msra.mxu0 %v42
    %2879 = vmatpush.msra.mxu0 %v39
    %2880 = vmatpush.msra.mxu0 %v36
    %2881 = vmatmul.f32.gmra.mxu0 %v2843
    %v2882 = vpop.f32.mrf.mxu0
    %v2883 = vadd.f32 %v106, %v2882
    %2884 = vdwg.mxu0
    %2885 = vmatpush.msra.mxu0 0.0
    %2886 = vmatpush.msra.mxu0 0.0
    %2887 = vmatpush.msra.mxu0 0.0
    %2888 = vmatpush.msra.mxu0 0.0
    %2889 = vmatpush.msra.mxu0 0.0
    %2890 = vmatpush.msra.mxu0 0.0
    %2891 = vmatpush.msra.mxu0 0.0
    %2892 = vmatpush.msra.mxu0 0.0
    %2893 = vmatpush.msra.mxu0 %v58
    %2894 = vmatpush.msra.mxu0 %v55
    %2895 = vmatpush.msra.mxu0 %v52
    %2896 = vmatpush.msra.mxu0 %v49
    %2897 = vmatpush.msra.mxu0 %v46
    %2898 = vmatpush.msra.mxu0 %v43
    %2899 = vmatpush.msra.mxu0 %v40
    %2900 = vmatpush.msra.mxu0 %v37
    %2901 = vmatmul.f32.gmra.mxu0 %v2843
    %v2902 = vpop.f32.mrf.mxu0
    %v2903 = vadd.f32 %v107, %v2902
    %2904 = vdwg.mxu0
    %vm2905 = vcmp.gt.f32.partialorder %v2903, 0.0
    %v2906 = vsel %vm2905, 1, 0
    %v2907 = vcvt.s32.f32 %v2906
    %2909 = vset.pattern.permute.xlu0 4
    %2910 = vperm.xlu0 %2909, %v2907
    %v2911 = vpop.permute.xlu0 %2910
    %v2913 = vmul.f32 %v2907, %v2911
    %v2914 = vld [vmem:[%s511] ss:$8 sm:$0x3]
    %v2915 = vld [vmem:[%s513] ss:$8 sm:$0x3]
    %v2916 = vld [vmem:[%s515] ss:$8 sm:$0x3]
    %2917 = vset.pattern.permute.xlu0 5
    %2918 = vperm.xlu0 %2917, %v2906
    %v2919 = vpop.permute.xlu0 %2918
    %vm2920 = vcmp.eq.s32.totalorder %v2919, 1
    %v2922 = vperm.slane %v2916, 0
    %v2923 = vperm.slane %v2916, 1
    %v2927 = vperm.slane %v2915, 0
    %v2928 = vperm.slane %v2915, 1
    %v2931 = vsel %vm2920, %v2922, %v2927
    %v2932 = vsel %vm2920, %v2923, %v2928
    %2933 = vset.pattern.permute.xlu0 4
    %2934 = vperm.xlu0 %2933, %v2906
    %v2935 = vpop.permute.xlu0 %2934
    %vm2936 = vcmp.eq.s32.totalorder %v2935, 1
    %v2938 = vperm.slane %v2914, 0
    %v2939 = vperm.slane %v2914, 1
    %v2942 = vsel %vm2936, %v2931, %v2938
    %v2943 = vsel %vm2936, %v2932, %v2939
    %2945 = vrot.lane.b32.xlu0 %v2913, 125
    %v2946 = vpop.permute.xlu0 %2945
    %2948 = vst.msk [vmem:[%s2 + $0x20] sm:$0x1] %vm221, %v2946
    %v2949 = vadd.f32 %v2942, %v2863
    %v2950 = vadd.f32 %v2943, %v2883
    %v2951 = vxor.u32 %v2949, 2147483648
    %v2952 = vxor.u32 %v2950, 2147483648
    %v2953 = vmul.f32 %v2951, 1.442695
    %v2954 = vpow.pop %v2953
    %v2955 = vmul.f32 %v2952, 1.442695
    %v2956 = vpow.pop %v2955
    %v2957 = vadd.f32 %v2954, 1.0
    %v2958 = vadd.f32 %v2956, 1.0
    %v2959 = vrcp.pop %v2957
    %v2960 = vmul.f32 %v2957, %v2959
    %v2961 = vsub.f32 1.0, %v2960
    %v2962 = vmul.f32 %v2959, %v2961
    %v2963 = vadd.f32 %v2959, %v2962
    %vm2964 = vweird.f32 %v2957
    %vm2965 = vweird.f32 %v2959
    %vm2966 = vmor %vm2964, %vm2965
    %v2967 = vsel %vm2966, %v2959, %v2963
    %v2968 = vand.u32 2147483647, %v2957
    %vm2969 = vcmp.eq.f32.partialorder %v2968, 8.507059e+37
    %v2970 = vand.u32 %v2957, 2147483648
    %v2971 = vor.u32 1.1754944e-38, %v2970
    %v2972 = vsel %vm2969, %v2971, %v2967
    %v2973 = vmul.f32 1.0, %v2972
    %v2974 = vrcp.pop %v2958
    %v2975 = vmul.f32 %v2958, %v2974
    %v2976 = vsub.f32 1.0, %v2975
    %v2977 = vmul.f32 %v2974, %v2976
    %v2978 = vadd.f32 %v2974, %v2977
    %vm2979 = vweird.f32 %v2958
    %vm2980 = vweird.f32 %v2974
    %vm2981 = vmor %vm2979, %vm2980
    %v2982 = vsel %vm2981, %v2974, %v2978
    %v2983 = vand.u32 2147483647, %v2958
    %vm2984 = vcmp.eq.f32.partialorder %v2983, 8.507059e+37
    %v2985 = vand.u32 %v2958, 2147483648
    %v2986 = vor.u32 1.1754944e-38, %v2985
    %v2987 = vsel %vm2984, %v2986, %v2982
    %v2988 = vmul.f32 1.0, %v2987
    %v2989 = vmul.f32 %v2988, 2.0
    %v2990 = vsub.f32 %v2989, 1.0
    %v2991 = vmul.f32 %v2973, %v2837
    %v2992 = vmul.f32 %v2973, %v2990
    %2994 = vrot.lane.b32.xlu0 %v2992, 64
    %v2995 = vpop.permute.xlu0 %2994
    %v2997 = vadd.f32 %v2991, %v2995
    %v2998 = vtanh.pop %v2997
    %v2999 = vmul.f32 %v2988, %v2998
    %3001 = vrot.lane.b32.xlu0 %v2999, 64
    %v3002 = vpop.permute.xlu0 %3001
    %v3003 = vsel %vm111, %v3002, 0
    %3005 = vmatpush.msra.mxu0 0.0
    %3006 = vmatpush.msra.mxu0 0.0
    %3007 = vmatpush.msra.mxu0 0.0
    %3008 = vmatpush.msra.mxu0 0.0
    %3009 = vmatpush.msra.mxu0 0.0
    %3010 = vmatpush.msra.mxu0 0.0
    %3011 = vmatpush.msra.mxu0 0.0
    %3012 = vmatpush.msra.mxu0 0.0
    %3013 = vmatpush.msra.mxu0 %v56
    %3014 = vmatpush.msra.mxu0 %v53
    %3015 = vmatpush.msra.mxu0 %v50
    %3016 = vmatpush.msra.mxu0 %v47
    %3017 = vmatpush.msra.mxu0 %v44
    %3018 = vmatpush.msra.mxu0 %v41
    %3019 = vmatpush.msra.mxu0 %v38
    %3020 = vmatpush.msra.mxu0 %v35
    %3021 = vmatmul.f32.gmra.mxu0 %v3003
    %v3022 = vpop.f32.mrf.mxu0
    %v3023 = vadd.f32 %v105, %v3022
    %3024 = vdwg.mxu0
    %3025 = vmatpush.msra.mxu0 0.0
    %3026 = vmatpush.msra.mxu0 0.0
    %3027 = vmatpush.msra.mxu0 0.0
    %3028 = vmatpush.msra.mxu0 0.0
    %3029 = vmatpush.msra.mxu0 0.0
    %3030 = vmatpush.msra.mxu0 0.0
    %3031 = vmatpush.msra.mxu0 0.0
    %3032 = vmatpush.msra.mxu0 0.0
    %3033 = vmatpush.msra.mxu0 %v57
    %3034 = vmatpush.msra.mxu0 %v54
    %3035 = vmatpush.msra.mxu0 %v51
    %3036 = vmatpush.msra.mxu0 %v48
    %3037 = vmatpush.msra.mxu0 %v45
    %3038 = vmatpush.msra.mxu0 %v42
    %3039 = vmatpush.msra.mxu0 %v39
    %3040 = vmatpush.msra.mxu0 %v36
    %3041 = vmatmul.f32.gmra.mxu0 %v3003
    %v3042 = vpop.f32.mrf.mxu0
    %v3043 = vadd.f32 %v106, %v3042
    %3044 = vdwg.mxu0
    %3045 = vmatpush.msra.mxu0 0.0
    %3046 = vmatpush.msra.mxu0 0.0
    %3047 = vmatpush.msra.mxu0 0.0
    %3048 = vmatpush.msra.mxu0 0.0
    %3049 = vmatpush.msra.mxu0 0.0
    %3050 = vmatpush.msra.mxu0 0.0
    %3051 = vmatpush.msra.mxu0 0.0
    %3052 = vmatpush.msra.mxu0 0.0
    %3053 = vmatpush.msra.mxu0 %v58
    %3054 = vmatpush.msra.mxu0 %v55
    %3055 = vmatpush.msra.mxu0 %v52
    %3056 = vmatpush.msra.mxu0 %v49
    %3057 = vmatpush.msra.mxu0 %v46
    %3058 = vmatpush.msra.mxu0 %v43
    %3059 = vmatpush.msra.mxu0 %v40
    %3060 = vmatpush.msra.mxu0 %v37
    %3061 = vmatmul.f32.gmra.mxu0 %v3003
    %v3062 = vpop.f32.mrf.mxu0
    %v3063 = vadd.f32 %v107, %v3062
    %3064 = vdwg.mxu0
    %vm3065 = vcmp.gt.f32.partialorder %v3063, 0.0
    %v3066 = vsel %vm3065, 1, 0
    %v3067 = vcvt.s32.f32 %v3066
    %3069 = vset.pattern.permute.xlu0 0
    %3070 = vperm.xlu0 %3069, %v3067
    %v3071 = vpop.permute.xlu0 %3070
    %v3073 = vmul.f32 %v3067, %v3071
    %v3074 = vld [vmem:[%s184] ss:$8 sm:$0x3]
    %v3075 = vld [vmem:[%s186] ss:$8 sm:$0x3]
    %v3076 = vld [vmem:[%s188] ss:$8 sm:$0x3]
    %3077 = vset.pattern.permute.xlu0 1
    %3078 = vperm.xlu0 %3077, %v3066
    %v3079 = vpop.permute.xlu0 %3078
    %vm3080 = vcmp.eq.s32.totalorder %v3079, 1
    %v3082 = vperm.slane %v3076, 0
    %v3083 = vperm.slane %v3076, 1
    %v3087 = vperm.slane %v3075, 0
    %v3088 = vperm.slane %v3075, 1
    %v3091 = vsel %vm3080, %v3082, %v3087
    %v3092 = vsel %vm3080, %v3083, %v3088
    %3093 = vset.pattern.permute.xlu0 0
    %3094 = vperm.xlu0 %3093, %v3066
    %v3095 = vpop.permute.xlu0 %3094
    %vm3096 = vcmp.eq.s32.totalorder %v3095, 1
    %v3098 = vperm.slane %v3074, 0
    %v3099 = vperm.slane %v3074, 1
    %v3102 = vsel %vm3096, %v3091, %v3098
    %v3103 = vsel %vm3096, %v3092, %v3099
    %3105 = vrot.lane.b32.xlu0 %v3073, 1
    %v3106 = vpop.permute.xlu0 %3105
    %3108 = vst.msk [vmem:[%s2 + $0x2] sm:$0x1] %vm221, %v3106
    %v3109 = vadd.f32 %v3102, %v3023
    %v3110 = vadd.f32 %v3103, %v3043
    %v3111 = vxor.u32 %v3109, 2147483648
    %v3112 = vxor.u32 %v3110, 2147483648
    %v3113 = vmul.f32 %v3111, 1.442695
    %v3114 = vpow.pop %v3113
    %v3115 = vmul.f32 %v3112, 1.442695
    %v3116 = vpow.pop %v3115
    %v3117 = vadd.f32 %v3114, 1.0
    %v3118 = vadd.f32 %v3116, 1.0
    %v3119 = vrcp.pop %v3117
    %v3120 = vmul.f32 %v3117, %v3119
    %v3121 = vsub.f32 1.0, %v3120
    %v3122 = vmul.f32 %v3119, %v3121
    %v3123 = vadd.f32 %v3119, %v3122
    %vm3124 = vweird.f32 %v3117
    %vm3125 = vweird.f32 %v3119
    %vm3126 = vmor %vm3124, %vm3125
    %v3127 = vsel %vm3126, %v3119, %v3123
    %v3128 = vand.u32 2147483647, %v3117
    %vm3129 = vcmp.eq.f32.partialorder %v3128, 8.507059e+37
    %v3130 = vand.u32 %v3117, 2147483648
    %v3131 = vor.u32 1.1754944e-38, %v3130
    %v3132 = vsel %vm3129, %v3131, %v3127
    %v3133 = vmul.f32 1.0, %v3132
    %v3134 = vrcp.pop %v3118
    %v3135 = vmul.f32 %v3118, %v3134
    %v3136 = vsub.f32 1.0, %v3135
    %v3137 = vmul.f32 %v3134, %v3136
    %v3138 = vadd.f32 %v3134, %v3137
    %vm3139 = vweird.f32 %v3118
    %vm3140 = vweird.f32 %v3134
    %vm3141 = vmor %vm3139, %vm3140
    %v3142 = vsel %vm3141, %v3134, %v3138
    %v3143 = vand.u32 2147483647, %v3118
    %vm3144 = vcmp.eq.f32.partialorder %v3143, 8.507059e+37
    %v3145 = vand.u32 %v3118, 2147483648
    %v3146 = vor.u32 1.1754944e-38, %v3145
    %v3147 = vsel %vm3144, %v3146, %v3142
    %v3148 = vmul.f32 1.0, %v3147
    %v3149 = vmul.f32 %v3148, 2.0
    %v3150 = vsub.f32 %v3149, 1.0
    %v3151 = vmul.f32 %v3133, %v2997
    %v3152 = vmul.f32 %v3133, %v3150
    %3154 = vrot.lane.b32.xlu0 %v3152, 64
    %v3155 = vpop.permute.xlu0 %3154
    %v3157 = vadd.f32 %v3151, %v3155
    %v3158 = vtanh.pop %v3157
    %v3159 = vmul.f32 %v3148, %v3158
    %3161 = vrot.lane.b32.xlu0 %v3159, 64
    %v3162 = vpop.permute.xlu0 %3161
    %v3163 = vsel %vm111, %v3162, 0
    %3165 = vmatpush.msra.mxu0 0.0
    %3166 = vmatpush.msra.mxu0 0.0
    %3167 = vmatpush.msra.mxu0 0.0
    %3168 = vmatpush.msra.mxu0 0.0
    %3169 = vmatpush.msra.mxu0 0.0
    %3170 = vmatpush.msra.mxu0 0.0
    %3171 = vmatpush.msra.mxu0 0.0
    %3172 = vmatpush.msra.mxu0 0.0
    %3173 = vmatpush.msra.mxu0 %v56
    %3174 = vmatpush.msra.mxu0 %v53
    %3175 = vmatpush.msra.mxu0 %v50
    %3176 = vmatpush.msra.mxu0 %v47
    %3177 = vmatpush.msra.mxu0 %v44
    %3178 = vmatpush.msra.mxu0 %v41
    %3179 = vmatpush.msra.mxu0 %v38
    %3180 = vmatpush.msra.mxu0 %v35
    %3181 = vmatmul.f32.gmra.mxu0 %v3163
    %v3182 = vpop.f32.mrf.mxu0
    %v3183 = vadd.f32 %v105, %v3182
    %3184 = vdwg.mxu0
    %3185 = vmatpush.msra.mxu0 0.0
    %3186 = vmatpush.msra.mxu0 0.0
    %3187 = vmatpush.msra.mxu0 0.0
    %3188 = vmatpush.msra.mxu0 0.0
    %3189 = vmatpush.msra.mxu0 0.0
    %3190 = vmatpush.msra.mxu0 0.0
    %3191 = vmatpush.msra.mxu0 0.0
    %3192 = vmatpush.msra.mxu0 0.0
    %3193 = vmatpush.msra.mxu0 %v57
    %3194 = vmatpush.msra.mxu0 %v54
    %3195 = vmatpush.msra.mxu0 %v51
    %3196 = vmatpush.msra.mxu0 %v48
    %3197 = vmatpush.msra.mxu0 %v45
    %3198 = vmatpush.msra.mxu0 %v42
    %3199 = vmatpush.msra.mxu0 %v39
    %3200 = vmatpush.msra.mxu0 %v36
    %3201 = vmatmul.f32.gmra.mxu0 %v3163
    %v3202 = vpop.f32.mrf.mxu0
    %v3203 = vadd.f32 %v106, %v3202
    %3204 = vdwg.mxu0
    %3205 = vmatpush.msra.mxu0 0.0
    %3206 = vmatpush.msra.mxu0 0.0
    %3207 = vmatpush.msra.mxu0 0.0
    %3208 = vmatpush.msra.mxu0 0.0
    %3209 = vmatpush.msra.mxu0 0.0
    %3210 = vmatpush.msra.mxu0 0.0
    %3211 = vmatpush.msra.mxu0 0.0
    %3212 = vmatpush.msra.mxu0 0.0
    %3213 = vmatpush.msra.mxu0 %v58
    %3214 = vmatpush.msra.mxu0 %v55
    %3215 = vmatpush.msra.mxu0 %v52
    %3216 = vmatpush.msra.mxu0 %v49
    %3217 = vmatpush.msra.mxu0 %v46
    %3218 = vmatpush.msra.mxu0 %v43
    %3219 = vmatpush.msra.mxu0 %v40
    %3220 = vmatpush.msra.mxu0 %v37
    %3221 = vmatmul.f32.gmra.mxu0 %v3163
    %v3222 = vpop.f32.mrf.mxu0
    %v3223 = vadd.f32 %v107, %v3222
    %3224 = vdwg.mxu0
    %vm3225 = vcmp.gt.f32.partialorder %v3223, 0.0
    %v3226 = vsel %vm3225, 1, 0
    %v3227 = vcvt.s32.f32 %v3226
    %3229 = vset.pattern.permute.xlu0 2
    %3230 = vperm.xlu0 %3229, %v3227
    %v3231 = vpop.permute.xlu0 %3230
    %v3233 = vmul.f32 %v3227, %v3231
    %v3234 = vld [vmem:[%s348] ss:$8 sm:$0x3]
    %v3235 = vld [vmem:[%s350] ss:$8 sm:$0x3]
    %v3236 = vld [vmem:[%s352] ss:$8 sm:$0x3]
    %3237 = vset.pattern.permute.xlu0 3
    %3238 = vperm.xlu0 %3237, %v3226
    %v3239 = vpop.permute.xlu0 %3238
    %vm3240 = vcmp.eq.s32.totalorder %v3239, 1
    %v3242 = vperm.slane %v3236, 0
    %v3243 = vperm.slane %v3236, 1
    %v3247 = vperm.slane %v3235, 0
    %v3248 = vperm.slane %v3235, 1
    %v3251 = vsel %vm3240, %v3242, %v3247
    %v3252 = vsel %vm3240, %v3243, %v3248
    %3253 = vset.pattern.permute.xlu0 2
    %3254 = vperm.xlu0 %3253, %v3226
    %v3255 = vpop.permute.xlu0 %3254
    %vm3256 = vcmp.eq.s32.totalorder %v3255, 1
    %v3258 = vperm.slane %v3234, 0
    %v3259 = vperm.slane %v3234, 1
    %v3262 = vsel %vm3256, %v3251, %v3258
    %v3263 = vsel %vm3256, %v3252, %v3259
    %3265 = vrot.lane.b32.xlu0 %v3233, 127
    %v3266 = vpop.permute.xlu0 %3265
    %3268 = vst.msk [vmem:[%s2 + $0xd] sm:$0x1] %vm221, %v3266
    %v3269 = vadd.f32 %v3262, %v3183
    %v3270 = vadd.f32 %v3263, %v3203
    %v3271 = vxor.u32 %v3269, 2147483648
    %v3272 = vxor.u32 %v3270, 2147483648
    %v3273 = vmul.f32 %v3271, 1.442695
    %v3274 = vpow.pop %v3273
    %v3275 = vmul.f32 %v3272, 1.442695
    %v3276 = vpow.pop %v3275
    %v3277 = vadd.f32 %v3274, 1.0
    %v3278 = vadd.f32 %v3276, 1.0
    %v3279 = vrcp.pop %v3277
    %v3280 = vmul.f32 %v3277, %v3279
    %v3281 = vsub.f32 1.0, %v3280
    %v3282 = vmul.f32 %v3279, %v3281
    %v3283 = vadd.f32 %v3279, %v3282
    %vm3284 = vweird.f32 %v3277
    %vm3285 = vweird.f32 %v3279
    %vm3286 = vmor %vm3284, %vm3285
    %v3287 = vsel %vm3286, %v3279, %v3283
    %v3288 = vand.u32 2147483647, %v3277
    %vm3289 = vcmp.eq.f32.partialorder %v3288, 8.507059e+37
    %v3290 = vand.u32 %v3277, 2147483648
    %v3291 = vor.u32 1.1754944e-38, %v3290
    %v3292 = vsel %vm3289, %v3291, %v3287
    %v3293 = vmul.f32 1.0, %v3292
    %v3294 = vrcp.pop %v3278
    %v3295 = vmul.f32 %v3278, %v3294
    %v3296 = vsub.f32 1.0, %v3295
    %v3297 = vmul.f32 %v3294, %v3296
    %v3298 = vadd.f32 %v3294, %v3297
    %vm3299 = vweird.f32 %v3278
    %vm3300 = vweird.f32 %v3294
    %vm3301 = vmor %vm3299, %vm3300
    %v3302 = vsel %vm3301, %v3294, %v3298
    %v3303 = vand.u32 2147483647, %v3278
    %vm3304 = vcmp.eq.f32.partialorder %v3303, 8.507059e+37
    %v3305 = vand.u32 %v3278, 2147483648
    %v3306 = vor.u32 1.1754944e-38, %v3305
    %v3307 = vsel %vm3304, %v3306, %v3302
    %v3308 = vmul.f32 1.0, %v3307
    %v3309 = vmul.f32 %v3308, 2.0
    %v3310 = vsub.f32 %v3309, 1.0
    %v3311 = vmul.f32 %v3293, %v3157
    %v3312 = vmul.f32 %v3293, %v3310
    %3314 = vrot.lane.b32.xlu0 %v3312, 64
    %v3315 = vpop.permute.xlu0 %3314
    %v3317 = vadd.f32 %v3311, %v3315
    %v3318 = vtanh.pop %v3317
    %v3319 = vmul.f32 %v3308, %v3318
    %3321 = vrot.lane.b32.xlu0 %v3319, 64
    %v3322 = vpop.permute.xlu0 %3321
    %v3323 = vsel %vm111, %v3322, 0
    %3325 = vmatpush.msra.mxu0 0.0
    %3326 = vmatpush.msra.mxu0 0.0
    %3327 = vmatpush.msra.mxu0 0.0
    %3328 = vmatpush.msra.mxu0 0.0
    %3329 = vmatpush.msra.mxu0 0.0
    %3330 = vmatpush.msra.mxu0 0.0
    %3331 = vmatpush.msra.mxu0 0.0
    %3332 = vmatpush.msra.mxu0 0.0
    %3333 = vmatpush.msra.mxu0 %v56
    %3334 = vmatpush.msra.mxu0 %v53
    %3335 = vmatpush.msra.mxu0 %v50
    %3336 = vmatpush.msra.mxu0 %v47
    %3337 = vmatpush.msra.mxu0 %v44
    %3338 = vmatpush.msra.mxu0 %v41
    %3339 = vmatpush.msra.mxu0 %v38
    %3340 = vmatpush.msra.mxu0 %v35
    %3341 = vmatmul.f32.gmra.mxu0 %v3323
    %v3342 = vpop.f32.mrf.mxu0
    %v3343 = vadd.f32 %v105, %v3342
    %3344 = vdwg.mxu0
    %3345 = vmatpush.msra.mxu0 0.0
    %3346 = vmatpush.msra.mxu0 0.0
    %3347 = vmatpush.msra.mxu0 0.0
    %3348 = vmatpush.msra.mxu0 0.0
    %3349 = vmatpush.msra.mxu0 0.0
    %3350 = vmatpush.msra.mxu0 0.0
    %3351 = vmatpush.msra.mxu0 0.0
    %3352 = vmatpush.msra.mxu0 0.0
    %3353 = vmatpush.msra.mxu0 %v57
    %3354 = vmatpush.msra.mxu0 %v54
    %3355 = vmatpush.msra.mxu0 %v51
    %3356 = vmatpush.msra.mxu0 %v48
    %3357 = vmatpush.msra.mxu0 %v45
    %3358 = vmatpush.msra.mxu0 %v42
    %3359 = vmatpush.msra.mxu0 %v39
    %3360 = vmatpush.msra.mxu0 %v36
    %3361 = vmatmul.f32.gmra.mxu0 %v3323
    %v3362 = vpop.f32.mrf.mxu0
    %v3363 = vadd.f32 %v106, %v3362
    %3364 = vdwg.mxu0
    %3365 = vmatpush.msra.mxu0 0.0
    %3366 = vmatpush.msra.mxu0 0.0
    %3367 = vmatpush.msra.mxu0 0.0
    %3368 = vmatpush.msra.mxu0 0.0
    %3369 = vmatpush.msra.mxu0 0.0
    %3370 = vmatpush.msra.mxu0 0.0
    %3371 = vmatpush.msra.mxu0 0.0
    %3372 = vmatpush.msra.mxu0 0.0
    %3373 = vmatpush.msra.mxu0 %v58
    %3374 = vmatpush.msra.mxu0 %v55
    %3375 = vmatpush.msra.mxu0 %v52
    %3376 = vmatpush.msra.mxu0 %v49
    %3377 = vmatpush.msra.mxu0 %v46
    %3378 = vmatpush.msra.mxu0 %v43
    %3379 = vmatpush.msra.mxu0 %v40
    %3380 = vmatpush.msra.mxu0 %v37
    %3381 = vmatmul.f32.gmra.mxu0 %v3323
    %v3382 = vpop.f32.mrf.mxu0
    %v3383 = vadd.f32 %v107, %v3382
    %3384 = vdwg.mxu0
    %vm3385 = vcmp.gt.f32.partialorder %v3383, 0.0
    %v3386 = vsel %vm3385, 1, 0
    %v3387 = vcvt.s32.f32 %v3386
    %3389 = vset.pattern.permute.xlu0 4
    %3390 = vperm.xlu0 %3389, %v3387
    %v3391 = vpop.permute.xlu0 %3390
    %v3393 = vmul.f32 %v3387, %v3391
    %v3394 = vld [vmem:[%s511] ss:$8 sm:$0x3]
    %v3395 = vld [vmem:[%s513] ss:$8 sm:$0x3]
    %v3396 = vld [vmem:[%s515] ss:$8 sm:$0x3]
    %3397 = vset.pattern.permute.xlu0 5
    %3398 = vperm.xlu0 %3397, %v3386
    %v3399 = vpop.permute.xlu0 %3398
    %vm3400 = vcmp.eq.s32.totalorder %v3399, 1
    %v3402 = vperm.slane %v3396, 0
    %v3403 = vperm.slane %v3396, 1
    %v3407 = vperm.slane %v3395, 0
    %v3408 = vperm.slane %v3395, 1
    %v3411 = vsel %vm3400, %v3402, %v3407
    %v3412 = vsel %vm3400, %v3403, %v3408
    %3413 = vset.pattern.permute.xlu0 4
    %3414 = vperm.xlu0 %3413, %v3386
    %v3415 = vpop.permute.xlu0 %3414
    %vm3416 = vcmp.eq.s32.totalorder %v3415, 1
    %v3418 = vperm.slane %v3394, 0
    %v3419 = vperm.slane %v3394, 1
    %v3422 = vsel %vm3416, %v3411, %v3418
    %v3423 = vsel %vm3416, %v3412, %v3419
    %3425 = vrot.lane.b32.xlu0 %v3393, 125
    %v3426 = vpop.permute.xlu0 %3425
    %3428 = vst.msk [vmem:[%s2 + $0x21] sm:$0x1] %vm221, %v3426
    %v3429 = vadd.f32 %v3422, %v3343
    %v3430 = vadd.f32 %v3423, %v3363
    %v3431 = vxor.u32 %v3429, 2147483648
    %v3432 = vxor.u32 %v3430, 2147483648
    %v3433 = vmul.f32 %v3431, 1.442695
    %v3434 = vpow.pop %v3433
    %v3435 = vmul.f32 %v3432, 1.442695
    %v3436 = vpow.pop %v3435
    %v3437 = vadd.f32 %v3434, 1.0
    %v3438 = vadd.f32 %v3436, 1.0
    %v3439 = vrcp.pop %v3437
    %v3440 = vmul.f32 %v3437, %v3439
    %v3441 = vsub.f32 1.0, %v3440
    %v3442 = vmul.f32 %v3439, %v3441
    %v3443 = vadd.f32 %v3439, %v3442
    %vm3444 = vweird.f32 %v3437
    %vm3445 = vweird.f32 %v3439
    %vm3446 = vmor %vm3444, %vm3445
    %v3447 = vsel %vm3446, %v3439, %v3443
    %v3448 = vand.u32 2147483647, %v3437
    %vm3449 = vcmp.eq.f32.partialorder %v3448, 8.507059e+37
    %v3450 = vand.u32 %v3437, 2147483648
    %v3451 = vor.u32 1.1754944e-38, %v3450
    %v3452 = vsel %vm3449, %v3451, %v3447
    %v3453 = vmul.f32 1.0, %v3452
    %v3454 = vrcp.pop %v3438
    %v3455 = vmul.f32 %v3438, %v3454
    %v3456 = vsub.f32 1.0, %v3455
    %v3457 = vmul.f32 %v3454, %v3456
    %v3458 = vadd.f32 %v3454, %v3457
    %vm3459 = vweird.f32 %v3438
    %vm3460 = vweird.f32 %v3454
    %vm3461 = vmor %vm3459, %vm3460
    %v3462 = vsel %vm3461, %v3454, %v3458
    %v3463 = vand.u32 2147483647, %v3438
    %vm3464 = vcmp.eq.f32.partialorder %v3463, 8.507059e+37
    %v3465 = vand.u32 %v3438, 2147483648
    %v3466 = vor.u32 1.1754944e-38, %v3465
    %v3467 = vsel %vm3464, %v3466, %v3462
    %v3468 = vmul.f32 1.0, %v3467
    %v3469 = vmul.f32 %v3468, 2.0
    %v3470 = vsub.f32 %v3469, 1.0
    %v3471 = vmul.f32 %v3453, %v3317
    %v3472 = vmul.f32 %v3453, %v3470
    %3474 = vrot.lane.b32.xlu0 %v3472, 64
    %v3475 = vpop.permute.xlu0 %3474
    %v3477 = vadd.f32 %v3471, %v3475
    %v3478 = vtanh.pop %v3477
    %v3479 = vmul.f32 %v3468, %v3478
    %3481 = vrot.lane.b32.xlu0 %v3479, 64
    %v3482 = vpop.permute.xlu0 %3481
    %v3483 = vsel %vm111, %v3482, 0
    %3485 = vmatpush.msra.mxu0 0.0
    %3486 = vmatpush.msra.mxu0 0.0
    %3487 = vmatpush.msra.mxu0 0.0
    %3488 = vmatpush.msra.mxu0 0.0
    %3489 = vmatpush.msra.mxu0 0.0
    %3490 = vmatpush.msra.mxu0 0.0
    %3491 = vmatpush.msra.mxu0 0.0
    %3492 = vmatpush.msra.mxu0 0.0
    %3493 = vmatpush.msra.mxu0 %v56
    %3494 = vmatpush.msra.mxu0 %v53
    %3495 = vmatpush.msra.mxu0 %v50
    %3496 = vmatpush.msra.mxu0 %v47
    %3497 = vmatpush.msra.mxu0 %v44
    %3498 = vmatpush.msra.mxu0 %v41
    %3499 = vmatpush.msra.mxu0 %v38
    %3500 = vmatpush.msra.mxu0 %v35
    %3501 = vmatmul.f32.gmra.mxu0 %v3483
    %v3502 = vpop.f32.mrf.mxu0
    %v3503 = vadd.f32 %v105, %v3502
    %3504 = vdwg.mxu0
    %3505 = vmatpush.msra.mxu0 0.0
    %3506 = vmatpush.msra.mxu0 0.0
    %3507 = vmatpush.msra.mxu0 0.0
    %3508 = vmatpush.msra.mxu0 0.0
    %3509 = vmatpush.msra.mxu0 0.0
    %3510 = vmatpush.msra.mxu0 0.0
    %3511 = vmatpush.msra.mxu0 0.0
    %3512 = vmatpush.msra.mxu0 0.0
    %3513 = vmatpush.msra.mxu0 %v57
    %3514 = vmatpush.msra.mxu0 %v54
    %3515 = vmatpush.msra.mxu0 %v51
    %3516 = vmatpush.msra.mxu0 %v48
    %3517 = vmatpush.msra.mxu0 %v45
    %3518 = vmatpush.msra.mxu0 %v42
    %3519 = vmatpush.msra.mxu0 %v39
    %3520 = vmatpush.msra.mxu0 %v36
    %3521 = vmatmul.f32.gmra.mxu0 %v3483
    %v3522 = vpop.f32.mrf.mxu0
    %v3523 = vadd.f32 %v106, %v3522
    %3524 = vdwg.mxu0
    %3525 = vmatpush.msra.mxu0 0.0
    %3526 = vmatpush.msra.mxu0 0.0
    %3527 = vmatpush.msra.mxu0 0.0
    %3528 = vmatpush.msra.mxu0 0.0
    %3529 = vmatpush.msra.mxu0 0.0
    %3530 = vmatpush.msra.mxu0 0.0
    %3531 = vmatpush.msra.mxu0 0.0
    %3532 = vmatpush.msra.mxu0 0.0
    %3533 = vmatpush.msra.mxu0 %v58
    %3534 = vmatpush.msra.mxu0 %v55
    %3535 = vmatpush.msra.mxu0 %v52
    %3536 = vmatpush.msra.mxu0 %v49
    %3537 = vmatpush.msra.mxu0 %v46
    %3538 = vmatpush.msra.mxu0 %v43
    %3539 = vmatpush.msra.mxu0 %v40
    %3540 = vmatpush.msra.mxu0 %v37
    %3541 = vmatmul.f32.gmra.mxu0 %v3483
    %v3542 = vpop.f32.mrf.mxu0
    %v3543 = vadd.f32 %v107, %v3542
    %3544 = vdwg.mxu0
    %vm3545 = vcmp.gt.f32.partialorder %v3543, 0.0
    %v3546 = vsel %vm3545, 1, 0
    %v3547 = vcvt.s32.f32 %v3546
    %3549 = vset.pattern.permute.xlu0 2
    %3550 = vperm.xlu0 %3549, %v3547
    %v3551 = vpop.permute.xlu0 %3550
    %v3553 = vmul.f32 %v3547, %v3551
    %v3554 = vld [vmem:[%s348] ss:$8 sm:$0x3]
    %v3555 = vld [vmem:[%s350] ss:$8 sm:$0x3]
    %v3556 = vld [vmem:[%s352] ss:$8 sm:$0x3]
    %3557 = vset.pattern.permute.xlu0 3
    %3558 = vperm.xlu0 %3557, %v3546
    %v3559 = vpop.permute.xlu0 %3558
    %vm3560 = vcmp.eq.s32.totalorder %v3559, 1
    %v3562 = vperm.slane %v3556, 0
    %v3563 = vperm.slane %v3556, 1
    %v3567 = vperm.slane %v3555, 0
    %v3568 = vperm.slane %v3555, 1
    %v3571 = vsel %vm3560, %v3562, %v3567
    %v3572 = vsel %vm3560, %v3563, %v3568
    %3573 = vset.pattern.permute.xlu0 2
    %3574 = vperm.xlu0 %3573, %v3546
    %v3575 = vpop.permute.xlu0 %3574
    %vm3576 = vcmp.eq.s32.totalorder %v3575, 1
    %v3578 = vperm.slane %v3554, 0
    %v3579 = vperm.slane %v3554, 1
    %v3582 = vsel %vm3576, %v3571, %v3578
    %v3583 = vsel %vm3576, %v3572, %v3579
    %3585 = vrot.lane.b32.xlu0 %v3553, 127
    %v3586 = vpop.permute.xlu0 %3585
    %3588 = vst.msk [vmem:[%s2 + $0xe] sm:$0x1] %vm221, %v3586
    %v3589 = vadd.f32 %v3582, %v3503
    %v3590 = vadd.f32 %v3583, %v3523
    %v3591 = vxor.u32 %v3589, 2147483648
    %v3592 = vxor.u32 %v3590, 2147483648
    %v3593 = vmul.f32 %v3591, 1.442695
    %v3594 = vpow.pop %v3593
    %v3595 = vmul.f32 %v3592, 1.442695
    %v3596 = vpow.pop %v3595
    %v3597 = vadd.f32 %v3594, 1.0
    %v3598 = vadd.f32 %v3596, 1.0
    %v3599 = vrcp.pop %v3597
    %v3600 = vmul.f32 %v3597, %v3599
    %v3601 = vsub.f32 1.0, %v3600
    %v3602 = vmul.f32 %v3599, %v3601
    %v3603 = vadd.f32 %v3599, %v3602
    %vm3604 = vweird.f32 %v3597
    %vm3605 = vweird.f32 %v3599
    %vm3606 = vmor %vm3604, %vm3605
    %v3607 = vsel %vm3606, %v3599, %v3603
    %v3608 = vand.u32 2147483647, %v3597
    %vm3609 = vcmp.eq.f32.partialorder %v3608, 8.507059e+37
    %v3610 = vand.u32 %v3597, 2147483648
    %v3611 = vor.u32 1.1754944e-38, %v3610
    %v3612 = vsel %vm3609, %v3611, %v3607
    %v3613 = vmul.f32 1.0, %v3612
    %v3614 = vrcp.pop %v3598
    %v3615 = vmul.f32 %v3598, %v3614
    %v3616 = vsub.f32 1.0, %v3615
    %v3617 = vmul.f32 %v3614, %v3616
    %v3618 = vadd.f32 %v3614, %v3617
    %vm3619 = vweird.f32 %v3598
    %vm3620 = vweird.f32 %v3614
    %vm3621 = vmor %vm3619, %vm3620
    %v3622 = vsel %vm3621, %v3614, %v3618
    %v3623 = vand.u32 2147483647, %v3598
    %vm3624 = vcmp.eq.f32.partialorder %v3623, 8.507059e+37
    %v3625 = vand.u32 %v3598, 2147483648
    %v3626 = vor.u32 1.1754944e-38, %v3625
    %v3627 = vsel %vm3624, %v3626, %v3622
    %v3628 = vmul.f32 1.0, %v3627
    %v3629 = vmul.f32 %v3628, 2.0
    %v3630 = vsub.f32 %v3629, 1.0
    %v3631 = vmul.f32 %v3613, %v3477
    %v3632 = vmul.f32 %v3613, %v3630
    %3634 = vrot.lane.b32.xlu0 %v3632, 64
    %v3635 = vpop.permute.xlu0 %3634
    %v3637 = vadd.f32 %v3631, %v3635
    %v3638 = vtanh.pop %v3637
    %v3639 = vmul.f32 %v3628, %v3638
    %3641 = vrot.lane.b32.xlu0 %v3639, 64
    %v3642 = vpop.permute.xlu0 %3641
    %v3643 = vsel %vm111, %v3642, 0
    %3645 = vmatpush.msra.mxu0 0.0
    %3646 = vmatpush.msra.mxu0 0.0
    %3647 = vmatpush.msra.mxu0 0.0
    %3648 = vmatpush.msra.mxu0 0.0
    %3649 = vmatpush.msra.mxu0 0.0
    %3650 = vmatpush.msra.mxu0 0.0
    %3651 = vmatpush.msra.mxu0 0.0
    %3652 = vmatpush.msra.mxu0 0.0
    %3653 = vmatpush.msra.mxu0 %v56
    %3654 = vmatpush.msra.mxu0 %v53
    %3655 = vmatpush.msra.mxu0 %v50
    %3656 = vmatpush.msra.mxu0 %v47
    %3657 = vmatpush.msra.mxu0 %v44
    %3658 = vmatpush.msra.mxu0 %v41
    %3659 = vmatpush.msra.mxu0 %v38
    %3660 = vmatpush.msra.mxu0 %v35
    %3661 = vmatmul.f32.gmra.mxu0 %v3643
    %v3662 = vpop.f32.mrf.mxu0
    %v3663 = vadd.f32 %v105, %v3662
    %3664 = vdwg.mxu0
    %3665 = vmatpush.msra.mxu0 0.0
    %3666 = vmatpush.msra.mxu0 0.0
    %3667 = vmatpush.msra.mxu0 0.0
    %3668 = vmatpush.msra.mxu0 0.0
    %3669 = vmatpush.msra.mxu0 0.0
    %3670 = vmatpush.msra.mxu0 0.0
    %3671 = vmatpush.msra.mxu0 0.0
    %3672 = vmatpush.msra.mxu0 0.0
    %3673 = vmatpush.msra.mxu0 %v57
    %3674 = vmatpush.msra.mxu0 %v54
    %3675 = vmatpush.msra.mxu0 %v51
    %3676 = vmatpush.msra.mxu0 %v48
    %3677 = vmatpush.msra.mxu0 %v45
    %3678 = vmatpush.msra.mxu0 %v42
    %3679 = vmatpush.msra.mxu0 %v39
    %3680 = vmatpush.msra.mxu0 %v36
    %3681 = vmatmul.f32.gmra.mxu0 %v3643
    %v3682 = vpop.f32.mrf.mxu0
    %v3683 = vadd.f32 %v106, %v3682
    %3684 = vdwg.mxu0
    %3685 = vmatpush.msra.mxu0 0.0
    %3686 = vmatpush.msra.mxu0 0.0
    %3687 = vmatpush.msra.mxu0 0.0
    %3688 = vmatpush.msra.mxu0 0.0
    %3689 = vmatpush.msra.mxu0 0.0
    %3690 = vmatpush.msra.mxu0 0.0
    %3691 = vmatpush.msra.mxu0 0.0
    %3692 = vmatpush.msra.mxu0 0.0
    %3693 = vmatpush.msra.mxu0 %v58
    %3694 = vmatpush.msra.mxu0 %v55
    %3695 = vmatpush.msra.mxu0 %v52
    %3696 = vmatpush.msra.mxu0 %v49
    %3697 = vmatpush.msra.mxu0 %v46
    %3698 = vmatpush.msra.mxu0 %v43
    %3699 = vmatpush.msra.mxu0 %v40
    %3700 = vmatpush.msra.mxu0 %v37
    %3701 = vmatmul.f32.gmra.mxu0 %v3643
    %v3702 = vpop.f32.mrf.mxu0
    %v3703 = vadd.f32 %v107, %v3702
    %3704 = vdwg.mxu0
    %vm3705 = vcmp.gt.f32.partialorder %v3703, 0.0
    %v3706 = vsel %vm3705, 1, 0
    %v3707 = vcvt.s32.f32 %v3706
    %3709 = vset.pattern.permute.xlu0 4
    %3710 = vperm.xlu0 %3709, %v3707
    %v3711 = vpop.permute.xlu0 %3710
    %v3713 = vmul.f32 %v3707, %v3711
    %v3714 = vld [vmem:[%s511] ss:$8 sm:$0x3]
    %v3715 = vld [vmem:[%s513] ss:$8 sm:$0x3]
    %v3716 = vld [vmem:[%s515] ss:$8 sm:$0x3]
    %3717 = vset.pattern.permute.xlu0 5
    %3718 = vperm.xlu0 %3717, %v3706
    %v3719 = vpop.permute.xlu0 %3718
    %vm3720 = vcmp.eq.s32.totalorder %v3719, 1
    %v3722 = vperm.slane %v3716, 0
    %v3723 = vperm.slane %v3716, 1
    %v3727 = vperm.slane %v3715, 0
    %v3728 = vperm.slane %v3715, 1
    %v3731 = vsel %vm3720, %v3722, %v3727
    %v3732 = vsel %vm3720, %v3723, %v3728
    %3733 = vset.pattern.permute.xlu0 4
    %3734 = vperm.xlu0 %3733, %v3706
    %v3735 = vpop.permute.xlu0 %3734
    %vm3736 = vcmp.eq.s32.totalorder %v3735, 1
    %v3738 = vperm.slane %v3714, 0
    %v3739 = vperm.slane %v3714, 1
    %v3742 = vsel %vm3736, %v3731, %v3738
    %v3743 = vsel %vm3736, %v3732, %v3739
    %3745 = vrot.lane.b32.xlu0 %v3713, 125
    %v3746 = vpop.permute.xlu0 %3745
    %3748 = vst.msk [vmem:[%s2 + $0x22] sm:$0x1] %vm221, %v3746
    %v3749 = vadd.f32 %v3742, %v3663
    %v3750 = vadd.f32 %v3743, %v3683
    %v3751 = vxor.u32 %v3749, 2147483648
    %v3752 = vxor.u32 %v3750, 2147483648
    %v3753 = vmul.f32 %v3751, 1.442695
    %v3754 = vpow.pop %v3753
    %v3755 = vmul.f32 %v3752, 1.442695
    %v3756 = vpow.pop %v3755
    %v3757 = vadd.f32 %v3754, 1.0
    %v3758 = vadd.f32 %v3756, 1.0
    %v3759 = vrcp.pop %v3757
    %v3760 = vmul.f32 %v3757, %v3759
    %v3761 = vsub.f32 1.0, %v3760
    %v3762 = vmul.f32 %v3759, %v3761
    %v3763 = vadd.f32 %v3759, %v3762
    %vm3764 = vweird.f32 %v3757
    %vm3765 = vweird.f32 %v3759
    %vm3766 = vmor %vm3764, %vm3765
    %v3767 = vsel %vm3766, %v3759, %v3763
    %v3768 = vand.u32 2147483647, %v3757
    %vm3769 = vcmp.eq.f32.partialorder %v3768, 8.507059e+37
    %v3770 = vand.u32 %v3757, 2147483648
    %v3771 = vor.u32 1.1754944e-38, %v3770
    %v3772 = vsel %vm3769, %v3771, %v3767
    %v3773 = vmul.f32 1.0, %v3772
    %v3774 = vrcp.pop %v3758
    %v3775 = vmul.f32 %v3758, %v3774
    %v3776 = vsub.f32 1.0, %v3775
    %v3777 = vmul.f32 %v3774, %v3776
    %v3778 = vadd.f32 %v3774, %v3777
    %vm3779 = vweird.f32 %v3758
    %vm3780 = vweird.f32 %v3774
    %vm3781 = vmor %vm3779, %vm3780
    %v3782 = vsel %vm3781, %v3774, %v3778
    %v3783 = vand.u32 2147483647, %v3758
    %vm3784 = vcmp.eq.f32.partialorder %v3783, 8.507059e+37
    %v3785 = vand.u32 %v3758, 2147483648
    %v3786 = vor.u32 1.1754944e-38, %v3785
    %v3787 = vsel %vm3784, %v3786, %v3782
    %v3788 = vmul.f32 1.0, %v3787
    %v3789 = vmul.f32 %v3788, 2.0
    %v3790 = vsub.f32 %v3789, 1.0
    %v3791 = vmul.f32 %v3773, %v3637
    %v3792 = vmul.f32 %v3773, %v3790
    %3794 = vrot.lane.b32.xlu0 %v3792, 64
    %v3795 = vpop.permute.xlu0 %3794
    %v3797 = vadd.f32 %v3791, %v3795
    %v3798 = vtanh.pop %v3797
    %v3799 = vmul.f32 %v3788, %v3798
    %3801 = vrot.lane.b32.xlu0 %v3799, 64
    %v3802 = vpop.permute.xlu0 %3801
    %v3803 = vsel %vm111, %v3802, 0
    %3805 = vmatpush.msra.mxu0 0.0
    %3806 = vmatpush.msra.mxu0 0.0
    %3807 = vmatpush.msra.mxu0 0.0
    %3808 = vmatpush.msra.mxu0 0.0
    %3809 = vmatpush.msra.mxu0 0.0
    %3810 = vmatpush.msra.mxu0 0.0
    %3811 = vmatpush.msra.mxu0 0.0
    %3812 = vmatpush.msra.mxu0 0.0
    %3813 = vmatpush.msra.mxu0 %v56
    %3814 = vmatpush.msra.mxu0 %v53
    %3815 = vmatpush.msra.mxu0 %v50
    %3816 = vmatpush.msra.mxu0 %v47
    %3817 = vmatpush.msra.mxu0 %v44
    %3818 = vmatpush.msra.mxu0 %v41
    %3819 = vmatpush.msra.mxu0 %v38
    %3820 = vmatpush.msra.mxu0 %v35
    %3821 = vmatmul.f32.gmra.mxu0 %v3803
    %v3822 = vpop.f32.mrf.mxu0
    %v3823 = vadd.f32 %v105, %v3822
    %3824 = vdwg.mxu0
    %3825 = vmatpush.msra.mxu0 0.0
    %3826 = vmatpush.msra.mxu0 0.0
    %3827 = vmatpush.msra.mxu0 0.0
    %3828 = vmatpush.msra.mxu0 0.0
    %3829 = vmatpush.msra.mxu0 0.0
    %3830 = vmatpush.msra.mxu0 0.0
    %3831 = vmatpush.msra.mxu0 0.0
    %3832 = vmatpush.msra.mxu0 0.0
    %3833 = vmatpush.msra.mxu0 %v57
    %3834 = vmatpush.msra.mxu0 %v54
    %3835 = vmatpush.msra.mxu0 %v51
    %3836 = vmatpush.msra.mxu0 %v48
    %3837 = vmatpush.msra.mxu0 %v45
    %3838 = vmatpush.msra.mxu0 %v42
    %3839 = vmatpush.msra.mxu0 %v39
    %3840 = vmatpush.msra.mxu0 %v36
    %3841 = vmatmul.f32.gmra.mxu0 %v3803
    %v3842 = vpop.f32.mrf.mxu0
    %v3843 = vadd.f32 %v106, %v3842
    %3844 = vdwg.mxu0
    %3845 = vmatpush.msra.mxu0 0.0
    %3846 = vmatpush.msra.mxu0 0.0
    %3847 = vmatpush.msra.mxu0 0.0
    %3848 = vmatpush.msra.mxu0 0.0
    %3849 = vmatpush.msra.mxu0 0.0
    %3850 = vmatpush.msra.mxu0 0.0
    %3851 = vmatpush.msra.mxu0 0.0
    %3852 = vmatpush.msra.mxu0 0.0
    %3853 = vmatpush.msra.mxu0 %v58
    %3854 = vmatpush.msra.mxu0 %v55
    %3855 = vmatpush.msra.mxu0 %v52
    %3856 = vmatpush.msra.mxu0 %v49
    %3857 = vmatpush.msra.mxu0 %v46
    %3858 = vmatpush.msra.mxu0 %v43
    %3859 = vmatpush.msra.mxu0 %v40
    %3860 = vmatpush.msra.mxu0 %v37
    %3861 = vmatmul.f32.gmra.mxu0 %v3803
    %v3862 = vpop.f32.mrf.mxu0
    %v3863 = vadd.f32 %v107, %v3862
    %3864 = vdwg.mxu0
    %vm3865 = vcmp.gt.f32.partialorder %v3863, 0.0
    %v3866 = vsel %vm3865, 1, 0
    %v3867 = vcvt.s32.f32 %v3866
    %3869 = vset.pattern.permute.xlu0 2
    %3870 = vperm.xlu0 %3869, %v3867
    %v3871 = vpop.permute.xlu0 %3870
    %v3873 = vmul.f32 %v3867, %v3871
    %v3874 = vld [vmem:[%s348] ss:$8 sm:$0x3]
    %v3875 = vld [vmem:[%s350] ss:$8 sm:$0x3]
    %v3876 = vld [vmem:[%s352] ss:$8 sm:$0x3]
    %3877 = vset.pattern.permute.xlu0 3
    %3878 = vperm.xlu0 %3877, %v3866
    %v3879 = vpop.permute.xlu0 %3878
    %vm3880 = vcmp.eq.s32.totalorder %v3879, 1
    %v3882 = vperm.slane %v3876, 0
    %v3883 = vperm.slane %v3876, 1
    %v3887 = vperm.slane %v3875, 0
    %v3888 = vperm.slane %v3875, 1
    %v3891 = vsel %vm3880, %v3882, %v3887
    %v3892 = vsel %vm3880, %v3883, %v3888
    %3893 = vset.pattern.permute.xlu0 2
    %3894 = vperm.xlu0 %3893, %v3866
    %v3895 = vpop.permute.xlu0 %3894
    %vm3896 = vcmp.eq.s32.totalorder %v3895, 1
    %v3898 = vperm.slane %v3874, 0
    %v3899 = vperm.slane %v3874, 1
    %v3902 = vsel %vm3896, %v3891, %v3898
    %v3903 = vsel %vm3896, %v3892, %v3899
    %3905 = vrot.lane.b32.xlu0 %v3873, 127
    %v3906 = vpop.permute.xlu0 %3905
    %3908 = vst.msk [vmem:[%s2 + $0xf] sm:$0x1] %vm221, %v3906
    %v3909 = vadd.f32 %v3902, %v3823
    %v3910 = vadd.f32 %v3903, %v3843
    %v3911 = vxor.u32 %v3909, 2147483648
    %v3912 = vxor.u32 %v3910, 2147483648
    %v3913 = vmul.f32 %v3911, 1.442695
    %v3914 = vpow.pop %v3913
    %v3915 = vmul.f32 %v3912, 1.442695
    %v3916 = vpow.pop %v3915
    %v3917 = vadd.f32 %v3914, 1.0
    %v3918 = vadd.f32 %v3916, 1.0
    %v3919 = vrcp.pop %v3917
    %v3920 = vmul.f32 %v3917, %v3919
    %v3921 = vsub.f32 1.0, %v3920
    %v3922 = vmul.f32 %v3919, %v3921
    %v3923 = vadd.f32 %v3919, %v3922
    %vm3924 = vweird.f32 %v3917
    %vm3925 = vweird.f32 %v3919
    %vm3926 = vmor %vm3924, %vm3925
    %v3927 = vsel %vm3926, %v3919, %v3923
    %v3928 = vand.u32 2147483647, %v3917
    %vm3929 = vcmp.eq.f32.partialorder %v3928, 8.507059e+37
    %v3930 = vand.u32 %v3917, 2147483648
    %v3931 = vor.u32 1.1754944e-38, %v3930
    %v3932 = vsel %vm3929, %v3931, %v3927
    %v3933 = vmul.f32 1.0, %v3932
    %v3934 = vrcp.pop %v3918
    %v3935 = vmul.f32 %v3918, %v3934
    %v3936 = vsub.f32 1.0, %v3935
    %v3937 = vmul.f32 %v3934, %v3936
    %v3938 = vadd.f32 %v3934, %v3937
    %vm3939 = vweird.f32 %v3918
    %vm3940 = vweird.f32 %v3934
    %vm3941 = vmor %vm3939, %vm3940
    %v3942 = vsel %vm3941, %v3934, %v3938
    %v3943 = vand.u32 2147483647, %v3918
    %vm3944 = vcmp.eq.f32.partialorder %v3943, 8.507059e+37
    %v3945 = vand.u32 %v3918, 2147483648
    %v3946 = vor.u32 1.1754944e-38, %v3945
    %v3947 = vsel %vm3944, %v3946, %v3942
    %v3948 = vmul.f32 1.0, %v3947
    %v3949 = vmul.f32 %v3948, 2.0
    %v3950 = vsub.f32 %v3949, 1.0
    %v3951 = vmul.f32 %v3933, %v3797
    %v3952 = vmul.f32 %v3933, %v3950
    %3954 = vrot.lane.b32.xlu0 %v3952, 64
    %v3955 = vpop.permute.xlu0 %3954
    %v3957 = vadd.f32 %v3951, %v3955
    %v3958 = vtanh.pop %v3957
    %v3959 = vmul.f32 %v3948, %v3958
    %3961 = vrot.lane.b32.xlu0 %v3959, 64
    %v3962 = vpop.permute.xlu0 %3961
    %v3963 = vsel %vm111, %v3962, 0
    %3965 = vmatpush.msra.mxu0 0.0
    %3966 = vmatpush.msra.mxu0 0.0
    %3967 = vmatpush.msra.mxu0 0.0
    %3968 = vmatpush.msra.mxu0 0.0
    %3969 = vmatpush.msra.mxu0 0.0
    %3970 = vmatpush.msra.mxu0 0.0
    %3971 = vmatpush.msra.mxu0 0.0
    %3972 = vmatpush.msra.mxu0 0.0
    %3973 = vmatpush.msra.mxu0 %v56
    %3974 = vmatpush.msra.mxu0 %v53
    %3975 = vmatpush.msra.mxu0 %v50
    %3976 = vmatpush.msra.mxu0 %v47
    %3977 = vmatpush.msra.mxu0 %v44
    %3978 = vmatpush.msra.mxu0 %v41
    %3979 = vmatpush.msra.mxu0 %v38
    %3980 = vmatpush.msra.mxu0 %v35
    %3981 = vmatmul.f32.gmra.mxu0 %v3963
    %v3982 = vpop.f32.mrf.mxu0
    %v3983 = vadd.f32 %v105, %v3982
    %3984 = vdwg.mxu0
    %3985 = vmatpush.msra.mxu0 0.0
    %3986 = vmatpush.msra.mxu0 0.0
    %3987 = vmatpush.msra.mxu0 0.0
    %3988 = vmatpush.msra.mxu0 0.0
    %3989 = vmatpush.msra.mxu0 0.0
    %3990 = vmatpush.msra.mxu0 0.0
    %3991 = vmatpush.msra.mxu0 0.0
    %3992 = vmatpush.msra.mxu0 0.0
    %3993 = vmatpush.msra.mxu0 %v57
    %3994 = vmatpush.msra.mxu0 %v54
    %3995 = vmatpush.msra.mxu0 %v51
    %3996 = vmatpush.msra.mxu0 %v48
    %3997 = vmatpush.msra.mxu0 %v45
    %3998 = vmatpush.msra.mxu0 %v42
    %3999 = vmatpush.msra.mxu0 %v39
    %4000 = vmatpush.msra.mxu0 %v36
    %4001 = vmatmul.f32.gmra.mxu0 %v3963
    %v4002 = vpop.f32.mrf.mxu0
    %v4003 = vadd.f32 %v106, %v4002
    %4004 = vdwg.mxu0
    %4005 = vmatpush.msra.mxu0 0.0
    %4006 = vmatpush.msra.mxu0 0.0
    %4007 = vmatpush.msra.mxu0 0.0
    %4008 = vmatpush.msra.mxu0 0.0
    %4009 = vmatpush.msra.mxu0 0.0
    %4010 = vmatpush.msra.mxu0 0.0
    %4011 = vmatpush.msra.mxu0 0.0
    %4012 = vmatpush.msra.mxu0 0.0
    %4013 = vmatpush.msra.mxu0 %v58
    %4014 = vmatpush.msra.mxu0 %v55
    %4015 = vmatpush.msra.mxu0 %v52
    %4016 = vmatpush.msra.mxu0 %v49
    %4017 = vmatpush.msra.mxu0 %v46
    %4018 = vmatpush.msra.mxu0 %v43
    %4019 = vmatpush.msra.mxu0 %v40
    %4020 = vmatpush.msra.mxu0 %v37
    %4021 = vmatmul.f32.gmra.mxu0 %v3963
    %v4022 = vpop.f32.mrf.mxu0
    %v4023 = vadd.f32 %v107, %v4022
    %4024 = vdwg.mxu0
    %vm4025 = vcmp.gt.f32.partialorder %v4023, 0.0
    %v4026 = vsel %vm4025, 1, 0
    %v4027 = vcvt.s32.f32 %v4026
    %4029 = vset.pattern.permute.xlu0 4
    %4030 = vperm.xlu0 %4029, %v4027
    %v4031 = vpop.permute.xlu0 %4030
    %v4033 = vmul.f32 %v4027, %v4031
    %v4034 = vld [vmem:[%s511] ss:$8 sm:$0x3]
    %v4035 = vld [vmem:[%s513] ss:$8 sm:$0x3]
    %v4036 = vld [vmem:[%s515] ss:$8 sm:$0x3]
    %4037 = vset.pattern.permute.xlu0 5
    %4038 = vperm.xlu0 %4037, %v4026
    %v4039 = vpop.permute.xlu0 %4038
    %vm4040 = vcmp.eq.s32.totalorder %v4039, 1
    %v4042 = vperm.slane %v4036, 0
    %v4043 = vperm.slane %v4036, 1
    %v4047 = vperm.slane %v4035, 0
    %v4048 = vperm.slane %v4035, 1
    %v4051 = vsel %vm4040, %v4042, %v4047
    %v4052 = vsel %vm4040, %v4043, %v4048
    %4053 = vset.pattern.permute.xlu0 4
    %4054 = vperm.xlu0 %4053, %v4026
    %v4055 = vpop.permute.xlu0 %4054
    %vm4056 = vcmp.eq.s32.totalorder %v4055, 1
    %v4058 = vperm.slane %v4034, 0
    %v4059 = vperm.slane %v4034, 1
    %v4062 = vsel %vm4056, %v4051, %v4058
    %v4063 = vsel %vm4056, %v4052, %v4059
    %4065 = vrot.lane.b32.xlu0 %v4033, 125
    %v4066 = vpop.permute.xlu0 %4065
    %4068 = vst.msk [vmem:[%s2 + $0x23] sm:$0x1] %vm221, %v4066
    %v4069 = vadd.f32 %v4062, %v3983
    %v4070 = vadd.f32 %v4063, %v4003
    %v4071 = vxor.u32 %v4069, 2147483648
    %v4072 = vxor.u32 %v4070, 2147483648
    %v4073 = vmul.f32 %v4071, 1.442695
    %v4074 = vpow.pop %v4073
    %v4075 = vmul.f32 %v4072, 1.442695
    %v4076 = vpow.pop %v4075
    %v4077 = vadd.f32 %v4074, 1.0
    %v4078 = vadd.f32 %v4076, 1.0
    %v4079 = vrcp.pop %v4077
    %v4080 = vmul.f32 %v4077, %v4079
    %v4081 = vsub.f32 1.0, %v4080
    %v4082 = vmul.f32 %v4079, %v4081
    %v4083 = vadd.f32 %v4079, %v4082
    %vm4084 = vweird.f32 %v4077
    %vm4085 = vweird.f32 %v4079
    %vm4086 = vmor %vm4084, %vm4085
    %v4087 = vsel %vm4086, %v4079, %v4083
    %v4088 = vand.u32 2147483647, %v4077
    %vm4089 = vcmp.eq.f32.partialorder %v4088, 8.507059e+37
    %v4090 = vand.u32 %v4077, 2147483648
    %v4091 = vor.u32 1.1754944e-38, %v4090
    %v4092 = vsel %vm4089, %v4091, %v4087
    %v4093 = vmul.f32 1.0, %v4092
    %v4094 = vrcp.pop %v4078
    %v4095 = vmul.f32 %v4078, %v4094
    %v4096 = vsub.f32 1.0, %v4095
    %v4097 = vmul.f32 %v4094, %v4096
    %v4098 = vadd.f32 %v4094, %v4097
    %vm4099 = vweird.f32 %v4078
    %vm4100 = vweird.f32 %v4094
    %vm4101 = vmor %vm4099, %vm4100
    %v4102 = vsel %vm4101, %v4094, %v4098
    %v4103 = vand.u32 2147483647, %v4078
    %vm4104 = vcmp.eq.f32.partialorder %v4103, 8.507059e+37
    %v4105 = vand.u32 %v4078, 2147483648
    %v4106 = vor.u32 1.1754944e-38, %v4105
    %v4107 = vsel %vm4104, %v4106, %v4102
    %v4108 = vmul.f32 1.0, %v4107
    %v4109 = vmul.f32 %v4108, 2.0
    %v4110 = vsub.f32 %v4109, 1.0
    %v4111 = vmul.f32 %v4093, %v3957
    %v4112 = vmul.f32 %v4093, %v4110
    %4114 = vrot.lane.b32.xlu0 %v4112, 64
    %v4115 = vpop.permute.xlu0 %4114
    %v4117 = vadd.f32 %v4111, %v4115
    %v4118 = vtanh.pop %v4117
    %v4119 = vmul.f32 %v4108, %v4118
    %4121 = vrot.lane.b32.xlu0 %v4119, 64
    %v4122 = vpop.permute.xlu0 %4121
    %v4123 = vsel %vm111, %v4122, 0
    %4125 = vmatpush.msra.mxu0 0.0
    %4126 = vmatpush.msra.mxu0 0.0
    %4127 = vmatpush.msra.mxu0 0.0
    %4128 = vmatpush.msra.mxu0 0.0
    %4129 = vmatpush.msra.mxu0 0.0
    %4130 = vmatpush.msra.mxu0 0.0
    %4131 = vmatpush.msra.mxu0 0.0
    %4132 = vmatpush.msra.mxu0 0.0
    %4133 = vmatpush.msra.mxu0 %v56
    %4134 = vmatpush.msra.mxu0 %v53
    %4135 = vmatpush.msra.mxu0 %v50
    %4136 = vmatpush.msra.mxu0 %v47
    %4137 = vmatpush.msra.mxu0 %v44
    %4138 = vmatpush.msra.mxu0 %v41
    %4139 = vmatpush.msra.mxu0 %v38
    %4140 = vmatpush.msra.mxu0 %v35
    %4141 = vmatmul.f32.gmra.mxu0 %v4123
    %v4142 = vpop.f32.mrf.mxu0
    %v4143 = vadd.f32 %v105, %v4142
    %4144 = vdwg.mxu0
    %4145 = vmatpush.msra.mxu0 0.0
    %4146 = vmatpush.msra.mxu0 0.0
    %4147 = vmatpush.msra.mxu0 0.0
    %4148 = vmatpush.msra.mxu0 0.0
    %4149 = vmatpush.msra.mxu0 0.0
    %4150 = vmatpush.msra.mxu0 0.0
    %4151 = vmatpush.msra.mxu0 0.0
    %4152 = vmatpush.msra.mxu0 0.0
    %4153 = vmatpush.msra.mxu0 %v57
    %4154 = vmatpush.msra.mxu0 %v54
    %4155 = vmatpush.msra.mxu0 %v51
    %4156 = vmatpush.msra.mxu0 %v48
    %4157 = vmatpush.msra.mxu0 %v45
    %4158 = vmatpush.msra.mxu0 %v42
    %4159 = vmatpush.msra.mxu0 %v39
    %4160 = vmatpush.msra.mxu0 %v36
    %4161 = vmatmul.f32.gmra.mxu0 %v4123
    %v4162 = vpop.f32.mrf.mxu0
    %v4163 = vadd.f32 %v106, %v4162
    %4164 = vdwg.mxu0
    %4165 = vmatpush.msra.mxu0 0.0
    %4166 = vmatpush.msra.mxu0 0.0
    %4167 = vmatpush.msra.mxu0 0.0
    %4168 = vmatpush.msra.mxu0 0.0
    %4169 = vmatpush.msra.mxu0 0.0
    %4170 = vmatpush.msra.mxu0 0.0
    %4171 = vmatpush.msra.mxu0 0.0
    %4172 = vmatpush.msra.mxu0 0.0
    %4173 = vmatpush.msra.mxu0 %v58
    %4174 = vmatpush.msra.mxu0 %v55
    %4175 = vmatpush.msra.mxu0 %v52
    %4176 = vmatpush.msra.mxu0 %v49
    %4177 = vmatpush.msra.mxu0 %v46
    %4178 = vmatpush.msra.mxu0 %v43
    %4179 = vmatpush.msra.mxu0 %v40
    %4180 = vmatpush.msra.mxu0 %v37
    %4181 = vmatmul.f32.gmra.mxu0 %v4123
    %v4182 = vpop.f32.mrf.mxu0
    %v4183 = vadd.f32 %v107, %v4182
    %4184 = vdwg.mxu0
    %vm4185 = vcmp.gt.f32.partialorder %v4183, 0.0
    %v4186 = vsel %vm4185, 1, 0
    %v4187 = vcvt.s32.f32 %v4186
    %4189 = vset.pattern.permute.xlu0 2
    %4190 = vperm.xlu0 %4189, %v4187
    %v4191 = vpop.permute.xlu0 %4190
    %v4193 = vmul.f32 %v4187, %v4191
    %v4194 = vld [vmem:[%s348] ss:$8 sm:$0x3]
    %v4195 = vld [vmem:[%s350] ss:$8 sm:$0x3]
    %v4196 = vld [vmem:[%s352] ss:$8 sm:$0x3]
    %4197 = vset.pattern.permute.xlu0 3
    %4198 = vperm.xlu0 %4197, %v4186
    %v4199 = vpop.permute.xlu0 %4198
    %vm4200 = vcmp.eq.s32.totalorder %v4199, 1
    %v4202 = vperm.slane %v4196, 0
    %v4203 = vperm.slane %v4196, 1
    %v4207 = vperm.slane %v4195, 0
    %v4208 = vperm.slane %v4195, 1
    %v4211 = vsel %vm4200, %v4202, %v4207
    %v4212 = vsel %vm4200, %v4203, %v4208
    %4213 = vset.pattern.permute.xlu0 2
    %4214 = vperm.xlu0 %4213, %v4186
    %v4215 = vpop.permute.xlu0 %4214
    %vm4216 = vcmp.eq.s32.totalorder %v4215, 1
    %v4218 = vperm.slane %v4194, 0
    %v4219 = vperm.slane %v4194, 1
    %v4222 = vsel %vm4216, %v4211, %v4218
    %v4223 = vsel %vm4216, %v4212, %v4219
    %4225 = vrot.lane.b32.xlu0 %v4193, 127
    %v4226 = vpop.permute.xlu0 %4225
    %4228 = vst.msk [vmem:[%s2 + $0x10] sm:$0x1] %vm221, %v4226
    %v4229 = vadd.f32 %v4222, %v4143
    %v4230 = vadd.f32 %v4223, %v4163
    %v4231 = vxor.u32 %v4229, 2147483648
    %v4232 = vxor.u32 %v4230, 2147483648
    %v4233 = vmul.f32 %v4231, 1.442695
    %v4234 = vpow.pop %v4233
    %v4235 = vmul.f32 %v4232, 1.442695
    %v4236 = vpow.pop %v4235
    %v4237 = vadd.f32 %v4234, 1.0
    %v4238 = vadd.f32 %v4236, 1.0
    %v4239 = vrcp.pop %v4237
    %v4240 = vmul.f32 %v4237, %v4239
    %v4241 = vsub.f32 1.0, %v4240
    %v4242 = vmul.f32 %v4239, %v4241
    %v4243 = vadd.f32 %v4239, %v4242
    %vm4244 = vweird.f32 %v4237
    %vm4245 = vweird.f32 %v4239
    %vm4246 = vmor %vm4244, %vm4245
    %v4247 = vsel %vm4246, %v4239, %v4243
    %v4248 = vand.u32 2147483647, %v4237
    %vm4249 = vcmp.eq.f32.partialorder %v4248, 8.507059e+37
    %v4250 = vand.u32 %v4237, 2147483648
    %v4251 = vor.u32 1.1754944e-38, %v4250
    %v4252 = vsel %vm4249, %v4251, %v4247
    %v4253 = vmul.f32 1.0, %v4252
    %v4254 = vrcp.pop %v4238
    %v4255 = vmul.f32 %v4238, %v4254
    %v4256 = vsub.f32 1.0, %v4255
    %v4257 = vmul.f32 %v4254, %v4256
    %v4258 = vadd.f32 %v4254, %v4257
    %vm4259 = vweird.f32 %v4238
    %vm4260 = vweird.f32 %v4254
    %vm4261 = vmor %vm4259, %vm4260
    %v4262 = vsel %vm4261, %v4254, %v4258
    %v4263 = vand.u32 2147483647, %v4238
    %vm4264 = vcmp.eq.f32.partialorder %v4263, 8.507059e+37
    %v4265 = vand.u32 %v4238, 2147483648
    %v4266 = vor.u32 1.1754944e-38, %v4265
    %v4267 = vsel %vm4264, %v4266, %v4262
    %v4268 = vmul.f32 1.0, %v4267
    %v4269 = vmul.f32 %v4268, 2.0
    %v4270 = vsub.f32 %v4269, 1.0
    %v4271 = vmul.f32 %v4253, %v4117
    %v4272 = vmul.f32 %v4253, %v4270
    %4274 = vrot.lane.b32.xlu0 %v4272, 64
    %v4275 = vpop.permute.xlu0 %4274
    %v4277 = vadd.f32 %v4271, %v4275
    %v4278 = vtanh.pop %v4277
    %v4279 = vmul.f32 %v4268, %v4278
    %4281 = vrot.lane.b32.xlu0 %v4279, 64
    %v4282 = vpop.permute.xlu0 %4281
    %v4283 = vsel %vm111, %v4282, 0
    %4285 = vmatpush.msra.mxu0 0.0
    %4286 = vmatpush.msra.mxu0 0.0
    %4287 = vmatpush.msra.mxu0 0.0
    %4288 = vmatpush.msra.mxu0 0.0
    %4289 = vmatpush.msra.mxu0 0.0
    %4290 = vmatpush.msra.mxu0 0.0
    %4291 = vmatpush.msra.mxu0 0.0
    %4292 = vmatpush.msra.mxu0 0.0
    %4293 = vmatpush.msra.mxu0 %v56
    %4294 = vmatpush.msra.mxu0 %v53
    %4295 = vmatpush.msra.mxu0 %v50
    %4296 = vmatpush.msra.mxu0 %v47
    %4297 = vmatpush.msra.mxu0 %v44
    %4298 = vmatpush.msra.mxu0 %v41
    %4299 = vmatpush.msra.mxu0 %v38
    %4300 = vmatpush.msra.mxu0 %v35
    %4301 = vmatmul.f32.gmra.mxu0 %v4283
    %v4302 = vpop.f32.mrf.mxu0
    %v4303 = vadd.f32 %v105, %v4302
    %4304 = vdwg.mxu0
    %4305 = vmatpush.msra.mxu0 0.0
    %4306 = vmatpush.msra.mxu0 0.0
    %4307 = vmatpush.msra.mxu0 0.0
    %4308 = vmatpush.msra.mxu0 0.0
    %4309 = vmatpush.msra.mxu0 0.0
    %4310 = vmatpush.msra.mxu0 0.0
    %4311 = vmatpush.msra.mxu0 0.0
    %4312 = vmatpush.msra.mxu0 0.0
    %4313 = vmatpush.msra.mxu0 %v57
    %4314 = vmatpush.msra.mxu0 %v54
    %4315 = vmatpush.msra.mxu0 %v51
    %4316 = vmatpush.msra.mxu0 %v48
    %4317 = vmatpush.msra.mxu0 %v45
    %4318 = vmatpush.msra.mxu0 %v42
    %4319 = vmatpush.msra.mxu0 %v39
    %4320 = vmatpush.msra.mxu0 %v36
    %4321 = vmatmul.f32.gmra.mxu0 %v4283
    %v4322 = vpop.f32.mrf.mxu0
    %v4323 = vadd.f32 %v106, %v4322
    %4324 = vdwg.mxu0
    %4325 = vmatpush.msra.mxu0 0.0
    %4326 = vmatpush.msra.mxu0 0.0
    %4327 = vmatpush.msra.mxu0 0.0
    %4328 = vmatpush.msra.mxu0 0.0
    %4329 = vmatpush.msra.mxu0 0.0
    %4330 = vmatpush.msra.mxu0 0.0
    %4331 = vmatpush.msra.mxu0 0.0
    %4332 = vmatpush.msra.mxu0 0.0
    %4333 = vmatpush.msra.mxu0 %v58
    %4334 = vmatpush.msra.mxu0 %v55
    %4335 = vmatpush.msra.mxu0 %v52
    %4336 = vmatpush.msra.mxu0 %v49
    %4337 = vmatpush.msra.mxu0 %v46
    %4338 = vmatpush.msra.mxu0 %v43
    %4339 = vmatpush.msra.mxu0 %v40
    %4340 = vmatpush.msra.mxu0 %v37
    %4341 = vmatmul.f32.gmra.mxu0 %v4283
    %v4342 = vpop.f32.mrf.mxu0
    %v4343 = vadd.f32 %v107, %v4342
    %4344 = vdwg.mxu0
    %vm4345 = vcmp.gt.f32.partialorder %v4343, 0.0
    %v4346 = vsel %vm4345, 1, 0
    %v4347 = vcvt.s32.f32 %v4346
    %4349 = vset.pattern.permute.xlu0 4
    %4350 = vperm.xlu0 %4349, %v4347
    %v4351 = vpop.permute.xlu0 %4350
    %v4353 = vmul.f32 %v4347, %v4351
    %v4354 = vld [vmem:[%s511] ss:$8 sm:$0x3]
    %v4355 = vld [vmem:[%s513] ss:$8 sm:$0x3]
    %v4356 = vld [vmem:[%s515] ss:$8 sm:$0x3]
    %4357 = vset.pattern.permute.xlu0 5
    %4358 = vperm.xlu0 %4357, %v4346
    %v4359 = vpop.permute.xlu0 %4358
    %vm4360 = vcmp.eq.s32.totalorder %v4359, 1
    %v4362 = vperm.slane %v4356, 0
    %v4363 = vperm.slane %v4356, 1
    %v4367 = vperm.slane %v4355, 0
    %v4368 = vperm.slane %v4355, 1
    %v4371 = vsel %vm4360, %v4362, %v4367
    %v4372 = vsel %vm4360, %v4363, %v4368
    %4373 = vset.pattern.permute.xlu0 4
    %4374 = vperm.xlu0 %4373, %v4346
    %v4375 = vpop.permute.xlu0 %4374
    %vm4376 = vcmp.eq.s32.totalorder %v4375, 1
    %v4378 = vperm.slane %v4354, 0
    %v4379 = vperm.slane %v4354, 1
    %v4382 = vsel %vm4376, %v4371, %v4378
    %v4383 = vsel %vm4376, %v4372, %v4379
    %4385 = vrot.lane.b32.xlu0 %v4353, 125
    %v4386 = vpop.permute.xlu0 %4385
    %4388 = vst.msk [vmem:[%s2 + $0x24] sm:$0x1] %vm221, %v4386
    %v4389 = vadd.f32 %v4382, %v4303
    %v4390 = vadd.f32 %v4383, %v4323
    %v4391 = vxor.u32 %v4389, 2147483648
    %v4392 = vxor.u32 %v4390, 2147483648
    %v4393 = vmul.f32 %v4391, 1.442695
    %v4394 = vpow.pop %v4393
    %v4395 = vmul.f32 %v4392, 1.442695
    %v4396 = vpow.pop %v4395
    %v4397 = vadd.f32 %v4394, 1.0
    %v4398 = vadd.f32 %v4396, 1.0
    %v4399 = vrcp.pop %v4397
    %v4400 = vmul.f32 %v4397, %v4399
    %v4401 = vsub.f32 1.0, %v4400
    %v4402 = vmul.f32 %v4399, %v4401
    %v4403 = vadd.f32 %v4399, %v4402
    %vm4404 = vweird.f32 %v4397
    %vm4405 = vweird.f32 %v4399
    %vm4406 = vmor %vm4404, %vm4405
    %v4407 = vsel %vm4406, %v4399, %v4403
    %v4408 = vand.u32 2147483647, %v4397
    %vm4409 = vcmp.eq.f32.partialorder %v4408, 8.507059e+37
    %v4410 = vand.u32 %v4397, 2147483648
    %v4411 = vor.u32 1.1754944e-38, %v4410
    %v4412 = vsel %vm4409, %v4411, %v4407
    %v4413 = vmul.f32 1.0, %v4412
    %v4414 = vrcp.pop %v4398
    %v4415 = vmul.f32 %v4398, %v4414
    %v4416 = vsub.f32 1.0, %v4415
    %v4417 = vmul.f32 %v4414, %v4416
    %v4418 = vadd.f32 %v4414, %v4417
    %vm4419 = vweird.f32 %v4398
    %vm4420 = vweird.f32 %v4414
    %vm4421 = vmor %vm4419, %vm4420
    %v4422 = vsel %vm4421, %v4414, %v4418
    %v4423 = vand.u32 2147483647, %v4398
    %vm4424 = vcmp.eq.f32.partialorder %v4423, 8.507059e+37
    %v4425 = vand.u32 %v4398, 2147483648
    %v4426 = vor.u32 1.1754944e-38, %v4425
    %v4427 = vsel %vm4424, %v4426, %v4422
    %v4428 = vmul.f32 1.0, %v4427
    %v4429 = vmul.f32 %v4428, 2.0
    %v4430 = vsub.f32 %v4429, 1.0
    %v4431 = vmul.f32 %v4413, %v4277
    %v4432 = vmul.f32 %v4413, %v4430
    %4434 = vrot.lane.b32.xlu0 %v4432, 64
    %v4435 = vpop.permute.xlu0 %4434
    %v4437 = vadd.f32 %v4431, %v4435
    %v4438 = vtanh.pop %v4437
    %v4439 = vmul.f32 %v4428, %v4438
    %4441 = vrot.lane.b32.xlu0 %v4439, 64
    %v4442 = vpop.permute.xlu0 %4441
    %v4443 = vsel %vm111, %v4442, 0
    %4445 = vmatpush.msra.mxu0 0.0
    %4446 = vmatpush.msra.mxu0 0.0
    %4447 = vmatpush.msra.mxu0 0.0
    %4448 = vmatpush.msra.mxu0 0.0
    %4449 = vmatpush.msra.mxu0 0.0
    %4450 = vmatpush.msra.mxu0 0.0
    %4451 = vmatpush.msra.mxu0 0.0
    %4452 = vmatpush.msra.mxu0 0.0
    %4453 = vmatpush.msra.mxu0 %v56
    %4454 = vmatpush.msra.mxu0 %v53
    %4455 = vmatpush.msra.mxu0 %v50
    %4456 = vmatpush.msra.mxu0 %v47
    %4457 = vmatpush.msra.mxu0 %v44
    %4458 = vmatpush.msra.mxu0 %v41
    %4459 = vmatpush.msra.mxu0 %v38
    %4460 = vmatpush.msra.mxu0 %v35
    %4461 = vmatmul.f32.gmra.mxu0 %v4443
    %v4462 = vpop.f32.mrf.mxu0
    %v4463 = vadd.f32 %v105, %v4462
    %4464 = vdwg.mxu0
    %4465 = vmatpush.msra.mxu0 0.0
    %4466 = vmatpush.msra.mxu0 0.0
    %4467 = vmatpush.msra.mxu0 0.0
    %4468 = vmatpush.msra.mxu0 0.0
    %4469 = vmatpush.msra.mxu0 0.0
    %4470 = vmatpush.msra.mxu0 0.0
    %4471 = vmatpush.msra.mxu0 0.0
    %4472 = vmatpush.msra.mxu0 0.0
    %4473 = vmatpush.msra.mxu0 %v57
    %4474 = vmatpush.msra.mxu0 %v54
    %4475 = vmatpush.msra.mxu0 %v51
    %4476 = vmatpush.msra.mxu0 %v48
    %4477 = vmatpush.msra.mxu0 %v45
    %4478 = vmatpush.msra.mxu0 %v42
    %4479 = vmatpush.msra.mxu0 %v39
    %4480 = vmatpush.msra.mxu0 %v36
    %4481 = vmatmul.f32.gmra.mxu0 %v4443
    %v4482 = vpop.f32.mrf.mxu0
    %v4483 = vadd.f32 %v106, %v4482
    %4484 = vdwg.mxu0
    %4485 = vmatpush.msra.mxu0 0.0
    %4486 = vmatpush.msra.mxu0 0.0
    %4487 = vmatpush.msra.mxu0 0.0
    %4488 = vmatpush.msra.mxu0 0.0
    %4489 = vmatpush.msra.mxu0 0.0
    %4490 = vmatpush.msra.mxu0 0.0
    %4491 = vmatpush.msra.mxu0 0.0
    %4492 = vmatpush.msra.mxu0 0.0
    %4493 = vmatpush.msra.mxu0 %v58
    %4494 = vmatpush.msra.mxu0 %v55
    %4495 = vmatpush.msra.mxu0 %v52
    %4496 = vmatpush.msra.mxu0 %v49
    %4497 = vmatpush.msra.mxu0 %v46
    %4498 = vmatpush.msra.mxu0 %v43
    %4499 = vmatpush.msra.mxu0 %v40
    %4500 = vmatpush.msra.mxu0 %v37
    %4501 = vmatmul.f32.gmra.mxu0 %v4443
    %v4502 = vpop.f32.mrf.mxu0
    %v4503 = vadd.f32 %v107, %v4502
    %4504 = vdwg.mxu0
    %vm4505 = vcmp.gt.f32.partialorder %v4503, 0.0
    %v4506 = vsel %vm4505, 1, 0
    %v4507 = vcvt.s32.f32 %v4506
    %4509 = vset.pattern.permute.xlu0 0
    %4510 = vperm.xlu0 %4509, %v4507
    %v4511 = vpop.permute.xlu0 %4510
    %v4513 = vmul.f32 %v4507, %v4511
    %v4514 = vld [vmem:[%s184] ss:$8 sm:$0x3]
    %v4515 = vld [vmem:[%s186] ss:$8 sm:$0x3]
    %v4516 = vld [vmem:[%s188] ss:$8 sm:$0x3]
    %4517 = vset.pattern.permute.xlu0 1
    %4518 = vperm.xlu0 %4517, %v4506
    %v4519 = vpop.permute.xlu0 %4518
    %vm4520 = vcmp.eq.s32.totalorder %v4519, 1
    %v4522 = vperm.slane %v4516, 0
    %v4523 = vperm.slane %v4516, 1
    %v4527 = vperm.slane %v4515, 0
    %v4528 = vperm.slane %v4515, 1
    %v4531 = vsel %vm4520, %v4522, %v4527
    %v4532 = vsel %vm4520, %v4523, %v4528
    %4533 = vset.pattern.permute.xlu0 0
    %4534 = vperm.xlu0 %4533, %v4506
    %v4535 = vpop.permute.xlu0 %4534
    %vm4536 = vcmp.eq.s32.totalorder %v4535, 1
    %v4538 = vperm.slane %v4514, 0
    %v4539 = vperm.slane %v4514, 1
    %v4542 = vsel %vm4536, %v4531, %v4538
    %v4543 = vsel %vm4536, %v4532, %v4539
    %4545 = vrot.lane.b32.xlu0 %v4513, 1
    %v4546 = vpop.permute.xlu0 %4545
    %4548 = vst.msk [vmem:[%s2 + $0x3] sm:$0x1] %vm221, %v4546
    %v4549 = vadd.f32 %v4542, %v4463
    %v4550 = vadd.f32 %v4543, %v4483
    %v4551 = vxor.u32 %v4549, 2147483648
    %v4552 = vxor.u32 %v4550, 2147483648
    %v4553 = vmul.f32 %v4551, 1.442695
    %v4554 = vpow.pop %v4553
    %v4555 = vmul.f32 %v4552, 1.442695
    %v4556 = vpow.pop %v4555
    %v4557 = vadd.f32 %v4554, 1.0
    %v4558 = vadd.f32 %v4556, 1.0
    %v4559 = vrcp.pop %v4557
    %v4560 = vmul.f32 %v4557, %v4559
    %v4561 = vsub.f32 1.0, %v4560
    %v4562 = vmul.f32 %v4559, %v4561
    %v4563 = vadd.f32 %v4559, %v4562
    %vm4564 = vweird.f32 %v4557
    %vm4565 = vweird.f32 %v4559
    %vm4566 = vmor %vm4564, %vm4565
    %v4567 = vsel %vm4566, %v4559, %v4563
    %v4568 = vand.u32 2147483647, %v4557
    %vm4569 = vcmp.eq.f32.partialorder %v4568, 8.507059e+37
    %v4570 = vand.u32 %v4557, 2147483648
    %v4571 = vor.u32 1.1754944e-38, %v4570
    %v4572 = vsel %vm4569, %v4571, %v4567
    %v4573 = vmul.f32 1.0, %v4572
    %v4574 = vrcp.pop %v4558
    %v4575 = vmul.f32 %v4558, %v4574
    %v4576 = vsub.f32 1.0, %v4575
    %v4577 = vmul.f32 %v4574, %v4576
    %v4578 = vadd.f32 %v4574, %v4577
    %vm4579 = vweird.f32 %v4558
    %vm4580 = vweird.f32 %v4574
    %vm4581 = vmor %vm4579, %vm4580
    %v4582 = vsel %vm4581, %v4574, %v4578
    %v4583 = vand.u32 2147483647, %v4558
    %vm4584 = vcmp.eq.f32.partialorder %v4583, 8.507059e+37
    %v4585 = vand.u32 %v4558, 2147483648
    %v4586 = vor.u32 1.1754944e-38, %v4585
    %v4587 = vsel %vm4584, %v4586, %v4582
    %v4588 = vmul.f32 1.0, %v4587
    %v4589 = vmul.f32 %v4588, 2.0
    %v4590 = vsub.f32 %v4589, 1.0
    %v4591 = vmul.f32 %v4573, %v4437
    %v4592 = vmul.f32 %v4573, %v4590
    %4594 = vrot.lane.b32.xlu0 %v4592, 64
    %v4595 = vpop.permute.xlu0 %4594
    %v4597 = vadd.f32 %v4591, %v4595
    %v4598 = vtanh.pop %v4597
    %v4599 = vmul.f32 %v4588, %v4598
    %4601 = vrot.lane.b32.xlu0 %v4599, 64
    %v4602 = vpop.permute.xlu0 %4601
    %v4603 = vsel %vm111, %v4602, 0
    %4605 = vmatpush.msra.mxu0 0.0
    %4606 = vmatpush.msra.mxu0 0.0
    %4607 = vmatpush.msra.mxu0 0.0
    %4608 = vmatpush.msra.mxu0 0.0
    %4609 = vmatpush.msra.mxu0 0.0
    %4610 = vmatpush.msra.mxu0 0.0
    %4611 = vmatpush.msra.mxu0 0.0
    %4612 = vmatpush.msra.mxu0 0.0
    %4613 = vmatpush.msra.mxu0 %v56
    %4614 = vmatpush.msra.mxu0 %v53
    %4615 = vmatpush.msra.mxu0 %v50
    %4616 = vmatpush.msra.mxu0 %v47
    %4617 = vmatpush.msra.mxu0 %v44
    %4618 = vmatpush.msra.mxu0 %v41
    %4619 = vmatpush.msra.mxu0 %v38
    %4620 = vmatpush.msra.mxu0 %v35
    %4621 = vmatmul.f32.gmra.mxu0 %v4603
    %v4622 = vpop.f32.mrf.mxu0
    %v4623 = vadd.f32 %v105, %v4622
    %4624 = vdwg.mxu0
    %4625 = vmatpush.msra.mxu0 0.0
    %4626 = vmatpush.msra.mxu0 0.0
    %4627 = vmatpush.msra.mxu0 0.0
    %4628 = vmatpush.msra.mxu0 0.0
    %4629 = vmatpush.msra.mxu0 0.0
    %4630 = vmatpush.msra.mxu0 0.0
    %4631 = vmatpush.msra.mxu0 0.0
    %4632 = vmatpush.msra.mxu0 0.0
    %4633 = vmatpush.msra.mxu0 %v57
    %4634 = vmatpush.msra.mxu0 %v54
    %4635 = vmatpush.msra.mxu0 %v51
    %4636 = vmatpush.msra.mxu0 %v48
    %4637 = vmatpush.msra.mxu0 %v45
    %4638 = vmatpush.msra.mxu0 %v42
    %4639 = vmatpush.msra.mxu0 %v39
    %4640 = vmatpush.msra.mxu0 %v36
    %4641 = vmatmul.f32.gmra.mxu0 %v4603
    %v4642 = vpop.f32.mrf.mxu0
    %v4643 = vadd.f32 %v106, %v4642
    %4644 = vdwg.mxu0
    %4645 = vmatpush.msra.mxu0 0.0
    %4646 = vmatpush.msra.mxu0 0.0
    %4647 = vmatpush.msra.mxu0 0.0
    %4648 = vmatpush.msra.mxu0 0.0
    %4649 = vmatpush.msra.mxu0 0.0
    %4650 = vmatpush.msra.mxu0 0.0
    %4651 = vmatpush.msra.mxu0 0.0
    %4652 = vmatpush.msra.mxu0 0.0
    %4653 = vmatpush.msra.mxu0 %v58
    %4654 = vmatpush.msra.mxu0 %v55
    %4655 = vmatpush.msra.mxu0 %v52
    %4656 = vmatpush.msra.mxu0 %v49
    %4657 = vmatpush.msra.mxu0 %v46
    %4658 = vmatpush.msra.mxu0 %v43
    %4659 = vmatpush.msra.mxu0 %v40
    %4660 = vmatpush.msra.mxu0 %v37
    %4661 = vmatmul.f32.gmra.mxu0 %v4603
    %v4662 = vpop.f32.mrf.mxu0
    %v4663 = vadd.f32 %v107, %v4662
    %4664 = vdwg.mxu0
    %vm4665 = vcmp.gt.f32.partialorder %v4663, 0.0
    %v4666 = vsel %vm4665, 1, 0
    %v4667 = vcvt.s32.f32 %v4666
    %4669 = vset.pattern.permute.xlu0 2
    %4670 = vperm.xlu0 %4669, %v4667
    %v4671 = vpop.permute.xlu0 %4670
    %v4673 = vmul.f32 %v4667, %v4671
    %v4674 = vld [vmem:[%s348] ss:$8 sm:$0x3]
    %v4675 = vld [vmem:[%s350] ss:$8 sm:$0x3]
    %v4676 = vld [vmem:[%s352] ss:$8 sm:$0x3]
    %4677 = vset.pattern.permute.xlu0 3
    %4678 = vperm.xlu0 %4677, %v4666
    %v4679 = vpop.permute.xlu0 %4678
    %vm4680 = vcmp.eq.s32.totalorder %v4679, 1
    %v4682 = vperm.slane %v4676, 0
    %v4683 = vperm.slane %v4676, 1
    %v4687 = vperm.slane %v4675, 0
    %v4688 = vperm.slane %v4675, 1
    %v4691 = vsel %vm4680, %v4682, %v4687
    %v4692 = vsel %vm4680, %v4683, %v4688
    %4693 = vset.pattern.permute.xlu0 2
    %4694 = vperm.xlu0 %4693, %v4666
    %v4695 = vpop.permute.xlu0 %4694
    %vm4696 = vcmp.eq.s32.totalorder %v4695, 1
    %v4698 = vperm.slane %v4674, 0
    %v4699 = vperm.slane %v4674, 1
    %v4702 = vsel %vm4696, %v4691, %v4698
    %v4703 = vsel %vm4696, %v4692, %v4699
    %4705 = vrot.lane.b32.xlu0 %v4673, 127
    %v4706 = vpop.permute.xlu0 %4705
    %4708 = vst.msk [vmem:[%s2 + $0x11] sm:$0x1] %vm221, %v4706
    %v4709 = vadd.f32 %v4702, %v4623
    %v4710 = vadd.f32 %v4703, %v4643
    %v4711 = vxor.u32 %v4709, 2147483648
    %v4712 = vxor.u32 %v4710, 2147483648
    %v4713 = vmul.f32 %v4711, 1.442695
    %v4714 = vpow.pop %v4713
    %v4715 = vmul.f32 %v4712, 1.442695
    %v4716 = vpow.pop %v4715
    %v4717 = vadd.f32 %v4714, 1.0
    %v4718 = vadd.f32 %v4716, 1.0
    %v4719 = vrcp.pop %v4717
    %v4720 = vmul.f32 %v4717, %v4719
    %v4721 = vsub.f32 1.0, %v4720
    %v4722 = vmul.f32 %v4719, %v4721
    %v4723 = vadd.f32 %v4719, %v4722
    %vm4724 = vweird.f32 %v4717
    %vm4725 = vweird.f32 %v4719
    %vm4726 = vmor %vm4724, %vm4725
    %v4727 = vsel %vm4726, %v4719, %v4723
    %v4728 = vand.u32 2147483647, %v4717
    %vm4729 = vcmp.eq.f32.partialorder %v4728, 8.507059e+37
    %v4730 = vand.u32 %v4717, 2147483648
    %v4731 = vor.u32 1.1754944e-38, %v4730
    %v4732 = vsel %vm4729, %v4731, %v4727
    %v4733 = vmul.f32 1.0, %v4732
    %v4734 = vrcp.pop %v4718
    %v4735 = vmul.f32 %v4718, %v4734
    %v4736 = vsub.f32 1.0, %v4735
    %v4737 = vmul.f32 %v4734, %v4736
    %v4738 = vadd.f32 %v4734, %v4737
    %vm4739 = vweird.f32 %v4718
    %vm4740 = vweird.f32 %v4734
    %vm4741 = vmor %vm4739, %vm4740
    %v4742 = vsel %vm4741, %v4734, %v4738
    %v4743 = vand.u32 2147483647, %v4718
    %vm4744 = vcmp.eq.f32.partialorder %v4743, 8.507059e+37
    %v4745 = vand.u32 %v4718, 2147483648
    %v4746 = vor.u32 1.1754944e-38, %v4745
    %v4747 = vsel %vm4744, %v4746, %v4742
    %v4748 = vmul.f32 1.0, %v4747
    %v4749 = vmul.f32 %v4748, 2.0
    %v4750 = vsub.f32 %v4749, 1.0
    %v4751 = vmul.f32 %v4733, %v4597
    %v4752 = vmul.f32 %v4733, %v4750
    %4754 = vrot.lane.b32.xlu0 %v4752, 64
    %v4755 = vpop.permute.xlu0 %4754
    %v4757 = vadd.f32 %v4751, %v4755
    %v4758 = vtanh.pop %v4757
    %v4759 = vmul.f32 %v4748, %v4758
    %4761 = vrot.lane.b32.xlu0 %v4759, 64
    %v4762 = vpop.permute.xlu0 %4761
    %v4763 = vsel %vm111, %v4762, 0
    %4765 = vmatpush.msra.mxu0 0.0
    %4766 = vmatpush.msra.mxu0 0.0
    %4767 = vmatpush.msra.mxu0 0.0
    %4768 = vmatpush.msra.mxu0 0.0
    %4769 = vmatpush.msra.mxu0 0.0
    %4770 = vmatpush.msra.mxu0 0.0
    %4771 = vmatpush.msra.mxu0 0.0
    %4772 = vmatpush.msra.mxu0 0.0
    %4773 = vmatpush.msra.mxu0 %v56
    %4774 = vmatpush.msra.mxu0 %v53
    %4775 = vmatpush.msra.mxu0 %v50
    %4776 = vmatpush.msra.mxu0 %v47
    %4777 = vmatpush.msra.mxu0 %v44
    %4778 = vmatpush.msra.mxu0 %v41
    %4779 = vmatpush.msra.mxu0 %v38
    %4780 = vmatpush.msra.mxu0 %v35
    %4781 = vmatmul.f32.gmra.mxu0 %v4763
    %v4782 = vpop.f32.mrf.mxu0
    %v4783 = vadd.f32 %v105, %v4782
    %4784 = vdwg.mxu0
    %4785 = vmatpush.msra.mxu0 0.0
    %4786 = vmatpush.msra.mxu0 0.0
    %4787 = vmatpush.msra.mxu0 0.0
    %4788 = vmatpush.msra.mxu0 0.0
    %4789 = vmatpush.msra.mxu0 0.0
    %4790 = vmatpush.msra.mxu0 0.0
    %4791 = vmatpush.msra.mxu0 0.0
    %4792 = vmatpush.msra.mxu0 0.0
    %4793 = vmatpush.msra.mxu0 %v57
    %4794 = vmatpush.msra.mxu0 %v54
    %4795 = vmatpush.msra.mxu0 %v51
    %4796 = vmatpush.msra.mxu0 %v48
    %4797 = vmatpush.msra.mxu0 %v45
    %4798 = vmatpush.msra.mxu0 %v42
    %4799 = vmatpush.msra.mxu0 %v39
    %4800 = vmatpush.msra.mxu0 %v36
    %4801 = vmatmul.f32.gmra.mxu0 %v4763
    %v4802 = vpop.f32.mrf.mxu0
    %v4803 = vadd.f32 %v106, %v4802
    %4804 = vdwg.mxu0
    %4805 = vmatpush.msra.mxu0 0.0
    %4806 = vmatpush.msra.mxu0 0.0
    %4807 = vmatpush.msra.mxu0 0.0
    %4808 = vmatpush.msra.mxu0 0.0
    %4809 = vmatpush.msra.mxu0 0.0
    %4810 = vmatpush.msra.mxu0 0.0
    %4811 = vmatpush.msra.mxu0 0.0
    %4812 = vmatpush.msra.mxu0 0.0
    %4813 = vmatpush.msra.mxu0 %v58
    %4814 = vmatpush.msra.mxu0 %v55
    %4815 = vmatpush.msra.mxu0 %v52
    %4816 = vmatpush.msra.mxu0 %v49
    %4817 = vmatpush.msra.mxu0 %v46
    %4818 = vmatpush.msra.mxu0 %v43
    %4819 = vmatpush.msra.mxu0 %v40
    %4820 = vmatpush.msra.mxu0 %v37
    %4821 = vmatmul.f32.gmra.mxu0 %v4763
    %v4822 = vpop.f32.mrf.mxu0
    %v4823 = vadd.f32 %v107, %v4822
    %4824 = vdwg.mxu0
    %vm4825 = vcmp.gt.f32.partialorder %v4823, 0.0
    %v4826 = vsel %vm4825, 1, 0
    %v4827 = vcvt.s32.f32 %v4826
    %4829 = vset.pattern.permute.xlu0 4
    %4830 = vperm.xlu0 %4829, %v4827
    %v4831 = vpop.permute.xlu0 %4830
    %v4833 = vmul.f32 %v4827, %v4831
    %v4834 = vld [vmem:[%s511] ss:$8 sm:$0x3]
    %v4835 = vld [vmem:[%s513] ss:$8 sm:$0x3]
    %v4836 = vld [vmem:[%s515] ss:$8 sm:$0x3]
    %4837 = vset.pattern.permute.xlu0 5
    %4838 = vperm.xlu0 %4837, %v4826
    %v4839 = vpop.permute.xlu0 %4838
    %vm4840 = vcmp.eq.s32.totalorder %v4839, 1
    %v4842 = vperm.slane %v4836, 0
    %v4843 = vperm.slane %v4836, 1
    %v4847 = vperm.slane %v4835, 0
    %v4848 = vperm.slane %v4835, 1
    %v4851 = vsel %vm4840, %v4842, %v4847
    %v4852 = vsel %vm4840, %v4843, %v4848
    %4853 = vset.pattern.permute.xlu0 4
    %4854 = vperm.xlu0 %4853, %v4826
    %v4855 = vpop.permute.xlu0 %4854
    %vm4856 = vcmp.eq.s32.totalorder %v4855, 1
    %v4858 = vperm.slane %v4834, 0
    %v4859 = vperm.slane %v4834, 1
    %v4862 = vsel %vm4856, %v4851, %v4858
    %v4863 = vsel %vm4856, %v4852, %v4859
    %4865 = vrot.lane.b32.xlu0 %v4833, 125
    %v4866 = vpop.permute.xlu0 %4865
    %4868 = vst.msk [vmem:[%s2 + $0x25] sm:$0x1] %vm221, %v4866
    %v4869 = vadd.f32 %v4862, %v4783
    %v4870 = vadd.f32 %v4863, %v4803
    %v4871 = vxor.u32 %v4869, 2147483648
    %v4872 = vxor.u32 %v4870, 2147483648
    %v4873 = vmul.f32 %v4871, 1.442695
    %v4874 = vpow.pop %v4873
    %v4875 = vmul.f32 %v4872, 1.442695
    %v4876 = vpow.pop %v4875
    %v4877 = vadd.f32 %v4874, 1.0
    %v4878 = vadd.f32 %v4876, 1.0
    %v4879 = vrcp.pop %v4877
    %v4880 = vmul.f32 %v4877, %v4879
    %v4881 = vsub.f32 1.0, %v4880
    %v4882 = vmul.f32 %v4879, %v4881
    %v4883 = vadd.f32 %v4879, %v4882
    %vm4884 = vweird.f32 %v4877
    %vm4885 = vweird.f32 %v4879
    %vm4886 = vmor %vm4884, %vm4885
    %v4887 = vsel %vm4886, %v4879, %v4883
    %v4888 = vand.u32 2147483647, %v4877
    %vm4889 = vcmp.eq.f32.partialorder %v4888, 8.507059e+37
    %v4890 = vand.u32 %v4877, 2147483648
    %v4891 = vor.u32 1.1754944e-38, %v4890
    %v4892 = vsel %vm4889, %v4891, %v4887
    %v4893 = vmul.f32 1.0, %v4892
    %v4894 = vrcp.pop %v4878
    %v4895 = vmul.f32 %v4878, %v4894
    %v4896 = vsub.f32 1.0, %v4895
    %v4897 = vmul.f32 %v4894, %v4896
    %v4898 = vadd.f32 %v4894, %v4897
    %vm4899 = vweird.f32 %v4878
    %vm4900 = vweird.f32 %v4894
    %vm4901 = vmor %vm4899, %vm4900
    %v4902 = vsel %vm4901, %v4894, %v4898
    %v4903 = vand.u32 2147483647, %v4878
    %vm4904 = vcmp.eq.f32.partialorder %v4903, 8.507059e+37
    %v4905 = vand.u32 %v4878, 2147483648
    %v4906 = vor.u32 1.1754944e-38, %v4905
    %v4907 = vsel %vm4904, %v4906, %v4902
    %v4908 = vmul.f32 1.0, %v4907
    %v4909 = vmul.f32 %v4908, 2.0
    %v4910 = vsub.f32 %v4909, 1.0
    %v4911 = vmul.f32 %v4893, %v4757
    %v4912 = vmul.f32 %v4893, %v4910
    %4914 = vrot.lane.b32.xlu0 %v4912, 64
    %v4915 = vpop.permute.xlu0 %4914
    %v4917 = vadd.f32 %v4911, %v4915
    %v4918 = vtanh.pop %v4917
    %v4919 = vmul.f32 %v4908, %v4918
    %4921 = vrot.lane.b32.xlu0 %v4919, 64
    %v4922 = vpop.permute.xlu0 %4921
    %v4923 = vsel %vm111, %v4922, 0
    %4925 = vmatpush.msra.mxu0 0.0
    %4926 = vmatpush.msra.mxu0 0.0
    %4927 = vmatpush.msra.mxu0 0.0
    %4928 = vmatpush.msra.mxu0 0.0
    %4929 = vmatpush.msra.mxu0 0.0
    %4930 = vmatpush.msra.mxu0 0.0
    %4931 = vmatpush.msra.mxu0 0.0
    %4932 = vmatpush.msra.mxu0 0.0
    %4933 = vmatpush.msra.mxu0 %v56
    %4934 = vmatpush.msra.mxu0 %v53
    %4935 = vmatpush.msra.mxu0 %v50
    %4936 = vmatpush.msra.mxu0 %v47
    %4937 = vmatpush.msra.mxu0 %v44
    %4938 = vmatpush.msra.mxu0 %v41
    %4939 = vmatpush.msra.mxu0 %v38
    %4940 = vmatpush.msra.mxu0 %v35
    %4941 = vmatmul.f32.gmra.mxu0 %v4923
    %v4942 = vpop.f32.mrf.mxu0
    %v4943 = vadd.f32 %v105, %v4942
    %4944 = vdwg.mxu0
    %4945 = vmatpush.msra.mxu0 0.0
    %4946 = vmatpush.msra.mxu0 0.0
    %4947 = vmatpush.msra.mxu0 0.0
    %4948 = vmatpush.msra.mxu0 0.0
    %4949 = vmatpush.msra.mxu0 0.0
    %4950 = vmatpush.msra.mxu0 0.0
    %4951 = vmatpush.msra.mxu0 0.0
    %4952 = vmatpush.msra.mxu0 0.0
    %4953 = vmatpush.msra.mxu0 %v57
    %4954 = vmatpush.msra.mxu0 %v54
    %4955 = vmatpush.msra.mxu0 %v51
    %4956 = vmatpush.msra.mxu0 %v48
    %4957 = vmatpush.msra.mxu0 %v45
    %4958 = vmatpush.msra.mxu0 %v42
    %4959 = vmatpush.msra.mxu0 %v39
    %4960 = vmatpush.msra.mxu0 %v36
    %4961 = vmatmul.f32.gmra.mxu0 %v4923
    %v4962 = vpop.f32.mrf.mxu0
    %v4963 = vadd.f32 %v106, %v4962
    %4964 = vdwg.mxu0
    %4965 = vmatpush.msra.mxu0 0.0
    %4966 = vmatpush.msra.mxu0 0.0
    %4967 = vmatpush.msra.mxu0 0.0
    %4968 = vmatpush.msra.mxu0 0.0
    %4969 = vmatpush.msra.mxu0 0.0
    %4970 = vmatpush.msra.mxu0 0.0
    %4971 = vmatpush.msra.mxu0 0.0
    %4972 = vmatpush.msra.mxu0 0.0
    %4973 = vmatpush.msra.mxu0 %v58
    %4974 = vmatpush.msra.mxu0 %v55
    %4975 = vmatpush.msra.mxu0 %v52
    %4976 = vmatpush.msra.mxu0 %v49
    %4977 = vmatpush.msra.mxu0 %v46
    %4978 = vmatpush.msra.mxu0 %v43
    %4979 = vmatpush.msra.mxu0 %v40
    %4980 = vmatpush.msra.mxu0 %v37
    %4981 = vmatmul.f32.gmra.mxu0 %v4923
    %v4982 = vpop.f32.mrf.mxu0
    %v4983 = vadd.f32 %v107, %v4982
    %4984 = vdwg.mxu0
    %vm4985 = vcmp.gt.f32.partialorder %v4983, 0.0
    %v4986 = vsel %vm4985, 1, 0
    %v4987 = vcvt.s32.f32 %v4986
    %4989 = vset.pattern.permute.xlu0 2
    %4990 = vperm.xlu0 %4989, %v4987
    %v4991 = vpop.permute.xlu0 %4990
    %v4993 = vmul.f32 %v4987, %v4991
    %v4994 = vld [vmem:[%s348] ss:$8 sm:$0x3]
    %v4995 = vld [vmem:[%s350] ss:$8 sm:$0x3]
    %v4996 = vld [vmem:[%s352] ss:$8 sm:$0x3]
    %4997 = vset.pattern.permute.xlu0 3
    %4998 = vperm.xlu0 %4997, %v4986
    %v4999 = vpop.permute.xlu0 %4998
    %vm5000 = vcmp.eq.s32.totalorder %v4999, 1
    %v5002 = vperm.slane %v4996, 0
    %v5003 = vperm.slane %v4996, 1
    %v5007 = vperm.slane %v4995, 0
    %v5008 = vperm.slane %v4995, 1
    %v5011 = vsel %vm5000, %v5002, %v5007
    %v5012 = vsel %vm5000, %v5003, %v5008
    %5013 = vset.pattern.permute.xlu0 2
    %5014 = vperm.xlu0 %5013, %v4986
    %v5015 = vpop.permute.xlu0 %5014
    %vm5016 = vcmp.eq.s32.totalorder %v5015, 1
    %v5018 = vperm.slane %v4994, 0
    %v5019 = vperm.slane %v4994, 1
    %v5022 = vsel %vm5016, %v5011, %v5018
    %v5023 = vsel %vm5016, %v5012, %v5019
    %5025 = vrot.lane.b32.xlu0 %v4993, 127
    %v5026 = vpop.permute.xlu0 %5025
    %5028 = vst.msk [vmem:[%s2 + $0x12] sm:$0x1] %vm221, %v5026
    %v5029 = vadd.f32 %v5022, %v4943
    %v5030 = vadd.f32 %v5023, %v4963
    %v5031 = vxor.u32 %v5029, 2147483648
    %v5032 = vxor.u32 %v5030, 2147483648
    %v5033 = vmul.f32 %v5031, 1.442695
    %v5034 = vpow.pop %v5033
    %v5035 = vmul.f32 %v5032, 1.442695
    %v5036 = vpow.pop %v5035
    %v5037 = vadd.f32 %v5034, 1.0
    %v5038 = vadd.f32 %v5036, 1.0
    %v5039 = vrcp.pop %v5037
    %v5040 = vmul.f32 %v5037, %v5039
    %v5041 = vsub.f32 1.0, %v5040
    %v5042 = vmul.f32 %v5039, %v5041
    %v5043 = vadd.f32 %v5039, %v5042
    %vm5044 = vweird.f32 %v5037
    %vm5045 = vweird.f32 %v5039
    %vm5046 = vmor %vm5044, %vm5045
    %v5047 = vsel %vm5046, %v5039, %v5043
    %v5048 = vand.u32 2147483647, %v5037
    %vm5049 = vcmp.eq.f32.partialorder %v5048, 8.507059e+37
    %v5050 = vand.u32 %v5037, 2147483648
    %v5051 = vor.u32 1.1754944e-38, %v5050
    %v5052 = vsel %vm5049, %v5051, %v5047
    %v5053 = vmul.f32 1.0, %v5052
    %v5054 = vrcp.pop %v5038
    %v5055 = vmul.f32 %v5038, %v5054
    %v5056 = vsub.f32 1.0, %v5055
    %v5057 = vmul.f32 %v5054, %v5056
    %v5058 = vadd.f32 %v5054, %v5057
    %vm5059 = vweird.f32 %v5038
    %vm5060 = vweird.f32 %v5054
    %vm5061 = vmor %vm5059, %vm5060
    %v5062 = vsel %vm5061, %v5054, %v5058
    %v5063 = vand.u32 2147483647, %v5038
    %vm5064 = vcmp.eq.f32.partialorder %v5063, 8.507059e+37
    %v5065 = vand.u32 %v5038, 2147483648
    %v5066 = vor.u32 1.1754944e-38, %v5065
    %v5067 = vsel %vm5064, %v5066, %v5062
    %v5068 = vmul.f32 1.0, %v5067
    %v5069 = vmul.f32 %v5068, 2.0
    %v5070 = vsub.f32 %v5069, 1.0
    %v5071 = vmul.f32 %v5053, %v4917
    %v5072 = vmul.f32 %v5053, %v5070
    %5074 = vrot.lane.b32.xlu0 %v5072, 64
    %v5075 = vpop.permute.xlu0 %5074
    %v5077 = vadd.f32 %v5071, %v5075
    %v5078 = vtanh.pop %v5077
    %v5079 = vmul.f32 %v5068, %v5078
    %5081 = vrot.lane.b32.xlu0 %v5079, 64
    %v5082 = vpop.permute.xlu0 %5081
    %v5083 = vsel %vm111, %v5082, 0
    %5085 = vmatpush.msra.mxu0 0.0
    %5086 = vmatpush.msra.mxu0 0.0
    %5087 = vmatpush.msra.mxu0 0.0
    %5088 = vmatpush.msra.mxu0 0.0
    %5089 = vmatpush.msra.mxu0 0.0
    %5090 = vmatpush.msra.mxu0 0.0
    %5091 = vmatpush.msra.mxu0 0.0
    %5092 = vmatpush.msra.mxu0 0.0
    %5093 = vmatpush.msra.mxu0 %v56
    %5094 = vmatpush.msra.mxu0 %v53
    %5095 = vmatpush.msra.mxu0 %v50
    %5096 = vmatpush.msra.mxu0 %v47
    %5097 = vmatpush.msra.mxu0 %v44
    %5098 = vmatpush.msra.mxu0 %v41
    %5099 = vmatpush.msra.mxu0 %v38
    %5100 = vmatpush.msra.mxu0 %v35
    %5101 = vmatmul.f32.gmra.mxu0 %v5083
    %v5102 = vpop.f32.mrf.mxu0
    %v5103 = vadd.f32 %v105, %v5102
    %5104 = vdwg.mxu0
    %5105 = vmatpush.msra.mxu0 0.0
    %5106 = vmatpush.msra.mxu0 0.0
    %5107 = vmatpush.msra.mxu0 0.0
    %5108 = vmatpush.msra.mxu0 0.0
    %5109 = vmatpush.msra.mxu0 0.0
    %5110 = vmatpush.msra.mxu0 0.0
    %5111 = vmatpush.msra.mxu0 0.0
    %5112 = vmatpush.msra.mxu0 0.0
    %5113 = vmatpush.msra.mxu0 %v57
    %5114 = vmatpush.msra.mxu0 %v54
    %5115 = vmatpush.msra.mxu0 %v51
    %5116 = vmatpush.msra.mxu0 %v48
    %5117 = vmatpush.msra.mxu0 %v45
    %5118 = vmatpush.msra.mxu0 %v42
    %5119 = vmatpush.msra.mxu0 %v39
    %5120 = vmatpush.msra.mxu0 %v36
    %5121 = vmatmul.f32.gmra.mxu0 %v5083
    %v5122 = vpop.f32.mrf.mxu0
    %v5123 = vadd.f32 %v106, %v5122
    %5124 = vdwg.mxu0
    %5125 = vmatpush.msra.mxu0 0.0
    %5126 = vmatpush.msra.mxu0 0.0
    %5127 = vmatpush.msra.mxu0 0.0
    %5128 = vmatpush.msra.mxu0 0.0
    %5129 = vmatpush.msra.mxu0 0.0
    %5130 = vmatpush.msra.mxu0 0.0
    %5131 = vmatpush.msra.mxu0 0.0
    %5132 = vmatpush.msra.mxu0 0.0
    %5133 = vmatpush.msra.mxu0 %v58
    %5134 = vmatpush.msra.mxu0 %v55
    %5135 = vmatpush.msra.mxu0 %v52
    %5136 = vmatpush.msra.mxu0 %v49
    %5137 = vmatpush.msra.mxu0 %v46
    %5138 = vmatpush.msra.mxu0 %v43
    %5139 = vmatpush.msra.mxu0 %v40
    %5140 = vmatpush.msra.mxu0 %v37
    %5141 = vmatmul.f32.gmra.mxu0 %v5083
    %v5142 = vpop.f32.mrf.mxu0
    %v5143 = vadd.f32 %v107, %v5142
    %5144 = vdwg.mxu0
    %vm5145 = vcmp.gt.f32.partialorder %v5143, 0.0
    %v5146 = vsel %vm5145, 1, 0
    %v5147 = vcvt.s32.f32 %v5146
    %5149 = vset.pattern.permute.xlu0 4
    %5150 = vperm.xlu0 %5149, %v5147
    %v5151 = vpop.permute.xlu0 %5150
    %v5153 = vmul.f32 %v5147, %v5151
    %v5154 = vld [vmem:[%s511] ss:$8 sm:$0x3]
    %v5155 = vld [vmem:[%s513] ss:$8 sm:$0x3]
    %v5156 = vld [vmem:[%s515] ss:$8 sm:$0x3]
    %5157 = vset.pattern.permute.xlu0 5
    %5158 = vperm.xlu0 %5157, %v5146
    %v5159 = vpop.permute.xlu0 %5158
    %vm5160 = vcmp.eq.s32.totalorder %v5159, 1
    %v5162 = vperm.slane %v5156, 0
    %v5163 = vperm.slane %v5156, 1
    %v5167 = vperm.slane %v5155, 0
    %v5168 = vperm.slane %v5155, 1
    %v5171 = vsel %vm5160, %v5162, %v5167
    %v5172 = vsel %vm5160, %v5163, %v5168
    %5173 = vset.pattern.permute.xlu0 4
    %5174 = vperm.xlu0 %5173, %v5146
    %v5175 = vpop.permute.xlu0 %5174
    %vm5176 = vcmp.eq.s32.totalorder %v5175, 1
    %v5178 = vperm.slane %v5154, 0
    %v5179 = vperm.slane %v5154, 1
    %v5182 = vsel %vm5176, %v5171, %v5178
    %v5183 = vsel %vm5176, %v5172, %v5179
    %5185 = vrot.lane.b32.xlu0 %v5153, 125
    %v5186 = vpop.permute.xlu0 %5185
    %5188 = vst.msk [vmem:[%s2 + $0x26] sm:$0x1] %vm221, %v5186
    %v5189 = vadd.f32 %v5182, %v5103
    %v5190 = vadd.f32 %v5183, %v5123
    %v5191 = vxor.u32 %v5189, 2147483648
    %v5192 = vxor.u32 %v5190, 2147483648
    %v5193 = vmul.f32 %v5191, 1.442695
    %v5194 = vpow.pop %v5193
    %v5195 = vmul.f32 %v5192, 1.442695
    %v5196 = vpow.pop %v5195
    %v5197 = vadd.f32 %v5194, 1.0
    %v5198 = vadd.f32 %v5196, 1.0
    %v5199 = vrcp.pop %v5197
    %v5200 = vmul.f32 %v5197, %v5199
    %v5201 = vsub.f32 1.0, %v5200
    %v5202 = vmul.f32 %v5199, %v5201
    %v5203 = vadd.f32 %v5199, %v5202
    %vm5204 = vweird.f32 %v5197
    %vm5205 = vweird.f32 %v5199
    %vm5206 = vmor %vm5204, %vm5205
    %v5207 = vsel %vm5206, %v5199, %v5203
    %v5208 = vand.u32 2147483647, %v5197
    %vm5209 = vcmp.eq.f32.partialorder %v5208, 8.507059e+37
    %v5210 = vand.u32 %v5197, 2147483648
    %v5211 = vor.u32 1.1754944e-38, %v5210
    %v5212 = vsel %vm5209, %v5211, %v5207
    %v5213 = vmul.f32 1.0, %v5212
    %v5214 = vrcp.pop %v5198
    %v5215 = vmul.f32 %v5198, %v5214
    %v5216 = vsub.f32 1.0, %v5215
    %v5217 = vmul.f32 %v5214, %v5216
    %v5218 = vadd.f32 %v5214, %v5217
    %vm5219 = vweird.f32 %v5198
    %vm5220 = vweird.f32 %v5214
    %vm5221 = vmor %vm5219, %vm5220
    %v5222 = vsel %vm5221, %v5214, %v5218
    %v5223 = vand.u32 2147483647, %v5198
    %vm5224 = vcmp.eq.f32.partialorder %v5223, 8.507059e+37
    %v5225 = vand.u32 %v5198, 2147483648
    %v5226 = vor.u32 1.1754944e-38, %v5225
    %v5227 = vsel %vm5224, %v5226, %v5222
    %v5228 = vmul.f32 1.0, %v5227
    %v5229 = vmul.f32 %v5228, 2.0
    %v5230 = vsub.f32 %v5229, 1.0
    %v5231 = vmul.f32 %v5213, %v5077
    %v5232 = vmul.f32 %v5213, %v5230
    %5234 = vrot.lane.b32.xlu0 %v5232, 64
    %v5235 = vpop.permute.xlu0 %5234
    %v5237 = vadd.f32 %v5231, %v5235
    %v5238 = vtanh.pop %v5237
    %v5239 = vmul.f32 %v5228, %v5238
    %5241 = vrot.lane.b32.xlu0 %v5239, 64
    %v5242 = vpop.permute.xlu0 %5241
    %v5243 = vsel %vm111, %v5242, 0
    %5245 = vmatpush.msra.mxu0 0.0
    %5246 = vmatpush.msra.mxu0 0.0
    %5247 = vmatpush.msra.mxu0 0.0
    %5248 = vmatpush.msra.mxu0 0.0
    %5249 = vmatpush.msra.mxu0 0.0
    %5250 = vmatpush.msra.mxu0 0.0
    %5251 = vmatpush.msra.mxu0 0.0
    %5252 = vmatpush.msra.mxu0 0.0
    %5253 = vmatpush.msra.mxu0 %v56
    %5254 = vmatpush.msra.mxu0 %v53
    %5255 = vmatpush.msra.mxu0 %v50
    %5256 = vmatpush.msra.mxu0 %v47
    %5257 = vmatpush.msra.mxu0 %v44
    %5258 = vmatpush.msra.mxu0 %v41
    %5259 = vmatpush.msra.mxu0 %v38
    %5260 = vmatpush.msra.mxu0 %v35
    %5261 = vmatmul.f32.gmra.mxu0 %v5243
    %v5262 = vpop.f32.mrf.mxu0
    %v5263 = vadd.f32 %v105, %v5262
    %5264 = vdwg.mxu0
    %5265 = vmatpush.msra.mxu0 0.0
    %5266 = vmatpush.msra.mxu0 0.0
    %5267 = vmatpush.msra.mxu0 0.0
    %5268 = vmatpush.msra.mxu0 0.0
    %5269 = vmatpush.msra.mxu0 0.0
    %5270 = vmatpush.msra.mxu0 0.0
    %5271 = vmatpush.msra.mxu0 0.0
    %5272 = vmatpush.msra.mxu0 0.0
    %5273 = vmatpush.msra.mxu0 %v57
    %5274 = vmatpush.msra.mxu0 %v54
    %5275 = vmatpush.msra.mxu0 %v51
    %5276 = vmatpush.msra.mxu0 %v48
    %5277 = vmatpush.msra.mxu0 %v45
    %5278 = vmatpush.msra.mxu0 %v42
    %5279 = vmatpush.msra.mxu0 %v39
    %5280 = vmatpush.msra.mxu0 %v36
    %5281 = vmatmul.f32.gmra.mxu0 %v5243
    %v5282 = vpop.f32.mrf.mxu0
    %v5283 = vadd.f32 %v106, %v5282
    %5284 = vdwg.mxu0
    %5285 = vmatpush.msra.mxu0 0.0
    %5286 = vmatpush.msra.mxu0 0.0
    %5287 = vmatpush.msra.mxu0 0.0
    %5288 = vmatpush.msra.mxu0 0.0
    %5289 = vmatpush.msra.mxu0 0.0
    %5290 = vmatpush.msra.mxu0 0.0
    %5291 = vmatpush.msra.mxu0 0.0
    %5292 = vmatpush.msra.mxu0 0.0
    %5293 = vmatpush.msra.mxu0 %v58
    %5294 = vmatpush.msra.mxu0 %v55
    %5295 = vmatpush.msra.mxu0 %v52
    %5296 = vmatpush.msra.mxu0 %v49
    %5297 = vmatpush.msra.mxu0 %v46
    %5298 = vmatpush.msra.mxu0 %v43
    %5299 = vmatpush.msra.mxu0 %v40
    %5300 = vmatpush.msra.mxu0 %v37
    %5301 = vmatmul.f32.gmra.mxu0 %v5243
    %v5302 = vpop.f32.mrf.mxu0
    %v5303 = vadd.f32 %v107, %v5302
    %5304 = vdwg.mxu0
    %vm5305 = vcmp.gt.f32.partialorder %v5303, 0.0
    %v5306 = vsel %vm5305, 1, 0
    %v5307 = vcvt.s32.f32 %v5306
    %5309 = vset.pattern.permute.xlu0 2
    %5310 = vperm.xlu0 %5309, %v5307
    %v5311 = vpop.permute.xlu0 %5310
    %v5313 = vmul.f32 %v5307, %v5311
    %v5314 = vld [vmem:[%s348] ss:$8 sm:$0x3]
    %v5315 = vld [vmem:[%s350] ss:$8 sm:$0x3]
    %v5316 = vld [vmem:[%s352] ss:$8 sm:$0x3]
    %5317 = vset.pattern.permute.xlu0 3
    %5318 = vperm.xlu0 %5317, %v5306
    %v5319 = vpop.permute.xlu0 %5318
    %vm5320 = vcmp.eq.s32.totalorder %v5319, 1
    %v5322 = vperm.slane %v5316, 0
    %v5323 = vperm.slane %v5316, 1
    %v5327 = vperm.slane %v5315, 0
    %v5328 = vperm.slane %v5315, 1
    %v5331 = vsel %vm5320, %v5322, %v5327
    %v5332 = vsel %vm5320, %v5323, %v5328
    %5333 = vset.pattern.permute.xlu0 2
    %5334 = vperm.xlu0 %5333, %v5306
    %v5335 = vpop.permute.xlu0 %5334
    %vm5336 = vcmp.eq.s32.totalorder %v5335, 1
    %v5338 = vperm.slane %v5314, 0
    %v5339 = vperm.slane %v5314, 1
    %v5342 = vsel %vm5336, %v5331, %v5338
    %v5343 = vsel %vm5336, %v5332, %v5339
    %5345 = vrot.lane.b32.xlu0 %v5313, 127
    %v5346 = vpop.permute.xlu0 %5345
    %5348 = vst.msk [vmem:[%s2 + $0x13] sm:$0x1] %vm221, %v5346
    %v5349 = vadd.f32 %v5342, %v5263
    %v5350 = vadd.f32 %v5343, %v5283
    %v5351 = vxor.u32 %v5349, 2147483648
    %v5352 = vxor.u32 %v5350, 2147483648
    %v5353 = vmul.f32 %v5351, 1.442695
    %v5354 = vpow.pop %v5353
    %v5355 = vmul.f32 %v5352, 1.442695
    %v5356 = vpow.pop %v5355
    %v5357 = vadd.f32 %v5354, 1.0
    %v5358 = vadd.f32 %v5356, 1.0
    %v5359 = vrcp.pop %v5357
    %v5360 = vmul.f32 %v5357, %v5359
    %v5361 = vsub.f32 1.0, %v5360
    %v5362 = vmul.f32 %v5359, %v5361
    %v5363 = vadd.f32 %v5359, %v5362
    %vm5364 = vweird.f32 %v5357
    %vm5365 = vweird.f32 %v5359
    %vm5366 = vmor %vm5364, %vm5365
    %v5367 = vsel %vm5366, %v5359, %v5363
    %v5368 = vand.u32 2147483647, %v5357
    %vm5369 = vcmp.eq.f32.partialorder %v5368, 8.507059e+37
    %v5370 = vand.u32 %v5357, 2147483648
    %v5371 = vor.u32 1.1754944e-38, %v5370
    %v5372 = vsel %vm5369, %v5371, %v5367
    %v5373 = vmul.f32 1.0, %v5372
    %v5374 = vrcp.pop %v5358
    %v5375 = vmul.f32 %v5358, %v5374
    %v5376 = vsub.f32 1.0, %v5375
    %v5377 = vmul.f32 %v5374, %v5376
    %v5378 = vadd.f32 %v5374, %v5377
    %vm5379 = vweird.f32 %v5358
    %vm5380 = vweird.f32 %v5374
    %vm5381 = vmor %vm5379, %vm5380
    %v5382 = vsel %vm5381, %v5374, %v5378
    %v5383 = vand.u32 2147483647, %v5358
    %vm5384 = vcmp.eq.f32.partialorder %v5383, 8.507059e+37
    %v5385 = vand.u32 %v5358, 2147483648
    %v5386 = vor.u32 1.1754944e-38, %v5385
    %v5387 = vsel %vm5384, %v5386, %v5382
    %v5388 = vmul.f32 1.0, %v5387
    %v5389 = vmul.f32 %v5388, 2.0
    %v5390 = vsub.f32 %v5389, 1.0
    %v5391 = vmul.f32 %v5373, %v5237
    %v5392 = vmul.f32 %v5373, %v5390
    %5394 = vrot.lane.b32.xlu0 %v5392, 64
    %v5395 = vpop.permute.xlu0 %5394
    %v5397 = vadd.f32 %v5391, %v5395
    %v5398 = vtanh.pop %v5397
    %v5399 = vmul.f32 %v5388, %v5398
    %5401 = vrot.lane.b32.xlu0 %v5399, 64
    %v5402 = vpop.permute.xlu0 %5401
    %v5403 = vsel %vm111, %v5402, 0
    %5405 = vmatpush.msra.mxu0 0.0
    %5406 = vmatpush.msra.mxu0 0.0
    %5407 = vmatpush.msra.mxu0 0.0
    %5408 = vmatpush.msra.mxu0 0.0
    %5409 = vmatpush.msra.mxu0 0.0
    %5410 = vmatpush.msra.mxu0 0.0
    %5411 = vmatpush.msra.mxu0 0.0
    %5412 = vmatpush.msra.mxu0 0.0
    %5413 = vmatpush.msra.mxu0 %v56
    %5414 = vmatpush.msra.mxu0 %v53
    %5415 = vmatpush.msra.mxu0 %v50
    %5416 = vmatpush.msra.mxu0 %v47
    %5417 = vmatpush.msra.mxu0 %v44
    %5418 = vmatpush.msra.mxu0 %v41
    %5419 = vmatpush.msra.mxu0 %v38
    %5420 = vmatpush.msra.mxu0 %v35
    %5421 = vmatmul.f32.gmra.mxu0 %v5403
    %v5422 = vpop.f32.mrf.mxu0
    %v5423 = vadd.f32 %v105, %v5422
    %5424 = vdwg.mxu0
    %5425 = vmatpush.msra.mxu0 0.0
    %5426 = vmatpush.msra.mxu0 0.0
    %5427 = vmatpush.msra.mxu0 0.0
    %5428 = vmatpush.msra.mxu0 0.0
    %5429 = vmatpush.msra.mxu0 0.0
    %5430 = vmatpush.msra.mxu0 0.0
    %5431 = vmatpush.msra.mxu0 0.0
    %5432 = vmatpush.msra.mxu0 0.0
    %5433 = vmatpush.msra.mxu0 %v57
    %5434 = vmatpush.msra.mxu0 %v54
    %5435 = vmatpush.msra.mxu0 %v51
    %5436 = vmatpush.msra.mxu0 %v48
    %5437 = vmatpush.msra.mxu0 %v45
    %5438 = vmatpush.msra.mxu0 %v42
    %5439 = vmatpush.msra.mxu0 %v39
    %5440 = vmatpush.msra.mxu0 %v36
    %5441 = vmatmul.f32.gmra.mxu0 %v5403
    %v5442 = vpop.f32.mrf.mxu0
    %v5443 = vadd.f32 %v106, %v5442
    %5444 = vdwg.mxu0
    %5445 = vmatpush.msra.mxu0 0.0
    %5446 = vmatpush.msra.mxu0 0.0
    %5447 = vmatpush.msra.mxu0 0.0
    %5448 = vmatpush.msra.mxu0 0.0
    %5449 = vmatpush.msra.mxu0 0.0
    %5450 = vmatpush.msra.mxu0 0.0
    %5451 = vmatpush.msra.mxu0 0.0
    %5452 = vmatpush.msra.mxu0 0.0
    %5453 = vmatpush.msra.mxu0 %v58
    %5454 = vmatpush.msra.mxu0 %v55
    %5455 = vmatpush.msra.mxu0 %v52
    %5456 = vmatpush.msra.mxu0 %v49
    %5457 = vmatpush.msra.mxu0 %v46
    %5458 = vmatpush.msra.mxu0 %v43
    %5459 = vmatpush.msra.mxu0 %v40
    %5460 = vmatpush.msra.mxu0 %v37
    %5461 = vmatmul.f32.gmra.mxu0 %v5403
    %v5462 = vpop.f32.mrf.mxu0
    %v5463 = vadd.f32 %v107, %v5462
    %5464 = vdwg.mxu0
    %vm5465 = vcmp.gt.f32.partialorder %v5463, 0.0
    %v5466 = vsel %vm5465, 1, 0
    %v5467 = vcvt.s32.f32 %v5466
    %5469 = vset.pattern.permute.xlu0 4
    %5470 = vperm.xlu0 %5469, %v5467
    %v5471 = vpop.permute.xlu0 %5470
    %v5473 = vmul.f32 %v5467, %v5471
    %v5474 = vld [vmem:[%s511] ss:$8 sm:$0x3]
    %v5475 = vld [vmem:[%s513] ss:$8 sm:$0x3]
    %v5476 = vld [vmem:[%s515] ss:$8 sm:$0x3]
    %5477 = vset.pattern.permute.xlu0 5
    %5478 = vperm.xlu0 %5477, %v5466
    %v5479 = vpop.permute.xlu0 %5478
    %vm5480 = vcmp.eq.s32.totalorder %v5479, 1
    %v5482 = vperm.slane %v5476, 0
    %v5483 = vperm.slane %v5476, 1
    %v5487 = vperm.slane %v5475, 0
    %v5488 = vperm.slane %v5475, 1
    %v5491 = vsel %vm5480, %v5482, %v5487
    %v5492 = vsel %vm5480, %v5483, %v5488
    %5493 = vset.pattern.permute.xlu0 4
    %5494 = vperm.xlu0 %5493, %v5466
    %v5495 = vpop.permute.xlu0 %5494
    %vm5496 = vcmp.eq.s32.totalorder %v5495, 1
    %v5498 = vperm.slane %v5474, 0
    %v5499 = vperm.slane %v5474, 1
    %v5502 = vsel %vm5496, %v5491, %v5498
    %v5503 = vsel %vm5496, %v5492, %v5499
    %5505 = vrot.lane.b32.xlu0 %v5473, 125
    %v5506 = vpop.permute.xlu0 %5505
    %5508 = vst.msk [vmem:[%s2 + $0x27] sm:$0x1] %vm221, %v5506
    %v5509 = vadd.f32 %v5502, %v5423
    %v5510 = vadd.f32 %v5503, %v5443
    %v5511 = vxor.u32 %v5509, 2147483648
    %v5512 = vxor.u32 %v5510, 2147483648
    %v5513 = vmul.f32 %v5511, 1.442695
    %v5514 = vpow.pop %v5513
    %v5515 = vmul.f32 %v5512, 1.442695
    %v5516 = vpow.pop %v5515
    %v5517 = vadd.f32 %v5514, 1.0
    %v5518 = vadd.f32 %v5516, 1.0
    %v5519 = vrcp.pop %v5517
    %v5520 = vmul.f32 %v5517, %v5519
    %v5521 = vsub.f32 1.0, %v5520
    %v5522 = vmul.f32 %v5519, %v5521
    %v5523 = vadd.f32 %v5519, %v5522
    %vm5524 = vweird.f32 %v5517
    %vm5525 = vweird.f32 %v5519
    %vm5526 = vmor %vm5524, %vm5525
    %v5527 = vsel %vm5526, %v5519, %v5523
    %v5528 = vand.u32 2147483647, %v5517
    %vm5529 = vcmp.eq.f32.partialorder %v5528, 8.507059e+37
    %v5530 = vand.u32 %v5517, 2147483648
    %v5531 = vor.u32 1.1754944e-38, %v5530
    %v5532 = vsel %vm5529, %v5531, %v5527
    %v5533 = vmul.f32 1.0, %v5532
    %v5534 = vrcp.pop %v5518
    %v5535 = vmul.f32 %v5518, %v5534
    %v5536 = vsub.f32 1.0, %v5535
    %v5537 = vmul.f32 %v5534, %v5536
    %v5538 = vadd.f32 %v5534, %v5537
    %vm5539 = vweird.f32 %v5518
    %vm5540 = vweird.f32 %v5534
    %vm5541 = vmor %vm5539, %vm5540
    %v5542 = vsel %vm5541, %v5534, %v5538
    %v5543 = vand.u32 2147483647, %v5518
    %vm5544 = vcmp.eq.f32.partialorder %v5543, 8.507059e+37
    %v5545 = vand.u32 %v5518, 2147483648
    %v5546 = vor.u32 1.1754944e-38, %v5545
    %v5547 = vsel %vm5544, %v5546, %v5542
    %v5548 = vmul.f32 1.0, %v5547
    %v5549 = vmul.f32 %v5548, 2.0
    %v5550 = vsub.f32 %v5549, 1.0
    %v5551 = vmul.f32 %v5533, %v5397
    %v5552 = vmul.f32 %v5533, %v5550
    %5554 = vrot.lane.b32.xlu0 %v5552, 64
    %v5555 = vpop.permute.xlu0 %5554
    %v5557 = vadd.f32 %v5551, %v5555
    %v5558 = vtanh.pop %v5557
    %v5559 = vmul.f32 %v5548, %v5558
    %5561 = vrot.lane.b32.xlu0 %v5559, 64
    %v5562 = vpop.permute.xlu0 %5561
    %v5563 = vsel %vm111, %v5562, 0
    %5565 = vmatpush.msra.mxu0 0.0
    %5566 = vmatpush.msra.mxu0 0.0
    %5567 = vmatpush.msra.mxu0 0.0
    %5568 = vmatpush.msra.mxu0 0.0
    %5569 = vmatpush.msra.mxu0 0.0
    %5570 = vmatpush.msra.mxu0 0.0
    %5571 = vmatpush.msra.mxu0 0.0
    %5572 = vmatpush.msra.mxu0 0.0
    %5573 = vmatpush.msra.mxu0 %v56
    %5574 = vmatpush.msra.mxu0 %v53
    %5575 = vmatpush.msra.mxu0 %v50
    %5576 = vmatpush.msra.mxu0 %v47
    %5577 = vmatpush.msra.mxu0 %v44
    %5578 = vmatpush.msra.mxu0 %v41
    %5579 = vmatpush.msra.mxu0 %v38
    %5580 = vmatpush.msra.mxu0 %v35
    %5581 = vmatmul.f32.gmra.mxu0 %v5563
    %v5582 = vpop.f32.mrf.mxu0
    %v5583 = vadd.f32 %v105, %v5582
    %5584 = vdwg.mxu0
    %5585 = vmatpush.msra.mxu0 0.0
    %5586 = vmatpush.msra.mxu0 0.0
    %5587 = vmatpush.msra.mxu0 0.0
    %5588 = vmatpush.msra.mxu0 0.0
    %5589 = vmatpush.msra.mxu0 0.0
    %5590 = vmatpush.msra.mxu0 0.0
    %5591 = vmatpush.msra.mxu0 0.0
    %5592 = vmatpush.msra.mxu0 0.0
    %5593 = vmatpush.msra.mxu0 %v57
    %5594 = vmatpush.msra.mxu0 %v54
    %5595 = vmatpush.msra.mxu0 %v51
    %5596 = vmatpush.msra.mxu0 %v48
    %5597 = vmatpush.msra.mxu0 %v45
    %5598 = vmatpush.msra.mxu0 %v42
    %5599 = vmatpush.msra.mxu0 %v39
    %5600 = vmatpush.msra.mxu0 %v36
    %5601 = vmatmul.f32.gmra.mxu0 %v5563
    %v5602 = vpop.f32.mrf.mxu0
    %v5603 = vadd.f32 %v106, %v5602
    %5604 = vdwg.mxu0
    %5605 = vmatpush.msra.mxu0 0.0
    %5606 = vmatpush.msra.mxu0 0.0
    %5607 = vmatpush.msra.mxu0 0.0
    %5608 = vmatpush.msra.mxu0 0.0
    %5609 = vmatpush.msra.mxu0 0.0
    %5610 = vmatpush.msra.mxu0 0.0
    %5611 = vmatpush.msra.mxu0 0.0
    %5612 = vmatpush.msra.mxu0 0.0
    %5613 = vmatpush.msra.mxu0 %v58
    %5614 = vmatpush.msra.mxu0 %v55
    %5615 = vmatpush.msra.mxu0 %v52
    %5616 = vmatpush.msra.mxu0 %v49
    %5617 = vmatpush.msra.mxu0 %v46
    %5618 = vmatpush.msra.mxu0 %v43
    %5619 = vmatpush.msra.mxu0 %v40
    %5620 = vmatpush.msra.mxu0 %v37
    %5621 = vmatmul.f32.gmra.mxu0 %v5563
    %v5622 = vpop.f32.mrf.mxu0
    %v5623 = vadd.f32 %v107, %v5622
    %5624 = vdwg.mxu0
    %vm5625 = vcmp.gt.f32.partialorder %v5623, 0.0
    %v5626 = vsel %vm5625, 1, 0
    %v5627 = vcvt.s32.f32 %v5626
    %5629 = vset.pattern.permute.xlu0 2
    %5630 = vperm.xlu0 %5629, %v5627
    %v5631 = vpop.permute.xlu0 %5630
    %v5633 = vmul.f32 %v5627, %v5631
    %v5634 = vld [vmem:[%s348] ss:$8 sm:$0x3]
    %v5635 = vld [vmem:[%s350] ss:$8 sm:$0x3]
    %v5636 = vld [vmem:[%s352] ss:$8 sm:$0x3]
    %5637 = vset.pattern.permute.xlu0 3
    %5638 = vperm.xlu0 %5637, %v5626
    %v5639 = vpop.permute.xlu0 %5638
    %vm5640 = vcmp.eq.s32.totalorder %v5639, 1
    %v5642 = vperm.slane %v5636, 0
    %v5643 = vperm.slane %v5636, 1
    %v5647 = vperm.slane %v5635, 0
    %v5648 = vperm.slane %v5635, 1
    %v5651 = vsel %vm5640, %v5642, %v5647
    %v5652 = vsel %vm5640, %v5643, %v5648
    %5653 = vset.pattern.permute.xlu0 2
    %5654 = vperm.xlu0 %5653, %v5626
    %v5655 = vpop.permute.xlu0 %5654
    %vm5656 = vcmp.eq.s32.totalorder %v5655, 1
    %v5658 = vperm.slane %v5634, 0
    %v5659 = vperm.slane %v5634, 1
    %v5662 = vsel %vm5656, %v5651, %v5658
    %v5663 = vsel %vm5656, %v5652, %v5659
    %5665 = vrot.lane.b32.xlu0 %v5633, 127
    %v5666 = vpop.permute.xlu0 %5665
    %5668 = vst.msk [vmem:[%s2 + $0x14] sm:$0x1] %vm221, %v5666
    %v5669 = vadd.f32 %v5662, %v5583
    %v5670 = vadd.f32 %v5663, %v5603
    %v5671 = vxor.u32 %v5669, 2147483648
    %v5672 = vxor.u32 %v5670, 2147483648
    %v5673 = vmul.f32 %v5671, 1.442695
    %v5674 = vpow.pop %v5673
    %v5675 = vmul.f32 %v5672, 1.442695
    %v5676 = vpow.pop %v5675
    %v5677 = vadd.f32 %v5674, 1.0
    %v5678 = vadd.f32 %v5676, 1.0
    %v5679 = vrcp.pop %v5677
    %v5680 = vmul.f32 %v5677, %v5679
    %v5681 = vsub.f32 1.0, %v5680
    %v5682 = vmul.f32 %v5679, %v5681
    %v5683 = vadd.f32 %v5679, %v5682
    %vm5684 = vweird.f32 %v5677
    %vm5685 = vweird.f32 %v5679
    %vm5686 = vmor %vm5684, %vm5685
    %v5687 = vsel %vm5686, %v5679, %v5683
    %v5688 = vand.u32 2147483647, %v5677
    %vm5689 = vcmp.eq.f32.partialorder %v5688, 8.507059e+37
    %v5690 = vand.u32 %v5677, 2147483648
    %v5691 = vor.u32 1.1754944e-38, %v5690
    %v5692 = vsel %vm5689, %v5691, %v5687
    %v5693 = vmul.f32 1.0, %v5692
    %v5694 = vrcp.pop %v5678
    %v5695 = vmul.f32 %v5678, %v5694
    %v5696 = vsub.f32 1.0, %v5695
    %v5697 = vmul.f32 %v5694, %v5696
    %v5698 = vadd.f32 %v5694, %v5697
    %vm5699 = vweird.f32 %v5678
    %vm5700 = vweird.f32 %v5694
    %vm5701 = vmor %vm5699, %vm5700
    %v5702 = vsel %vm5701, %v5694, %v5698
    %v5703 = vand.u32 2147483647, %v5678
    %vm5704 = vcmp.eq.f32.partialorder %v5703, 8.507059e+37
    %v5705 = vand.u32 %v5678, 2147483648
    %v5706 = vor.u32 1.1754944e-38, %v5705
    %v5707 = vsel %vm5704, %v5706, %v5702
    %v5708 = vmul.f32 1.0, %v5707
    %v5709 = vmul.f32 %v5708, 2.0
    %v5710 = vsub.f32 %v5709, 1.0
    %v5711 = vmul.f32 %v5693, %v5557
    %v5712 = vmul.f32 %v5693, %v5710
    %5714 = vrot.lane.b32.xlu0 %v5712, 64
    %v5715 = vpop.permute.xlu0 %5714
    %v5717 = vadd.f32 %v5711, %v5715
    %v5718 = vtanh.pop %v5717
    %v5719 = vmul.f32 %v5708, %v5718
    %5721 = vrot.lane.b32.xlu0 %v5719, 64
    %v5722 = vpop.permute.xlu0 %5721
    %v5723 = vsel %vm111, %v5722, 0
    %5725 = vmatpush.msra.mxu0 0.0
    %5726 = vmatpush.msra.mxu0 0.0
    %5727 = vmatpush.msra.mxu0 0.0
    %5728 = vmatpush.msra.mxu0 0.0
    %5729 = vmatpush.msra.mxu0 0.0
    %5730 = vmatpush.msra.mxu0 0.0
    %5731 = vmatpush.msra.mxu0 0.0
    %5732 = vmatpush.msra.mxu0 0.0
    %5733 = vmatpush.msra.mxu0 %v56
    %5734 = vmatpush.msra.mxu0 %v53
    %5735 = vmatpush.msra.mxu0 %v50
    %5736 = vmatpush.msra.mxu0 %v47
    %5737 = vmatpush.msra.mxu0 %v44
    %5738 = vmatpush.msra.mxu0 %v41
    %5739 = vmatpush.msra.mxu0 %v38
    %5740 = vmatpush.msra.mxu0 %v35
    %5741 = vmatmul.f32.gmra.mxu0 %v5723
    %v5742 = vpop.f32.mrf.mxu0
    %v5743 = vadd.f32 %v105, %v5742
    %5744 = vdwg.mxu0
    %5745 = vmatpush.msra.mxu0 0.0
    %5746 = vmatpush.msra.mxu0 0.0
    %5747 = vmatpush.msra.mxu0 0.0
    %5748 = vmatpush.msra.mxu0 0.0
    %5749 = vmatpush.msra.mxu0 0.0
    %5750 = vmatpush.msra.mxu0 0.0
    %5751 = vmatpush.msra.mxu0 0.0
    %5752 = vmatpush.msra.mxu0 0.0
    %5753 = vmatpush.msra.mxu0 %v57
    %5754 = vmatpush.msra.mxu0 %v54
    %5755 = vmatpush.msra.mxu0 %v51
    %5756 = vmatpush.msra.mxu0 %v48
    %5757 = vmatpush.msra.mxu0 %v45
    %5758 = vmatpush.msra.mxu0 %v42
    %5759 = vmatpush.msra.mxu0 %v39
    %5760 = vmatpush.msra.mxu0 %v36
    %5761 = vmatmul.f32.gmra.mxu0 %v5723
    %v5762 = vpop.f32.mrf.mxu0
    %v5763 = vadd.f32 %v106, %v5762
    %5764 = vdwg.mxu0
    %5765 = vmatpush.msra.mxu0 0.0
    %5766 = vmatpush.msra.mxu0 0.0
    %5767 = vmatpush.msra.mxu0 0.0
    %5768 = vmatpush.msra.mxu0 0.0
    %5769 = vmatpush.msra.mxu0 0.0
    %5770 = vmatpush.msra.mxu0 0.0
    %5771 = vmatpush.msra.mxu0 0.0
    %5772 = vmatpush.msra.mxu0 0.0
    %5773 = vmatpush.msra.mxu0 %v58
    %5774 = vmatpush.msra.mxu0 %v55
    %5775 = vmatpush.msra.mxu0 %v52
    %5776 = vmatpush.msra.mxu0 %v49
    %5777 = vmatpush.msra.mxu0 %v46
    %5778 = vmatpush.msra.mxu0 %v43
    %5779 = vmatpush.msra.mxu0 %v40
    %5780 = vmatpush.msra.mxu0 %v37
    %5781 = vmatmul.f32.gmra.mxu0 %v5723
    %v5782 = vpop.f32.mrf.mxu0
    %v5783 = vadd.f32 %v107, %v5782
    %5784 = vdwg.mxu0
    %vm5785 = vcmp.gt.f32.partialorder %v5783, 0.0
    %v5786 = vsel %vm5785, 1, 0
    %v5787 = vcvt.s32.f32 %v5786
    %5789 = vset.pattern.permute.xlu0 4
    %5790 = vperm.xlu0 %5789, %v5787
    %v5791 = vpop.permute.xlu0 %5790
    %v5793 = vmul.f32 %v5787, %v5791
    %v5794 = vld [vmem:[%s511] ss:$8 sm:$0x3]
    %v5795 = vld [vmem:[%s513] ss:$8 sm:$0x3]
    %v5796 = vld [vmem:[%s515] ss:$8 sm:$0x3]
    %5797 = vset.pattern.permute.xlu0 5
    %5798 = vperm.xlu0 %5797, %v5786
    %v5799 = vpop.permute.xlu0 %5798
    %vm5800 = vcmp.eq.s32.totalorder %v5799, 1
    %v5802 = vperm.slane %v5796, 0
    %v5803 = vperm.slane %v5796, 1
    %v5807 = vperm.slane %v5795, 0
    %v5808 = vperm.slane %v5795, 1
    %v5811 = vsel %vm5800, %v5802, %v5807
    %v5812 = vsel %vm5800, %v5803, %v5808
    %5813 = vset.pattern.permute.xlu0 4
    %5814 = vperm.xlu0 %5813, %v5786
    %v5815 = vpop.permute.xlu0 %5814
    %vm5816 = vcmp.eq.s32.totalorder %v5815, 1
    %v5818 = vperm.slane %v5794, 0
    %v5819 = vperm.slane %v5794, 1
    %v5822 = vsel %vm5816, %v5811, %v5818
    %v5823 = vsel %vm5816, %v5812, %v5819
    %5825 = vrot.lane.b32.xlu0 %v5793, 125
    %v5826 = vpop.permute.xlu0 %5825
    %5828 = vst.msk [vmem:[%s2 + $0x28] sm:$0x1] %vm221, %v5826
    %v5829 = vadd.f32 %v5822, %v5743
    %v5830 = vadd.f32 %v5823, %v5763
    %v5831 = vxor.u32 %v5829, 2147483648
    %v5832 = vxor.u32 %v5830, 2147483648
    %v5833 = vmul.f32 %v5831, 1.442695
    %v5834 = vpow.pop %v5833
    %v5835 = vmul.f32 %v5832, 1.442695
    %v5836 = vpow.pop %v5835
    %v5837 = vadd.f32 %v5834, 1.0
    %v5838 = vadd.f32 %v5836, 1.0
    %v5839 = vrcp.pop %v5837
    %v5840 = vmul.f32 %v5837, %v5839
    %v5841 = vsub.f32 1.0, %v5840
    %v5842 = vmul.f32 %v5839, %v5841
    %v5843 = vadd.f32 %v5839, %v5842
    %vm5844 = vweird.f32 %v5837
    %vm5845 = vweird.f32 %v5839
    %vm5846 = vmor %vm5844, %vm5845
    %v5847 = vsel %vm5846, %v5839, %v5843
    %v5848 = vand.u32 2147483647, %v5837
    %vm5849 = vcmp.eq.f32.partialorder %v5848, 8.507059e+37
    %v5850 = vand.u32 %v5837, 2147483648
    %v5851 = vor.u32 1.1754944e-38, %v5850
    %v5852 = vsel %vm5849, %v5851, %v5847
    %v5853 = vmul.f32 1.0, %v5852
    %v5854 = vrcp.pop %v5838
    %v5855 = vmul.f32 %v5838, %v5854
    %v5856 = vsub.f32 1.0, %v5855
    %v5857 = vmul.f32 %v5854, %v5856
    %v5858 = vadd.f32 %v5854, %v5857
    %vm5859 = vweird.f32 %v5838
    %vm5860 = vweird.f32 %v5854
    %vm5861 = vmor %vm5859, %vm5860
    %v5862 = vsel %vm5861, %v5854, %v5858
    %v5863 = vand.u32 2147483647, %v5838
    %vm5864 = vcmp.eq.f32.partialorder %v5863, 8.507059e+37
    %v5865 = vand.u32 %v5838, 2147483648
    %v5866 = vor.u32 1.1754944e-38, %v5865
    %v5867 = vsel %vm5864, %v5866, %v5862
    %v5868 = vmul.f32 1.0, %v5867
    %v5869 = vmul.f32 %v5868, 2.0
    %v5870 = vsub.f32 %v5869, 1.0
    %v5871 = vmul.f32 %v5853, %v5717
    %v5872 = vmul.f32 %v5853, %v5870
    %5874 = vrot.lane.b32.xlu0 %v5872, 64
    %v5875 = vpop.permute.xlu0 %5874
    %v5877 = vadd.f32 %v5871, %v5875
    %v5878 = vtanh.pop %v5877
    %v5879 = vmul.f32 %v5868, %v5878
    %5881 = vrot.lane.b32.xlu0 %v5879, 64
    %v5882 = vpop.permute.xlu0 %5881
    %v5883 = vsel %vm111, %v5882, 0
    %5885 = vmatpush.msra.mxu0 0.0
    %5886 = vmatpush.msra.mxu0 0.0
    %5887 = vmatpush.msra.mxu0 0.0
    %5888 = vmatpush.msra.mxu0 0.0
    %5889 = vmatpush.msra.mxu0 0.0
    %5890 = vmatpush.msra.mxu0 0.0
    %5891 = vmatpush.msra.mxu0 0.0
    %5892 = vmatpush.msra.mxu0 0.0
    %5893 = vmatpush.msra.mxu0 %v56
    %5894 = vmatpush.msra.mxu0 %v53
    %5895 = vmatpush.msra.mxu0 %v50
    %5896 = vmatpush.msra.mxu0 %v47
    %5897 = vmatpush.msra.mxu0 %v44
    %5898 = vmatpush.msra.mxu0 %v41
    %5899 = vmatpush.msra.mxu0 %v38
    %5900 = vmatpush.msra.mxu0 %v35
    %5901 = vmatmul.f32.gmra.mxu0 %v5883
    %v5902 = vpop.f32.mrf.mxu0
    %v5903 = vadd.f32 %v105, %v5902
    %5904 = vdwg.mxu0
    %5905 = vmatpush.msra.mxu0 0.0
    %5906 = vmatpush.msra.mxu0 0.0
    %5907 = vmatpush.msra.mxu0 0.0
    %5908 = vmatpush.msra.mxu0 0.0
    %5909 = vmatpush.msra.mxu0 0.0
    %5910 = vmatpush.msra.mxu0 0.0
    %5911 = vmatpush.msra.mxu0 0.0
    %5912 = vmatpush.msra.mxu0 0.0
    %5913 = vmatpush.msra.mxu0 %v57
    %5914 = vmatpush.msra.mxu0 %v54
    %5915 = vmatpush.msra.mxu0 %v51
    %5916 = vmatpush.msra.mxu0 %v48
    %5917 = vmatpush.msra.mxu0 %v45
    %5918 = vmatpush.msra.mxu0 %v42
    %5919 = vmatpush.msra.mxu0 %v39
    %5920 = vmatpush.msra.mxu0 %v36
    %5921 = vmatmul.f32.gmra.mxu0 %v5883
    %v5922 = vpop.f32.mrf.mxu0
    %v5923 = vadd.f32 %v106, %v5922
    %5924 = vdwg.mxu0
    %5925 = vmatpush.msra.mxu0 0.0
    %5926 = vmatpush.msra.mxu0 0.0
    %5927 = vmatpush.msra.mxu0 0.0
    %5928 = vmatpush.msra.mxu0 0.0
    %5929 = vmatpush.msra.mxu0 0.0
    %5930 = vmatpush.msra.mxu0 0.0
    %5931 = vmatpush.msra.mxu0 0.0
    %5932 = vmatpush.msra.mxu0 0.0
    %5933 = vmatpush.msra.mxu0 %v58
    %5934 = vmatpush.msra.mxu0 %v55
    %5935 = vmatpush.msra.mxu0 %v52
    %5936 = vmatpush.msra.mxu0 %v49
    %5937 = vmatpush.msra.mxu0 %v46
    %5938 = vmatpush.msra.mxu0 %v43
    %5939 = vmatpush.msra.mxu0 %v40
    %5940 = vmatpush.msra.mxu0 %v37
    %5941 = vmatmul.f32.gmra.mxu0 %v5883
    %v5942 = vpop.f32.mrf.mxu0
    %v5943 = vadd.f32 %v107, %v5942
    %5944 = vdwg.mxu0
    %vm5945 = vcmp.gt.f32.partialorder %v5943, 0.0
    %v5946 = vsel %vm5945, 1, 0
    %v5947 = vcvt.s32.f32 %v5946
    %5949 = vset.pattern.permute.xlu0 0
    %5950 = vperm.xlu0 %5949, %v5947
    %v5951 = vpop.permute.xlu0 %5950
    %v5953 = vmul.f32 %v5947, %v5951
    %v5954 = vld [vmem:[%s184] ss:$8 sm:$0x3]
    %v5955 = vld [vmem:[%s186] ss:$8 sm:$0x3]
    %v5956 = vld [vmem:[%s188] ss:$8 sm:$0x3]
    %5957 = vset.pattern.permute.xlu0 1
    %5958 = vperm.xlu0 %5957, %v5946
    %v5959 = vpop.permute.xlu0 %5958
    %vm5960 = vcmp.eq.s32.totalorder %v5959, 1
    %v5962 = vperm.slane %v5956, 0
    %v5963 = vperm.slane %v5956, 1
    %v5967 = vperm.slane %v5955, 0
    %v5968 = vperm.slane %v5955, 1
    %v5971 = vsel %vm5960, %v5962, %v5967
    %v5972 = vsel %vm5960, %v5963, %v5968
    %5973 = vset.pattern.permute.xlu0 0
    %5974 = vperm.xlu0 %5973, %v5946
    %v5975 = vpop.permute.xlu0 %5974
    %vm5976 = vcmp.eq.s32.totalorder %v5975, 1
    %v5978 = vperm.slane %v5954, 0
    %v5979 = vperm.slane %v5954, 1
    %v5982 = vsel %vm5976, %v5971, %v5978
    %v5983 = vsel %vm5976, %v5972, %v5979
    %5985 = vrot.lane.b32.xlu0 %v5953, 1
    %v5986 = vpop.permute.xlu0 %5985
    %5988 = vst.msk [vmem:[%s2 + $0x4] sm:$0x1] %vm221, %v5986
    %v5989 = vadd.f32 %v5982, %v5903
    %v5990 = vadd.f32 %v5983, %v5923
    %v5991 = vxor.u32 %v5989, 2147483648
    %v5992 = vxor.u32 %v5990, 2147483648
    %v5993 = vmul.f32 %v5991, 1.442695
    %v5994 = vpow.pop %v5993
    %v5995 = vmul.f32 %v5992, 1.442695
    %v5996 = vpow.pop %v5995
    %v5997 = vadd.f32 %v5994, 1.0
    %v5998 = vadd.f32 %v5996, 1.0
    %v5999 = vrcp.pop %v5997
    %v6000 = vmul.f32 %v5997, %v5999
    %v6001 = vsub.f32 1.0, %v6000
    %v6002 = vmul.f32 %v5999, %v6001
    %v6003 = vadd.f32 %v5999, %v6002
    %vm6004 = vweird.f32 %v5997
    %vm6005 = vweird.f32 %v5999
    %vm6006 = vmor %vm6004, %vm6005
    %v6007 = vsel %vm6006, %v5999, %v6003
    %v6008 = vand.u32 2147483647, %v5997
    %vm6009 = vcmp.eq.f32.partialorder %v6008, 8.507059e+37
    %v6010 = vand.u32 %v5997, 2147483648
    %v6011 = vor.u32 1.1754944e-38, %v6010
    %v6012 = vsel %vm6009, %v6011, %v6007
    %v6013 = vmul.f32 1.0, %v6012
    %v6014 = vrcp.pop %v5998
    %v6015 = vmul.f32 %v5998, %v6014
    %v6016 = vsub.f32 1.0, %v6015
    %v6017 = vmul.f32 %v6014, %v6016
    %v6018 = vadd.f32 %v6014, %v6017
    %vm6019 = vweird.f32 %v5998
    %vm6020 = vweird.f32 %v6014
    %vm6021 = vmor %vm6019, %vm6020
    %v6022 = vsel %vm6021, %v6014, %v6018
    %v6023 = vand.u32 2147483647, %v5998
    %vm6024 = vcmp.eq.f32.partialorder %v6023, 8.507059e+37
    %v6025 = vand.u32 %v5998, 2147483648
    %v6026 = vor.u32 1.1754944e-38, %v6025
    %v6027 = vsel %vm6024, %v6026, %v6022
    %v6028 = vmul.f32 1.0, %v6027
    %v6029 = vmul.f32 %v6028, 2.0
    %v6030 = vsub.f32 %v6029, 1.0
    %v6031 = vmul.f32 %v6013, %v5877
    %v6032 = vmul.f32 %v6013, %v6030
    %6034 = vrot.lane.b32.xlu0 %v6032, 64
    %v6035 = vpop.permute.xlu0 %6034
    %v6037 = vadd.f32 %v6031, %v6035
    %v6038 = vtanh.pop %v6037
    %v6039 = vmul.f32 %v6028, %v6038
    %6041 = vrot.lane.b32.xlu0 %v6039, 64
    %v6042 = vpop.permute.xlu0 %6041
    %v6043 = vsel %vm111, %v6042, 0
    %6045 = vmatpush.msra.mxu0 0.0
    %6046 = vmatpush.msra.mxu0 0.0
    %6047 = vmatpush.msra.mxu0 0.0
    %6048 = vmatpush.msra.mxu0 0.0
    %6049 = vmatpush.msra.mxu0 0.0
    %6050 = vmatpush.msra.mxu0 0.0
    %6051 = vmatpush.msra.mxu0 0.0
    %6052 = vmatpush.msra.mxu0 0.0
    %6053 = vmatpush.msra.mxu0 %v56
    %6054 = vmatpush.msra.mxu0 %v53
    %6055 = vmatpush.msra.mxu0 %v50
    %6056 = vmatpush.msra.mxu0 %v47
    %6057 = vmatpush.msra.mxu0 %v44
    %6058 = vmatpush.msra.mxu0 %v41
    %6059 = vmatpush.msra.mxu0 %v38
    %6060 = vmatpush.msra.mxu0 %v35
    %6061 = vmatmul.f32.gmra.mxu0 %v6043
    %v6062 = vpop.f32.mrf.mxu0
    %v6063 = vadd.f32 %v105, %v6062
    %6064 = vdwg.mxu0
    %6065 = vmatpush.msra.mxu0 0.0
    %6066 = vmatpush.msra.mxu0 0.0
    %6067 = vmatpush.msra.mxu0 0.0
    %6068 = vmatpush.msra.mxu0 0.0
    %6069 = vmatpush.msra.mxu0 0.0
    %6070 = vmatpush.msra.mxu0 0.0
    %6071 = vmatpush.msra.mxu0 0.0
    %6072 = vmatpush.msra.mxu0 0.0
    %6073 = vmatpush.msra.mxu0 %v57
    %6074 = vmatpush.msra.mxu0 %v54
    %6075 = vmatpush.msra.mxu0 %v51
    %6076 = vmatpush.msra.mxu0 %v48
    %6077 = vmatpush.msra.mxu0 %v45
    %6078 = vmatpush.msra.mxu0 %v42
    %6079 = vmatpush.msra.mxu0 %v39
    %6080 = vmatpush.msra.mxu0 %v36
    %6081 = vmatmul.f32.gmra.mxu0 %v6043
    %v6082 = vpop.f32.mrf.mxu0
    %v6083 = vadd.f32 %v106, %v6082
    %6084 = vdwg.mxu0
    %6085 = vmatpush.msra.mxu0 0.0
    %6086 = vmatpush.msra.mxu0 0.0
    %6087 = vmatpush.msra.mxu0 0.0
    %6088 = vmatpush.msra.mxu0 0.0
    %6089 = vmatpush.msra.mxu0 0.0
    %6090 = vmatpush.msra.mxu0 0.0
    %6091 = vmatpush.msra.mxu0 0.0
    %6092 = vmatpush.msra.mxu0 0.0
    %6093 = vmatpush.msra.mxu0 %v58
    %6094 = vmatpush.msra.mxu0 %v55
    %6095 = vmatpush.msra.mxu0 %v52
    %6096 = vmatpush.msra.mxu0 %v49
    %6097 = vmatpush.msra.mxu0 %v46
    %6098 = vmatpush.msra.mxu0 %v43
    %6099 = vmatpush.msra.mxu0 %v40
    %6100 = vmatpush.msra.mxu0 %v37
    %6101 = vmatmul.f32.gmra.mxu0 %v6043
    %v6102 = vpop.f32.mrf.mxu0
    %v6103 = vadd.f32 %v107, %v6102
    %6104 = vdwg.mxu0
    %vm6105 = vcmp.gt.f32.partialorder %v6103, 0.0
    %v6106 = vsel %vm6105, 1, 0
    %v6107 = vcvt.s32.f32 %v6106
    %6109 = vset.pattern.permute.xlu0 2
    %6110 = vperm.xlu0 %6109, %v6107
    %v6111 = vpop.permute.xlu0 %6110
    %v6113 = vmul.f32 %v6107, %v6111
    %v6114 = vld [vmem:[%s348] ss:$8 sm:$0x3]
    %v6115 = vld [vmem:[%s350] ss:$8 sm:$0x3]
    %v6116 = vld [vmem:[%s352] ss:$8 sm:$0x3]
    %6117 = vset.pattern.permute.xlu0 3
    %6118 = vperm.xlu0 %6117, %v6106
    %v6119 = vpop.permute.xlu0 %6118
    %vm6120 = vcmp.eq.s32.totalorder %v6119, 1
    %v6122 = vperm.slane %v6116, 0
    %v6123 = vperm.slane %v6116, 1
    %v6127 = vperm.slane %v6115, 0
    %v6128 = vperm.slane %v6115, 1
    %v6131 = vsel %vm6120, %v6122, %v6127
    %v6132 = vsel %vm6120, %v6123, %v6128
    %6133 = vset.pattern.permute.xlu0 2
    %6134 = vperm.xlu0 %6133, %v6106
    %v6135 = vpop.permute.xlu0 %6134
    %vm6136 = vcmp.eq.s32.totalorder %v6135, 1
    %v6138 = vperm.slane %v6114, 0
    %v6139 = vperm.slane %v6114, 1
    %v6142 = vsel %vm6136, %v6131, %v6138
    %v6143 = vsel %vm6136, %v6132, %v6139
    %6145 = vrot.lane.b32.xlu0 %v6113, 127
    %v6146 = vpop.permute.xlu0 %6145
    %6148 = vst.msk [vmem:[%s2 + $0x15] sm:$0x1] %vm221, %v6146
    %v6149 = vadd.f32 %v6142, %v6063
    %v6150 = vadd.f32 %v6143, %v6083
    %v6151 = vxor.u32 %v6149, 2147483648
    %v6152 = vxor.u32 %v6150, 2147483648
    %v6153 = vmul.f32 %v6151, 1.442695
    %v6154 = vpow.pop %v6153
    %v6155 = vmul.f32 %v6152, 1.442695
    %v6156 = vpow.pop %v6155
    %v6157 = vadd.f32 %v6154, 1.0
    %v6158 = vadd.f32 %v6156, 1.0
    %v6159 = vrcp.pop %v6157
    %v6160 = vmul.f32 %v6157, %v6159
    %v6161 = vsub.f32 1.0, %v6160
    %v6162 = vmul.f32 %v6159, %v6161
    %v6163 = vadd.f32 %v6159, %v6162
    %vm6164 = vweird.f32 %v6157
    %vm6165 = vweird.f32 %v6159
    %vm6166 = vmor %vm6164, %vm6165
    %v6167 = vsel %vm6166, %v6159, %v6163
    %v6168 = vand.u32 2147483647, %v6157
    %vm6169 = vcmp.eq.f32.partialorder %v6168, 8.507059e+37
    %v6170 = vand.u32 %v6157, 2147483648
    %v6171 = vor.u32 1.1754944e-38, %v6170
    %v6172 = vsel %vm6169, %v6171, %v6167
    %v6173 = vmul.f32 1.0, %v6172
    %v6174 = vrcp.pop %v6158
    %v6175 = vmul.f32 %v6158, %v6174
    %v6176 = vsub.f32 1.0, %v6175
    %v6177 = vmul.f32 %v6174, %v6176
    %v6178 = vadd.f32 %v6174, %v6177
    %vm6179 = vweird.f32 %v6158
    %vm6180 = vweird.f32 %v6174
    %vm6181 = vmor %vm6179, %vm6180
    %v6182 = vsel %vm6181, %v6174, %v6178
    %v6183 = vand.u32 2147483647, %v6158
    %vm6184 = vcmp.eq.f32.partialorder %v6183, 8.507059e+37
    %v6185 = vand.u32 %v6158, 2147483648
    %v6186 = vor.u32 1.1754944e-38, %v6185
    %v6187 = vsel %vm6184, %v6186, %v6182
    %v6188 = vmul.f32 1.0, %v6187
    %v6189 = vmul.f32 %v6188, 2.0
    %v6190 = vsub.f32 %v6189, 1.0
    %v6191 = vmul.f32 %v6173, %v6037
    %v6192 = vmul.f32 %v6173, %v6190
    %6194 = vrot.lane.b32.xlu0 %v6192, 64
    %v6195 = vpop.permute.xlu0 %6194
    %v6197 = vadd.f32 %v6191, %v6195
    %v6198 = vtanh.pop %v6197
    %v6199 = vmul.f32 %v6188, %v6198
    %6201 = vrot.lane.b32.xlu0 %v6199, 64
    %v6202 = vpop.permute.xlu0 %6201
    %v6203 = vsel %vm111, %v6202, 0
    %6205 = vmatpush.msra.mxu0 0.0
    %6206 = vmatpush.msra.mxu0 0.0
    %6207 = vmatpush.msra.mxu0 0.0
    %6208 = vmatpush.msra.mxu0 0.0
    %6209 = vmatpush.msra.mxu0 0.0
    %6210 = vmatpush.msra.mxu0 0.0
    %6211 = vmatpush.msra.mxu0 0.0
    %6212 = vmatpush.msra.mxu0 0.0
    %6213 = vmatpush.msra.mxu0 %v56
    %6214 = vmatpush.msra.mxu0 %v53
    %6215 = vmatpush.msra.mxu0 %v50
    %6216 = vmatpush.msra.mxu0 %v47
    %6217 = vmatpush.msra.mxu0 %v44
    %6218 = vmatpush.msra.mxu0 %v41
    %6219 = vmatpush.msra.mxu0 %v38
    %6220 = vmatpush.msra.mxu0 %v35
    %6221 = vmatmul.f32.gmra.mxu0 %v6203
    %v6222 = vpop.f32.mrf.mxu0
    %v6223 = vadd.f32 %v105, %v6222
    %6224 = vdwg.mxu0
    %6225 = vmatpush.msra.mxu0 0.0
    %6226 = vmatpush.msra.mxu0 0.0
    %6227 = vmatpush.msra.mxu0 0.0
    %6228 = vmatpush.msra.mxu0 0.0
    %6229 = vmatpush.msra.mxu0 0.0
    %6230 = vmatpush.msra.mxu0 0.0
    %6231 = vmatpush.msra.mxu0 0.0
    %6232 = vmatpush.msra.mxu0 0.0
    %6233 = vmatpush.msra.mxu0 %v57
    %6234 = vmatpush.msra.mxu0 %v54
    %6235 = vmatpush.msra.mxu0 %v51
    %6236 = vmatpush.msra.mxu0 %v48
    %6237 = vmatpush.msra.mxu0 %v45
    %6238 = vmatpush.msra.mxu0 %v42
    %6239 = vmatpush.msra.mxu0 %v39
    %6240 = vmatpush.msra.mxu0 %v36
    %6241 = vmatmul.f32.gmra.mxu0 %v6203
    %v6242 = vpop.f32.mrf.mxu0
    %v6243 = vadd.f32 %v106, %v6242
    %6244 = vdwg.mxu0
    %6245 = vmatpush.msra.mxu0 0.0
    %6246 = vmatpush.msra.mxu0 0.0
    %6247 = vmatpush.msra.mxu0 0.0
    %6248 = vmatpush.msra.mxu0 0.0
    %6249 = vmatpush.msra.mxu0 0.0
    %6250 = vmatpush.msra.mxu0 0.0
    %6251 = vmatpush.msra.mxu0 0.0
    %6252 = vmatpush.msra.mxu0 0.0
    %6253 = vmatpush.msra.mxu0 %v58
    %6254 = vmatpush.msra.mxu0 %v55
    %6255 = vmatpush.msra.mxu0 %v52
    %6256 = vmatpush.msra.mxu0 %v49
    %6257 = vmatpush.msra.mxu0 %v46
    %6258 = vmatpush.msra.mxu0 %v43
    %6259 = vmatpush.msra.mxu0 %v40
    %6260 = vmatpush.msra.mxu0 %v37
    %6261 = vmatmul.f32.gmra.mxu0 %v6203
    %v6262 = vpop.f32.mrf.mxu0
    %v6263 = vadd.f32 %v107, %v6262
    %6264 = vdwg.mxu0
    %vm6265 = vcmp.gt.f32.partialorder %v6263, 0.0
    %v6266 = vsel %vm6265, 1, 0
    %v6267 = vcvt.s32.f32 %v6266
    %6269 = vset.pattern.permute.xlu0 4
    %6270 = vperm.xlu0 %6269, %v6267
    %v6271 = vpop.permute.xlu0 %6270
    %v6273 = vmul.f32 %v6267, %v6271
    %v6274 = vld [vmem:[%s511] ss:$8 sm:$0x3]
    %v6275 = vld [vmem:[%s513] ss:$8 sm:$0x3]
    %v6276 = vld [vmem:[%s515] ss:$8 sm:$0x3]
    %6277 = vset.pattern.permute.xlu0 5
    %6278 = vperm.xlu0 %6277, %v6266
    %v6279 = vpop.permute.xlu0 %6278
    %vm6280 = vcmp.eq.s32.totalorder %v6279, 1
    %v6282 = vperm.slane %v6276, 0
    %v6283 = vperm.slane %v6276, 1
    %v6287 = vperm.slane %v6275, 0
    %v6288 = vperm.slane %v6275, 1
    %v6291 = vsel %vm6280, %v6282, %v6287
    %v6292 = vsel %vm6280, %v6283, %v6288
    %6293 = vset.pattern.permute.xlu0 4
    %6294 = vperm.xlu0 %6293, %v6266
    %v6295 = vpop.permute.xlu0 %6294
    %vm6296 = vcmp.eq.s32.totalorder %v6295, 1
    %v6298 = vperm.slane %v6274, 0
    %v6299 = vperm.slane %v6274, 1
    %v6302 = vsel %vm6296, %v6291, %v6298
    %v6303 = vsel %vm6296, %v6292, %v6299
    %6305 = vrot.lane.b32.xlu0 %v6273, 125
    %v6306 = vpop.permute.xlu0 %6305
    %6308 = vst.msk [vmem:[%s2 + $0x29] sm:$0x1] %vm221, %v6306
    %v6309 = vadd.f32 %v6302, %v6223
    %v6310 = vadd.f32 %v6303, %v6243
    %v6311 = vxor.u32 %v6309, 2147483648
    %v6312 = vxor.u32 %v6310, 2147483648
    %v6313 = vmul.f32 %v6311, 1.442695
    %v6314 = vpow.pop %v6313
    %v6315 = vmul.f32 %v6312, 1.442695
    %v6316 = vpow.pop %v6315
    %v6317 = vadd.f32 %v6314, 1.0
    %v6318 = vadd.f32 %v6316, 1.0
    %v6319 = vrcp.pop %v6317
    %v6320 = vmul.f32 %v6317, %v6319
    %v6321 = vsub.f32 1.0, %v6320
    %v6322 = vmul.f32 %v6319, %v6321
    %v6323 = vadd.f32 %v6319, %v6322
    %vm6324 = vweird.f32 %v6317
    %vm6325 = vweird.f32 %v6319
    %vm6326 = vmor %vm6324, %vm6325
    %v6327 = vsel %vm6326, %v6319, %v6323
    %v6328 = vand.u32 2147483647, %v6317
    %vm6329 = vcmp.eq.f32.partialorder %v6328, 8.507059e+37
    %v6330 = vand.u32 %v6317, 2147483648
    %v6331 = vor.u32 1.1754944e-38, %v6330
    %v6332 = vsel %vm6329, %v6331, %v6327
    %v6333 = vmul.f32 1.0, %v6332
    %v6334 = vrcp.pop %v6318
    %v6335 = vmul.f32 %v6318, %v6334
    %v6336 = vsub.f32 1.0, %v6335
    %v6337 = vmul.f32 %v6334, %v6336
    %v6338 = vadd.f32 %v6334, %v6337
    %vm6339 = vweird.f32 %v6318
    %vm6340 = vweird.f32 %v6334
    %vm6341 = vmor %vm6339, %vm6340
    %v6342 = vsel %vm6341, %v6334, %v6338
    %v6343 = vand.u32 2147483647, %v6318
    %vm6344 = vcmp.eq.f32.partialorder %v6343, 8.507059e+37
    %v6345 = vand.u32 %v6318, 2147483648
    %v6346 = vor.u32 1.1754944e-38, %v6345
    %v6347 = vsel %vm6344, %v6346, %v6342
    %v6348 = vmul.f32 1.0, %v6347
    %v6349 = vmul.f32 %v6348, 2.0
    %v6350 = vsub.f32 %v6349, 1.0
    %v6351 = vmul.f32 %v6333, %v6197
    %v6352 = vmul.f32 %v6333, %v6350
    %6354 = vrot.lane.b32.xlu0 %v6352, 64
    %v6355 = vpop.permute.xlu0 %6354
    %v6357 = vadd.f32 %v6351, %v6355
    %v6358 = vtanh.pop %v6357
    %v6359 = vmul.f32 %v6348, %v6358
    %6361 = vrot.lane.b32.xlu0 %v6359, 64
    %v6362 = vpop.permute.xlu0 %6361
    %v6363 = vsel %vm111, %v6362, 0
    %6365 = vmatpush.msra.mxu0 0.0
    %6366 = vmatpush.msra.mxu0 0.0
    %6367 = vmatpush.msra.mxu0 0.0
    %6368 = vmatpush.msra.mxu0 0.0
    %6369 = vmatpush.msra.mxu0 0.0
    %6370 = vmatpush.msra.mxu0 0.0
    %6371 = vmatpush.msra.mxu0 0.0
    %6372 = vmatpush.msra.mxu0 0.0
    %6373 = vmatpush.msra.mxu0 %v56
    %6374 = vmatpush.msra.mxu0 %v53
    %6375 = vmatpush.msra.mxu0 %v50
    %6376 = vmatpush.msra.mxu0 %v47
    %6377 = vmatpush.msra.mxu0 %v44
    %6378 = vmatpush.msra.mxu0 %v41
    %6379 = vmatpush.msra.mxu0 %v38
    %6380 = vmatpush.msra.mxu0 %v35
    %6381 = vmatmul.f32.gmra.mxu0 %v6363
    %v6382 = vpop.f32.mrf.mxu0
    %v6383 = vadd.f32 %v105, %v6382
    %6384 = vdwg.mxu0
    %6385 = vmatpush.msra.mxu0 0.0
    %6386 = vmatpush.msra.mxu0 0.0
    %6387 = vmatpush.msra.mxu0 0.0
    %6388 = vmatpush.msra.mxu0 0.0
    %6389 = vmatpush.msra.mxu0 0.0
    %6390 = vmatpush.msra.mxu0 0.0
    %6391 = vmatpush.msra.mxu0 0.0
    %6392 = vmatpush.msra.mxu0 0.0
    %6393 = vmatpush.msra.mxu0 %v57
    %6394 = vmatpush.msra.mxu0 %v54
    %6395 = vmatpush.msra.mxu0 %v51
    %6396 = vmatpush.msra.mxu0 %v48
    %6397 = vmatpush.msra.mxu0 %v45
    %6398 = vmatpush.msra.mxu0 %v42
    %6399 = vmatpush.msra.mxu0 %v39
    %6400 = vmatpush.msra.mxu0 %v36
    %6401 = vmatmul.f32.gmra.mxu0 %v6363
    %v6402 = vpop.f32.mrf.mxu0
    %v6403 = vadd.f32 %v106, %v6402
    %6404 = vdwg.mxu0
    %6405 = vmatpush.msra.mxu0 0.0
    %6406 = vmatpush.msra.mxu0 0.0
    %6407 = vmatpush.msra.mxu0 0.0
    %6408 = vmatpush.msra.mxu0 0.0
    %6409 = vmatpush.msra.mxu0 0.0
    %6410 = vmatpush.msra.mxu0 0.0
    %6411 = vmatpush.msra.mxu0 0.0
    %6412 = vmatpush.msra.mxu0 0.0
    %6413 = vmatpush.msra.mxu0 %v58
    %6414 = vmatpush.msra.mxu0 %v55
    %6415 = vmatpush.msra.mxu0 %v52
    %6416 = vmatpush.msra.mxu0 %v49
    %6417 = vmatpush.msra.mxu0 %v46
    %6418 = vmatpush.msra.mxu0 %v43
    %6419 = vmatpush.msra.mxu0 %v40
    %6420 = vmatpush.msra.mxu0 %v37
    %6421 = vmatmul.f32.gmra.mxu0 %v6363
    %v6422 = vpop.f32.mrf.mxu0
    %v6423 = vadd.f32 %v107, %v6422
    %6424 = vdwg.mxu0
    %vm6425 = vcmp.gt.f32.partialorder %v6423, 0.0
    %v6426 = vsel %vm6425, 1, 0
    %v6427 = vcvt.s32.f32 %v6426
    %6429 = vset.pattern.permute.xlu0 2
    %6430 = vperm.xlu0 %6429, %v6427
    %v6431 = vpop.permute.xlu0 %6430
    %v6433 = vmul.f32 %v6427, %v6431
    %v6434 = vld [vmem:[%s348] ss:$8 sm:$0x3]
    %v6435 = vld [vmem:[%s350] ss:$8 sm:$0x3]
    %v6436 = vld [vmem:[%s352] ss:$8 sm:$0x3]
    %6437 = vset.pattern.permute.xlu0 3
    %6438 = vperm.xlu0 %6437, %v6426
    %v6439 = vpop.permute.xlu0 %6438
    %vm6440 = vcmp.eq.s32.totalorder %v6439, 1
    %v6442 = vperm.slane %v6436, 0
    %v6443 = vperm.slane %v6436, 1
    %v6447 = vperm.slane %v6435, 0
    %v6448 = vperm.slane %v6435, 1
    %v6451 = vsel %vm6440, %v6442, %v6447
    %v6452 = vsel %vm6440, %v6443, %v6448
    %6453 = vset.pattern.permute.xlu0 2
    %6454 = vperm.xlu0 %6453, %v6426
    %v6455 = vpop.permute.xlu0 %6454
    %vm6456 = vcmp.eq.s32.totalorder %v6455, 1
    %v6458 = vperm.slane %v6434, 0
    %v6459 = vperm.slane %v6434, 1
    %v6462 = vsel %vm6456, %v6451, %v6458
    %v6463 = vsel %vm6456, %v6452, %v6459
    %6465 = vrot.lane.b32.xlu0 %v6433, 127
    %v6466 = vpop.permute.xlu0 %6465
    %6468 = vst.msk [vmem:[%s2 + $0x16] sm:$0x1] %vm221, %v6466
    %v6469 = vadd.f32 %v6462, %v6383
    %v6470 = vadd.f32 %v6463, %v6403
    %v6471 = vxor.u32 %v6469, 2147483648
    %v6472 = vxor.u32 %v6470, 2147483648
    %v6473 = vmul.f32 %v6471, 1.442695
    %v6474 = vpow.pop %v6473
    %v6475 = vmul.f32 %v6472, 1.442695
    %v6476 = vpow.pop %v6475
    %v6477 = vadd.f32 %v6474, 1.0
    %v6478 = vadd.f32 %v6476, 1.0
    %v6479 = vrcp.pop %v6477
    %v6480 = vmul.f32 %v6477, %v6479
    %v6481 = vsub.f32 1.0, %v6480
    %v6482 = vmul.f32 %v6479, %v6481
    %v6483 = vadd.f32 %v6479, %v6482
    %vm6484 = vweird.f32 %v6477
    %vm6485 = vweird.f32 %v6479
    %vm6486 = vmor %vm6484, %vm6485
    %v6487 = vsel %vm6486, %v6479, %v6483
    %v6488 = vand.u32 2147483647, %v6477
    %vm6489 = vcmp.eq.f32.partialorder %v6488, 8.507059e+37
    %v6490 = vand.u32 %v6477, 2147483648
    %v6491 = vor.u32 1.1754944e-38, %v6490
    %v6492 = vsel %vm6489, %v6491, %v6487
    %v6493 = vmul.f32 1.0, %v6492
    %v6494 = vrcp.pop %v6478
    %v6495 = vmul.f32 %v6478, %v6494
    %v6496 = vsub.f32 1.0, %v6495
    %v6497 = vmul.f32 %v6494, %v6496
    %v6498 = vadd.f32 %v6494, %v6497
    %vm6499 = vweird.f32 %v6478
    %vm6500 = vweird.f32 %v6494
    %vm6501 = vmor %vm6499, %vm6500
    %v6502 = vsel %vm6501, %v6494, %v6498
    %v6503 = vand.u32 2147483647, %v6478
    %vm6504 = vcmp.eq.f32.partialorder %v6503, 8.507059e+37
    %v6505 = vand.u32 %v6478, 2147483648
    %v6506 = vor.u32 1.1754944e-38, %v6505
    %v6507 = vsel %vm6504, %v6506, %v6502
    %v6508 = vmul.f32 1.0, %v6507
    %v6509 = vmul.f32 %v6508, 2.0
    %v6510 = vsub.f32 %v6509, 1.0
    %v6511 = vmul.f32 %v6493, %v6357
    %v6512 = vmul.f32 %v6493, %v6510
    %6514 = vrot.lane.b32.xlu0 %v6512, 64
    %v6515 = vpop.permute.xlu0 %6514
    %v6517 = vadd.f32 %v6511, %v6515
    %v6518 = vtanh.pop %v6517
    %v6519 = vmul.f32 %v6508, %v6518
    %6521 = vrot.lane.b32.xlu0 %v6519, 64
    %v6522 = vpop.permute.xlu0 %6521
    %v6523 = vsel %vm111, %v6522, 0
    %6525 = vmatpush.msra.mxu0 0.0
    %6526 = vmatpush.msra.mxu0 0.0
    %6527 = vmatpush.msra.mxu0 0.0
    %6528 = vmatpush.msra.mxu0 0.0
    %6529 = vmatpush.msra.mxu0 0.0
    %6530 = vmatpush.msra.mxu0 0.0
    %6531 = vmatpush.msra.mxu0 0.0
    %6532 = vmatpush.msra.mxu0 0.0
    %6533 = vmatpush.msra.mxu0 %v56
    %6534 = vmatpush.msra.mxu0 %v53
    %6535 = vmatpush.msra.mxu0 %v50
    %6536 = vmatpush.msra.mxu0 %v47
    %6537 = vmatpush.msra.mxu0 %v44
    %6538 = vmatpush.msra.mxu0 %v41
    %6539 = vmatpush.msra.mxu0 %v38
    %6540 = vmatpush.msra.mxu0 %v35
    %6541 = vmatmul.f32.gmra.mxu0 %v6523
    %v6542 = vpop.f32.mrf.mxu0
    %v6543 = vadd.f32 %v105, %v6542
    %6544 = vdwg.mxu0
    %6545 = vmatpush.msra.mxu0 0.0
    %6546 = vmatpush.msra.mxu0 0.0
    %6547 = vmatpush.msra.mxu0 0.0
    %6548 = vmatpush.msra.mxu0 0.0
    %6549 = vmatpush.msra.mxu0 0.0
    %6550 = vmatpush.msra.mxu0 0.0
    %6551 = vmatpush.msra.mxu0 0.0
    %6552 = vmatpush.msra.mxu0 0.0
    %6553 = vmatpush.msra.mxu0 %v57
    %6554 = vmatpush.msra.mxu0 %v54
    %6555 = vmatpush.msra.mxu0 %v51
    %6556 = vmatpush.msra.mxu0 %v48
    %6557 = vmatpush.msra.mxu0 %v45
    %6558 = vmatpush.msra.mxu0 %v42
    %6559 = vmatpush.msra.mxu0 %v39
    %6560 = vmatpush.msra.mxu0 %v36
    %6561 = vmatmul.f32.gmra.mxu0 %v6523
    %v6562 = vpop.f32.mrf.mxu0
    %v6563 = vadd.f32 %v106, %v6562
    %6564 = vdwg.mxu0
    %6565 = vmatpush.msra.mxu0 0.0
    %6566 = vmatpush.msra.mxu0 0.0
    %6567 = vmatpush.msra.mxu0 0.0
    %6568 = vmatpush.msra.mxu0 0.0
    %6569 = vmatpush.msra.mxu0 0.0
    %6570 = vmatpush.msra.mxu0 0.0
    %6571 = vmatpush.msra.mxu0 0.0
    %6572 = vmatpush.msra.mxu0 0.0
    %6573 = vmatpush.msra.mxu0 %v58
    %6574 = vmatpush.msra.mxu0 %v55
    %6575 = vmatpush.msra.mxu0 %v52
    %6576 = vmatpush.msra.mxu0 %v49
    %6577 = vmatpush.msra.mxu0 %v46
    %6578 = vmatpush.msra.mxu0 %v43
    %6579 = vmatpush.msra.mxu0 %v40
    %6580 = vmatpush.msra.mxu0 %v37
    %6581 = vmatmul.f32.gmra.mxu0 %v6523
    %v6582 = vpop.f32.mrf.mxu0
    %v6583 = vadd.f32 %v107, %v6582
    %6584 = vdwg.mxu0
    %vm6585 = vcmp.gt.f32.partialorder %v6583, 0.0
    %v6586 = vsel %vm6585, 1, 0
    %v6587 = vcvt.s32.f32 %v6586
    %6589 = vset.pattern.permute.xlu0 4
    %6590 = vperm.xlu0 %6589, %v6587
    %v6591 = vpop.permute.xlu0 %6590
    %v6593 = vmul.f32 %v6587, %v6591
    %v6594 = vld [vmem:[%s511] ss:$8 sm:$0x3]
    %v6595 = vld [vmem:[%s513] ss:$8 sm:$0x3]
    %v6596 = vld [vmem:[%s515] ss:$8 sm:$0x3]
    %6597 = vset.pattern.permute.xlu0 5
    %6598 = vperm.xlu0 %6597, %v6586
    %v6599 = vpop.permute.xlu0 %6598
    %vm6600 = vcmp.eq.s32.totalorder %v6599, 1
    %v6602 = vperm.slane %v6596, 0
    %v6603 = vperm.slane %v6596, 1
    %v6607 = vperm.slane %v6595, 0
    %v6608 = vperm.slane %v6595, 1
    %v6611 = vsel %vm6600, %v6602, %v6607
    %v6612 = vsel %vm6600, %v6603, %v6608
    %6613 = vset.pattern.permute.xlu0 4
    %6614 = vperm.xlu0 %6613, %v6586
    %v6615 = vpop.permute.xlu0 %6614
    %vm6616 = vcmp.eq.s32.totalorder %v6615, 1
    %v6618 = vperm.slane %v6594, 0
    %v6619 = vperm.slane %v6594, 1
    %v6622 = vsel %vm6616, %v6611, %v6618
    %v6623 = vsel %vm6616, %v6612, %v6619
    %6625 = vrot.lane.b32.xlu0 %v6593, 125
    %v6626 = vpop.permute.xlu0 %6625
    %6628 = vst.msk [vmem:[%s2 + $0x2a] sm:$0x1] %vm221, %v6626
    %v6629 = vadd.f32 %v6622, %v6543
    %v6630 = vadd.f32 %v6623, %v6563
    %v6631 = vxor.u32 %v6629, 2147483648
    %v6632 = vxor.u32 %v6630, 2147483648
    %v6633 = vmul.f32 %v6631, 1.442695
    %v6634 = vpow.pop %v6633
    %v6635 = vmul.f32 %v6632, 1.442695
    %v6636 = vpow.pop %v6635
    %v6637 = vadd.f32 %v6634, 1.0
    %v6638 = vadd.f32 %v6636, 1.0
    %v6639 = vrcp.pop %v6637
    %v6640 = vmul.f32 %v6637, %v6639
    %v6641 = vsub.f32 1.0, %v6640
    %v6642 = vmul.f32 %v6639, %v6641
    %v6643 = vadd.f32 %v6639, %v6642
    %vm6644 = vweird.f32 %v6637
    %vm6645 = vweird.f32 %v6639
    %vm6646 = vmor %vm6644, %vm6645
    %v6647 = vsel %vm6646, %v6639, %v6643
    %v6648 = vand.u32 2147483647, %v6637
    %vm6649 = vcmp.eq.f32.partialorder %v6648, 8.507059e+37
    %v6650 = vand.u32 %v6637, 2147483648
    %v6651 = vor.u32 1.1754944e-38, %v6650
    %v6652 = vsel %vm6649, %v6651, %v6647
    %v6653 = vmul.f32 1.0, %v6652
    %v6654 = vrcp.pop %v6638
    %v6655 = vmul.f32 %v6638, %v6654
    %v6656 = vsub.f32 1.0, %v6655
    %v6657 = vmul.f32 %v6654, %v6656
    %v6658 = vadd.f32 %v6654, %v6657
    %vm6659 = vweird.f32 %v6638
    %vm6660 = vweird.f32 %v6654
    %vm6661 = vmor %vm6659, %vm6660
    %v6662 = vsel %vm6661, %v6654, %v6658
    %v6663 = vand.u32 2147483647, %v6638
    %vm6664 = vcmp.eq.f32.partialorder %v6663, 8.507059e+37
    %v6665 = vand.u32 %v6638, 2147483648
    %v6666 = vor.u32 1.1754944e-38, %v6665
    %v6667 = vsel %vm6664, %v6666, %v6662
    %v6668 = vmul.f32 1.0, %v6667
    %v6669 = vmul.f32 %v6668, 2.0
    %v6670 = vsub.f32 %v6669, 1.0
    %v6671 = vmul.f32 %v6653, %v6517
    %v6672 = vmul.f32 %v6653, %v6670
    %6674 = vrot.lane.b32.xlu0 %v6672, 64
    %v6675 = vpop.permute.xlu0 %6674
    %v6677 = vadd.f32 %v6671, %v6675
    %v6678 = vtanh.pop %v6677
    %v6679 = vmul.f32 %v6668, %v6678
    %6681 = vrot.lane.b32.xlu0 %v6679, 64
    %v6682 = vpop.permute.xlu0 %6681
    %v6683 = vsel %vm111, %v6682, 0
    %6685 = vmatpush.msra.mxu0 0.0
    %6686 = vmatpush.msra.mxu0 0.0
    %6687 = vmatpush.msra.mxu0 0.0
    %6688 = vmatpush.msra.mxu0 0.0
    %6689 = vmatpush.msra.mxu0 0.0
    %6690 = vmatpush.msra.mxu0 0.0
    %6691 = vmatpush.msra.mxu0 0.0
    %6692 = vmatpush.msra.mxu0 0.0
    %6693 = vmatpush.msra.mxu0 %v56
    %6694 = vmatpush.msra.mxu0 %v53
    %6695 = vmatpush.msra.mxu0 %v50
    %6696 = vmatpush.msra.mxu0 %v47
    %6697 = vmatpush.msra.mxu0 %v44
    %6698 = vmatpush.msra.mxu0 %v41
    %6699 = vmatpush.msra.mxu0 %v38
    %6700 = vmatpush.msra.mxu0 %v35
    %6701 = vmatmul.f32.gmra.mxu0 %v6683
    %v6702 = vpop.f32.mrf.mxu0
    %v6703 = vadd.f32 %v105, %v6702
    %6704 = vdwg.mxu0
    %6705 = vmatpush.msra.mxu0 0.0
    %6706 = vmatpush.msra.mxu0 0.0
    %6707 = vmatpush.msra.mxu0 0.0
    %6708 = vmatpush.msra.mxu0 0.0
    %6709 = vmatpush.msra.mxu0 0.0
    %6710 = vmatpush.msra.mxu0 0.0
    %6711 = vmatpush.msra.mxu0 0.0
    %6712 = vmatpush.msra.mxu0 0.0
    %6713 = vmatpush.msra.mxu0 %v57
    %6714 = vmatpush.msra.mxu0 %v54
    %6715 = vmatpush.msra.mxu0 %v51
    %6716 = vmatpush.msra.mxu0 %v48
    %6717 = vmatpush.msra.mxu0 %v45
    %6718 = vmatpush.msra.mxu0 %v42
    %6719 = vmatpush.msra.mxu0 %v39
    %6720 = vmatpush.msra.mxu0 %v36
    %6721 = vmatmul.f32.gmra.mxu0 %v6683
    %v6722 = vpop.f32.mrf.mxu0
    %v6723 = vadd.f32 %v106, %v6722
    %6724 = vdwg.mxu0
    %6725 = vmatpush.msra.mxu0 0.0
    %6726 = vmatpush.msra.mxu0 0.0
    %6727 = vmatpush.msra.mxu0 0.0
    %6728 = vmatpush.msra.mxu0 0.0
    %6729 = vmatpush.msra.mxu0 0.0
    %6730 = vmatpush.msra.mxu0 0.0
    %6731 = vmatpush.msra.mxu0 0.0
    %6732 = vmatpush.msra.mxu0 0.0
    %6733 = vmatpush.msra.mxu0 %v58
    %6734 = vmatpush.msra.mxu0 %v55
    %6735 = vmatpush.msra.mxu0 %v52
    %6736 = vmatpush.msra.mxu0 %v49
    %6737 = vmatpush.msra.mxu0 %v46
    %6738 = vmatpush.msra.mxu0 %v43
    %6739 = vmatpush.msra.mxu0 %v40
    %6740 = vmatpush.msra.mxu0 %v37
    %6741 = vmatmul.f32.gmra.mxu0 %v6683
    %v6742 = vpop.f32.mrf.mxu0
    %v6743 = vadd.f32 %v107, %v6742
    %6744 = vdwg.mxu0
    %vm6745 = vcmp.gt.f32.partialorder %v6743, 0.0
    %v6746 = vsel %vm6745, 1, 0
    %v6747 = vcvt.s32.f32 %v6746
    %6749 = vset.pattern.permute.xlu0 2
    %6750 = vperm.xlu0 %6749, %v6747
    %v6751 = vpop.permute.xlu0 %6750
    %v6753 = vmul.f32 %v6747, %v6751
    %v6754 = vld [vmem:[%s348] ss:$8 sm:$0x3]
    %v6755 = vld [vmem:[%s350] ss:$8 sm:$0x3]
    %v6756 = vld [vmem:[%s352] ss:$8 sm:$0x3]
    %6757 = vset.pattern.permute.xlu0 3
    %6758 = vperm.xlu0 %6757, %v6746
    %v6759 = vpop.permute.xlu0 %6758
    %vm6760 = vcmp.eq.s32.totalorder %v6759, 1
    %v6762 = vperm.slane %v6756, 0
    %v6763 = vperm.slane %v6756, 1
    %v6767 = vperm.slane %v6755, 0
    %v6768 = vperm.slane %v6755, 1
    %v6771 = vsel %vm6760, %v6762, %v6767
    %v6772 = vsel %vm6760, %v6763, %v6768
    %6773 = vset.pattern.permute.xlu0 2
    %6774 = vperm.xlu0 %6773, %v6746
    %v6775 = vpop.permute.xlu0 %6774
    %vm6776 = vcmp.eq.s32.totalorder %v6775, 1
    %v6778 = vperm.slane %v6754, 0
    %v6779 = vperm.slane %v6754, 1
    %v6782 = vsel %vm6776, %v6771, %v6778
    %v6783 = vsel %vm6776, %v6772, %v6779
    %6785 = vrot.lane.b32.xlu0 %v6753, 127
    %v6786 = vpop.permute.xlu0 %6785
    %6788 = vst.msk [vmem:[%s2 + $0x17] sm:$0x1] %vm221, %v6786
    %v6789 = vadd.f32 %v6782, %v6703
    %v6790 = vadd.f32 %v6783, %v6723
    %v6791 = vxor.u32 %v6789, 2147483648
    %v6792 = vxor.u32 %v6790, 2147483648
    %v6793 = vmul.f32 %v6791, 1.442695
    %v6794 = vpow.pop %v6793
    %v6795 = vmul.f32 %v6792, 1.442695
    %v6796 = vpow.pop %v6795
    %v6797 = vadd.f32 %v6794, 1.0
    %v6798 = vadd.f32 %v6796, 1.0
    %v6799 = vrcp.pop %v6797
    %v6800 = vmul.f32 %v6797, %v6799
    %v6801 = vsub.f32 1.0, %v6800
    %v6802 = vmul.f32 %v6799, %v6801
    %v6803 = vadd.f32 %v6799, %v6802
    %vm6804 = vweird.f32 %v6797
    %vm6805 = vweird.f32 %v6799
    %vm6806 = vmor %vm6804, %vm6805
    %v6807 = vsel %vm6806, %v6799, %v6803
    %v6808 = vand.u32 2147483647, %v6797
    %vm6809 = vcmp.eq.f32.partialorder %v6808, 8.507059e+37
    %v6810 = vand.u32 %v6797, 2147483648
    %v6811 = vor.u32 1.1754944e-38, %v6810
    %v6812 = vsel %vm6809, %v6811, %v6807
    %v6813 = vmul.f32 1.0, %v6812
    %v6814 = vrcp.pop %v6798
    %v6815 = vmul.f32 %v6798, %v6814
    %v6816 = vsub.f32 1.0, %v6815
    %v6817 = vmul.f32 %v6814, %v6816
    %v6818 = vadd.f32 %v6814, %v6817
    %vm6819 = vweird.f32 %v6798
    %vm6820 = vweird.f32 %v6814
    %vm6821 = vmor %vm6819, %vm6820
    %v6822 = vsel %vm6821, %v6814, %v6818
    %v6823 = vand.u32 2147483647, %v6798
    %vm6824 = vcmp.eq.f32.partialorder %v6823, 8.507059e+37
    %v6825 = vand.u32 %v6798, 2147483648
    %v6826 = vor.u32 1.1754944e-38, %v6825
    %v6827 = vsel %vm6824, %v6826, %v6822
    %v6828 = vmul.f32 1.0, %v6827
    %v6829 = vmul.f32 %v6828, 2.0
    %v6830 = vsub.f32 %v6829, 1.0
    %v6831 = vmul.f32 %v6813, %v6677
    %v6832 = vmul.f32 %v6813, %v6830
    %6834 = vrot.lane.b32.xlu0 %v6832, 64
    %v6835 = vpop.permute.xlu0 %6834
    %v6837 = vadd.f32 %v6831, %v6835
    %v6838 = vtanh.pop %v6837
    %v6839 = vmul.f32 %v6828, %v6838
    %6841 = vrot.lane.b32.xlu0 %v6839, 64
    %v6842 = vpop.permute.xlu0 %6841
    %v6843 = vsel %vm111, %v6842, 0
    %6845 = vmatpush.msra.mxu0 0.0
    %6846 = vmatpush.msra.mxu0 0.0
    %6847 = vmatpush.msra.mxu0 0.0
    %6848 = vmatpush.msra.mxu0 0.0
    %6849 = vmatpush.msra.mxu0 0.0
    %6850 = vmatpush.msra.mxu0 0.0
    %6851 = vmatpush.msra.mxu0 0.0
    %6852 = vmatpush.msra.mxu0 0.0
    %6853 = vmatpush.msra.mxu0 %v56
    %6854 = vmatpush.msra.mxu0 %v53
    %6855 = vmatpush.msra.mxu0 %v50
    %6856 = vmatpush.msra.mxu0 %v47
    %6857 = vmatpush.msra.mxu0 %v44
    %6858 = vmatpush.msra.mxu0 %v41
    %6859 = vmatpush.msra.mxu0 %v38
    %6860 = vmatpush.msra.mxu0 %v35
    %6861 = vmatmul.f32.gmra.mxu0 %v6843
    %v6862 = vpop.f32.mrf.mxu0
    %v6863 = vadd.f32 %v105, %v6862
    %6864 = vdwg.mxu0
    %6865 = vmatpush.msra.mxu0 0.0
    %6866 = vmatpush.msra.mxu0 0.0
    %6867 = vmatpush.msra.mxu0 0.0
    %6868 = vmatpush.msra.mxu0 0.0
    %6869 = vmatpush.msra.mxu0 0.0
    %6870 = vmatpush.msra.mxu0 0.0
    %6871 = vmatpush.msra.mxu0 0.0
    %6872 = vmatpush.msra.mxu0 0.0
    %6873 = vmatpush.msra.mxu0 %v57
    %6874 = vmatpush.msra.mxu0 %v54
    %6875 = vmatpush.msra.mxu0 %v51
    %6876 = vmatpush.msra.mxu0 %v48
    %6877 = vmatpush.msra.mxu0 %v45
    %6878 = vmatpush.msra.mxu0 %v42
    %6879 = vmatpush.msra.mxu0 %v39
    %6880 = vmatpush.msra.mxu0 %v36
    %6881 = vmatmul.f32.gmra.mxu0 %v6843
    %v6882 = vpop.f32.mrf.mxu0
    %v6883 = vadd.f32 %v106, %v6882
    %6884 = vdwg.mxu0
    %6885 = vmatpush.msra.mxu0 0.0
    %6886 = vmatpush.msra.mxu0 0.0
    %6887 = vmatpush.msra.mxu0 0.0
    %6888 = vmatpush.msra.mxu0 0.0
    %6889 = vmatpush.msra.mxu0 0.0
    %6890 = vmatpush.msra.mxu0 0.0
    %6891 = vmatpush.msra.mxu0 0.0
    %6892 = vmatpush.msra.mxu0 0.0
    %6893 = vmatpush.msra.mxu0 %v58
    %6894 = vmatpush.msra.mxu0 %v55
    %6895 = vmatpush.msra.mxu0 %v52
    %6896 = vmatpush.msra.mxu0 %v49
    %6897 = vmatpush.msra.mxu0 %v46
    %6898 = vmatpush.msra.mxu0 %v43
    %6899 = vmatpush.msra.mxu0 %v40
    %6900 = vmatpush.msra.mxu0 %v37
    %6901 = vmatmul.f32.gmra.mxu0 %v6843
    %v6902 = vpop.f32.mrf.mxu0
    %v6903 = vadd.f32 %v107, %v6902
    %6904 = vdwg.mxu0
    %vm6905 = vcmp.gt.f32.partialorder %v6903, 0.0
    %v6906 = vsel %vm6905, 1, 0
    %v6907 = vcvt.s32.f32 %v6906
    %6909 = vset.pattern.permute.xlu0 4
    %6910 = vperm.xlu0 %6909, %v6907
    %v6911 = vpop.permute.xlu0 %6910
    %v6913 = vmul.f32 %v6907, %v6911
    %v6914 = vld [vmem:[%s511] ss:$8 sm:$0x3]
    %v6915 = vld [vmem:[%s513] ss:$8 sm:$0x3]
    %v6916 = vld [vmem:[%s515] ss:$8 sm:$0x3]
    %6917 = vset.pattern.permute.xlu0 5
    %6918 = vperm.xlu0 %6917, %v6906
    %v6919 = vpop.permute.xlu0 %6918
    %vm6920 = vcmp.eq.s32.totalorder %v6919, 1
    %v6922 = vperm.slane %v6916, 0
    %v6923 = vperm.slane %v6916, 1
    %v6927 = vperm.slane %v6915, 0
    %v6928 = vperm.slane %v6915, 1
    %v6931 = vsel %vm6920, %v6922, %v6927
    %v6932 = vsel %vm6920, %v6923, %v6928
    %6933 = vset.pattern.permute.xlu0 4
    %6934 = vperm.xlu0 %6933, %v6906
    %v6935 = vpop.permute.xlu0 %6934
    %vm6936 = vcmp.eq.s32.totalorder %v6935, 1
    %v6938 = vperm.slane %v6914, 0
    %v6939 = vperm.slane %v6914, 1
    %v6942 = vsel %vm6936, %v6931, %v6938
    %v6943 = vsel %vm6936, %v6932, %v6939
    %6945 = vrot.lane.b32.xlu0 %v6913, 125
    %v6946 = vpop.permute.xlu0 %6945
    %6948 = vst.msk [vmem:[%s2 + $0x2b] sm:$0x1] %vm221, %v6946
    %v6949 = vadd.f32 %v6942, %v6863
    %v6950 = vadd.f32 %v6943, %v6883
    %v6951 = vxor.u32 %v6949, 2147483648
    %v6952 = vxor.u32 %v6950, 2147483648
    %v6953 = vmul.f32 %v6951, 1.442695
    %v6954 = vpow.pop %v6953
    %v6955 = vmul.f32 %v6952, 1.442695
    %v6956 = vpow.pop %v6955
    %v6957 = vadd.f32 %v6954, 1.0
    %v6958 = vadd.f32 %v6956, 1.0
    %v6959 = vrcp.pop %v6957
    %v6960 = vmul.f32 %v6957, %v6959
    %v6961 = vsub.f32 1.0, %v6960
    %v6962 = vmul.f32 %v6959, %v6961
    %v6963 = vadd.f32 %v6959, %v6962
    %vm6964 = vweird.f32 %v6957
    %vm6965 = vweird.f32 %v6959
    %vm6966 = vmor %vm6964, %vm6965
    %v6967 = vsel %vm6966, %v6959, %v6963
    %v6968 = vand.u32 2147483647, %v6957
    %vm6969 = vcmp.eq.f32.partialorder %v6968, 8.507059e+37
    %v6970 = vand.u32 %v6957, 2147483648
    %v6971 = vor.u32 1.1754944e-38, %v6970
    %v6972 = vsel %vm6969, %v6971, %v6967
    %v6973 = vmul.f32 1.0, %v6972
    %v6974 = vrcp.pop %v6958
    %v6975 = vmul.f32 %v6958, %v6974
    %v6976 = vsub.f32 1.0, %v6975
    %v6977 = vmul.f32 %v6974, %v6976
    %v6978 = vadd.f32 %v6974, %v6977
    %vm6979 = vweird.f32 %v6958
    %vm6980 = vweird.f32 %v6974
    %vm6981 = vmor %vm6979, %vm6980
    %v6982 = vsel %vm6981, %v6974, %v6978
    %v6983 = vand.u32 2147483647, %v6958
    %vm6984 = vcmp.eq.f32.partialorder %v6983, 8.507059e+37
    %v6985 = vand.u32 %v6958, 2147483648
    %v6986 = vor.u32 1.1754944e-38, %v6985
    %v6987 = vsel %vm6984, %v6986, %v6982
    %v6988 = vmul.f32 1.0, %v6987
    %v6989 = vmul.f32 %v6988, 2.0
    %v6990 = vsub.f32 %v6989, 1.0
    %v6991 = vmul.f32 %v6973, %v6837
    %v6992 = vmul.f32 %v6973, %v6990
    %6994 = vrot.lane.b32.xlu0 %v6992, 64
    %v6995 = vpop.permute.xlu0 %6994
    %v6997 = vadd.f32 %v6991, %v6995
    %v6998 = vtanh.pop %v6997
    %v6999 = vmul.f32 %v6988, %v6998
    %7001 = vrot.lane.b32.xlu0 %v6999, 64
    %v7002 = vpop.permute.xlu0 %7001
    %v7003 = vsel %vm111, %v7002, 0
    %7005 = vmatpush.msra.mxu0 0.0
    %7006 = vmatpush.msra.mxu0 0.0
    %7007 = vmatpush.msra.mxu0 0.0
    %7008 = vmatpush.msra.mxu0 0.0
    %7009 = vmatpush.msra.mxu0 0.0
    %7010 = vmatpush.msra.mxu0 0.0
    %7011 = vmatpush.msra.mxu0 0.0
    %7012 = vmatpush.msra.mxu0 0.0
    %7013 = vmatpush.msra.mxu0 %v56
    %7014 = vmatpush.msra.mxu0 %v53
    %7015 = vmatpush.msra.mxu0 %v50
    %7016 = vmatpush.msra.mxu0 %v47
    %7017 = vmatpush.msra.mxu0 %v44
    %7018 = vmatpush.msra.mxu0 %v41
    %7019 = vmatpush.msra.mxu0 %v38
    %7020 = vmatpush.msra.mxu0 %v35
    %7021 = vmatmul.f32.gmra.mxu0 %v7003
    %v7022 = vpop.f32.mrf.mxu0
    %v7023 = vadd.f32 %v105, %v7022
    %7024 = vdwg.mxu0
    %7025 = vmatpush.msra.mxu0 0.0
    %7026 = vmatpush.msra.mxu0 0.0
    %7027 = vmatpush.msra.mxu0 0.0
    %7028 = vmatpush.msra.mxu0 0.0
    %7029 = vmatpush.msra.mxu0 0.0
    %7030 = vmatpush.msra.mxu0 0.0
    %7031 = vmatpush.msra.mxu0 0.0
    %7032 = vmatpush.msra.mxu0 0.0
    %7033 = vmatpush.msra.mxu0 %v57
    %7034 = vmatpush.msra.mxu0 %v54
    %7035 = vmatpush.msra.mxu0 %v51
    %7036 = vmatpush.msra.mxu0 %v48
    %7037 = vmatpush.msra.mxu0 %v45
    %7038 = vmatpush.msra.mxu0 %v42
    %7039 = vmatpush.msra.mxu0 %v39
    %7040 = vmatpush.msra.mxu0 %v36
    %7041 = vmatmul.f32.gmra.mxu0 %v7003
    %v7042 = vpop.f32.mrf.mxu0
    %v7043 = vadd.f32 %v106, %v7042
    %7044 = vdwg.mxu0
    %7045 = vmatpush.msra.mxu0 0.0
    %7046 = vmatpush.msra.mxu0 0.0
    %7047 = vmatpush.msra.mxu0 0.0
    %7048 = vmatpush.msra.mxu0 0.0
    %7049 = vmatpush.msra.mxu0 0.0
    %7050 = vmatpush.msra.mxu0 0.0
    %7051 = vmatpush.msra.mxu0 0.0
    %7052 = vmatpush.msra.mxu0 0.0
    %7053 = vmatpush.msra.mxu0 %v58
    %7054 = vmatpush.msra.mxu0 %v55
    %7055 = vmatpush.msra.mxu0 %v52
    %7056 = vmatpush.msra.mxu0 %v49
    %7057 = vmatpush.msra.mxu0 %v46
    %7058 = vmatpush.msra.mxu0 %v43
    %7059 = vmatpush.msra.mxu0 %v40
    %7060 = vmatpush.msra.mxu0 %v37
    %7061 = vmatmul.f32.gmra.mxu0 %v7003
    %v7062 = vpop.f32.mrf.mxu0
    %v7063 = vadd.f32 %v107, %v7062
    %7064 = vdwg.mxu0
    %vm7065 = vcmp.gt.f32.partialorder %v7063, 0.0
    %v7066 = vsel %vm7065, 1, 0
    %v7067 = vcvt.s32.f32 %v7066
    %7069 = vset.pattern.permute.xlu0 2
    %7070 = vperm.xlu0 %7069, %v7067
    %v7071 = vpop.permute.xlu0 %7070
    %v7073 = vmul.f32 %v7067, %v7071
    %v7074 = vld [vmem:[%s348] ss:$8 sm:$0x3]
    %v7075 = vld [vmem:[%s350] ss:$8 sm:$0x3]
    %v7076 = vld [vmem:[%s352] ss:$8 sm:$0x3]
    %7077 = vset.pattern.permute.xlu0 3
    %7078 = vperm.xlu0 %7077, %v7066
    %v7079 = vpop.permute.xlu0 %7078
    %vm7080 = vcmp.eq.s32.totalorder %v7079, 1
    %v7082 = vperm.slane %v7076, 0
    %v7083 = vperm.slane %v7076, 1
    %v7087 = vperm.slane %v7075, 0
    %v7088 = vperm.slane %v7075, 1
    %v7091 = vsel %vm7080, %v7082, %v7087
    %v7092 = vsel %vm7080, %v7083, %v7088
    %7093 = vset.pattern.permute.xlu0 2
    %7094 = vperm.xlu0 %7093, %v7066
    %v7095 = vpop.permute.xlu0 %7094
    %vm7096 = vcmp.eq.s32.totalorder %v7095, 1
    %v7098 = vperm.slane %v7074, 0
    %v7099 = vperm.slane %v7074, 1
    %v7102 = vsel %vm7096, %v7091, %v7098
    %v7103 = vsel %vm7096, %v7092, %v7099
    %7105 = vrot.lane.b32.xlu0 %v7073, 127
    %v7106 = vpop.permute.xlu0 %7105
    %7108 = vst.msk [vmem:[%s2 + $0x18] sm:$0x1] %vm221, %v7106
    %v7109 = vadd.f32 %v7102, %v7023
    %v7110 = vadd.f32 %v7103, %v7043
    %v7111 = vxor.u32 %v7109, 2147483648
    %v7112 = vxor.u32 %v7110, 2147483648
    %v7113 = vmul.f32 %v7111, 1.442695
    %v7114 = vpow.pop %v7113
    %v7115 = vmul.f32 %v7112, 1.442695
    %v7116 = vpow.pop %v7115
    %v7117 = vadd.f32 %v7114, 1.0
    %v7118 = vadd.f32 %v7116, 1.0
    %v7119 = vrcp.pop %v7117
    %v7120 = vmul.f32 %v7117, %v7119
    %v7121 = vsub.f32 1.0, %v7120
    %v7122 = vmul.f32 %v7119, %v7121
    %v7123 = vadd.f32 %v7119, %v7122
    %vm7124 = vweird.f32 %v7117
    %vm7125 = vweird.f32 %v7119
    %vm7126 = vmor %vm7124, %vm7125
    %v7127 = vsel %vm7126, %v7119, %v7123
    %v7128 = vand.u32 2147483647, %v7117
    %vm7129 = vcmp.eq.f32.partialorder %v7128, 8.507059e+37
    %v7130 = vand.u32 %v7117, 2147483648
    %v7131 = vor.u32 1.1754944e-38, %v7130
    %v7132 = vsel %vm7129, %v7131, %v7127
    %v7133 = vmul.f32 1.0, %v7132
    %v7134 = vrcp.pop %v7118
    %v7135 = vmul.f32 %v7118, %v7134
    %v7136 = vsub.f32 1.0, %v7135
    %v7137 = vmul.f32 %v7134, %v7136
    %v7138 = vadd.f32 %v7134, %v7137
    %vm7139 = vweird.f32 %v7118
    %vm7140 = vweird.f32 %v7134
    %vm7141 = vmor %vm7139, %vm7140
    %v7142 = vsel %vm7141, %v7134, %v7138
    %v7143 = vand.u32 2147483647, %v7118
    %vm7144 = vcmp.eq.f32.partialorder %v7143, 8.507059e+37
    %v7145 = vand.u32 %v7118, 2147483648
    %v7146 = vor.u32 1.1754944e-38, %v7145
    %v7147 = vsel %vm7144, %v7146, %v7142
    %v7148 = vmul.f32 1.0, %v7147
    %v7149 = vmul.f32 %v7148, 2.0
    %v7150 = vsub.f32 %v7149, 1.0
    %v7151 = vmul.f32 %v7133, %v6997
    %v7152 = vmul.f32 %v7133, %v7150
    %7154 = vrot.lane.b32.xlu0 %v7152, 64
    %v7155 = vpop.permute.xlu0 %7154
    %v7157 = vadd.f32 %v7151, %v7155
    %v7158 = vtanh.pop %v7157
    %v7159 = vmul.f32 %v7148, %v7158
    %7161 = vrot.lane.b32.xlu0 %v7159, 64
    %v7162 = vpop.permute.xlu0 %7161
    %v7163 = vsel %vm111, %v7162, 0
    %7165 = vmatpush.msra.mxu0 0.0
    %7166 = vmatpush.msra.mxu0 0.0
    %7167 = vmatpush.msra.mxu0 0.0
    %7168 = vmatpush.msra.mxu0 0.0
    %7169 = vmatpush.msra.mxu0 0.0
    %7170 = vmatpush.msra.mxu0 0.0
    %7171 = vmatpush.msra.mxu0 0.0
    %7172 = vmatpush.msra.mxu0 0.0
    %7173 = vmatpush.msra.mxu0 %v58
    %7174 = vmatpush.msra.mxu0 %v55
    %7175 = vmatpush.msra.mxu0 %v52
    %7176 = vmatpush.msra.mxu0 %v49
    %7177 = vmatpush.msra.mxu0 %v46
    %7178 = vmatpush.msra.mxu0 %v43
    %7179 = vmatpush.msra.mxu0 %v40
    %7180 = vmatpush.msra.mxu0 %v37
    %7181 = vmatmul.f32.gmra.mxu0 %v7163
    %v7182 = vpop.f32.mrf.mxu0
    %v7183 = vadd.f32 %v107, %v7182
    %7184 = vdwg.mxu0
    %vm7185 = vcmp.gt.f32.partialorder %v7183, 0.0
    %v7186 = vsel %vm7185, 1, 0
    %v7187 = vcvt.s32.f32 %v7186
    %7189 = vset.pattern.permute.xlu0 4
    %7190 = vperm.xlu0 %7189, %v7187
    %v7191 = vpop.permute.xlu0 %7190
    %v7193 = vmul.f32 %v7187, %v7191
    %7195 = vrot.lane.b32.xlu0 %v7193, 125
    %v7196 = vpop.permute.xlu0 %7195
    %7198 = vst.msk [vmem:[%s2 + $0x2c] sm:$0x1] %vm221, %v7196
    // Predicated region
    $region14: #{controller_forward.1} parent=1 // pred_check
      _
    $region15: #{controller_forward.1} parent=1 // pred_check_branch
      %7200 = sbr.rel (0) target = $region17
    $region16: #{controller_forward.1} parent=1 // pred_region
      _
    $region17: #{controller_forward.1} parent=1 // pred_fallthru
      _
    // Predicated region
    $region18: #{controller_forward.1} parent=1 // pred_check
      _
    $region19: #{controller_forward.1} parent=1 // pred_check_branch
      %7202 = sbr.rel (0) target = $region21
    $region20: #{controller_forward.1} parent=1 // pred_region
      _
    $region21: #{controller_forward.1} parent=1 // pred_fallthru
      _
    %7203 = vsyncpa [#allocation3], 1

</llo_original>
